<compile_context>
chip_gen: v7x
topology: tpu7x:2x2x1
jax: 0.10.0
libtpu: 0.0.40
codegen_flags: <defaults>
</compile_context>

<pallas_src>
import functools

import numpy as np
import jax
import jax.numpy as jnp
from jax.experimental import pallas as pl
from jax.experimental.pallas import tpu as pltpu

# Static geometry implied by the module (linear_first_dimension=2048 => 64x64 input).
IN_CH = 3
H0 = W0 = 64
C1, C2, C3 = 8, 16, 32
NUM_CLASSES = 40
FLAT = 8 * 8 * C3                # 2048
# Padded rows per image for each conv layer (zero row above / below the image;
# S1 is rounded up to a multiple of 8 so any per-step batch B keeps the input
# block's second-minor dimension 8-aligned).
S1, S2, S3 = 72, 34, 18


# ---------------------------------------------------------------------------
# Wrapper-side (trace-time) constant construction
# ---------------------------------------------------------------------------
def _toeplitz_conv_weight(w_hwio, width):
    """Lower a 3x3 'same' conv weight (3,3,Cin,Cout) into 3 banded matrices
    T[kh] of shape (width*Cin, width*Cout) so the conv along W (including the
    horizontal zero padding) is one lane-dense matmul per kh tap."""
    _, _, cin, cout = w_hwio.shape
    sel = np.zeros((3, width, width), np.float32)
    for kw in range(3):
        for w in range(width):
            win = w + kw - 1
            if 0 <= win < width:
                sel[kw, win, w] = 1.0
    t = jnp.einsum("kpw,hkio->hpiwo", jnp.asarray(sel), w_hwio)
    return t.reshape(3, width * cin, width * cout)


def _pool_col_selector(width, ch):
    """0/1 matrix (width*ch - ch, (width//2)*ch) that keeps the even-w channel
    groups after the shifted column max (lane-dense)."""
    half = width // 2
    sw = np.zeros((width * ch - ch, half * ch), np.float32)
    for wo in range(half):
        for c in range(ch):
            sw[2 * wo * ch + c, wo * ch + c] = 1.0
    return jnp.asarray(sw)


def _fill_row_selector(bsz, s_in, s_out, h_out):
    """0/1 matrix (bsz*s_out, bsz*s_in - 3) that simultaneously:
      - picks the pooled (even) row-max rows of this layer's conv output,
      - drops the junk rows at the boundaries between stacked images,
      - lays the result out in the next layer's per-image padded layout
        (zero rows at b*s_out and b*s_out + h_out + 1)."""
    rows, cols = bsz * s_out, bsz * s_in - 3
    f = np.zeros((rows, cols), np.float32)
    for b in range(bsz):
        for j in range(h_out):
            f[b * s_out + 1 + j, b * s_in + 2 * j] = 1.0
    return jnp.asarray(f)


def _out_row_selector(bsz, s_in, h_out):
    """Like _fill_row_selector but produces the compact (bsz*h_out) layout
    used for the final (layer-3) activations fed to the FC outside."""
    rows, cols = bsz * h_out, bsz * s_in - 3
    f = np.zeros((rows, cols), np.float32)
    for b in range(bsz):
        for j in range(h_out):
            f[b * h_out + j, b * s_in + 2 * j] = 1.0
    return jnp.asarray(f)


def _bias_map(bsz, s_out, bias, width_out):
    """Per-channel bias tiled over width for every real row of the padded
    layout, zeros on the padding rows (so padding stays exactly zero)."""
    ch = bias.shape[0]
    row = jnp.tile(bias, width_out).reshape(1, width_out * ch)
    mask = np.zeros((bsz * s_out, 1), np.float32)
    for b in range(bsz):
        mask[b * s_out + 1: b * s_out + 1 + (s_out - 2), 0] = 1.0
    return jnp.asarray(mask) * row


# ---------------------------------------------------------------------------
# The fused kernel (B images per grid step, everything stays in VMEM)
# ---------------------------------------------------------------------------
def _net_kernel(x_ref, t1_ref, t2_ref, t3_ref,
                sw1_ref, sw2_ref, sw3_ref,
                f2_ref, f3_ref, fo_ref,
                bm1_ref, bm2_ref, b3_ref,
                o_ref,
                p2_ref, p3_ref,
                *, bsz):
    f32 = jnp.float32

    def conv3x3(src_ref, t_ref, m):
        # Three banded matmuls (one per kh tap), f32 accumulation on the MXU.
        acc = jnp.dot(src_ref[0:m, :], t_ref[0], preferred_element_type=f32)
        acc = acc + jnp.dot(src_ref[1:m + 1, :], t_ref[1], preferred_element_type=f32)
        acc = acc + jnp.dot(src_ref[2:m + 2, :], t_ref[2], preferred_element_type=f32)
        return acc                                            # (m, W*Cout)

    def pool(o, c, sw_ref):
        # 2x2 max-pool as shifted maxima (VPU) + a 0/1 width-decimation matmul.
        # Row decimation (and image-boundary junk-row removal) happens later in
        # the fill/output selector matmul.
        mr = jnp.maximum(o[:-1, :], o[1:, :])                 # max(row h, row h+1)
        wc = o.shape[1]
        mc = jnp.maximum(mr[:, 0:wc - c], mr[:, c:wc])        # max(col w, col w+1)
        return jnp.dot(mc, sw_ref[...], preferred_element_type=f32)

    # layer 1: (B*72, 192) input (pre-padded in HBM) -> padded (B*34, 256)
    o1 = conv3x3(x_ref, t1_ref, bsz * S1 - 2)
    s1 = pool(o1, C1, sw1_ref)
    p2_ref[...] = jnp.dot(f2_ref[...], s1, preferred_element_type=f32) + bm1_ref[...]

    # layer 2: -> padded (B*18, 256)
    o2 = conv3x3(p2_ref, t2_ref, bsz * S2 - 2)
    s2 = pool(o2, C2, sw2_ref)
    p3_ref[...] = jnp.dot(f3_ref[...], s2, preferred_element_type=f32) + bm2_ref[...]

    # layer 3: -> lane-dense (B*8, 256) activations; flatten + FC run outside.
    o3 = conv3x3(p3_ref, t3_ref, bsz * S3 - 2)
    s3 = pool(o3, C3, sw3_ref)
    o_ref[...] = (jnp.dot(fo_ref[...], s3, preferred_element_type=f32)
                  + b3_ref[...]).astype(o_ref.dtype)


# ---------------------------------------------------------------------------
# Forward pass (single pallas_call + one small XLA matmul) and a pure-JAX ref
# ---------------------------------------------------------------------------
@jax.jit
def net_forward(x_nchw, params):
    (w1, b1), (w2, b2), (w3, b3), (wf, bf) = params
    n = x_nchw.shape[0]

    # Per-step image batch: cap at 8, but keep >= 2 grid steps whenever n >= 2
    # so both v7x TensorCores get work.
    bsz = max(1, min(8, n // 2)) if n >= 2 else 1
    n_pad = -(-n // bsz) * bsz
    steps = n_pad // bsz

    # NCHW -> lane-dense rows (H, W*Cin), with the vertical zero padding folded
    # into the HBM layout (72 rows per image: 1 zero row above, 7 below).
    x2d = jnp.transpose(x_nchw, (0, 2, 3, 1)).reshape(n, H0, W0 * IN_CH)
    if n_pad != n:
        x2d = jnp.concatenate(
            [x2d, jnp.zeros((n_pad - n, H0, W0 * IN_CH), x2d.dtype)], axis=0)
    xp = jnp.pad(x2d, ((0, 0), (1, S1 - 1 - H0), (0, 0)))      # (n_pad, 72, 192)
    xp = xp.reshape(n_pad * S1, W0 * IN_CH)

    # Constants (all f32; exact 0/1 selectors).
    t1 = _toeplitz_conv_weight(w1, 64)                          # (3, 192, 512)
    t2 = _toeplitz_conv_weight(w2, 32)                          # (3, 256, 512)
    t3 = _toeplitz_conv_weight(w3, 16)                          # (3, 256, 512)
    sw1 = _pool_col_selector(64, C1)                            # (504, 256)
    sw2 = _pool_col_selector(32, C2)                            # (496, 256)
    sw3 = _pool_col_selector(16, C3)                            # (480, 256)
    f2 = _fill_row_selector(bsz, S1, S2, 32)                    # (B*34, B*72-3)
    f3 = _fill_row_selector(bsz, S2, S3, 16)                    # (B*18, B*34-3)
    fo = _out_row_selector(bsz, S3, 8)                          # (B*8,  B*18-3)
    bm1 = _bias_map(bsz, S2, b1, 32)                            # (B*34, 256)
    bm2 = _bias_map(bsz, S3, b2, 16)                            # (B*18, 256)
    b3row = jnp.tile(b3, 8).reshape(1, 8 * C3)                  # (1, 256)

    # torch flatten order is (c, h, w); kernel flatten order is (h, w*C + c).
    wf_r = wf.reshape(C3, 8, 8, NUM_CLASSES).transpose(1, 2, 0, 3).reshape(FLAT, NUM_CLASSES)

    def const_spec(arr):
        nd = arr.ndim
        return pl.BlockSpec(arr.shape, lambda i, _nd=nd: (0,) * _nd)

    kernel = functools.partial(_net_kernel, bsz=bsz)

    out3 = pl.pallas_call(
        kernel,
        out_shape=jax.ShapeDtypeStruct((n_pad * 8, 8 * C3), jnp.float32),
        grid=(steps,),
        in_specs=[
            pl.BlockSpec((bsz * S1, W0 * IN_CH), lambda i: (i, 0)),
            const_spec(t1), const_spec(t2), const_spec(t3),
            const_spec(sw1), const_spec(sw2), const_spec(sw3),
            const_spec(f2), const_spec(f3), const_spec(fo),
            const_spec(bm1), const_spec(bm2), const_spec(b3row),
        ],
        out_specs=pl.BlockSpec((bsz * 8, 8 * C3), lambda i: (i, 0)),
        scratch_shapes=[
            pltpu.VMEM((bsz * S2, 32 * C1), jnp.float32),   # padded layer-2 input
            pltpu.VMEM((bsz * S3, 16 * C2), jnp.float32),   # padded layer-3 input
        ],
        compiler_params=pltpu.CompilerParams(
            dimension_semantics=("parallel",),
            vmem_limit_bytes=32 * 1024 * 1024,
        ),
    )(xp, t1, t2, t3, sw1, sw2, sw3, f2, f3, fo, bm1, bm2, b3row)

    # Flatten (kernel order) + FC as one batched XLA matmul.
    flat = out3.reshape(n_pad, FLAT)[:n]
    return flat @ wf_r + bf.reshape(1, NUM_CLASSES)


def ref_forward(x_nchw, params):
    (w1, b1), (w2, b2), (w3, b3), (wf, bf) = params

    def conv(x, w_hwio, b):
        y = jax.lax.conv_general_dilated(
            x, w_hwio, window_strides=(1, 1), padding=((1, 1), (1, 1)),
            dimension_numbers=("NCHW", "HWIO", "NCHW"))
        return y + b.reshape(1, -1, 1, 1)

    def pool(x):
        return jax.lax.reduce_window(
            x, -jnp.inf, jax.lax.max, (1, 1, 2, 2), (1, 1, 2, 2), "VALID")

    out = pool(conv(x_nchw, w1, b1))
    out = pool(conv(out, w2, b2))
    out = pool(conv(out, w3, b3))
    out = out.reshape(out.shape[0], -1)
    return out @ wf + bf


if __name__ == "__main__":
    key = jax.random.PRNGKey(0)
    ks = jax.random.split(key, 9)

    # Conv weights stored as HWIO = (3, 3, Cin, Cout); fc weight as (in, out).
    w1 = 0.1 * jax.random.normal(ks[0], (3, 3, 3, C1), jnp.float32)
    b1 = 0.1 * jax.random.normal(ks[1], (C1,), jnp.float32)
    w2 = 0.1 * jax.random.normal(ks[2], (3, 3, C1, C2), jnp.float32)
    b2 = 0.1 * jax.random.normal(ks[3], (C2,), jnp.float32)
    w3 = 0.1 * jax.random.normal(ks[4], (3, 3, C2, C3), jnp.float32)
    b3 = 0.1 * jax.random.normal(ks[5], (C3,), jnp.float32)
    wf = 0.05 * jax.random.normal(ks[6], (FLAT, NUM_CLASSES), jnp.float32)
    bf = 0.05 * jax.random.normal(ks[7], (NUM_CLASSES,), jnp.float32)
    params = ((w1, b1), (w2, b2), (w3, b3), (wf, bf))

    # Input geometry is fixed by the module (2048 = 32*8*8 => 3x64x64 images).
    # batch=4 with 2 images per grid step -> a 2-step parallel grid.
    x = jax.random.normal(ks[8], (4, 3, 64, 64), jnp.float32)

    out = jax.block_until_ready(net_forward(x, params))
    ref = jax.block_until_ready(ref_forward(x, params))

    assert out.shape == (4, NUM_CLASSES)
    np.testing.assert_allclose(np.asarray(out), np.asarray(ref),
                               rtol=1e-4, atol=5e-4)
    print("KERNEL_OK")
</pallas_src>

<mosaic_0001>
module attributes {stable_mosaic.version = 11 : i64} {
  func.func @_net_kernel(%arg0: i32, %arg1: memref<144x192xf32, #tpu.memory_space<vmem>>, %arg2: memref<3x192x512xf32, #tpu.memory_space<vmem>>, %arg3: memref<3x256x512xf32, #tpu.memory_space<vmem>>, %arg4: memref<3x256x512xf32, #tpu.memory_space<vmem>>, %arg5: memref<504x256xf32, #tpu.memory_space<vmem>>, %arg6: memref<496x256xf32, #tpu.memory_space<vmem>>, %arg7: memref<480x256xf32, #tpu.memory_space<vmem>>, %arg8: memref<68x141xf32, #tpu.memory_space<vmem>>, %arg9: memref<36x65xf32, #tpu.memory_space<vmem>>, %arg10: memref<16x33xf32, #tpu.memory_space<vmem>>, %arg11: memref<68x256xf32, #tpu.memory_space<vmem>>, %arg12: memref<36x256xf32, #tpu.memory_space<vmem>>, %arg13: memref<1x256xf32, #tpu.memory_space<vmem>>, %arg14: memref<16x256xf32, #tpu.memory_space<vmem>>, %arg15: memref<68x256xf32, #tpu.memory_space<vmem>>, %arg16: memref<36x256xf32, #tpu.memory_space<vmem>>) attributes {dimension_semantics = [#tpu.dimension_semantics<parallel>], iteration_bounds = array<i64: 2>, scalar_prefetch = 0 : i64, scratch_operands = 2 : i64, tpu.core_type = #tpu.core_type<tc>, window_params = [{transform_indices = @transform_0, window_bounds = array<i64: 144, 192>}, {pipeline_mode = #tpu.pipeline_mode<synchronous>, transform_indices = @transform_1, window_bounds = array<i64: 3, 192, 512>}, {pipeline_mode = #tpu.pipeline_mode<synchronous>, transform_indices = @transform_2, window_bounds = array<i64: 3, 256, 512>}, {pipeline_mode = #tpu.pipeline_mode<synchronous>, transform_indices = @transform_3, window_bounds = array<i64: 3, 256, 512>}, {pipeline_mode = #tpu.pipeline_mode<synchronous>, transform_indices = @transform_4, window_bounds = array<i64: 504, 256>}, {pipeline_mode = #tpu.pipeline_mode<synchronous>, transform_indices = @transform_5, window_bounds = array<i64: 496, 256>}, {pipeline_mode = #tpu.pipeline_mode<synchronous>, transform_indices = @transform_6, window_bounds = array<i64: 480, 256>}, {pipeline_mode = #tpu.pipeline_mode<synchronous>, transform_indices = @transform_7, window_bounds = array<i64: 68, 141>}, {pipeline_mode = #tpu.pipeline_mode<synchronous>, transform_indices = @transform_8, window_bounds = array<i64: 36, 65>}, {pipeline_mode = #tpu.pipeline_mode<synchronous>, transform_indices = @transform_9, window_bounds = array<i64: 16, 33>}, {pipeline_mode = #tpu.pipeline_mode<synchronous>, transform_indices = @transform_10, window_bounds = array<i64: 68, 256>}, {pipeline_mode = #tpu.pipeline_mode<synchronous>, transform_indices = @transform_11, window_bounds = array<i64: 36, 256>}, {pipeline_mode = #tpu.pipeline_mode<synchronous>, transform_indices = @transform_12, window_bounds = array<i64: 1, 256>}, {transform_indices = @transform_13, window_bounds = array<i64: 16, 256>}]} {
    %c0 = arith.constant 0 : index
    %c0_0 = arith.constant 0 : index
    %0 = vector.load %arg1[%c0, %c0_0] : memref<144x192xf32, #tpu.memory_space<vmem>>, vector<142x192xf32>
    %c0_1 = arith.constant 0 : index
    %c0_2 = arith.constant 0 : index
    %c0_3 = arith.constant 0 : index
    %1 = vector.load %arg2[%c0_1, %c0_2, %c0_3] : memref<3x192x512xf32, #tpu.memory_space<vmem>>, vector<1x192x512xf32>
    %2 = vector.shape_cast %1 : vector<1x192x512xf32> to vector<192x512xf32>
    %cst = arith.constant dense<0.000000e+00> : vector<142x512xf32>
    %3 = tpu.matmul %0, %2, %cst {dimension_numbers = #tpu.dot_dimension_numbers<[1], [0], [0], [1], [0, 0, 1, 1], [], []>} : vector<142x192xf32>, vector<192x512xf32>, vector<142x512xf32> -> vector<142x512xf32>
    %c1 = arith.constant 1 : index
    %c0_4 = arith.constant 0 : index
    %4 = vector.load %arg1[%c1, %c0_4] : memref<144x192xf32, #tpu.memory_space<vmem>>, vector<142x192xf32>
    %c1_5 = arith.constant 1 : index
    %c0_6 = arith.constant 0 : index
    %c0_7 = arith.constant 0 : index
    %5 = vector.load %arg2[%c1_5, %c0_6, %c0_7] : memref<3x192x512xf32, #tpu.memory_space<vmem>>, vector<1x192x512xf32>
    %6 = vector.shape_cast %5 : vector<1x192x512xf32> to vector<192x512xf32>
    %cst_8 = arith.constant dense<0.000000e+00> : vector<142x512xf32>
    %7 = tpu.matmul %4, %6, %cst_8 {dimension_numbers = #tpu.dot_dimension_numbers<[1], [0], [0], [1], [0, 0, 1, 1], [], []>} : vector<142x192xf32>, vector<192x512xf32>, vector<142x512xf32> -> vector<142x512xf32>
    %8 = arith.addf %3, %7 : vector<142x512xf32>
    %c2 = arith.constant 2 : index
    %c0_9 = arith.constant 0 : index
    %9 = vector.load %arg1[%c2, %c0_9] : memref<144x192xf32, #tpu.memory_space<vmem>>, vector<142x192xf32>
    %c2_10 = arith.constant 2 : index
    %c0_11 = arith.constant 0 : index
    %c0_12 = arith.constant 0 : index
    %10 = vector.load %arg2[%c2_10, %c0_11, %c0_12] : memref<3x192x512xf32, #tpu.memory_space<vmem>>, vector<1x192x512xf32>
    %11 = vector.shape_cast %10 : vector<1x192x512xf32> to vector<192x512xf32>
    %cst_13 = arith.constant dense<0.000000e+00> : vector<142x512xf32>
    %12 = tpu.matmul %9, %11, %cst_13 {dimension_numbers = #tpu.dot_dimension_numbers<[1], [0], [0], [1], [0, 0, 1, 1], [], []>} : vector<142x192xf32>, vector<192x512xf32>, vector<142x512xf32> -> vector<142x512xf32>
    %13 = arith.addf %8, %12 : vector<142x512xf32>
    %14 = vector.extract_strided_slice %13 {offsets = [0, 0], sizes = [141, 512], strides = [1, 1]} : vector<142x512xf32> to vector<141x512xf32>
    %15 = vector.extract_strided_slice %13 {offsets = [1, 0], sizes = [141, 512], strides = [1, 1]} : vector<142x512xf32> to vector<141x512xf32>
    %16 = arith.maximumf %14, %15 : vector<141x512xf32>
    %17 = vector.extract_strided_slice %16 {offsets = [0, 0], sizes = [141, 504], strides = [1, 1]} : vector<141x512xf32> to vector<141x504xf32>
    %18 = vector.extract_strided_slice %16 {offsets = [0, 8], sizes = [141, 504], strides = [1, 1]} : vector<141x512xf32> to vector<141x504xf32>
    %19 = arith.maximumf %17, %18 : vector<141x504xf32>
    %c0_14 = arith.constant 0 : index
    %c0_15 = arith.constant 0 : index
    %20 = vector.load %arg5[%c0_14, %c0_15] : memref<504x256xf32, #tpu.memory_space<vmem>>, vector<504x256xf32>
    %cst_16 = arith.constant dense<0.000000e+00> : vector<141x256xf32>
    %21 = tpu.matmul %19, %20, %cst_16 {dimension_numbers = #tpu.dot_dimension_numbers<[1], [0], [0], [1], [0, 0, 1, 1], [], []>} : vector<141x504xf32>, vector<504x256xf32>, vector<141x256xf32> -> vector<141x256xf32>
    %c0_17 = arith.constant 0 : index
    %c0_18 = arith.constant 0 : index
    %22 = vector.load %arg8[%c0_17, %c0_18] : memref<68x141xf32, #tpu.memory_space<vmem>>, vector<68x141xf32>
    %cst_19 = arith.constant dense<0.000000e+00> : vector<68x256xf32>
    %23 = tpu.matmul %22, %21, %cst_19 {dimension_numbers = #tpu.dot_dimension_numbers<[1], [0], [0], [1], [0, 0, 1, 1], [], []>} : vector<68x141xf32>, vector<141x256xf32>, vector<68x256xf32> -> vector<68x256xf32>
    %c0_20 = arith.constant 0 : index
    %c0_21 = arith.constant 0 : index
    %24 = vector.load %arg11[%c0_20, %c0_21] : memref<68x256xf32, #tpu.memory_space<vmem>>, vector<68x256xf32>
    %25 = arith.addf %23, %24 : vector<68x256xf32>
    %c0_22 = arith.constant 0 : index
    %c0_23 = arith.constant 0 : index
    %26 = vector.load %arg15[%c0_22, %c0_23] : memref<68x256xf32, #tpu.memory_space<vmem>>, vector<68x256xf32>
    tpu.vector_store %arg15[%c0_22, %c0_23], %25 {strides = array<i32>} : memref<68x256xf32, #tpu.memory_space<vmem>>, vector<68x256xf32>,
    %c0_24 = arith.constant 0 : index
    %c0_25 = arith.constant 0 : index
    %27 = vector.load %arg15[%c0_24, %c0_25] : memref<68x256xf32, #tpu.memory_space<vmem>>, vector<66x256xf32>
    %c0_26 = arith.constant 0 : index
    %c0_27 = arith.constant 0 : index
    %c0_28 = arith.constant 0 : index
    %28 = vector.load %arg3[%c0_26, %c0_27, %c0_28] : memref<3x256x512xf32, #tpu.memory_space<vmem>>, vector<1x256x512xf32>
    %29 = vector.shape_cast %28 : vector<1x256x512xf32> to vector<256x512xf32>
    %cst_29 = arith.constant dense<0.000000e+00> : vector<66x512xf32>
    %30 = tpu.matmul %27, %29, %cst_29 {dimension_numbers = #tpu.dot_dimension_numbers<[1], [0], [0], [1], [0, 0, 1, 1], [], []>} : vector<66x256xf32>, vector<256x512xf32>, vector<66x512xf32> -> vector<66x512xf32>
    %c1_30 = arith.constant 1 : index
    %c0_31 = arith.constant 0 : index
    %31 = vector.load %arg15[%c1_30, %c0_31] : memref<68x256xf32, #tpu.memory_space<vmem>>, vector<66x256xf32>
    %c1_32 = arith.constant 1 : index
    %c0_33 = arith.constant 0 : index
    %c0_34 = arith.constant 0 : index
    %32 = vector.load %arg3[%c1_32, %c0_33, %c0_34] : memref<3x256x512xf32, #tpu.memory_space<vmem>>, vector<1x256x512xf32>
    %33 = vector.shape_cast %32 : vector<1x256x512xf32> to vector<256x512xf32>
    %cst_35 = arith.constant dense<0.000000e+00> : vector<66x512xf32>
    %34 = tpu.matmul %31, %33, %cst_35 {dimension_numbers = #tpu.dot_dimension_numbers<[1], [0], [0], [1], [0, 0, 1, 1], [], []>} : vector<66x256xf32>, vector<256x512xf32>, vector<66x512xf32> -> vector<66x512xf32>
    %35 = arith.addf %30, %34 : vector<66x512xf32>
    %c2_36 = arith.constant 2 : index
    %c0_37 = arith.constant 0 : index
    %36 = vector.load %arg15[%c2_36, %c0_37] : memref<68x256xf32, #tpu.memory_space<vmem>>, vector<66x256xf32>
    %c2_38 = arith.constant 2 : index
    %c0_39 = arith.constant 0 : index
    %c0_40 = arith.constant 0 : index
    %37 = vector.load %arg3[%c2_38, %c0_39, %c0_40] : memref<3x256x512xf32, #tpu.memory_space<vmem>>, vector<1x256x512xf32>
    %38 = vector.shape_cast %37 : vector<1x256x512xf32> to vector<256x512xf32>
    %cst_41 = arith.constant dense<0.000000e+00> : vector<66x512xf32>
    %39 = tpu.matmul %36, %38, %cst_41 {dimension_numbers = #tpu.dot_dimension_numbers<[1], [0], [0], [1], [0, 0, 1, 1], [], []>} : vector<66x256xf32>, vector<256x512xf32>, vector<66x512xf32> -> vector<66x512xf32>
    %40 = arith.addf %35, %39 : vector<66x512xf32>
    %41 = vector.extract_strided_slice %40 {offsets = [0, 0], sizes = [65, 512], strides = [1, 1]} : vector<66x512xf32> to vector<65x512xf32>
    %42 = vector.extract_strided_slice %40 {offsets = [1, 0], sizes = [65, 512], strides = [1, 1]} : vector<66x512xf32> to vector<65x512xf32>
    %43 = arith.maximumf %41, %42 : vector<65x512xf32>
    %44 = vector.extract_strided_slice %43 {offsets = [0, 0], sizes = [65, 496], strides = [1, 1]} : vector<65x512xf32> to vector<65x496xf32>
    %45 = vector.extract_strided_slice %43 {offsets = [0, 16], sizes = [65, 496], strides = [1, 1]} : vector<65x512xf32> to vector<65x496xf32>
    %46 = arith.maximumf %44, %45 : vector<65x496xf32>
    %c0_42 = arith.constant 0 : index
    %c0_43 = arith.constant 0 : index
    %47 = vector.load %arg6[%c0_42, %c0_43] : memref<496x256xf32, #tpu.memory_space<vmem>>, vector<496x256xf32>
    %cst_44 = arith.constant dense<0.000000e+00> : vector<65x256xf32>
    %48 = tpu.matmul %46, %47, %cst_44 {dimension_numbers = #tpu.dot_dimension_numbers<[1], [0], [0], [1], [0, 0, 1, 1], [], []>} : vector<65x496xf32>, vector<496x256xf32>, vector<65x256xf32> -> vector<65x256xf32>
    %c0_45 = arith.constant 0 : index
    %c0_46 = arith.constant 0 : index
    %49 = vector.load %arg9[%c0_45, %c0_46] : memref<36x65xf32, #tpu.memory_space<vmem>>, vector<36x65xf32>
    %cst_47 = arith.constant dense<0.000000e+00> : vector<36x256xf32>
    %50 = tpu.matmul %49, %48, %cst_47 {dimension_numbers = #tpu.dot_dimension_numbers<[1], [0], [0], [1], [0, 0, 1, 1], [], []>} : vector<36x65xf32>, vector<65x256xf32>, vector<36x256xf32> -> vector<36x256xf32>
    %c0_48 = arith.constant 0 : index
    %c0_49 = arith.constant 0 : index
    %51 = vector.load %arg12[%c0_48, %c0_49] : memref<36x256xf32, #tpu.memory_space<vmem>>, vector<36x256xf32>
    %52 = arith.addf %50, %51 : vector<36x256xf32>
    %c0_50 = arith.constant 0 : index
    %c0_51 = arith.constant 0 : index
    %53 = vector.load %arg16[%c0_50, %c0_51] : memref<36x256xf32, #tpu.memory_space<vmem>>, vector<36x256xf32>
    tpu.vector_store %arg16[%c0_50, %c0_51], %52 {strides = array<i32>} : memref<36x256xf32, #tpu.memory_space<vmem>>, vector<36x256xf32>,
    %c0_52 = arith.constant 0 : index
    %c0_53 = arith.constant 0 : index
    %54 = vector.load %arg16[%c0_52, %c0_53] : memref<36x256xf32, #tpu.memory_space<vmem>>, vector<34x256xf32>
    %c0_54 = arith.constant 0 : index
    %c0_55 = arith.constant 0 : index
    %c0_56 = arith.constant 0 : index
    %55 = vector.load %arg4[%c0_54, %c0_55, %c0_56] : memref<3x256x512xf32, #tpu.memory_space<vmem>>, vector<1x256x512xf32>
    %56 = vector.shape_cast %55 : vector<1x256x512xf32> to vector<256x512xf32>
    %cst_57 = arith.constant dense<0.000000e+00> : vector<34x512xf32>
    %57 = tpu.matmul %54, %56, %cst_57 {dimension_numbers = #tpu.dot_dimension_numbers<[1], [0], [0], [1], [0, 0, 1, 1], [], []>} : vector<34x256xf32>, vector<256x512xf32>, vector<34x512xf32> -> vector<34x512xf32>
    %c1_58 = arith.constant 1 : index
    %c0_59 = arith.constant 0 : index
    %58 = vector.load %arg16[%c1_58, %c0_59] : memref<36x256xf32, #tpu.memory_space<vmem>>, vector<34x256xf32>
    %c1_60 = arith.constant 1 : index
    %c0_61 = arith.constant 0 : index
    %c0_62 = arith.constant 0 : index
    %59 = vector.load %arg4[%c1_60, %c0_61, %c0_62] : memref<3x256x512xf32, #tpu.memory_space<vmem>>, vector<1x256x512xf32>
    %60 = vector.shape_cast %59 : vector<1x256x512xf32> to vector<256x512xf32>
    %cst_63 = arith.constant dense<0.000000e+00> : vector<34x512xf32>
    %61 = tpu.matmul %58, %60, %cst_63 {dimension_numbers = #tpu.dot_dimension_numbers<[1], [0], [0], [1], [0, 0, 1, 1], [], []>} : vector<34x256xf32>, vector<256x512xf32>, vector<34x512xf32> -> vector<34x512xf32>
    %62 = arith.addf %57, %61 : vector<34x512xf32>
    %c2_64 = arith.constant 2 : index
    %c0_65 = arith.constant 0 : index
    %63 = vector.load %arg16[%c2_64, %c0_65] : memref<36x256xf32, #tpu.memory_space<vmem>>, vector<34x256xf32>
    %c2_66 = arith.constant 2 : index
    %c0_67 = arith.constant 0 : index
    %c0_68 = arith.constant 0 : index
    %64 = vector.load %arg4[%c2_66, %c0_67, %c0_68] : memref<3x256x512xf32, #tpu.memory_space<vmem>>, vector<1x256x512xf32>
    %65 = vector.shape_cast %64 : vector<1x256x512xf32> to vector<256x512xf32>
    %cst_69 = arith.constant dense<0.000000e+00> : vector<34x512xf32>
    %66 = tpu.matmul %63, %65, %cst_69 {dimension_numbers = #tpu.dot_dimension_numbers<[1], [0], [0], [1], [0, 0, 1, 1], [], []>} : vector<34x256xf32>, vector<256x512xf32>, vector<34x512xf32> -> vector<34x512xf32>
    %67 = arith.addf %62, %66 : vector<34x512xf32>
    %68 = vector.extract_strided_slice %67 {offsets = [0, 0], sizes = [33, 512], strides = [1, 1]} : vector<34x512xf32> to vector<33x512xf32>
    %69 = vector.extract_strided_slice %67 {offsets = [1, 0], sizes = [33, 512], strides = [1, 1]} : vector<34x512xf32> to vector<33x512xf32>
    %70 = arith.maximumf %68, %69 : vector<33x512xf32>
    %71 = vector.extract_strided_slice %70 {offsets = [0, 0], sizes = [33, 480], strides = [1, 1]} : vector<33x512xf32> to vector<33x480xf32>
    %72 = vector.extract_strided_slice %70 {offsets = [0, 32], sizes = [33, 480], strides = [1, 1]} : vector<33x512xf32> to vector<33x480xf32>
    %73 = arith.maximumf %71, %72 : vector<33x480xf32>
    %c0_70 = arith.constant 0 : index
    %c0_71 = arith.constant 0 : index
    %74 = vector.load %arg7[%c0_70, %c0_71] : memref<480x256xf32, #tpu.memory_space<vmem>>, vector<480x256xf32>
    %cst_72 = arith.constant dense<0.000000e+00> : vector<33x256xf32>
    %75 = tpu.matmul %73, %74, %cst_72 {dimension_numbers = #tpu.dot_dimension_numbers<[1], [0], [0], [1], [0, 0, 1, 1], [], []>} : vector<33x480xf32>, vector<480x256xf32>, vector<33x256xf32> -> vector<33x256xf32>
    %c0_73 = arith.constant 0 : index
    %c0_74 = arith.constant 0 : index
    %76 = vector.load %arg10[%c0_73, %c0_74] : memref<16x33xf32, #tpu.memory_space<vmem>>, vector<16x33xf32>
    %cst_75 = arith.constant dense<0.000000e+00> : vector<16x256xf32>
    %77 = tpu.matmul %76, %75, %cst_75 {dimension_numbers = #tpu.dot_dimension_numbers<[1], [0], [0], [1], [0, 0, 1, 1], [], []>} : vector<16x33xf32>, vector<33x256xf32>, vector<16x256xf32> -> vector<16x256xf32>
    %c0_76 = arith.constant 0 : index
    %c0_77 = arith.constant 0 : index
    %78 = vector.load %arg13[%c0_76, %c0_77] : memref<1x256xf32, #tpu.memory_space<vmem>>, vector<1x256xf32>
    %79 = vector.broadcast %78 : vector<1x256xf32> to vector<16x256xf32>
    %80 = arith.addf %77, %79 : vector<16x256xf32>
    %c0_78 = arith.constant 0 : index
    %c0_79 = arith.constant 0 : index
    %81 = vector.load %arg14[%c0_78, %c0_79] : memref<16x256xf32, #tpu.memory_space<vmem>>, vector<16x256xf32>
    tpu.vector_store %arg14[%c0_78, %c0_79], %80 {strides = array<i32>} : memref<16x256xf32, #tpu.memory_space<vmem>>, vector<16x256xf32>,
    return
  }
  func.func @transform_0(%arg0: i32) -> (i32, i32) {
    %c0_i32 = arith.constant 0 : i32
    %c0_i32_0 = arith.constant 0 : i32
    return %arg0, %c0_i32 : i32, i32
  }
  func.func @transform_1(%arg0: i32) -> (i32, i32, i32) {
    %c0_i32 = arith.constant 0 : i32
    %c0_i32_0 = arith.constant 0 : i32
    %c0_i32_1 = arith.constant 0 : i32
    %c0_i32_2 = arith.constant 0 : i32
    return %c0_i32, %c0_i32_0, %c0_i32_1 : i32, i32, i32
  }
  func.func @transform_2(%arg0: i32) -> (i32, i32, i32) {
    %c0_i32 = arith.constant 0 : i32
    %c0_i32_0 = arith.constant 0 : i32
    %c0_i32_1 = arith.constant 0 : i32
    %c0_i32_2 = arith.constant 0 : i32
    return %c0_i32, %c0_i32_0, %c0_i32_1 : i32, i32, i32
  }
  func.func @transform_3(%arg0: i32) -> (i32, i32, i32) {
    %c0_i32 = arith.constant 0 : i32
    %c0_i32_0 = arith.constant 0 : i32
    %c0_i32_1 = arith.constant 0 : i32
    %c0_i32_2 = arith.constant 0 : i32
    return %c0_i32, %c0_i32_0, %c0_i32_1 : i32, i32, i32
  }
  func.func @transform_4(%arg0: i32) -> (i32, i32) {
    %c0_i32 = arith.constant 0 : i32
    %c0_i32_0 = arith.constant 0 : i32
    %c0_i32_1 = arith.constant 0 : i32
    return %c0_i32, %c0_i32_0 : i32, i32
  }
  func.func @transform_5(%arg0: i32) -> (i32, i32) {
    %c0_i32 = arith.constant 0 : i32
    %c0_i32_0 = arith.constant 0 : i32
    %c0_i32_1 = arith.constant 0 : i32
    return %c0_i32, %c0_i32_0 : i32, i32
  }
  func.func @transform_6(%arg0: i32) -> (i32, i32) {
    %c0_i32 = arith.constant 0 : i32
    %c0_i32_0 = arith.constant 0 : i32
    %c0_i32_1 = arith.constant 0 : i32
    return %c0_i32, %c0_i32_0 : i32, i32
  }
  func.func @transform_7(%arg0: i32) -> (i32, i32) {
    %c0_i32 = arith.constant 0 : i32
    %c0_i32_0 = arith.constant 0 : i32
    %c0_i32_1 = arith.constant 0 : i32
    return %c0_i32, %c0_i32_0 : i32, i32
  }
  func.func @transform_8(%arg0: i32) -> (i32, i32) {
    %c0_i32 = arith.constant 0 : i32
    %c0_i32_0 = arith.constant 0 : i32
    %c0_i32_1 = arith.constant 0 : i32
    return %c0_i32, %c0_i32_0 : i32, i32
  }
  func.func @transform_9(%arg0: i32) -> (i32, i32) {
    %c0_i32 = arith.constant 0 : i32
    %c0_i32_0 = arith.constant 0 : i32
    %c0_i32_1 = arith.constant 0 : i32
    return %c0_i32, %c0_i32_0 : i32, i32
  }
  func.func @transform_10(%arg0: i32) -> (i32, i32) {
    %c0_i32 = arith.constant 0 : i32
    %c0_i32_0 = arith.constant 0 : i32
    %c0_i32_1 = arith.constant 0 : i32
    return %c0_i32, %c0_i32_0 : i32, i32
  }
  func.func @transform_11(%arg0: i32) -> (i32, i32) {
    %c0_i32 = arith.constant 0 : i32
    %c0_i32_0 = arith.constant 0 : i32
    %c0_i32_1 = arith.constant 0 : i32
    return %c0_i32, %c0_i32_0 : i32, i32
  }
  func.func @transform_12(%arg0: i32) -> (i32, i32) {
    %c0_i32 = arith.constant 0 : i32
    %c0_i32_0 = arith.constant 0 : i32
    %c0_i32_1 = arith.constant 0 : i32
    return %c0_i32, %c0_i32_0 : i32, i32
  }
  func.func @transform_13(%arg0: i32) -> (i32, i32) {
    %c0_i32 = arith.constant 0 : i32
    %c0_i32_0 = arith.constant 0 : i32
    return %arg0, %c0_i32 : i32, i32
  }
}

</mosaic_0001>

<llo_original>
// kernel: tile.18
$region0: #{tile.18}
  #allocation0 [shape = 's32[1]{0}', space=sflag, size = 0x4, scoped, tag = 'scoped memory for tile.18']
  %s0 = inlined_call_operand.vmem [shape: f32[8], index: 0, kind: input, shape index: {}]
  %s1 = inlined_call_operand.vmem [shape: f32[32,8], index: 1, kind: output, shape index: {}]
  // Predicated region
  $region2: #{tile.18} parent=0 // pred_check
    _
  $region3: #{tile.18} parent=0 // pred_check_branch
    %3 = sbr.rel (0) target = $region5
  $region4: #{tile.18} parent=0 // pred_region
    _
  $region5: #{tile.18} parent=0 // pred_fallthru
    _
  %v4 = vld [vmem:[%s0] ss:$0 sm:$0xff]
  %5 = vst [vmem:[%s1] sm:$0xff] %v4
  %s6 = scalar_lea.vmem %s1, 8
  %7 = vst [vmem:[%s6] sm:$0xff] %v4
  %s8 = scalar_lea.vmem %s1, 16
  %9 = vst [vmem:[%s8] sm:$0xff] %v4
  %s10 = scalar_lea.vmem %s1, 24
  %11 = vst [vmem:[%s10] sm:$0xff] %v4

// kernel: mul.18
$region0: #{mul.18}
  %s0 = inlined_call_operand.vmem [shape: f32[32,8], index: 0, kind: input, shape index: {}]
  %s1 = inlined_call_operand.vmem [shape: f32[256], index: 1, kind: output, shape index: {}]
  $region1: #{mul.18} parent=0
    #allocation0 [shape = 'u8[4096]{0}', space=vmem, size = 0x1000, scoped, tag = 'scoped mem for output reshape']
    %s2 = smov 3
    %v3 = vld [vmem:[%s0] ss:$16 sm:%s2]
    %vm4 = vcmask 64512
    %5 = vst.msk [vmem:[#allocation0] sm:$0x3] %vm4, %v3
    %s6 = scalar_lea.vmem %s0, 15
    %s7 = smov 3
    %v8 = vld [vmem:[%s6] ss:$16 sm:%s7]
    %9 = vrot.lane.b32.xlu0 %v8, 120
    %v10 = vpop.permute.xlu0 %9
    %vm11 = vcmask 1048512
    %12 = vst.msk [vmem:[#allocation0] sm:$0x3] %vm11, %v10
    %s13 = scalar_lea.vmem %s0, 14
    %s14 = smov 3
    %v15 = vld [vmem:[%s13] ss:$16 sm:%s14]
    %16 = vrot.lane.b32.xlu0 %v15, 112
    %v17 = vpop.permute.xlu0 %16
    %vm18 = vcmask 982912
    %19 = vst.msk [vmem:[#allocation0] sm:$0x3] %vm18, %v17
    %s20 = scalar_lea.vmem %s0, 13
    %s21 = smov 3
    %v22 = vld [vmem:[%s20] ss:$16 sm:%s21]
    %23 = vrot.lane.b32.xlu0 %v22, 104
    %v24 = vpop.permute.xlu0 %23
    %vm25 = vcmask 917312
    %26 = vst.msk [vmem:[#allocation0] sm:$0x3] %vm25, %v24
    %s27 = scalar_lea.vmem %s0, 12
    %s28 = smov 3
    %v29 = vld [vmem:[%s27] ss:$16 sm:%s28]
    %30 = vrot.lane.b32.xlu0 %v29, 96
    %v31 = vpop.permute.xlu0 %30
    %vm32 = vcmask 851712
    %33 = vst.msk [vmem:[#allocation0] sm:$0x3] %vm32, %v31
    %s34 = scalar_lea.vmem %s0, 11
    %s35 = smov 3
    %v36 = vld [vmem:[%s34] ss:$16 sm:%s35]
    %37 = vrot.lane.b32.xlu0 %v36, 88
    %v38 = vpop.permute.xlu0 %37
    %vm39 = vcmask 786112
    %40 = vst.msk [vmem:[#allocation0] sm:$0x3] %vm39, %v38
    %s41 = scalar_lea.vmem %s0, 10
    %s42 = smov 3
    %v43 = vld [vmem:[%s41] ss:$16 sm:%s42]
    %44 = vrot.lane.b32.xlu0 %v43, 80
    %v45 = vpop.permute.xlu0 %44
    %vm46 = vcmask 720512
    %47 = vst.msk [vmem:[#allocation0] sm:$0x3] %vm46, %v45
    %s48 = scalar_lea.vmem %s0, 9
    %s49 = smov 3
    %v50 = vld [vmem:[%s48] ss:$16 sm:%s49]
    %51 = vrot.lane.b32.xlu0 %v50, 72
    %v52 = vpop.permute.xlu0 %51
    %vm53 = vcmask 654912
    %54 = vst.msk [vmem:[#allocation0] sm:$0x3] %vm53, %v52
    %s55 = scalar_lea.vmem %s0, 8
    %s56 = smov 3
    %v57 = vld [vmem:[%s55] ss:$16 sm:%s56]
    %58 = vrot.lane.b32.xlu0 %v57, 64
    %v59 = vpop.permute.xlu0 %58
    %vm60 = vcmask 589312
    %61 = vst.msk [vmem:[#allocation0] sm:$0x3] %vm60, %v59
    %s62 = scalar_lea.vmem %s0, 7
    %s63 = smov 3
    %v64 = vld [vmem:[%s62] ss:$16 sm:%s63]
    %65 = vrot.lane.b32.xlu0 %v64, 56
    %v66 = vpop.permute.xlu0 %65
    %vm67 = vcmask 523712
    %68 = vst.msk [vmem:[#allocation0] sm:$0x3] %vm67, %v66
    %s69 = scalar_lea.vmem %s0, 6
    %s70 = smov 3
    %v71 = vld [vmem:[%s69] ss:$16 sm:%s70]
    %72 = vrot.lane.b32.xlu0 %v71, 48
    %v73 = vpop.permute.xlu0 %72
    %vm74 = vcmask 458112
    %75 = vst.msk [vmem:[#allocation0] sm:$0x3] %vm74, %v73
    %s76 = scalar_lea.vmem %s0, 5
    %s77 = smov 3
    %v78 = vld [vmem:[%s76] ss:$16 sm:%s77]
    %79 = vrot.lane.b32.xlu0 %v78, 40
    %v80 = vpop.permute.xlu0 %79
    %vm81 = vcmask 392512
    %82 = vst.msk [vmem:[#allocation0] sm:$0x3] %vm81, %v80
    %s83 = scalar_lea.vmem %s0, 4
    %s84 = smov 3
    %v85 = vld [vmem:[%s83] ss:$16 sm:%s84]
    %86 = vrot.lane.b32.xlu0 %v85, 32
    %v87 = vpop.permute.xlu0 %86
    %vm88 = vcmask 326912
    %89 = vst.msk [vmem:[#allocation0] sm:$0x3] %vm88, %v87
    %s90 = scalar_lea.vmem %s0, 3
    %s91 = smov 3
    %v92 = vld [vmem:[%s90] ss:$16 sm:%s91]
    %93 = vrot.lane.b32.xlu0 %v92, 24
    %v94 = vpop.permute.xlu0 %93
    %vm95 = vcmask 261312
    %96 = vst.msk [vmem:[#allocation0] sm:$0x3] %vm95, %v94
    %s97 = scalar_lea.vmem %s0, 2
    %s98 = smov 3
    %v99 = vld [vmem:[%s97] ss:$16 sm:%s98]
    %100 = vrot.lane.b32.xlu0 %v99, 16
    %v101 = vpop.permute.xlu0 %100
    %vm102 = vcmask 195712
    %103 = vst.msk [vmem:[#allocation0] sm:$0x3] %vm102, %v101
    %s104 = scalar_lea.vmem %s0, 1
    %s105 = smov 3
    %v106 = vld [vmem:[%s104] ss:$16 sm:%s105]
    %107 = vrot.lane.b32.xlu0 %v106, 8
    %v108 = vpop.permute.xlu0 %107
    %vm109 = vcmask 130112
    %110 = vst.msk [vmem:[#allocation0] sm:$0x3] %vm109, %v108
    %s112 = sshllo.u32 0, 2
    %v114 = vld [vmem:[#allocation0] sm:%s112]
    %s115 = sshllo.u32 0, 2
    %116 = vst [vmem:[%s1] sm:%s115] %v114

// kernel: tile.23
$region0: #{tile.23}
  #allocation0 [shape = 's32[1]{0}', space=sflag, size = 0x4, scoped, tag = 'scoped memory for tile.23']
  %s0 = inlined_call_operand.vmem [shape: f32[16], index: 0, kind: input, shape index: {}]
  %s1 = inlined_call_operand.vmem [shape: f32[16,16], index: 1, kind: output, shape index: {}]
  // Predicated region
  $region2: #{tile.23} parent=0 // pred_check
    _
  $region3: #{tile.23} parent=0 // pred_check_branch
    %3 = sbr.rel (0) target = $region5
  $region4: #{tile.23} parent=0 // pred_region
    _
  $region5: #{tile.23} parent=0 // pred_fallthru
    _
  %v4 = vld [vmem:[%s0] ss:$0 sm:$0xff]
  %5 = vst [vmem:[%s1] sm:$0xff] %v4
  %s6 = scalar_lea.vmem %s1, 8
  %7 = vst [vmem:[%s6] sm:$0xff] %v4

// kernel: mul.25
$region0: #{mul.25}
  %s0 = inlined_call_operand.vmem [shape: f32[16,16], index: 0, kind: input, shape index: {}]
  %s1 = inlined_call_operand.vmem [shape: f32[256], index: 1, kind: output, shape index: {}]
  $region1: #{mul.25} parent=0
    #allocation0 [shape = 'u8[4096]{0}', space=vmem, size = 0x1000, scoped, tag = 'scoped mem for output reshape']
    %s2 = smov 3
    %v3 = vld [vmem:[%s0] ss:$8 sm:%s2]
    %vm4 = vcmask 130048
    %5 = vst.msk [vmem:[#allocation0] sm:$0x3] %vm4, %v3
    %s6 = scalar_lea.vmem %s0, 7
    %s7 = smov 3
    %v8 = vld [vmem:[%s6] ss:$8 sm:%s7]
    %9 = vrot.lane.b32.xlu0 %v8, 112
    %v10 = vpop.permute.xlu0 %9
    %vm11 = vcmask 1048448
    %12 = vst.msk [vmem:[#allocation0] sm:$0x3] %vm11, %v10
    %s13 = scalar_lea.vmem %s0, 6
    %s14 = smov 3
    %v15 = vld [vmem:[%s13] ss:$8 sm:%s14]
    %16 = vrot.lane.b32.xlu0 %v15, 96
    %v17 = vpop.permute.xlu0 %16
    %vm18 = vcmask 917248
    %19 = vst.msk [vmem:[#allocation0] sm:$0x3] %vm18, %v17
    %s20 = scalar_lea.vmem %s0, 5
    %s21 = smov 3
    %v22 = vld [vmem:[%s20] ss:$8 sm:%s21]
    %23 = vrot.lane.b32.xlu0 %v22, 80
    %v24 = vpop.permute.xlu0 %23
    %vm25 = vcmask 786048
    %26 = vst.msk [vmem:[#allocation0] sm:$0x3] %vm25, %v24
    %s27 = scalar_lea.vmem %s0, 4
    %s28 = smov 3
    %v29 = vld [vmem:[%s27] ss:$8 sm:%s28]
    %30 = vrot.lane.b32.xlu0 %v29, 64
    %v31 = vpop.permute.xlu0 %30
    %vm32 = vcmask 654848
    %33 = vst.msk [vmem:[#allocation0] sm:$0x3] %vm32, %v31
    %s34 = scalar_lea.vmem %s0, 3
    %s35 = smov 3
    %v36 = vld [vmem:[%s34] ss:$8 sm:%s35]
    %37 = vrot.lane.b32.xlu0 %v36, 48
    %v38 = vpop.permute.xlu0 %37
    %vm39 = vcmask 523648
    %40 = vst.msk [vmem:[#allocation0] sm:$0x3] %vm39, %v38
    %s41 = scalar_lea.vmem %s0, 2
    %s42 = smov 3
    %v43 = vld [vmem:[%s41] ss:$8 sm:%s42]
    %44 = vrot.lane.b32.xlu0 %v43, 32
    %v45 = vpop.permute.xlu0 %44
    %vm46 = vcmask 392448
    %47 = vst.msk [vmem:[#allocation0] sm:$0x3] %vm46, %v45
    %s48 = scalar_lea.vmem %s0, 1
    %s49 = smov 3
    %v50 = vld [vmem:[%s48] ss:$8 sm:%s49]
    %51 = vrot.lane.b32.xlu0 %v50, 16
    %v52 = vpop.permute.xlu0 %51
    %vm53 = vcmask 261248
    %54 = vst.msk [vmem:[#allocation0] sm:$0x3] %vm53, %v52
    %s56 = sshllo.u32 0, 2
    %v58 = vld [vmem:[#allocation0] sm:%s56]
    %s59 = sshllo.u32 0, 2
    %60 = vst [vmem:[%s1] sm:%s59] %v58

// kernel: tile.28
$region0: #{tile.28}
  #allocation0 [shape = 's32[1]{0}', space=sflag, size = 0x4, scoped, tag = 'scoped memory for tile.28']
  %s0 = inlined_call_operand.vmem [shape: f32[32], index: 0, kind: input, shape index: {}]
  %s1 = inlined_call_operand.vmem [shape: f32[8,32], index: 1, kind: output, shape index: {}]
  // Predicated region
  $region2: #{tile.28} parent=0 // pred_check
    _
  $region3: #{tile.28} parent=0 // pred_check_branch
    %3 = sbr.rel (0) target = $region5
  $region4: #{tile.28} parent=0 // pred_region
    _
  $region5: #{tile.28} parent=0 // pred_fallthru
    _
  %v4 = vld [vmem:[%s0] ss:$0 sm:$0xff]
  %5 = vst [vmem:[%s1] sm:$0xff] %v4

// kernel: tile.29
$region0: #{tile.29}
  %s0 = inlined_call_operand.vmem [shape: f32[8,32], index: 0, kind: input, shape index: {}]
  %s1 = inlined_call_operand.vmem [shape: f32[1,256], index: 1, kind: output, shape index: {}]
  $region1: #{tile.29} parent=0
    #allocation0 [shape = 'u8[8192]{0}', space=vmem, size = 0x2000, scoped, tag = 'scoped mem for output reshape']
    %s2 = smov 3
    %v3 = vld [vmem:[%s0] ss:$4 sm:%s2]
    %vm4 = vcmask 261120
    %5 = vst.msk [vmem:[#allocation0] ss:$8 sm:$0x3] %vm4, %v3
    %s6 = scalar_lea.vmem %s0, 3
    %s7 = smov 3
    %v8 = vld [vmem:[%s6] ss:$4 sm:%s7]
    %9 = vrot.lane.b32.xlu0 %v8, 96
    %v10 = vpop.permute.xlu0 %9
    %vm11 = vcmask 1048320
    %12 = vst.msk [vmem:[#allocation0] ss:$8 sm:$0x3] %vm11, %v10
    %s13 = scalar_lea.vmem %s0, 2
    %s14 = smov 3
    %v15 = vld [vmem:[%s13] ss:$4 sm:%s14]
    %16 = vrot.lane.b32.xlu0 %v15, 64
    %v17 = vpop.permute.xlu0 %16
    %vm18 = vcmask 785920
    %19 = vst.msk [vmem:[#allocation0] ss:$8 sm:$0x3] %vm18, %v17
    %s20 = scalar_lea.vmem %s0, 1
    %s21 = smov 3
    %v22 = vld [vmem:[%s20] ss:$4 sm:%s21]
    %23 = vrot.lane.b32.xlu0 %v22, 32
    %v24 = vpop.permute.xlu0 %23
    %vm25 = vcmask 523520
    %26 = vst.msk [vmem:[#allocation0] ss:$8 sm:$0x3] %vm25, %v24
    %s28 = sshllo.u32 0, 1
    %v30 = vld [vmem:[#allocation0] sm:%s28]
    %s31 = sshllo.u32 0, 1
    %32 = vst [vmem:[%s1] sm:%s31] %v30
    %s33 = scalar_lea.vmem [#allocation0], 8
    %v34 = vld [vmem:[%s33] sm:%s28]
    %s35 = sshllo.u32 0, 1
    %s36 = scalar_lea.vmem %s1, 1
    %37 = vst [vmem:[%s36] sm:%s35] %v34

// kernel: net_forward.1
$region0: #{net_forward.1}
  #allocation0 [shape = 'u32[]', space=smem, size = 0x4, offset = 0x4, fixed_abs, tag = 'smem constant byte address 0x4 - core index']
  #allocation1 [shape = 'u32[144,128]{1,0:T(1,128)}', space=vmem, size = 0x12000, scoped, tag = 'internal scratch']
  #allocation2 [shape = 'f32[68,256]{1,0:T(8,128)}', space=vmem, size = 0x12000, scoped, tag = 'scratch operand']
  #allocation3 [shape = 'f32[36,256]{1,0:T(8,128)}', space=vmem, size = 0xa000, scoped, tag = 'scratch operand']
  %s0 = inlined_call_operand.vmem [shape: f32[288,192], index: 0, kind: input, shape index: {}]
  %s1 = inlined_call_operand.vmem [shape: f32[3,192,512], index: 1, kind: input, shape index: {}]
  %s2 = inlined_call_operand.vmem [shape: f32[3,256,512], index: 2, kind: input, shape index: {}]
  %s3 = inlined_call_operand.vmem [shape: f32[3,256,512], index: 3, kind: input, shape index: {}]
  %s4 = inlined_call_operand.vmem [shape: f32[504,256], index: 4, kind: input, shape index: {}]
  %s5 = inlined_call_operand.vmem [shape: f32[496,256], index: 5, kind: input, shape index: {}]
  %s6 = inlined_call_operand.vmem [shape: f32[480,256], index: 6, kind: input, shape index: {}]
  %s7 = inlined_call_operand.vmem [shape: f32[68,141], index: 7, kind: input, shape index: {}]
  %s8 = inlined_call_operand.vmem [shape: f32[36,65], index: 8, kind: input, shape index: {}]
  %s9 = inlined_call_operand.vmem [shape: f32[16,33], index: 9, kind: input, shape index: {}]
  %s10 = inlined_call_operand.vmem [shape: f32[68,256], index: 10, kind: input, shape index: {}]
  %s11 = inlined_call_operand.vmem [shape: f32[36,256], index: 11, kind: input, shape index: {}]
  %s12 = inlined_call_operand.vmem [shape: f32[1,256], index: 12, kind: input, shape index: {}]
  %s13 = inlined_call_operand.vmem [shape: f32[32,256], index: 13, kind: output, shape index: {}]
  %s14 = sld [smem:[#allocation0]]
  $region85: #{net_forward.1} parent=0
    _
  %s16 = ssub.s32 1, %s14
  %s17 = scalar_select 0, %s16, %s14
  loop: start=0, step=1, limit=4
  $region2: #{net_forward.1} parent=0 // loop_pre_header
    _
  $region3: #{net_forward.1} parent=0 // loop_header
    %s19 = sphi 0, %s23
    %p20 = scmp.ge.s32.totalorder %s19, 4
    %s29 = sphi 0, %s31
    %s32 = sphi 0, %s29
    %s33 = sphi 0, %s32
    %s49 = sphi 0, %s33
    %s53 = sphi 0, %s53
    %s55 = sphi 0, %s53
    %s56 = sphi 0, %s55
    %s70 = sphi 0, %s56
    %s74 = sphi 0, %s74
    %s76 = sphi 0, %s74
    %s77 = sphi 0, %s76
    %s91 = sphi 0, %s77
    %s95 = sphi 0, %s95
    %s97 = sphi 0, %s95
    %s98 = sphi 0, %s97
    %s112 = sphi 0, %s98
    %s116 = sphi 0, %s116
    %s118 = sphi 0, %s116
    %s119 = sphi 0, %s118
    %s133 = sphi 0, %s119
    %s137 = sphi 0, %s137
    %s139 = sphi 0, %s137
    %s140 = sphi 0, %s139
    %s154 = sphi 0, %s140
    %s158 = sphi 0, %s158
    %s160 = sphi 0, %s158
    %s161 = sphi 0, %s160
    %s175 = sphi 0, %s161
    %s179 = sphi 0, %s179
    %s181 = sphi 0, %s179
    %s182 = sphi 0, %s181
    %s196 = sphi 0, %s182
    %s200 = sphi 0, %s200
    %s202 = sphi 0, %s200
    %s203 = sphi 0, %s202
    %s217 = sphi 0, %s203
    %s221 = sphi 0, %s221
    %s223 = sphi 0, %s221
    %s224 = sphi 0, %s223
    %s238 = sphi 0, %s224
    %s242 = sphi 0, %s242
    %s244 = sphi 0, %s242
    %s245 = sphi 0, %s244
    %s259 = sphi 0, %s245
    %s263 = sphi 0, %s263
    %s265 = sphi 0, %s263
    %s266 = sphi 0, %s265
    %s280 = sphi 0, %s266
    %s284 = sphi 0, %s284
    %s286 = sphi 0, %s284
    %s287 = sphi 0, %s286
    %s301 = sphi 0, %s287
    %s307 = sphi 0, %s309
    %s310 = sphi 0, %s307
    %s311 = sphi 0, %s310
    %s327 = sphi 0, %s311
  $region4: #{net_forward.1} parent=0 // loop_header_branch
    %22 = sbr.rel (%p20) target = $region8
  $region5: #{net_forward.1} parent=0 // loop_body
    %s24 = ssub.s32 %s19, 1
    %s25 = ssub.s32 %s19, 2
    %s26 = sadd.s32 %s19, 1
    %s27 = ssub.s32 %s19, %s26
    %p28 = scmp.eq.s32.totalorder %s27, 0
    %s30 = sadd.s32 %s29, 1
    %s31 = scalar_select %p28, %s29, %s30
    %p34 = pneg %p28
    %p35 = scmp.eq.s32.totalorder %s19, 1
    %p36 = por %p34, %p35
    %p37 = scmp.ne.s32.totalorder %s29, %s32
    %p38 = scmp.eq.s32.totalorder %s19, 0
    %p39 = por %p37, %p38
    %p40 = scmp.ne.s32.totalorder %s29, %s32
    %p41 = scmp.eq.s32.totalorder %s24, 1
    %p42 = por %p40, %p41
    %p43 = scmp.ne.s32.totalorder %s32, %s33
    %p44 = scmp.eq.s32.totalorder %s24, 0
    %p45 = por %p43, %p44
    %p46 = scmp.ne.s32.totalorder %s32, %s33
    %p47 = scmp.eq.s32.totalorder %s25, 1
    %p48 = por %p46, %p47
    %p50 = scmp.ne.s32.totalorder %s33, %s49
    %p51 = scmp.eq.s32.totalorder %s25, 0
    %p52 = por %p50, %p51
    %s54 = sadd.s32 %s53, 1
    %p57 = scmp.eq.s32.totalorder %s19, 1
    %p58 = scmp.ne.s32.totalorder %s53, %s55
    %p59 = scmp.eq.s32.totalorder %s19, 0
    %p60 = por %p58, %p59
    %p61 = scmp.ne.s32.totalorder %s53, %s55
    %p62 = scmp.eq.s32.totalorder %s24, 1
    %p63 = por %p61, %p62
    %p64 = scmp.ne.s32.totalorder %s55, %s56
    %p65 = scmp.eq.s32.totalorder %s24, 0
    %p66 = por %p64, %p65
    %p67 = scmp.ne.s32.totalorder %s55, %s56
    %p68 = scmp.eq.s32.totalorder %s25, 1
    %p69 = por %p67, %p68
    %p71 = scmp.ne.s32.totalorder %s56, %s70
    %p72 = scmp.eq.s32.totalorder %s25, 0
    %p73 = por %p71, %p72
    %s75 = sadd.s32 %s74, 1
    %p78 = scmp.eq.s32.totalorder %s19, 1
    %p79 = scmp.ne.s32.totalorder %s74, %s76
    %p80 = scmp.eq.s32.totalorder %s19, 0
    %p81 = por %p79, %p80
    %p82 = scmp.ne.s32.totalorder %s74, %s76
    %p83 = scmp.eq.s32.totalorder %s24, 1
    %p84 = por %p82, %p83
    %p85 = scmp.ne.s32.totalorder %s76, %s77
    %p86 = scmp.eq.s32.totalorder %s24, 0
    %p87 = por %p85, %p86
    %p88 = scmp.ne.s32.totalorder %s76, %s77
    %p89 = scmp.eq.s32.totalorder %s25, 1
    %p90 = por %p88, %p89
    %p92 = scmp.ne.s32.totalorder %s77, %s91
    %p93 = scmp.eq.s32.totalorder %s25, 0
    %p94 = por %p92, %p93
    %s96 = sadd.s32 %s95, 1
    %p99 = scmp.eq.s32.totalorder %s19, 1
    %p100 = scmp.ne.s32.totalorder %s95, %s97
    %p101 = scmp.eq.s32.totalorder %s19, 0
    %p102 = por %p100, %p101
    %p103 = scmp.ne.s32.totalorder %s95, %s97
    %p104 = scmp.eq.s32.totalorder %s24, 1
    %p105 = por %p103, %p104
    %p106 = scmp.ne.s32.totalorder %s97, %s98
    %p107 = scmp.eq.s32.totalorder %s24, 0
    %p108 = por %p106, %p107
    %p109 = scmp.ne.s32.totalorder %s97, %s98
    %p110 = scmp.eq.s32.totalorder %s25, 1
    %p111 = por %p109, %p110
    %p113 = scmp.ne.s32.totalorder %s98, %s112
    %p114 = scmp.eq.s32.totalorder %s25, 0
    %p115 = por %p113, %p114
    %s117 = sadd.s32 %s116, 1
    %p120 = scmp.eq.s32.totalorder %s19, 1
    %p121 = scmp.ne.s32.totalorder %s116, %s118
    %p122 = scmp.eq.s32.totalorder %s19, 0
    %p123 = por %p121, %p122
    %p124 = scmp.ne.s32.totalorder %s116, %s118
    %p125 = scmp.eq.s32.totalorder %s24, 1
    %p126 = por %p124, %p125
    %p127 = scmp.ne.s32.totalorder %s118, %s119
    %p128 = scmp.eq.s32.totalorder %s24, 0
    %p129 = por %p127, %p128
    %p130 = scmp.ne.s32.totalorder %s118, %s119
    %p131 = scmp.eq.s32.totalorder %s25, 1
    %p132 = por %p130, %p131
    %p134 = scmp.ne.s32.totalorder %s119, %s133
    %p135 = scmp.eq.s32.totalorder %s25, 0
    %p136 = por %p134, %p135
    %s138 = sadd.s32 %s137, 1
    %p141 = scmp.eq.s32.totalorder %s19, 1
    %p142 = scmp.ne.s32.totalorder %s137, %s139
    %p143 = scmp.eq.s32.totalorder %s19, 0
    %p144 = por %p142, %p143
    %p145 = scmp.ne.s32.totalorder %s137, %s139
    %p146 = scmp.eq.s32.totalorder %s24, 1
    %p147 = por %p145, %p146
    %p148 = scmp.ne.s32.totalorder %s139, %s140
    %p149 = scmp.eq.s32.totalorder %s24, 0
    %p150 = por %p148, %p149
    %p151 = scmp.ne.s32.totalorder %s139, %s140
    %p152 = scmp.eq.s32.totalorder %s25, 1
    %p153 = por %p151, %p152
    %p155 = scmp.ne.s32.totalorder %s140, %s154
    %p156 = scmp.eq.s32.totalorder %s25, 0
    %p157 = por %p155, %p156
    %s159 = sadd.s32 %s158, 1
    %p162 = scmp.eq.s32.totalorder %s19, 1
    %p163 = scmp.ne.s32.totalorder %s158, %s160
    %p164 = scmp.eq.s32.totalorder %s19, 0
    %p165 = por %p163, %p164
    %p166 = scmp.ne.s32.totalorder %s158, %s160
    %p167 = scmp.eq.s32.totalorder %s24, 1
    %p168 = por %p166, %p167
    %p169 = scmp.ne.s32.totalorder %s160, %s161
    %p170 = scmp.eq.s32.totalorder %s24, 0
    %p171 = por %p169, %p170
    %p172 = scmp.ne.s32.totalorder %s160, %s161
    %p173 = scmp.eq.s32.totalorder %s25, 1
    %p174 = por %p172, %p173
    %p176 = scmp.ne.s32.totalorder %s161, %s175
    %p177 = scmp.eq.s32.totalorder %s25, 0
    %p178 = por %p176, %p177
    %s180 = sadd.s32 %s179, 1
    %p183 = scmp.eq.s32.totalorder %s19, 1
    %p184 = scmp.ne.s32.totalorder %s179, %s181
    %p185 = scmp.eq.s32.totalorder %s19, 0
    %p186 = por %p184, %p185
    %p187 = scmp.ne.s32.totalorder %s179, %s181
    %p188 = scmp.eq.s32.totalorder %s24, 1
    %p189 = por %p187, %p188
    %p190 = scmp.ne.s32.totalorder %s181, %s182
    %p191 = scmp.eq.s32.totalorder %s24, 0
    %p192 = por %p190, %p191
    %p193 = scmp.ne.s32.totalorder %s181, %s182
    %p194 = scmp.eq.s32.totalorder %s25, 1
    %p195 = por %p193, %p194
    %p197 = scmp.ne.s32.totalorder %s182, %s196
    %p198 = scmp.eq.s32.totalorder %s25, 0
    %p199 = por %p197, %p198
    %s201 = sadd.s32 %s200, 1
    %p204 = scmp.eq.s32.totalorder %s19, 1
    %p205 = scmp.ne.s32.totalorder %s200, %s202
    %p206 = scmp.eq.s32.totalorder %s19, 0
    %p207 = por %p205, %p206
    %p208 = scmp.ne.s32.totalorder %s200, %s202
    %p209 = scmp.eq.s32.totalorder %s24, 1
    %p210 = por %p208, %p209
    %p211 = scmp.ne.s32.totalorder %s202, %s203
    %p212 = scmp.eq.s32.totalorder %s24, 0
    %p213 = por %p211, %p212
    %p214 = scmp.ne.s32.totalorder %s202, %s203
    %p215 = scmp.eq.s32.totalorder %s25, 1
    %p216 = por %p214, %p215
    %p218 = scmp.ne.s32.totalorder %s203, %s217
    %p219 = scmp.eq.s32.totalorder %s25, 0
    %p220 = por %p218, %p219
    %s222 = sadd.s32 %s221, 1
    %p225 = scmp.eq.s32.totalorder %s19, 1
    %p226 = scmp.ne.s32.totalorder %s221, %s223
    %p227 = scmp.eq.s32.totalorder %s19, 0
    %p228 = por %p226, %p227
    %p229 = scmp.ne.s32.totalorder %s221, %s223
    %p230 = scmp.eq.s32.totalorder %s24, 1
    %p231 = por %p229, %p230
    %p232 = scmp.ne.s32.totalorder %s223, %s224
    %p233 = scmp.eq.s32.totalorder %s24, 0
    %p234 = por %p232, %p233
    %p235 = scmp.ne.s32.totalorder %s223, %s224
    %p236 = scmp.eq.s32.totalorder %s25, 1
    %p237 = por %p235, %p236
    %p239 = scmp.ne.s32.totalorder %s224, %s238
    %p240 = scmp.eq.s32.totalorder %s25, 0
    %p241 = por %p239, %p240
    %s243 = sadd.s32 %s242, 1
    %p246 = scmp.eq.s32.totalorder %s19, 1
    %p247 = scmp.ne.s32.totalorder %s242, %s244
    %p248 = scmp.eq.s32.totalorder %s19, 0
    %p249 = por %p247, %p248
    %p250 = scmp.ne.s32.totalorder %s242, %s244
    %p251 = scmp.eq.s32.totalorder %s24, 1
    %p252 = por %p250, %p251
    %p253 = scmp.ne.s32.totalorder %s244, %s245
    %p254 = scmp.eq.s32.totalorder %s24, 0
    %p255 = por %p253, %p254
    %p256 = scmp.ne.s32.totalorder %s244, %s245
    %p257 = scmp.eq.s32.totalorder %s25, 1
    %p258 = por %p256, %p257
    %p260 = scmp.ne.s32.totalorder %s245, %s259
    %p261 = scmp.eq.s32.totalorder %s25, 0
    %p262 = por %p260, %p261
    %s264 = sadd.s32 %s263, 1
    %p267 = scmp.eq.s32.totalorder %s19, 1
    %p268 = scmp.ne.s32.totalorder %s263, %s265
    %p269 = scmp.eq.s32.totalorder %s19, 0
    %p270 = por %p268, %p269
    %p271 = scmp.ne.s32.totalorder %s263, %s265
    %p272 = scmp.eq.s32.totalorder %s24, 1
    %p273 = por %p271, %p272
    %p274 = scmp.ne.s32.totalorder %s265, %s266
    %p275 = scmp.eq.s32.totalorder %s24, 0
    %p276 = por %p274, %p275
    %p277 = scmp.ne.s32.totalorder %s265, %s266
    %p278 = scmp.eq.s32.totalorder %s25, 1
    %p279 = por %p277, %p278
    %p281 = scmp.ne.s32.totalorder %s266, %s280
    %p282 = scmp.eq.s32.totalorder %s25, 0
    %p283 = por %p281, %p282
    %s285 = sadd.s32 %s284, 1
    %p288 = scmp.eq.s32.totalorder %s19, 1
    %p289 = scmp.ne.s32.totalorder %s284, %s286
    %p290 = scmp.eq.s32.totalorder %s19, 0
    %p291 = por %p289, %p290
    %p292 = scmp.ne.s32.totalorder %s284, %s286
    %p293 = scmp.eq.s32.totalorder %s24, 1
    %p294 = por %p292, %p293
    %p295 = scmp.ne.s32.totalorder %s286, %s287
    %p296 = scmp.eq.s32.totalorder %s24, 0
    %p297 = por %p295, %p296
    %p298 = scmp.ne.s32.totalorder %s286, %s287
    %p299 = scmp.eq.s32.totalorder %s25, 1
    %p300 = por %p298, %p299
    %p302 = scmp.ne.s32.totalorder %s287, %s301
    %p303 = scmp.eq.s32.totalorder %s25, 0
    %p304 = por %p302, %p303
    %s305 = ssub.s32 %s19, %s26
    %p306 = scmp.eq.s32.totalorder %s305, 0
    %s308 = sadd.s32 %s307, 1
    %s309 = scalar_select %p306, %s307, %s308
    %p312 = pneg %p306
    %p313 = scmp.eq.s32.totalorder %s19, 1
    %p314 = por %p312, %p313
    %p315 = scmp.ne.s32.totalorder %s307, %s310
    %p316 = scmp.eq.s32.totalorder %s19, 0
    %p317 = por %p315, %p316
    %p318 = scmp.ne.s32.totalorder %s307, %s310
    %p319 = scmp.eq.s32.totalorder %s24, 1
    %p320 = por %p318, %p319
    %p321 = scmp.ne.s32.totalorder %s310, %s311
    %p322 = scmp.eq.s32.totalorder %s24, 0
    %p323 = por %p321, %p322
    %p324 = scmp.ne.s32.totalorder %s310, %s311
    %p325 = scmp.eq.s32.totalorder %s25, 1
    %p326 = por %p324, %p325
    %p328 = scmp.ne.s32.totalorder %s311, %s327
    %p329 = scmp.eq.s32.totalorder %s25, 0
    %p330 = por %p328, %p329
    %p331 = scmp.le.s32.totalorder 1, %s19
    %p332 = scmp.lt.s32.totalorder %s19, 3
    %p333 = pnand %p331, %p332
    %p334 = pneg %p333
    // Predicated region
    $region9: #{net_forward.1} parent=5 // pred_check
      _
    $region10: #{net_forward.1} parent=5 // pred_check_branch
      %336 = sbr.rel (%p333) target = $region12
    $region11: #{net_forward.1} parent=5 // pred_region
      %s337 = ssub.s32 %s19, 1
      // Predicated region
      $region13: #{net_forward.1} parent=11 // pred_check
        %p338 = pneg %p66
      $region14: #{net_forward.1} parent=11 // pred_check_branch
        %340 = sbr.rel (%p338) target = $region16
      $region15: #{net_forward.1} parent=11 // pred_region
        _
      $region16: #{net_forward.1} parent=11 // pred_fallthru
        _
      // Predicated region
      $region17: #{net_forward.1} parent=11 // pred_check
        %p341 = pneg %p87
      $region18: #{net_forward.1} parent=11 // pred_check_branch
        %343 = sbr.rel (%p341) target = $region20
      $region19: #{net_forward.1} parent=11 // pred_region
        _
      $region20: #{net_forward.1} parent=11 // pred_fallthru
        _
      // Predicated region
      $region21: #{net_forward.1} parent=11 // pred_check
        %p344 = pneg %p108
      $region22: #{net_forward.1} parent=11 // pred_check_branch
        %346 = sbr.rel (%p344) target = $region24
      $region23: #{net_forward.1} parent=11 // pred_region
        _
      $region24: #{net_forward.1} parent=11 // pred_fallthru
        _
      // Predicated region
      $region25: #{net_forward.1} parent=11 // pred_check
        %p347 = pneg %p129
      $region26: #{net_forward.1} parent=11 // pred_check_branch
        %349 = sbr.rel (%p347) target = $region28
      $region27: #{net_forward.1} parent=11 // pred_region
        _
      $region28: #{net_forward.1} parent=11 // pred_fallthru
        _
      // Predicated region
      $region29: #{net_forward.1} parent=11 // pred_check
        %p350 = pneg %p150
      $region30: #{net_forward.1} parent=11 // pred_check_branch
        %352 = sbr.rel (%p350) target = $region32
      $region31: #{net_forward.1} parent=11 // pred_region
        _
      $region32: #{net_forward.1} parent=11 // pred_fallthru
        _
      // Predicated region
      $region33: #{net_forward.1} parent=11 // pred_check
        %p353 = pneg %p171
      $region34: #{net_forward.1} parent=11 // pred_check_branch
        %355 = sbr.rel (%p353) target = $region36
      $region35: #{net_forward.1} parent=11 // pred_region
        _
      $region36: #{net_forward.1} parent=11 // pred_fallthru
        _
      // Predicated region
      $region37: #{net_forward.1} parent=11 // pred_check
        %p356 = pneg %p192
      $region38: #{net_forward.1} parent=11 // pred_check_branch
        %358 = sbr.rel (%p356) target = $region40
      $region39: #{net_forward.1} parent=11 // pred_region
        _
      $region40: #{net_forward.1} parent=11 // pred_fallthru
        _
      // Predicated region
      $region41: #{net_forward.1} parent=11 // pred_check
        %p359 = pneg %p213
      $region42: #{net_forward.1} parent=11 // pred_check_branch
        %361 = sbr.rel (%p359) target = $region44
      $region43: #{net_forward.1} parent=11 // pred_region
        _
      $region44: #{net_forward.1} parent=11 // pred_fallthru
        _
      // Predicated region
      $region45: #{net_forward.1} parent=11 // pred_check
        %p362 = pneg %p234
      $region46: #{net_forward.1} parent=11 // pred_check_branch
        %364 = sbr.rel (%p362) target = $region48
      $region47: #{net_forward.1} parent=11 // pred_region
        _
      $region48: #{net_forward.1} parent=11 // pred_fallthru
        _
      // Predicated region
      $region49: #{net_forward.1} parent=11 // pred_check
        %p365 = pneg %p255
      $region50: #{net_forward.1} parent=11 // pred_check_branch
        %367 = sbr.rel (%p365) target = $region52
      $region51: #{net_forward.1} parent=11 // pred_region
        _
      $region52: #{net_forward.1} parent=11 // pred_fallthru
        _
      // Predicated region
      $region53: #{net_forward.1} parent=11 // pred_check
        %p368 = pneg %p276
      $region54: #{net_forward.1} parent=11 // pred_check_branch
        %370 = sbr.rel (%p368) target = $region56
      $region55: #{net_forward.1} parent=11 // pred_region
        _
      $region56: #{net_forward.1} parent=11 // pred_fallthru
        _
      // Predicated region
      $region57: #{net_forward.1} parent=11 // pred_check
        %p371 = pneg %p297
      $region58: #{net_forward.1} parent=11 // pred_check_branch
        %373 = sbr.rel (%p371) target = $region60
      $region59: #{net_forward.1} parent=11 // pred_region
        _
      $region60: #{net_forward.1} parent=11 // pred_fallthru
        _
    $region12: #{net_forward.1} parent=5 // pred_fallthru
      _
    %p374 = scmp.lt.s32.totalorder %s19, 2
    // Predicated region
    $region61: #{net_forward.1} parent=5 // pred_check
      %p375 = pneg %p374
    $region62: #{net_forward.1} parent=5 // pred_check_branch
      %377 = sbr.rel (%p375) target = $region64
    $region63: #{net_forward.1} parent=5 // pred_region
      // Predicated region
      $region65: #{net_forward.1} parent=63 // pred_check
        %p378 = pneg %p39
      $region66: #{net_forward.1} parent=63 // pred_check_branch
        %380 = sbr.rel (%p378) target = $region68
      $region67: #{net_forward.1} parent=63 // pred_region
        %s381 = smul.u32 18, %s19
        %p382 = scmp.lt.s32.totalorder %s381, 35
        %s383 = scalar_select %p382, %s381, 35
        %s384 = smul.addr %s383, 2
        %s385 = smul.addr %s384, 8
        %s386 = scalar_lea.vmem %s0, %s385
        %s387 = smul.u32 18, %s19
      $region68: #{net_forward.1} parent=63 // pred_fallthru
        _
    $region64: #{net_forward.1} parent=5 // pred_fallthru
      _
    %p388 = scmp.le.s32.totalorder 1, %s19
    %p389 = scmp.lt.s32.totalorder %s19, 3
    %p390 = pnand %p388, %p389
    %p391 = pneg %p390
    // Predicated region
    $region69: #{net_forward.1} parent=5 // pred_check
      _
    $region70: #{net_forward.1} parent=5 // pred_check_branch
      %393 = sbr.rel (%p390) target = $region72
    $region71: #{net_forward.1} parent=5 // pred_region
      %s394 = ssub.s32 %s19, 1
      %s395 = smul.u32 18, %s24
      %p396 = scmp.lt.s32.totalorder %s395, 35
      %s397 = scalar_select %p396, %s395, 35
      %s398 = smul.addr %s397, 2
      %s399 = smul.addr %s398, 8
      %s400 = scalar_lea.vmem %s0, %s399
      %p401 = pneg %p45
      %p402 = pneg %p42
      %p403 = pneg %p66
      %p404 = pneg %p63
      %p405 = pneg %p87
      %p406 = pneg %p84
      %p407 = pneg %p108
      %p408 = pneg %p105
      %p409 = pneg %p129
      %p410 = pneg %p126
      %p411 = pneg %p150
      %p412 = pneg %p147
      %p413 = pneg %p171
      %p414 = pneg %p168
      %p415 = pneg %p192
      %p416 = pneg %p189
      %p417 = pneg %p213
      %p418 = pneg %p210
      %p419 = pneg %p234
      %p420 = pneg %p231
      %p421 = pneg %p255
      %p422 = pneg %p252
      %p423 = pneg %p276
      %p424 = pneg %p273
      %p425 = pneg %p297
      %p426 = pneg %p294
      %p427 = pneg %p323
      %p428 = pneg %p320
      %s429 = smul.u32 2, %s24
      %p430 = scmp.lt.s32.totalorder %s429, 3
      %s431 = scalar_select %p430, %s429, 3
      %s432 = smul.addr %s431, 2
      %s433 = smul.addr %s432, 8
      %s434 = scalar_lea.vmem %s13, %s433
      %s435 = smul.u32 18, %s24
      %p436 = scmp.lt.s32.totalorder %s435, 35
      %s437 = scalar_select %p436, %s435, 35
      %s438 = smul.addr %s437, 2
      %s439 = smul.addr %s438, 8
      %s440 = scalar_lea.vmem %s0, %s439
      %s441 = smul.u32 18, %s24
      %s442 = smul.u32 2, %s24
      %p443 = scmp.lt.s32.totalorder %s442, 3
      %s444 = scalar_select %p443, %s442, 3
      %s445 = smul.addr %s444, 2
      %s446 = smul.addr %s445, 8
      %s447 = scalar_lea.vmem %s13, %s446
      %s448 = smul.u32 2, %s24
      %v449 = vld [vmem:[%s440] sm:$0xff]
      %v450 = vld [vmem:[%s440 + $0x8] sm:$0xff]
      %v451 = vld [vmem:[%s440 + $0x10] sm:$0xff]
      %v452 = vld [vmem:[%s440 + $0x18] sm:$0xff]
      %v453 = vld [vmem:[%s440 + $0x20] sm:$0xff]
      %v454 = vld [vmem:[%s440 + $0x28] sm:$0xff]
      %v455 = vld [vmem:[%s440 + $0x30] sm:$0xff]
      %v456 = vld [vmem:[%s440 + $0x38] sm:$0xff]
      %v457 = vld [vmem:[%s440 + $0x40] sm:$0xff]
      %v458 = vld [vmem:[%s440 + $0x48] sm:$0xff]
      %v459 = vld [vmem:[%s440 + $0x50] sm:$0xff]
      %v460 = vld [vmem:[%s440 + $0x58] sm:$0xff]
      %v461 = vld [vmem:[%s440 + $0x60] sm:$0xff]
      %v462 = vld [vmem:[%s440 + $0x68] sm:$0xff]
      %v463 = vld [vmem:[%s440 + $0x70] sm:$0xff]
      %v464 = vld [vmem:[%s440 + $0x78] sm:$0xff]
      %v465 = vld [vmem:[%s440 + $0x80] sm:$0xff]
      %v466 = vld [vmem:[%s440 + $0x88] sm:$0xff]
      %v467 = vld [vmem:[%s440 + $0x90] sm:$0xff]
      %v468 = vld [vmem:[%s440 + $0x98] sm:$0xff]
      %v469 = vld [vmem:[%s440 + $0xa0] sm:$0xff]
      %v470 = vld [vmem:[%s440 + $0xa8] sm:$0xff]
      %v471 = vld [vmem:[%s440 + $0xb0] sm:$0xff]
      %v472 = vld [vmem:[%s440 + $0xb8] sm:$0xff]
      %v473 = vld [vmem:[%s440 + $0xc0] sm:$0xff]
      %v474 = vld [vmem:[%s440 + $0xc8] sm:$0xff]
      %v475 = vld [vmem:[%s440 + $0xd0] sm:$0xff]
      %v476 = vld [vmem:[%s440 + $0xd8] sm:$0xff]
      %v477 = vld [vmem:[%s440 + $0xe0] sm:$0xff]
      %v478 = vld [vmem:[%s440 + $0xe8] sm:$0xff]
      %v479 = vld [vmem:[%s440 + $0xf0] sm:$0xff]
      %v480 = vld [vmem:[%s440 + $0xf8] sm:$0xff]
      %v481 = vld [vmem:[%s440 + $0x100] sm:$0xff]
      %v482 = vld [vmem:[%s440 + $0x108] sm:$0xff]
      %v483 = vld [vmem:[%s440 + $0x110] sm:$0x3f]
      %v484 = vld [vmem:[%s440 + $0x118] sm:$0x3f]
      %v485 = vld [vmem:[%s1] sm:$0xff]
      %v486 = vld [vmem:[%s1 + $0x8] sm:$0xff]
      %v487 = vld [vmem:[%s1 + $0x10] sm:$0xff]
      %v488 = vld [vmem:[%s1 + $0x18] sm:$0xff]
      %v489 = vld [vmem:[%s1 + $0x20] sm:$0xff]
      %v490 = vld [vmem:[%s1 + $0x28] sm:$0xff]
      %v491 = vld [vmem:[%s1 + $0x30] sm:$0xff]
      %v492 = vld [vmem:[%s1 + $0x38] sm:$0xff]
      %v493 = vld [vmem:[%s1 + $0x40] sm:$0xff]
      %v494 = vld [vmem:[%s1 + $0x48] sm:$0xff]
      %v495 = vld [vmem:[%s1 + $0x50] sm:$0xff]
      %v496 = vld [vmem:[%s1 + $0x58] sm:$0xff]
      %v497 = vld [vmem:[%s1 + $0x60] sm:$0xff]
      %v498 = vld [vmem:[%s1 + $0x68] sm:$0xff]
      %v499 = vld [vmem:[%s1 + $0x70] sm:$0xff]
      %v500 = vld [vmem:[%s1 + $0x78] sm:$0xff]
      %v501 = vld [vmem:[%s1 + $0x80] sm:$0xff]
      %v502 = vld [vmem:[%s1 + $0x88] sm:$0xff]
      %v503 = vld [vmem:[%s1 + $0x90] sm:$0xff]
      %v504 = vld [vmem:[%s1 + $0x98] sm:$0xff]
      %v505 = vld [vmem:[%s1 + $0xa0] sm:$0xff]
      %v506 = vld [vmem:[%s1 + $0xa8] sm:$0xff]
      %v507 = vld [vmem:[%s1 + $0xb0] sm:$0xff]
      %v508 = vld [vmem:[%s1 + $0xb8] sm:$0xff]
      %v509 = vld [vmem:[%s1 + $0xc0] sm:$0xff]
      %v510 = vld [vmem:[%s1 + $0xc8] sm:$0xff]
      %v511 = vld [vmem:[%s1 + $0xd0] sm:$0xff]
      %v512 = vld [vmem:[%s1 + $0xd8] sm:$0xff]
      %v513 = vld [vmem:[%s1 + $0xe0] sm:$0xff]
      %v514 = vld [vmem:[%s1 + $0xe8] sm:$0xff]
      %v515 = vld [vmem:[%s1 + $0xf0] sm:$0xff]
      %v516 = vld [vmem:[%s1 + $0xf8] sm:$0xff]
      %v517 = vld [vmem:[%s1 + $0x100] sm:$0xff]
      %v518 = vld [vmem:[%s1 + $0x108] sm:$0xff]
      %v519 = vld [vmem:[%s1 + $0x110] sm:$0xff]
      %v520 = vld [vmem:[%s1 + $0x118] sm:$0xff]
      %v521 = vld [vmem:[%s1 + $0x120] sm:$0xff]
      %v522 = vld [vmem:[%s1 + $0x128] sm:$0xff]
      %v523 = vld [vmem:[%s1 + $0x130] sm:$0xff]
      %v524 = vld [vmem:[%s1 + $0x138] sm:$0xff]
      %v525 = vld [vmem:[%s1 + $0x140] sm:$0xff]
      %v526 = vld [vmem:[%s1 + $0x148] sm:$0xff]
      %v527 = vld [vmem:[%s1 + $0x150] sm:$0xff]
      %v528 = vld [vmem:[%s1 + $0x158] sm:$0xff]
      %v529 = vld [vmem:[%s1 + $0x160] sm:$0xff]
      %v530 = vld [vmem:[%s1 + $0x168] sm:$0xff]
      %v531 = vld [vmem:[%s1 + $0x170] sm:$0xff]
      %v532 = vld [vmem:[%s1 + $0x178] sm:$0xff]
      %v533 = vld [vmem:[%s1 + $0x180] sm:$0xff]
      %v534 = vld [vmem:[%s1 + $0x188] sm:$0xff]
      %v535 = vld [vmem:[%s1 + $0x190] sm:$0xff]
      %v536 = vld [vmem:[%s1 + $0x198] sm:$0xff]
      %v537 = vld [vmem:[%s1 + $0x1a0] sm:$0xff]
      %v538 = vld [vmem:[%s1 + $0x1a8] sm:$0xff]
      %v539 = vld [vmem:[%s1 + $0x1b0] sm:$0xff]
      %v540 = vld [vmem:[%s1 + $0x1b8] sm:$0xff]
      %v541 = vld [vmem:[%s1 + $0x1c0] sm:$0xff]
      %v542 = vld [vmem:[%s1 + $0x1c8] sm:$0xff]
      %v543 = vld [vmem:[%s1 + $0x1d0] sm:$0xff]
      %v544 = vld [vmem:[%s1 + $0x1d8] sm:$0xff]
      %v545 = vld [vmem:[%s1 + $0x1e0] sm:$0xff]
      %v546 = vld [vmem:[%s1 + $0x1e8] sm:$0xff]
      %v547 = vld [vmem:[%s1 + $0x1f0] sm:$0xff]
      %v548 = vld [vmem:[%s1 + $0x1f8] sm:$0xff]
      %v549 = vld [vmem:[%s1 + $0x200] sm:$0xff]
      %v550 = vld [vmem:[%s1 + $0x208] sm:$0xff]
      %v551 = vld [vmem:[%s1 + $0x210] sm:$0xff]
      %v552 = vld [vmem:[%s1 + $0x218] sm:$0xff]
      %v553 = vld [vmem:[%s1 + $0x220] sm:$0xff]
      %v554 = vld [vmem:[%s1 + $0x228] sm:$0xff]
      %v555 = vld [vmem:[%s1 + $0x230] sm:$0xff]
      %v556 = vld [vmem:[%s1 + $0x238] sm:$0xff]
      %v557 = vld [vmem:[%s1 + $0x240] sm:$0xff]
      %v558 = vld [vmem:[%s1 + $0x248] sm:$0xff]
      %v559 = vld [vmem:[%s1 + $0x250] sm:$0xff]
      %v560 = vld [vmem:[%s1 + $0x258] sm:$0xff]
      %v561 = vld [vmem:[%s1 + $0x260] sm:$0xff]
      %v562 = vld [vmem:[%s1 + $0x268] sm:$0xff]
      %v563 = vld [vmem:[%s1 + $0x270] sm:$0xff]
      %v564 = vld [vmem:[%s1 + $0x278] sm:$0xff]
      %v565 = vld [vmem:[%s1 + $0x280] sm:$0xff]
      %v566 = vld [vmem:[%s1 + $0x288] sm:$0xff]
      %v567 = vld [vmem:[%s1 + $0x290] sm:$0xff]
      %v568 = vld [vmem:[%s1 + $0x298] sm:$0xff]
      %v569 = vld [vmem:[%s1 + $0x2a0] sm:$0xff]
      %v570 = vld [vmem:[%s1 + $0x2a8] sm:$0xff]
      %v571 = vld [vmem:[%s1 + $0x2b0] sm:$0xff]
      %v572 = vld [vmem:[%s1 + $0x2b8] sm:$0xff]
      %v573 = vld [vmem:[%s1 + $0x2c0] sm:$0xff]
      %v574 = vld [vmem:[%s1 + $0x2c8] sm:$0xff]
      %v575 = vld [vmem:[%s1 + $0x2d0] sm:$0xff]
      %v576 = vld [vmem:[%s1 + $0x2d8] sm:$0xff]
      %v577 = vld [vmem:[%s1 + $0x2e0] sm:$0xff]
      %v578 = vld [vmem:[%s1 + $0x2e8] sm:$0xff]
      %v579 = vld [vmem:[%s1 + $0x2f0] sm:$0xff]
      %v580 = vld [vmem:[%s1 + $0x2f8] sm:$0xff]
      %v581 = vld [vmem:[%s440] sm:$0xfe]
      %v582 = vld [vmem:[%s440 + $0x8] sm:$0xfe]
      %v583 = vld [vmem:[%s440 + $0x110] sm:$0x7f]
      %v584 = vld [vmem:[%s440 + $0x118] sm:$0x7f]
      %s585 = scalar_lea.vmem %s1, 768
      %v586 = vld [vmem:[%s585] sm:$0xff]
      %v587 = vld [vmem:[%s585 + $0x8] sm:$0xff]
      %v588 = vld [vmem:[%s585 + $0x10] sm:$0xff]
      %v589 = vld [vmem:[%s585 + $0x18] sm:$0xff]
      %v590 = vld [vmem:[%s585 + $0x20] sm:$0xff]
      %v591 = vld [vmem:[%s585 + $0x28] sm:$0xff]
      %v592 = vld [vmem:[%s585 + $0x30] sm:$0xff]
      %v593 = vld [vmem:[%s585 + $0x38] sm:$0xff]
      %v594 = vld [vmem:[%s585 + $0x40] sm:$0xff]
      %v595 = vld [vmem:[%s585 + $0x48] sm:$0xff]
      %v596 = vld [vmem:[%s585 + $0x50] sm:$0xff]
      %v597 = vld [vmem:[%s585 + $0x58] sm:$0xff]
      %v598 = vld [vmem:[%s585 + $0x60] sm:$0xff]
      %v599 = vld [vmem:[%s585 + $0x68] sm:$0xff]
      %v600 = vld [vmem:[%s585 + $0x70] sm:$0xff]
      %v601 = vld [vmem:[%s585 + $0x78] sm:$0xff]
      %v602 = vld [vmem:[%s585 + $0x80] sm:$0xff]
      %v603 = vld [vmem:[%s585 + $0x88] sm:$0xff]
      %v604 = vld [vmem:[%s585 + $0x90] sm:$0xff]
      %v605 = vld [vmem:[%s585 + $0x98] sm:$0xff]
      %v606 = vld [vmem:[%s585 + $0xa0] sm:$0xff]
      %v607 = vld [vmem:[%s585 + $0xa8] sm:$0xff]
      %v608 = vld [vmem:[%s585 + $0xb0] sm:$0xff]
      %v609 = vld [vmem:[%s585 + $0xb8] sm:$0xff]
      %v610 = vld [vmem:[%s585 + $0xc0] sm:$0xff]
      %v611 = vld [vmem:[%s585 + $0xc8] sm:$0xff]
      %v612 = vld [vmem:[%s585 + $0xd0] sm:$0xff]
      %v613 = vld [vmem:[%s585 + $0xd8] sm:$0xff]
      %v614 = vld [vmem:[%s585 + $0xe0] sm:$0xff]
      %v615 = vld [vmem:[%s585 + $0xe8] sm:$0xff]
      %v616 = vld [vmem:[%s585 + $0xf0] sm:$0xff]
      %v617 = vld [vmem:[%s585 + $0xf8] sm:$0xff]
      %v618 = vld [vmem:[%s585 + $0x100] sm:$0xff]
      %v619 = vld [vmem:[%s585 + $0x108] sm:$0xff]
      %v620 = vld [vmem:[%s585 + $0x110] sm:$0xff]
      %v621 = vld [vmem:[%s585 + $0x118] sm:$0xff]
      %v622 = vld [vmem:[%s585 + $0x120] sm:$0xff]
      %v623 = vld [vmem:[%s585 + $0x128] sm:$0xff]
      %v624 = vld [vmem:[%s585 + $0x130] sm:$0xff]
      %v625 = vld [vmem:[%s585 + $0x138] sm:$0xff]
      %v626 = vld [vmem:[%s585 + $0x140] sm:$0xff]
      %v627 = vld [vmem:[%s585 + $0x148] sm:$0xff]
      %v628 = vld [vmem:[%s585 + $0x150] sm:$0xff]
      %v629 = vld [vmem:[%s585 + $0x158] sm:$0xff]
      %v630 = vld [vmem:[%s585 + $0x160] sm:$0xff]
      %v631 = vld [vmem:[%s585 + $0x168] sm:$0xff]
      %v632 = vld [vmem:[%s585 + $0x170] sm:$0xff]
      %v633 = vld [vmem:[%s585 + $0x178] sm:$0xff]
      %v634 = vld [vmem:[%s585 + $0x180] sm:$0xff]
      %v635 = vld [vmem:[%s585 + $0x188] sm:$0xff]
      %v636 = vld [vmem:[%s585 + $0x190] sm:$0xff]
      %v637 = vld [vmem:[%s585 + $0x198] sm:$0xff]
      %v638 = vld [vmem:[%s585 + $0x1a0] sm:$0xff]
      %v639 = vld [vmem:[%s585 + $0x1a8] sm:$0xff]
      %v640 = vld [vmem:[%s585 + $0x1b0] sm:$0xff]
      %v641 = vld [vmem:[%s585 + $0x1b8] sm:$0xff]
      %v642 = vld [vmem:[%s585 + $0x1c0] sm:$0xff]
      %v643 = vld [vmem:[%s585 + $0x1c8] sm:$0xff]
      %v644 = vld [vmem:[%s585 + $0x1d0] sm:$0xff]
      %v645 = vld [vmem:[%s585 + $0x1d8] sm:$0xff]
      %v646 = vld [vmem:[%s585 + $0x1e0] sm:$0xff]
      %v647 = vld [vmem:[%s585 + $0x1e8] sm:$0xff]
      %v648 = vld [vmem:[%s585 + $0x1f0] sm:$0xff]
      %v649 = vld [vmem:[%s585 + $0x1f8] sm:$0xff]
      %v650 = vld [vmem:[%s585 + $0x200] sm:$0xff]
      %v651 = vld [vmem:[%s585 + $0x208] sm:$0xff]
      %v652 = vld [vmem:[%s585 + $0x210] sm:$0xff]
      %v653 = vld [vmem:[%s585 + $0x218] sm:$0xff]
      %v654 = vld [vmem:[%s585 + $0x220] sm:$0xff]
      %v655 = vld [vmem:[%s585 + $0x228] sm:$0xff]
      %v656 = vld [vmem:[%s585 + $0x230] sm:$0xff]
      %v657 = vld [vmem:[%s585 + $0x238] sm:$0xff]
      %v658 = vld [vmem:[%s585 + $0x240] sm:$0xff]
      %v659 = vld [vmem:[%s585 + $0x248] sm:$0xff]
      %v660 = vld [vmem:[%s585 + $0x250] sm:$0xff]
      %v661 = vld [vmem:[%s585 + $0x258] sm:$0xff]
      %v662 = vld [vmem:[%s585 + $0x260] sm:$0xff]
      %v663 = vld [vmem:[%s585 + $0x268] sm:$0xff]
      %v664 = vld [vmem:[%s585 + $0x270] sm:$0xff]
      %v665 = vld [vmem:[%s585 + $0x278] sm:$0xff]
      %v666 = vld [vmem:[%s585 + $0x280] sm:$0xff]
      %v667 = vld [vmem:[%s585 + $0x288] sm:$0xff]
      %v668 = vld [vmem:[%s585 + $0x290] sm:$0xff]
      %v669 = vld [vmem:[%s585 + $0x298] sm:$0xff]
      %v670 = vld [vmem:[%s585 + $0x2a0] sm:$0xff]
      %v671 = vld [vmem:[%s585 + $0x2a8] sm:$0xff]
      %v672 = vld [vmem:[%s585 + $0x2b0] sm:$0xff]
      %v673 = vld [vmem:[%s585 + $0x2b8] sm:$0xff]
      %v674 = vld [vmem:[%s585 + $0x2c0] sm:$0xff]
      %v675 = vld [vmem:[%s585 + $0x2c8] sm:$0xff]
      %v676 = vld [vmem:[%s585 + $0x2d0] sm:$0xff]
      %v677 = vld [vmem:[%s585 + $0x2d8] sm:$0xff]
      %v678 = vld [vmem:[%s585 + $0x2e0] sm:$0xff]
      %v679 = vld [vmem:[%s585 + $0x2e8] sm:$0xff]
      %v680 = vld [vmem:[%s585 + $0x2f0] sm:$0xff]
      %v681 = vld [vmem:[%s585 + $0x2f8] sm:$0xff]
      %vm718 = vcmask 1046528
      %v719 = vrot.slane %v581, 1
      %v720 = vrot.slane %v451, 1
      %v721 = vsel %vm718, %v719, %v720
      %v722 = vrot.slane %v582, 1
      %v723 = vrot.slane %v452, 1
      %v724 = vsel %vm718, %v722, %v723
      %v725 = vrot.slane %v453, 1
      %v726 = vsel %vm718, %v720, %v725
      %v727 = vrot.slane %v454, 1
      %v728 = vsel %vm718, %v723, %v727
      %v729 = vrot.slane %v455, 1
      %v730 = vsel %vm718, %v725, %v729
      %v731 = vrot.slane %v456, 1
      %v732 = vsel %vm718, %v727, %v731
      %v733 = vrot.slane %v457, 1
      %v734 = vsel %vm718, %v729, %v733
      %v735 = vrot.slane %v458, 1
      %v736 = vsel %vm718, %v731, %v735
      %v737 = vrot.slane %v459, 1
      %v738 = vsel %vm718, %v733, %v737
      %v739 = vrot.slane %v460, 1
      %v740 = vsel %vm718, %v735, %v739
      %v741 = vrot.slane %v461, 1
      %v742 = vsel %vm718, %v737, %v741
      %v743 = vrot.slane %v462, 1
      %v744 = vsel %vm718, %v739, %v743
      %v745 = vrot.slane %v463, 1
      %v746 = vsel %vm718, %v741, %v745
      %v747 = vrot.slane %v464, 1
      %v748 = vsel %vm718, %v743, %v747
      %v749 = vrot.slane %v465, 1
      %v750 = vsel %vm718, %v745, %v749
      %v751 = vrot.slane %v466, 1
      %v752 = vsel %vm718, %v747, %v751
      %v753 = vrot.slane %v467, 1
      %v754 = vsel %vm718, %v749, %v753
      %v755 = vrot.slane %v468, 1
      %v756 = vsel %vm718, %v751, %v755
      %v757 = vrot.slane %v469, 1
      %v758 = vsel %vm718, %v753, %v757
      %v759 = vrot.slane %v470, 1
      %v760 = vsel %vm718, %v755, %v759
      %v761 = vrot.slane %v471, 1
      %v762 = vsel %vm718, %v757, %v761
      %v763 = vrot.slane %v472, 1
      %v764 = vsel %vm718, %v759, %v763
      %v765 = vrot.slane %v473, 1
      %v766 = vsel %vm718, %v761, %v765
      %v767 = vrot.slane %v474, 1
      %v768 = vsel %vm718, %v763, %v767
      %v769 = vrot.slane %v475, 1
      %v770 = vsel %vm718, %v765, %v769
      %v771 = vrot.slane %v476, 1
      %v772 = vsel %vm718, %v767, %v771
      %v773 = vrot.slane %v477, 1
      %v774 = vsel %vm718, %v769, %v773
      %v775 = vrot.slane %v478, 1
      %v776 = vsel %vm718, %v771, %v775
      %v777 = vrot.slane %v479, 1
      %v778 = vsel %vm718, %v773, %v777
      %v779 = vrot.slane %v480, 1
      %v780 = vsel %vm718, %v775, %v779
      %v781 = vrot.slane %v481, 1
      %v782 = vsel %vm718, %v777, %v781
      %v783 = vrot.slane %v482, 1
      %v784 = vsel %vm718, %v779, %v783
      %v785 = vrot.slane %v583, 1
      %v786 = vsel %vm718, %v781, %v785
      %v787 = vrot.slane %v584, 1
      %v788 = vsel %vm718, %v783, %v787
      %vm807 = vcmask 523264
      %v808 = vsel %vm807, %v724, 0
      %v810 = vsel %vm807, %v728, 0
      %v812 = vsel %vm807, %v732, 0
      %v814 = vsel %vm807, %v736, 0
      %v816 = vsel %vm807, %v740, 0
      %v818 = vsel %vm807, %v744, 0
      %v820 = vsel %vm807, %v748, 0
      %v822 = vsel %vm807, %v752, 0
      %v824 = vsel %vm807, %v756, 0
      %v826 = vsel %vm807, %v760, 0
      %v828 = vsel %vm807, %v764, 0
      %v830 = vsel %vm807, %v768, 0
      %v832 = vsel %vm807, %v772, 0
      %v834 = vsel %vm807, %v776, 0
      %v836 = vsel %vm807, %v780, 0
      %v838 = vsel %vm807, %v784, 0
      %v840 = vsel %vm807, %v788, 0
      %v842 = vsel %vm807, %v787, 0
      %844 = vmatprep.subr.mxu0 %v587
      %845 = vmatpush1.msra.mxu0 %v586
      %846 = vmatprep.subr.mxu0 %v591
      %847 = vmatpush1.msra.mxu0 %v590
      %848 = vmatprep.subr.mxu0 %v595
      %849 = vmatpush1.msra.mxu0 %v594
      %850 = vmatprep.subr.mxu0 %v599
      %851 = vmatpush1.msra.mxu0 %v598
      %852 = vmatprep.subr.mxu0 %v603
      %853 = vmatpush1.msra.mxu0 %v602
      %854 = vmatprep.subr.mxu0 %v607
      %855 = vmatpush1.msra.mxu0 %v606
      %856 = vmatprep.subr.mxu0 %v611
      %857 = vmatpush1.msra.mxu0 %v610
      %858 = vmatprep.subr.mxu0 %v615
      %859 = vmatpush1.msra.mxu0 %v614
      %860 = vmatprep.subr.mxu0 %v619
      %861 = vmatpush1.msra.mxu0 %v618
      %862 = vmatprep.subr.mxu0 %v623
      %863 = vmatpush1.msra.mxu0 %v622
      %864 = vmatprep.subr.mxu0 %v627
      %865 = vmatpush1.msra.mxu0 %v626
      %866 = vmatprep.subr.mxu0 %v631
      %867 = vmatpush1.msra.mxu0 %v630
      %868 = vmatprep.subr.mxu0 %v635
      %869 = vmatpush1.msra.mxu0 %v634
      %870 = vmatprep.subr.mxu0 %v639
      %871 = vmatpush1.msra.mxu0 %v638
      %872 = vmatprep.subr.mxu0 %v643
      %873 = vmatpush1.msra.mxu0 %v642
      %874 = vmatprep.subr.mxu0 %v647
      %875 = vmatpush1.msra.mxu0 %v646
      %876 = vmatprep.subr.mxu0 %v651
      %877 = vmatpush1.msra.mxu0 %v650
      %878 = vmatprep.subr.mxu0 %v655
      %879 = vmatpush1.msra.mxu0 %v654
      %880 = vmatprep.subr.mxu0 %v659
      %881 = vmatpush1.msra.mxu0 %v658
      %882 = vmatprep.subr.mxu0 %v663
      %883 = vmatpush1.msra.mxu0 %v662
      %884 = vmatprep.subr.mxu0 %v667
      %885 = vmatpush1.msra.mxu0 %v666
      %886 = vmatprep.subr.mxu0 %v671
      %887 = vmatpush1.msra.mxu0 %v670
      %888 = vmatprep.subr.mxu0 %v675
      %889 = vmatpush1.msra.mxu0 %v674
      %890 = vmatprep.subr.mxu0 %v679
      %891 = vmatpush1.msra.mxu0 %v678
      %892 = vmatprep.subr.mxu0 0.0
      %893 = vmatpush1.msra.mxu0 0.0
      %894 = vmatprep.subr.mxu0 0.0
      %895 = vmatpush1.msra.mxu0 0.0
      %896 = vmatprep.subr.mxu0 0.0
      %897 = vmatpush1.msra.mxu0 0.0
      %898 = vmatprep.subr.mxu0 0.0
      %899 = vmatpush1.msra.mxu0 0.0
      %900 = vmatprep.subr.mxu0 0.0
      %901 = vmatpush1.msra.mxu0 0.0
      %902 = vmatprep.subr.mxu0 0.0
      %903 = vmatpush1.msra.mxu0 0.0
      %904 = vmatprep.subr.mxu0 0.0
      %905 = vmatpush1.msra.mxu0 0.0
      %906 = vmatprep.subr.mxu0 0.0
      %907 = vmatpush1.msra.mxu0 0.0
      %908 = vmatprep.mubr.f32.mxu0 %v808
      %909 = vmatmul.mubr.f32.gmra.mrb[0].mxu0 %v721
      %v910 = vpop.f32.mrb[0].mxu0
      %v911 = vadd.f32 0.0, %v910
      %v912 = vpop.f32.mrb[0].mxu0
      %v913 = vadd.f32 0.0, %v912
      %914 = vmatprep.mubr.f32.mxu0 %v810
      %915 = vmatmul.mubr.f32.gmra.mrb[0].mxu0 %v726
      %v916 = vpop.f32.mrb[0].mxu0
      %v917 = vadd.f32 0.0, %v916
      %v918 = vpop.f32.mrb[0].mxu0
      %v919 = vadd.f32 0.0, %v918
      %920 = vmatprep.mubr.f32.mxu0 %v812
      %921 = vmatmul.mubr.f32.gmra.mrb[0].mxu0 %v730
      %v922 = vpop.f32.mrb[0].mxu0
      %v923 = vadd.f32 0.0, %v922
      %v924 = vpop.f32.mrb[0].mxu0
      %v925 = vadd.f32 0.0, %v924
      %926 = vmatprep.mubr.f32.mxu0 %v814
      %927 = vmatmul.mubr.f32.gmra.mrb[0].mxu0 %v734
      %v928 = vpop.f32.mrb[0].mxu0
      %v929 = vadd.f32 0.0, %v928
      %v930 = vpop.f32.mrb[0].mxu0
      %v931 = vadd.f32 0.0, %v930
      %932 = vmatprep.mubr.f32.mxu0 %v816
      %933 = vmatmul.mubr.f32.gmra.mrb[0].mxu0 %v738
      %v934 = vpop.f32.mrb[0].mxu0
      %v935 = vadd.f32 0.0, %v934
      %v936 = vpop.f32.mrb[0].mxu0
      %v937 = vadd.f32 0.0, %v936
      %938 = vmatprep.mubr.f32.mxu0 %v818
      %939 = vmatmul.mubr.f32.gmra.mrb[0].mxu0 %v742
      %v940 = vpop.f32.mrb[0].mxu0
      %v941 = vadd.f32 0.0, %v940
      %v942 = vpop.f32.mrb[0].mxu0
      %v943 = vadd.f32 0.0, %v942
      %944 = vmatprep.mubr.f32.mxu0 %v820
      %945 = vmatmul.mubr.f32.gmra.mrb[0].mxu0 %v746
      %v946 = vpop.f32.mrb[0].mxu0
      %v947 = vadd.f32 0.0, %v946
      %v948 = vpop.f32.mrb[0].mxu0
      %v949 = vadd.f32 0.0, %v948
      %950 = vmatprep.mubr.f32.mxu0 %v822
      %951 = vmatmul.mubr.f32.gmra.mrb[0].mxu0 %v750
      %v952 = vpop.f32.mrb[0].mxu0
      %v953 = vadd.f32 0.0, %v952
      %v954 = vpop.f32.mrb[0].mxu0
      %v955 = vadd.f32 0.0, %v954
      %956 = vmatprep.mubr.f32.mxu0 %v824
      %957 = vmatmul.mubr.f32.gmra.mrb[0].mxu0 %v754
      %v958 = vpop.f32.mrb[0].mxu0
      %v959 = vadd.f32 0.0, %v958
      %v960 = vpop.f32.mrb[0].mxu0
      %v961 = vadd.f32 0.0, %v960
      %962 = vmatprep.mubr.f32.mxu0 %v826
      %963 = vmatmul.mubr.f32.gmra.mrb[0].mxu0 %v758
      %v964 = vpop.f32.mrb[0].mxu0
      %v965 = vadd.f32 0.0, %v964
      %v966 = vpop.f32.mrb[0].mxu0
      %v967 = vadd.f32 0.0, %v966
      %968 = vmatprep.mubr.f32.mxu0 %v828
      %969 = vmatmul.mubr.f32.gmra.mrb[0].mxu0 %v762
      %v970 = vpop.f32.mrb[0].mxu0
      %v971 = vadd.f32 0.0, %v970
      %v972 = vpop.f32.mrb[0].mxu0
      %v973 = vadd.f32 0.0, %v972
      %974 = vmatprep.mubr.f32.mxu0 %v830
      %975 = vmatmul.mubr.f32.gmra.mrb[0].mxu0 %v766
      %v976 = vpop.f32.mrb[0].mxu0
      %v977 = vadd.f32 0.0, %v976
      %v978 = vpop.f32.mrb[0].mxu0
      %v979 = vadd.f32 0.0, %v978
      %980 = vmatprep.mubr.f32.mxu0 %v832
      %981 = vmatmul.mubr.f32.gmra.mrb[0].mxu0 %v770
      %v982 = vpop.f32.mrb[0].mxu0
      %v983 = vadd.f32 0.0, %v982
      %v984 = vpop.f32.mrb[0].mxu0
      %v985 = vadd.f32 0.0, %v984
      %986 = vmatprep.mubr.f32.mxu0 %v834
      %987 = vmatmul.mubr.f32.gmra.mrb[0].mxu0 %v774
      %v988 = vpop.f32.mrb[0].mxu0
      %v989 = vadd.f32 0.0, %v988
      %v990 = vpop.f32.mrb[0].mxu0
      %v991 = vadd.f32 0.0, %v990
      %992 = vmatprep.mubr.f32.mxu0 %v836
      %993 = vmatmul.mubr.f32.gmra.mrb[0].mxu0 %v778
      %v994 = vpop.f32.mrb[0].mxu0
      %v995 = vadd.f32 0.0, %v994
      %v996 = vpop.f32.mrb[0].mxu0
      %v997 = vadd.f32 0.0, %v996
      %998 = vmatprep.mubr.f32.mxu0 %v838
      %999 = vmatmul.mubr.f32.gmra.mrb[0].mxu0 %v782
      %v1000 = vpop.f32.mrb[0].mxu0
      %v1001 = vadd.f32 0.0, %v1000
      %v1002 = vpop.f32.mrb[0].mxu0
      %v1003 = vadd.f32 0.0, %v1002
      %1004 = vmatprep.mubr.f32.mxu0 %v840
      %1005 = vmatmul.mubr.f32.gmra.mrb[0].mxu0 %v786
      %v1006 = vpop.f32.mrb[0].mxu0
      %v1007 = vadd.f32 0.0, %v1006
      %v1008 = vpop.f32.mrb[0].mxu0
      %v1009 = vadd.f32 0.0, %v1008
      %1010 = vmatprep.mubr.f32.mxu0 %v842
      %1011 = vmatmul.mubr.f32.gmra.mrb[0].mxu0 %v785
      %v1012 = vpop.f32.mrb[0].mxu0
      %v1013 = vadd.f32 0.0, %v1012
      %v1014 = vpop.f32.mrb[0].mxu0
      %v1015 = vadd.f32 0.0, %v1014
      %1016 = vdwg.mxu0
      %1017 = vmatprep.subr.mxu0 %v589
      %1018 = vmatpush1.msra.mxu0 %v588
      %1019 = vmatprep.subr.mxu0 %v593
      %1020 = vmatpush1.msra.mxu0 %v592
      %1021 = vmatprep.subr.mxu0 %v597
      %1022 = vmatpush1.msra.mxu0 %v596
      %1023 = vmatprep.subr.mxu0 %v601
      %1024 = vmatpush1.msra.mxu0 %v600
      %1025 = vmatprep.subr.mxu0 %v605
      %1026 = vmatpush1.msra.mxu0 %v604
      %1027 = vmatprep.subr.mxu0 %v609
      %1028 = vmatpush1.msra.mxu0 %v608
      %1029 = vmatprep.subr.mxu0 %v613
      %1030 = vmatpush1.msra.mxu0 %v612
      %1031 = vmatprep.subr.mxu0 %v617
      %1032 = vmatpush1.msra.mxu0 %v616
      %1033 = vmatprep.subr.mxu0 %v621
      %1034 = vmatpush1.msra.mxu0 %v620
      %1035 = vmatprep.subr.mxu0 %v625
      %1036 = vmatpush1.msra.mxu0 %v624
      %1037 = vmatprep.subr.mxu0 %v629
      %1038 = vmatpush1.msra.mxu0 %v628
      %1039 = vmatprep.subr.mxu0 %v633
      %1040 = vmatpush1.msra.mxu0 %v632
      %1041 = vmatprep.subr.mxu0 %v637
      %1042 = vmatpush1.msra.mxu0 %v636
      %1043 = vmatprep.subr.mxu0 %v641
      %1044 = vmatpush1.msra.mxu0 %v640
      %1045 = vmatprep.subr.mxu0 %v645
      %1046 = vmatpush1.msra.mxu0 %v644
      %1047 = vmatprep.subr.mxu0 %v649
      %1048 = vmatpush1.msra.mxu0 %v648
      %1049 = vmatprep.subr.mxu0 %v653
      %1050 = vmatpush1.msra.mxu0 %v652
      %1051 = vmatprep.subr.mxu0 %v657
      %1052 = vmatpush1.msra.mxu0 %v656
      %1053 = vmatprep.subr.mxu0 %v661
      %1054 = vmatpush1.msra.mxu0 %v660
      %1055 = vmatprep.subr.mxu0 %v665
      %1056 = vmatpush1.msra.mxu0 %v664
      %1057 = vmatprep.subr.mxu0 %v669
      %1058 = vmatpush1.msra.mxu0 %v668
      %1059 = vmatprep.subr.mxu0 %v673
      %1060 = vmatpush1.msra.mxu0 %v672
      %1061 = vmatprep.subr.mxu0 %v677
      %1062 = vmatpush1.msra.mxu0 %v676
      %1063 = vmatprep.subr.mxu0 %v681
      %1064 = vmatpush1.msra.mxu0 %v680
      %1065 = vmatprep.subr.mxu0 0.0
      %1066 = vmatpush1.msra.mxu0 0.0
      %1067 = vmatprep.subr.mxu0 0.0
      %1068 = vmatpush1.msra.mxu0 0.0
      %1069 = vmatprep.subr.mxu0 0.0
      %1070 = vmatpush1.msra.mxu0 0.0
      %1071 = vmatprep.subr.mxu0 0.0
      %1072 = vmatpush1.msra.mxu0 0.0
      %1073 = vmatprep.subr.mxu0 0.0
      %1074 = vmatpush1.msra.mxu0 0.0
      %1075 = vmatprep.subr.mxu0 0.0
      %1076 = vmatpush1.msra.mxu0 0.0
      %1077 = vmatprep.subr.mxu0 0.0
      %1078 = vmatpush1.msra.mxu0 0.0
      %1079 = vmatprep.subr.mxu0 0.0
      %1080 = vmatpush1.msra.mxu0 0.0
      %1081 = vmatprep.mubr.f32.mxu0 %v808
      %1082 = vmatmul.mubr.f32.gmra.mrb[0].mxu0 %v721
      %v1083 = vpop.f32.mrb[0].mxu0
      %v1084 = vadd.f32 0.0, %v1083
      %v1085 = vpop.f32.mrb[0].mxu0
      %v1086 = vadd.f32 0.0, %v1085
      %1087 = vmatprep.mubr.f32.mxu0 %v810
      %1088 = vmatmul.mubr.f32.gmra.mrb[0].mxu0 %v726
      %v1089 = vpop.f32.mrb[0].mxu0
      %v1090 = vadd.f32 0.0, %v1089
      %v1091 = vpop.f32.mrb[0].mxu0
      %v1092 = vadd.f32 0.0, %v1091
      %1093 = vmatprep.mubr.f32.mxu0 %v812
      %1094 = vmatmul.mubr.f32.gmra.mrb[0].mxu0 %v730
      %v1095 = vpop.f32.mrb[0].mxu0
      %v1096 = vadd.f32 0.0, %v1095
      %v1097 = vpop.f32.mrb[0].mxu0
      %v1098 = vadd.f32 0.0, %v1097
      %1099 = vmatprep.mubr.f32.mxu0 %v814
      %1100 = vmatmul.mubr.f32.gmra.mrb[0].mxu0 %v734
      %v1101 = vpop.f32.mrb[0].mxu0
      %v1102 = vadd.f32 0.0, %v1101
      %v1103 = vpop.f32.mrb[0].mxu0
      %v1104 = vadd.f32 0.0, %v1103
      %1105 = vmatprep.mubr.f32.mxu0 %v816
      %1106 = vmatmul.mubr.f32.gmra.mrb[0].mxu0 %v738
      %v1107 = vpop.f32.mrb[0].mxu0
      %v1108 = vadd.f32 0.0, %v1107
      %v1109 = vpop.f32.mrb[0].mxu0
      %v1110 = vadd.f32 0.0, %v1109
      %1111 = vmatprep.mubr.f32.mxu0 %v818
      %1112 = vmatmul.mubr.f32.gmra.mrb[0].mxu0 %v742
      %v1113 = vpop.f32.mrb[0].mxu0
      %v1114 = vadd.f32 0.0, %v1113
      %v1115 = vpop.f32.mrb[0].mxu0
      %v1116 = vadd.f32 0.0, %v1115
      %1117 = vmatprep.mubr.f32.mxu0 %v820
      %1118 = vmatmul.mubr.f32.gmra.mrb[0].mxu0 %v746
      %v1119 = vpop.f32.mrb[0].mxu0
      %v1120 = vadd.f32 0.0, %v1119
      %v1121 = vpop.f32.mrb[0].mxu0
      %v1122 = vadd.f32 0.0, %v1121
      %1123 = vmatprep.mubr.f32.mxu0 %v822
      %1124 = vmatmul.mubr.f32.gmra.mrb[0].mxu0 %v750
      %v1125 = vpop.f32.mrb[0].mxu0
      %v1126 = vadd.f32 0.0, %v1125
      %v1127 = vpop.f32.mrb[0].mxu0
      %v1128 = vadd.f32 0.0, %v1127
      %1129 = vmatprep.mubr.f32.mxu0 %v824
      %1130 = vmatmul.mubr.f32.gmra.mrb[0].mxu0 %v754
      %v1131 = vpop.f32.mrb[0].mxu0
      %v1132 = vadd.f32 0.0, %v1131
      %v1133 = vpop.f32.mrb[0].mxu0
      %v1134 = vadd.f32 0.0, %v1133
      %1135 = vmatprep.mubr.f32.mxu0 %v826
      %1136 = vmatmul.mubr.f32.gmra.mrb[0].mxu0 %v758
      %v1137 = vpop.f32.mrb[0].mxu0
      %v1138 = vadd.f32 0.0, %v1137
      %v1139 = vpop.f32.mrb[0].mxu0
      %v1140 = vadd.f32 0.0, %v1139
      %1141 = vmatprep.mubr.f32.mxu0 %v828
      %1142 = vmatmul.mubr.f32.gmra.mrb[0].mxu0 %v762
      %v1143 = vpop.f32.mrb[0].mxu0
      %v1144 = vadd.f32 0.0, %v1143
      %v1145 = vpop.f32.mrb[0].mxu0
      %v1146 = vadd.f32 0.0, %v1145
      %1147 = vmatprep.mubr.f32.mxu0 %v830
      %1148 = vmatmul.mubr.f32.gmra.mrb[0].mxu0 %v766
      %v1149 = vpop.f32.mrb[0].mxu0
      %v1150 = vadd.f32 0.0, %v1149
      %v1151 = vpop.f32.mrb[0].mxu0
      %v1152 = vadd.f32 0.0, %v1151
      %1153 = vmatprep.mubr.f32.mxu0 %v832
      %1154 = vmatmul.mubr.f32.gmra.mrb[0].mxu0 %v770
      %v1155 = vpop.f32.mrb[0].mxu0
      %v1156 = vadd.f32 0.0, %v1155
      %v1157 = vpop.f32.mrb[0].mxu0
      %v1158 = vadd.f32 0.0, %v1157
      %1159 = vmatprep.mubr.f32.mxu0 %v834
      %1160 = vmatmul.mubr.f32.gmra.mrb[0].mxu0 %v774
      %v1161 = vpop.f32.mrb[0].mxu0
      %v1162 = vadd.f32 0.0, %v1161
      %v1163 = vpop.f32.mrb[0].mxu0
      %v1164 = vadd.f32 0.0, %v1163
      %1165 = vmatprep.mubr.f32.mxu0 %v836
      %1166 = vmatmul.mubr.f32.gmra.mrb[0].mxu0 %v778
      %v1167 = vpop.f32.mrb[0].mxu0
      %v1168 = vadd.f32 0.0, %v1167
      %v1169 = vpop.f32.mrb[0].mxu0
      %v1170 = vadd.f32 0.0, %v1169
      %1171 = vmatprep.mubr.f32.mxu0 %v838
      %1172 = vmatmul.mubr.f32.gmra.mrb[0].mxu0 %v782
      %v1173 = vpop.f32.mrb[0].mxu0
      %v1174 = vadd.f32 0.0, %v1173
      %v1175 = vpop.f32.mrb[0].mxu0
      %v1176 = vadd.f32 0.0, %v1175
      %1177 = vmatprep.mubr.f32.mxu0 %v840
      %1178 = vmatmul.mubr.f32.gmra.mrb[0].mxu0 %v786
      %v1179 = vpop.f32.mrb[0].mxu0
      %v1180 = vadd.f32 0.0, %v1179
      %v1181 = vpop.f32.mrb[0].mxu0
      %v1182 = vadd.f32 0.0, %v1181
      %1183 = vmatprep.mubr.f32.mxu0 %v842
      %1184 = vmatmul.mubr.f32.gmra.mrb[0].mxu0 %v785
      %v1185 = vpop.f32.mrb[0].mxu0
      %v1186 = vadd.f32 0.0, %v1185
      %v1187 = vpop.f32.mrb[0].mxu0
      %v1188 = vadd.f32 0.0, %v1187
      %1189 = vdwg.mxu0
      %v1191 = vsel %vm807, %v450, 0
      %v1193 = vsel %vm807, %v452, 0
      %v1195 = vsel %vm807, %v454, 0
      %v1197 = vsel %vm807, %v456, 0
      %v1199 = vsel %vm807, %v458, 0
      %v1201 = vsel %vm807, %v460, 0
      %v1203 = vsel %vm807, %v462, 0
      %v1205 = vsel %vm807, %v464, 0
      %v1207 = vsel %vm807, %v466, 0
      %v1209 = vsel %vm807, %v468, 0
      %v1211 = vsel %vm807, %v470, 0
      %v1213 = vsel %vm807, %v472, 0
      %v1215 = vsel %vm807, %v474, 0
      %v1217 = vsel %vm807, %v476, 0
      %v1219 = vsel %vm807, %v478, 0
      %v1221 = vsel %vm807, %v480, 0
      %v1223 = vsel %vm807, %v482, 0
      %v1226 = vsel %vm807, %v484, 0
      %1228 = vmatprep.subr.mxu0 %v486
      %1229 = vmatpush1.msra.mxu0 %v485
      %1230 = vmatprep.subr.mxu0 %v490
      %1231 = vmatpush1.msra.mxu0 %v489
      %1232 = vmatprep.subr.mxu0 %v494
      %1233 = vmatpush1.msra.mxu0 %v493
      %1234 = vmatprep.subr.mxu0 %v498
      %1235 = vmatpush1.msra.mxu0 %v497
      %1236 = vmatprep.subr.mxu0 %v502
      %1237 = vmatpush1.msra.mxu0 %v501
      %1238 = vmatprep.subr.mxu0 %v506
      %1239 = vmatpush1.msra.mxu0 %v505
      %1240 = vmatprep.subr.mxu0 %v510
      %1241 = vmatpush1.msra.mxu0 %v509
      %1242 = vmatprep.subr.mxu0 %v514
      %1243 = vmatpush1.msra.mxu0 %v513
      %1244 = vmatprep.subr.mxu0 %v518
      %1245 = vmatpush1.msra.mxu0 %v517
      %1246 = vmatprep.subr.mxu0 %v522
      %1247 = vmatpush1.msra.mxu0 %v521
      %1248 = vmatprep.subr.mxu0 %v526
      %1249 = vmatpush1.msra.mxu0 %v525
      %1250 = vmatprep.subr.mxu0 %v530
      %1251 = vmatpush1.msra.mxu0 %v529
      %1252 = vmatprep.subr.mxu0 %v534
      %1253 = vmatpush1.msra.mxu0 %v533
      %1254 = vmatprep.subr.mxu0 %v538
      %1255 = vmatpush1.msra.mxu0 %v537
      %1256 = vmatprep.subr.mxu0 %v542
      %1257 = vmatpush1.msra.mxu0 %v541
      %1258 = vmatprep.subr.mxu0 %v546
      %1259 = vmatpush1.msra.mxu0 %v545
      %1260 = vmatprep.subr.mxu0 %v550
      %1261 = vmatpush1.msra.mxu0 %v549
      %1262 = vmatprep.subr.mxu0 %v554
      %1263 = vmatpush1.msra.mxu0 %v553
      %1264 = vmatprep.subr.mxu0 %v558
      %1265 = vmatpush1.msra.mxu0 %v557
      %1266 = vmatprep.subr.mxu0 %v562
      %1267 = vmatpush1.msra.mxu0 %v561
      %1268 = vmatprep.subr.mxu0 %v566
      %1269 = vmatpush1.msra.mxu0 %v565
      %1270 = vmatprep.subr.mxu0 %v570
      %1271 = vmatpush1.msra.mxu0 %v569
      %1272 = vmatprep.subr.mxu0 %v574
      %1273 = vmatpush1.msra.mxu0 %v573
      %1274 = vmatprep.subr.mxu0 %v578
      %1275 = vmatpush1.msra.mxu0 %v577
      %1276 = vmatprep.subr.mxu0 0.0
      %1277 = vmatpush1.msra.mxu0 0.0
      %1278 = vmatprep.subr.mxu0 0.0
      %1279 = vmatpush1.msra.mxu0 0.0
      %1280 = vmatprep.subr.mxu0 0.0
      %1281 = vmatpush1.msra.mxu0 0.0
      %1282 = vmatprep.subr.mxu0 0.0
      %1283 = vmatpush1.msra.mxu0 0.0
      %1284 = vmatprep.subr.mxu0 0.0
      %1285 = vmatpush1.msra.mxu0 0.0
      %1286 = vmatprep.subr.mxu0 0.0
      %1287 = vmatpush1.msra.mxu0 0.0
      %1288 = vmatprep.subr.mxu0 0.0
      %1289 = vmatpush1.msra.mxu0 0.0
      %1290 = vmatprep.subr.mxu0 0.0
      %1291 = vmatpush1.msra.mxu0 0.0
      %1292 = vmatprep.mubr.f32.mxu0 %v1191
      %1293 = vmatmul.mubr.f32.gmra.mrb[0].mxu0 %v449
      %v1294 = vpop.f32.mrb[0].mxu0
      %v1295 = vadd.f32 %v911, %v1294
      %v1296 = vpop.f32.mrb[0].mxu0
      %v1297 = vadd.f32 %v913, %v1296
      %1298 = vmatprep.mubr.f32.mxu0 %v1193
      %1299 = vmatmul.mubr.f32.gmra.mrb[0].mxu0 %v451
      %v1300 = vpop.f32.mrb[0].mxu0
      %v1301 = vadd.f32 %v917, %v1300
      %v1302 = vpop.f32.mrb[0].mxu0
      %v1303 = vadd.f32 %v919, %v1302
      %1304 = vmatprep.mubr.f32.mxu0 %v1195
      %1305 = vmatmul.mubr.f32.gmra.mrb[0].mxu0 %v453
      %v1306 = vpop.f32.mrb[0].mxu0
      %v1307 = vadd.f32 %v923, %v1306
      %v1308 = vpop.f32.mrb[0].mxu0
      %v1309 = vadd.f32 %v925, %v1308
      %1310 = vmatprep.mubr.f32.mxu0 %v1197
      %1311 = vmatmul.mubr.f32.gmra.mrb[0].mxu0 %v455
      %v1312 = vpop.f32.mrb[0].mxu0
      %v1313 = vadd.f32 %v929, %v1312
      %v1314 = vpop.f32.mrb[0].mxu0
      %v1315 = vadd.f32 %v931, %v1314
      %1316 = vmatprep.mubr.f32.mxu0 %v1199
      %1317 = vmatmul.mubr.f32.gmra.mrb[0].mxu0 %v457
      %v1318 = vpop.f32.mrb[0].mxu0
      %v1319 = vadd.f32 %v935, %v1318
      %v1320 = vpop.f32.mrb[0].mxu0
      %v1321 = vadd.f32 %v937, %v1320
      %1322 = vmatprep.mubr.f32.mxu0 %v1201
      %1323 = vmatmul.mubr.f32.gmra.mrb[0].mxu0 %v459
      %v1324 = vpop.f32.mrb[0].mxu0
      %v1325 = vadd.f32 %v941, %v1324
      %v1326 = vpop.f32.mrb[0].mxu0
      %v1327 = vadd.f32 %v943, %v1326
      %1328 = vmatprep.mubr.f32.mxu0 %v1203
      %1329 = vmatmul.mubr.f32.gmra.mrb[0].mxu0 %v461
      %v1330 = vpop.f32.mrb[0].mxu0
      %v1331 = vadd.f32 %v947, %v1330
      %v1332 = vpop.f32.mrb[0].mxu0
      %v1333 = vadd.f32 %v949, %v1332
      %1334 = vmatprep.mubr.f32.mxu0 %v1205
      %1335 = vmatmul.mubr.f32.gmra.mrb[0].mxu0 %v463
      %v1336 = vpop.f32.mrb[0].mxu0
      %v1337 = vadd.f32 %v953, %v1336
      %v1338 = vpop.f32.mrb[0].mxu0
      %v1339 = vadd.f32 %v955, %v1338
      %1340 = vmatprep.mubr.f32.mxu0 %v1207
      %1341 = vmatmul.mubr.f32.gmra.mrb[0].mxu0 %v465
      %v1342 = vpop.f32.mrb[0].mxu0
      %v1343 = vadd.f32 %v959, %v1342
      %v1344 = vpop.f32.mrb[0].mxu0
      %v1345 = vadd.f32 %v961, %v1344
      %1346 = vmatprep.mubr.f32.mxu0 %v1209
      %1347 = vmatmul.mubr.f32.gmra.mrb[0].mxu0 %v467
      %v1348 = vpop.f32.mrb[0].mxu0
      %v1349 = vadd.f32 %v965, %v1348
      %v1350 = vpop.f32.mrb[0].mxu0
      %v1351 = vadd.f32 %v967, %v1350
      %1352 = vmatprep.mubr.f32.mxu0 %v1211
      %1353 = vmatmul.mubr.f32.gmra.mrb[0].mxu0 %v469
      %v1354 = vpop.f32.mrb[0].mxu0
      %v1355 = vadd.f32 %v971, %v1354
      %v1356 = vpop.f32.mrb[0].mxu0
      %v1357 = vadd.f32 %v973, %v1356
      %1358 = vmatprep.mubr.f32.mxu0 %v1213
      %1359 = vmatmul.mubr.f32.gmra.mrb[0].mxu0 %v471
      %v1360 = vpop.f32.mrb[0].mxu0
      %v1361 = vadd.f32 %v977, %v1360
      %v1362 = vpop.f32.mrb[0].mxu0
      %v1363 = vadd.f32 %v979, %v1362
      %1364 = vmatprep.mubr.f32.mxu0 %v1215
      %1365 = vmatmul.mubr.f32.gmra.mrb[0].mxu0 %v473
      %v1366 = vpop.f32.mrb[0].mxu0
      %v1367 = vadd.f32 %v983, %v1366
      %v1368 = vpop.f32.mrb[0].mxu0
      %v1369 = vadd.f32 %v985, %v1368
      %1370 = vmatprep.mubr.f32.mxu0 %v1217
      %1371 = vmatmul.mubr.f32.gmra.mrb[0].mxu0 %v475
      %v1372 = vpop.f32.mrb[0].mxu0
      %v1373 = vadd.f32 %v989, %v1372
      %v1374 = vpop.f32.mrb[0].mxu0
      %v1375 = vadd.f32 %v991, %v1374
      %1376 = vmatprep.mubr.f32.mxu0 %v1219
      %1377 = vmatmul.mubr.f32.gmra.mrb[0].mxu0 %v477
      %v1378 = vpop.f32.mrb[0].mxu0
      %v1379 = vadd.f32 %v995, %v1378
      %v1380 = vpop.f32.mrb[0].mxu0
      %v1381 = vadd.f32 %v997, %v1380
      %1382 = vmatprep.mubr.f32.mxu0 %v1221
      %1383 = vmatmul.mubr.f32.gmra.mrb[0].mxu0 %v479
      %v1384 = vpop.f32.mrb[0].mxu0
      %v1385 = vadd.f32 %v1001, %v1384
      %v1386 = vpop.f32.mrb[0].mxu0
      %v1387 = vadd.f32 %v1003, %v1386
      %1388 = vmatprep.mubr.f32.mxu0 %v1223
      %1389 = vmatmul.mubr.f32.gmra.mrb[0].mxu0 %v481
      %v1390 = vpop.f32.mrb[0].mxu0
      %v1391 = vadd.f32 %v1007, %v1390
      %v1392 = vpop.f32.mrb[0].mxu0
      %v1393 = vadd.f32 %v1009, %v1392
      %1394 = vmatprep.mubr.f32.mxu0 %v1226
      %1395 = vmatmul.mubr.f32.gmra.mrb[0].mxu0 %v483
      %v1396 = vpop.f32.mrb[0].mxu0
      %v1397 = vadd.f32 %v1013, %v1396
      %v1398 = vpop.f32.mrb[0].mxu0
      %v1399 = vadd.f32 %v1015, %v1398
      %1400 = vdwg.mxu0
      %1401 = vmatprep.subr.mxu0 %v488
      %1402 = vmatpush1.msra.mxu0 %v487
      %1403 = vmatprep.subr.mxu0 %v492
      %1404 = vmatpush1.msra.mxu0 %v491
      %1405 = vmatprep.subr.mxu0 %v496
      %1406 = vmatpush1.msra.mxu0 %v495
      %1407 = vmatprep.subr.mxu0 %v500
      %1408 = vmatpush1.msra.mxu0 %v499
      %1409 = vmatprep.subr.mxu0 %v504
      %1410 = vmatpush1.msra.mxu0 %v503
      %1411 = vmatprep.subr.mxu0 %v508
      %1412 = vmatpush1.msra.mxu0 %v507
      %1413 = vmatprep.subr.mxu0 %v512
      %1414 = vmatpush1.msra.mxu0 %v511
      %1415 = vmatprep.subr.mxu0 %v516
      %1416 = vmatpush1.msra.mxu0 %v515
      %1417 = vmatprep.subr.mxu0 %v520
      %1418 = vmatpush1.msra.mxu0 %v519
      %1419 = vmatprep.subr.mxu0 %v524
      %1420 = vmatpush1.msra.mxu0 %v523
      %1421 = vmatprep.subr.mxu0 %v528
      %1422 = vmatpush1.msra.mxu0 %v527
      %1423 = vmatprep.subr.mxu0 %v532
      %1424 = vmatpush1.msra.mxu0 %v531
      %1425 = vmatprep.subr.mxu0 %v536
      %1426 = vmatpush1.msra.mxu0 %v535
      %1427 = vmatprep.subr.mxu0 %v540
      %1428 = vmatpush1.msra.mxu0 %v539
      %1429 = vmatprep.subr.mxu0 %v544
      %1430 = vmatpush1.msra.mxu0 %v543
      %1431 = vmatprep.subr.mxu0 %v548
      %1432 = vmatpush1.msra.mxu0 %v547
      %1433 = vmatprep.subr.mxu0 %v552
      %1434 = vmatpush1.msra.mxu0 %v551
      %1435 = vmatprep.subr.mxu0 %v556
      %1436 = vmatpush1.msra.mxu0 %v555
      %1437 = vmatprep.subr.mxu0 %v560
      %1438 = vmatpush1.msra.mxu0 %v559
      %1439 = vmatprep.subr.mxu0 %v564
      %1440 = vmatpush1.msra.mxu0 %v563
      %1441 = vmatprep.subr.mxu0 %v568
      %1442 = vmatpush1.msra.mxu0 %v567
      %1443 = vmatprep.subr.mxu0 %v572
      %1444 = vmatpush1.msra.mxu0 %v571
      %1445 = vmatprep.subr.mxu0 %v576
      %1446 = vmatpush1.msra.mxu0 %v575
      %1447 = vmatprep.subr.mxu0 %v580
      %1448 = vmatpush1.msra.mxu0 %v579
      %1449 = vmatprep.subr.mxu0 0.0
      %1450 = vmatpush1.msra.mxu0 0.0
      %1451 = vmatprep.subr.mxu0 0.0
      %1452 = vmatpush1.msra.mxu0 0.0
      %1453 = vmatprep.subr.mxu0 0.0
      %1454 = vmatpush1.msra.mxu0 0.0
      %1455 = vmatprep.subr.mxu0 0.0
      %1456 = vmatpush1.msra.mxu0 0.0
      %1457 = vmatprep.subr.mxu0 0.0
      %1458 = vmatpush1.msra.mxu0 0.0
      %1459 = vmatprep.subr.mxu0 0.0
      %1460 = vmatpush1.msra.mxu0 0.0
      %1461 = vmatprep.subr.mxu0 0.0
      %1462 = vmatpush1.msra.mxu0 0.0
      %1463 = vmatprep.subr.mxu0 0.0
      %1464 = vmatpush1.msra.mxu0 0.0
      %1465 = vmatprep.mubr.f32.mxu0 %v1191
      %1466 = vmatmul.mubr.f32.gmra.mrb[0].mxu0 %v449
      %v1467 = vpop.f32.mrb[0].mxu0
      %v1468 = vadd.f32 %v1084, %v1467
      %v1469 = vpop.f32.mrb[0].mxu0
      %v1470 = vadd.f32 %v1086, %v1469
      %1471 = vmatprep.mubr.f32.mxu0 %v1193
      %1472 = vmatmul.mubr.f32.gmra.mrb[0].mxu0 %v451
      %v1473 = vpop.f32.mrb[0].mxu0
      %v1474 = vadd.f32 %v1090, %v1473
      %v1475 = vpop.f32.mrb[0].mxu0
      %v1476 = vadd.f32 %v1092, %v1475
      %1477 = vmatprep.mubr.f32.mxu0 %v1195
      %1478 = vmatmul.mubr.f32.gmra.mrb[0].mxu0 %v453
      %v1479 = vpop.f32.mrb[0].mxu0
      %v1480 = vadd.f32 %v1096, %v1479
      %v1481 = vpop.f32.mrb[0].mxu0
      %v1482 = vadd.f32 %v1098, %v1481
      %1483 = vmatprep.mubr.f32.mxu0 %v1197
      %1484 = vmatmul.mubr.f32.gmra.mrb[0].mxu0 %v455
      %v1485 = vpop.f32.mrb[0].mxu0
      %v1486 = vadd.f32 %v1102, %v1485
      %v1487 = vpop.f32.mrb[0].mxu0
      %v1488 = vadd.f32 %v1104, %v1487
      %1489 = vmatprep.mubr.f32.mxu0 %v1199
      %1490 = vmatmul.mubr.f32.gmra.mrb[0].mxu0 %v457
      %v1491 = vpop.f32.mrb[0].mxu0
      %v1492 = vadd.f32 %v1108, %v1491
      %v1493 = vpop.f32.mrb[0].mxu0
      %v1494 = vadd.f32 %v1110, %v1493
      %1495 = vmatprep.mubr.f32.mxu0 %v1201
      %1496 = vmatmul.mubr.f32.gmra.mrb[0].mxu0 %v459
      %v1497 = vpop.f32.mrb[0].mxu0
      %v1498 = vadd.f32 %v1114, %v1497
      %v1499 = vpop.f32.mrb[0].mxu0
      %v1500 = vadd.f32 %v1116, %v1499
      %1501 = vmatprep.mubr.f32.mxu0 %v1203
      %1502 = vmatmul.mubr.f32.gmra.mrb[0].mxu0 %v461
      %v1503 = vpop.f32.mrb[0].mxu0
      %v1504 = vadd.f32 %v1120, %v1503
      %v1505 = vpop.f32.mrb[0].mxu0
      %v1506 = vadd.f32 %v1122, %v1505
      %1507 = vmatprep.mubr.f32.mxu0 %v1205
      %1508 = vmatmul.mubr.f32.gmra.mrb[0].mxu0 %v463
      %v1509 = vpop.f32.mrb[0].mxu0
      %v1510 = vadd.f32 %v1126, %v1509
      %v1511 = vpop.f32.mrb[0].mxu0
      %v1512 = vadd.f32 %v1128, %v1511
      %1513 = vmatprep.mubr.f32.mxu0 %v1207
      %1514 = vmatmul.mubr.f32.gmra.mrb[0].mxu0 %v465
      %v1515 = vpop.f32.mrb[0].mxu0
      %v1516 = vadd.f32 %v1132, %v1515
      %v1517 = vpop.f32.mrb[0].mxu0
      %v1518 = vadd.f32 %v1134, %v1517
      %1519 = vmatprep.mubr.f32.mxu0 %v1209
      %1520 = vmatmul.mubr.f32.gmra.mrb[0].mxu0 %v467
      %v1521 = vpop.f32.mrb[0].mxu0
      %v1522 = vadd.f32 %v1138, %v1521
      %v1523 = vpop.f32.mrb[0].mxu0
      %v1524 = vadd.f32 %v1140, %v1523
      %1525 = vmatprep.mubr.f32.mxu0 %v1211
      %1526 = vmatmul.mubr.f32.gmra.mrb[0].mxu0 %v469
      %v1527 = vpop.f32.mrb[0].mxu0
      %v1528 = vadd.f32 %v1144, %v1527
      %v1529 = vpop.f32.mrb[0].mxu0
      %v1530 = vadd.f32 %v1146, %v1529
      %1531 = vmatprep.mubr.f32.mxu0 %v1213
      %1532 = vmatmul.mubr.f32.gmra.mrb[0].mxu0 %v471
      %v1533 = vpop.f32.mrb[0].mxu0
      %v1534 = vadd.f32 %v1150, %v1533
      %v1535 = vpop.f32.mrb[0].mxu0
      %v1536 = vadd.f32 %v1152, %v1535
      %1537 = vmatprep.mubr.f32.mxu0 %v1215
      %1538 = vmatmul.mubr.f32.gmra.mrb[0].mxu0 %v473
      %v1539 = vpop.f32.mrb[0].mxu0
      %v1540 = vadd.f32 %v1156, %v1539
      %v1541 = vpop.f32.mrb[0].mxu0
      %v1542 = vadd.f32 %v1158, %v1541
      %1543 = vmatprep.mubr.f32.mxu0 %v1217
      %1544 = vmatmul.mubr.f32.gmra.mrb[0].mxu0 %v475
      %v1545 = vpop.f32.mrb[0].mxu0
      %v1546 = vadd.f32 %v1162, %v1545
      %v1547 = vpop.f32.mrb[0].mxu0
      %v1548 = vadd.f32 %v1164, %v1547
      %1549 = vmatprep.mubr.f32.mxu0 %v1219
      %1550 = vmatmul.mubr.f32.gmra.mrb[0].mxu0 %v477
      %v1551 = vpop.f32.mrb[0].mxu0
      %v1552 = vadd.f32 %v1168, %v1551
      %v1553 = vpop.f32.mrb[0].mxu0
      %v1554 = vadd.f32 %v1170, %v1553
      %1555 = vmatprep.mubr.f32.mxu0 %v1221
      %1556 = vmatmul.mubr.f32.gmra.mrb[0].mxu0 %v479
      %v1557 = vpop.f32.mrb[0].mxu0
      %v1558 = vadd.f32 %v1174, %v1557
      %v1559 = vpop.f32.mrb[0].mxu0
      %v1560 = vadd.f32 %v1176, %v1559
      %1561 = vmatprep.mubr.f32.mxu0 %v1223
      %1562 = vmatmul.mubr.f32.gmra.mrb[0].mxu0 %v481
      %v1563 = vpop.f32.mrb[0].mxu0
      %v1564 = vadd.f32 %v1180, %v1563
      %v1565 = vpop.f32.mrb[0].mxu0
      %v1566 = vadd.f32 %v1182, %v1565
      %1567 = vmatprep.mubr.f32.mxu0 %v1226
      %1568 = vmatmul.mubr.f32.gmra.mrb[0].mxu0 %v483
      %v1569 = vpop.f32.mrb[0].mxu0
      %v1570 = vadd.f32 %v1186, %v1569
      %v1571 = vpop.f32.mrb[0].mxu0
      %v1572 = vadd.f32 %v1188, %v1571
      %1573 = vdwg.mxu0
      %v1574 = vld [vmem:[%s440] sm:$0xfc]
      %v1575 = vld [vmem:[%s440 + $0x8] sm:$0xfc]
      %v1576 = vld [vmem:[%s440 + $0x110] sm:$0xff]
      %v1577 = vld [vmem:[%s440 + $0x118] sm:$0xff]
      %s1578 = scalar_lea.vmem %s1, 1536
      %v1579 = vld [vmem:[%s1578] sm:$0xff]
      %v1580 = vld [vmem:[%s1578 + $0x8] sm:$0xff]
      %v1581 = vld [vmem:[%s1578 + $0x10] sm:$0xff]
      %v1582 = vld [vmem:[%s1578 + $0x18] sm:$0xff]
      %v1583 = vld [vmem:[%s1578 + $0x20] sm:$0xff]
      %v1584 = vld [vmem:[%s1578 + $0x28] sm:$0xff]
      %v1585 = vld [vmem:[%s1578 + $0x30] sm:$0xff]
      %v1586 = vld [vmem:[%s1578 + $0x38] sm:$0xff]
      %v1587 = vld [vmem:[%s1578 + $0x40] sm:$0xff]
      %v1588 = vld [vmem:[%s1578 + $0x48] sm:$0xff]
      %v1589 = vld [vmem:[%s1578 + $0x50] sm:$0xff]
      %v1590 = vld [vmem:[%s1578 + $0x58] sm:$0xff]
      %v1591 = vld [vmem:[%s1578 + $0x60] sm:$0xff]
      %v1592 = vld [vmem:[%s1578 + $0x68] sm:$0xff]
      %v1593 = vld [vmem:[%s1578 + $0x70] sm:$0xff]
      %v1594 = vld [vmem:[%s1578 + $0x78] sm:$0xff]
      %v1595 = vld [vmem:[%s1578 + $0x80] sm:$0xff]
      %v1596 = vld [vmem:[%s1578 + $0x88] sm:$0xff]
      %v1597 = vld [vmem:[%s1578 + $0x90] sm:$0xff]
      %v1598 = vld [vmem:[%s1578 + $0x98] sm:$0xff]
      %v1599 = vld [vmem:[%s1578 + $0xa0] sm:$0xff]
      %v1600 = vld [vmem:[%s1578 + $0xa8] sm:$0xff]
      %v1601 = vld [vmem:[%s1578 + $0xb0] sm:$0xff]
      %v1602 = vld [vmem:[%s1578 + $0xb8] sm:$0xff]
      %v1603 = vld [vmem:[%s1578 + $0xc0] sm:$0xff]
      %v1604 = vld [vmem:[%s1578 + $0xc8] sm:$0xff]
      %v1605 = vld [vmem:[%s1578 + $0xd0] sm:$0xff]
      %v1606 = vld [vmem:[%s1578 + $0xd8] sm:$0xff]
      %v1607 = vld [vmem:[%s1578 + $0xe0] sm:$0xff]
      %v1608 = vld [vmem:[%s1578 + $0xe8] sm:$0xff]
      %v1609 = vld [vmem:[%s1578 + $0xf0] sm:$0xff]
      %v1610 = vld [vmem:[%s1578 + $0xf8] sm:$0xff]
      %v1611 = vld [vmem:[%s1578 + $0x100] sm:$0xff]
      %v1612 = vld [vmem:[%s1578 + $0x108] sm:$0xff]
      %v1613 = vld [vmem:[%s1578 + $0x110] sm:$0xff]
      %v1614 = vld [vmem:[%s1578 + $0x118] sm:$0xff]
      %v1615 = vld [vmem:[%s1578 + $0x120] sm:$0xff]
      %v1616 = vld [vmem:[%s1578 + $0x128] sm:$0xff]
      %v1617 = vld [vmem:[%s1578 + $0x130] sm:$0xff]
      %v1618 = vld [vmem:[%s1578 + $0x138] sm:$0xff]
      %v1619 = vld [vmem:[%s1578 + $0x140] sm:$0xff]
      %v1620 = vld [vmem:[%s1578 + $0x148] sm:$0xff]
      %v1621 = vld [vmem:[%s1578 + $0x150] sm:$0xff]
      %v1622 = vld [vmem:[%s1578 + $0x158] sm:$0xff]
      %v1623 = vld [vmem:[%s1578 + $0x160] sm:$0xff]
      %v1624 = vld [vmem:[%s1578 + $0x168] sm:$0xff]
      %v1625 = vld [vmem:[%s1578 + $0x170] sm:$0xff]
      %v1626 = vld [vmem:[%s1578 + $0x178] sm:$0xff]
      %v1627 = vld [vmem:[%s1578 + $0x180] sm:$0xff]
      %v1628 = vld [vmem:[%s1578 + $0x188] sm:$0xff]
      %v1629 = vld [vmem:[%s1578 + $0x190] sm:$0xff]
      %v1630 = vld [vmem:[%s1578 + $0x198] sm:$0xff]
      %v1631 = vld [vmem:[%s1578 + $0x1a0] sm:$0xff]
      %v1632 = vld [vmem:[%s1578 + $0x1a8] sm:$0xff]
      %v1633 = vld [vmem:[%s1578 + $0x1b0] sm:$0xff]
      %v1634 = vld [vmem:[%s1578 + $0x1b8] sm:$0xff]
      %v1635 = vld [vmem:[%s1578 + $0x1c0] sm:$0xff]
      %v1636 = vld [vmem:[%s1578 + $0x1c8] sm:$0xff]
      %v1637 = vld [vmem:[%s1578 + $0x1d0] sm:$0xff]
      %v1638 = vld [vmem:[%s1578 + $0x1d8] sm:$0xff]
      %v1639 = vld [vmem:[%s1578 + $0x1e0] sm:$0xff]
      %v1640 = vld [vmem:[%s1578 + $0x1e8] sm:$0xff]
      %v1641 = vld [vmem:[%s1578 + $0x1f0] sm:$0xff]
      %v1642 = vld [vmem:[%s1578 + $0x1f8] sm:$0xff]
      %v1643 = vld [vmem:[%s1578 + $0x200] sm:$0xff]
      %v1644 = vld [vmem:[%s1578 + $0x208] sm:$0xff]
      %v1645 = vld [vmem:[%s1578 + $0x210] sm:$0xff]
      %v1646 = vld [vmem:[%s1578 + $0x218] sm:$0xff]
      %v1647 = vld [vmem:[%s1578 + $0x220] sm:$0xff]
      %v1648 = vld [vmem:[%s1578 + $0x228] sm:$0xff]
      %v1649 = vld [vmem:[%s1578 + $0x230] sm:$0xff]
      %v1650 = vld [vmem:[%s1578 + $0x238] sm:$0xff]
      %v1651 = vld [vmem:[%s1578 + $0x240] sm:$0xff]
      %v1652 = vld [vmem:[%s1578 + $0x248] sm:$0xff]
      %v1653 = vld [vmem:[%s1578 + $0x250] sm:$0xff]
      %v1654 = vld [vmem:[%s1578 + $0x258] sm:$0xff]
      %v1655 = vld [vmem:[%s1578 + $0x260] sm:$0xff]
      %v1656 = vld [vmem:[%s1578 + $0x268] sm:$0xff]
      %v1657 = vld [vmem:[%s1578 + $0x270] sm:$0xff]
      %v1658 = vld [vmem:[%s1578 + $0x278] sm:$0xff]
      %v1659 = vld [vmem:[%s1578 + $0x280] sm:$0xff]
      %v1660 = vld [vmem:[%s1578 + $0x288] sm:$0xff]
      %v1661 = vld [vmem:[%s1578 + $0x290] sm:$0xff]
      %v1662 = vld [vmem:[%s1578 + $0x298] sm:$0xff]
      %v1663 = vld [vmem:[%s1578 + $0x2a0] sm:$0xff]
      %v1664 = vld [vmem:[%s1578 + $0x2a8] sm:$0xff]
      %v1665 = vld [vmem:[%s1578 + $0x2b0] sm:$0xff]
      %v1666 = vld [vmem:[%s1578 + $0x2b8] sm:$0xff]
      %v1667 = vld [vmem:[%s1578 + $0x2c0] sm:$0xff]
      %v1668 = vld [vmem:[%s1578 + $0x2c8] sm:$0xff]
      %v1669 = vld [vmem:[%s1578 + $0x2d0] sm:$0xff]
      %v1670 = vld [vmem:[%s1578 + $0x2d8] sm:$0xff]
      %v1671 = vld [vmem:[%s1578 + $0x2e0] sm:$0xff]
      %v1672 = vld [vmem:[%s1578 + $0x2e8] sm:$0xff]
      %v1673 = vld [vmem:[%s1578 + $0x2f0] sm:$0xff]
      %v1674 = vld [vmem:[%s1578 + $0x2f8] sm:$0xff]
      %vm1679 = vcmask 1045504
      %v1680 = vrot.slane %v1574, 2
      %v1681 = vrot.slane %v451, 2
      %v1682 = vsel %vm1679, %v1680, %v1681
      %v1683 = vrot.slane %v1575, 2
      %v1684 = vrot.slane %v452, 2
      %v1685 = vsel %vm1679, %v1683, %v1684
      %v1686 = vrot.slane %v453, 2
      %v1687 = vsel %vm1679, %v1681, %v1686
      %v1688 = vrot.slane %v454, 2
      %v1689 = vsel %vm1679, %v1684, %v1688
      %v1690 = vrot.slane %v455, 2
      %v1691 = vsel %vm1679, %v1686, %v1690
      %v1692 = vrot.slane %v456, 2
      %v1693 = vsel %vm1679, %v1688, %v1692
      %v1694 = vrot.slane %v457, 2
      %v1695 = vsel %vm1679, %v1690, %v1694
      %v1696 = vrot.slane %v458, 2
      %v1697 = vsel %vm1679, %v1692, %v1696
      %v1698 = vrot.slane %v459, 2
      %v1699 = vsel %vm1679, %v1694, %v1698
      %v1700 = vrot.slane %v460, 2
      %v1701 = vsel %vm1679, %v1696, %v1700
      %v1702 = vrot.slane %v461, 2
      %v1703 = vsel %vm1679, %v1698, %v1702
      %v1704 = vrot.slane %v462, 2
      %v1705 = vsel %vm1679, %v1700, %v1704
      %v1706 = vrot.slane %v463, 2
      %v1707 = vsel %vm1679, %v1702, %v1706
      %v1708 = vrot.slane %v464, 2
      %v1709 = vsel %vm1679, %v1704, %v1708
      %v1710 = vrot.slane %v465, 2
      %v1711 = vsel %vm1679, %v1706, %v1710
      %v1712 = vrot.slane %v466, 2
      %v1713 = vsel %vm1679, %v1708, %v1712
      %v1714 = vrot.slane %v467, 2
      %v1715 = vsel %vm1679, %v1710, %v1714
      %v1716 = vrot.slane %v468, 2
      %v1717 = vsel %vm1679, %v1712, %v1716
      %v1718 = vrot.slane %v469, 2
      %v1719 = vsel %vm1679, %v1714, %v1718
      %v1720 = vrot.slane %v470, 2
      %v1721 = vsel %vm1679, %v1716, %v1720
      %v1722 = vrot.slane %v471, 2
      %v1723 = vsel %vm1679, %v1718, %v1722
      %v1724 = vrot.slane %v472, 2
      %v1725 = vsel %vm1679, %v1720, %v1724
      %v1726 = vrot.slane %v473, 2
      %v1727 = vsel %vm1679, %v1722, %v1726
      %v1728 = vrot.slane %v474, 2
      %v1729 = vsel %vm1679, %v1724, %v1728
      %v1730 = vrot.slane %v475, 2
      %v1731 = vsel %vm1679, %v1726, %v1730
      %v1732 = vrot.slane %v476, 2
      %v1733 = vsel %vm1679, %v1728, %v1732
      %v1734 = vrot.slane %v477, 2
      %v1735 = vsel %vm1679, %v1730, %v1734
      %v1736 = vrot.slane %v478, 2
      %v1737 = vsel %vm1679, %v1732, %v1736
      %v1738 = vrot.slane %v479, 2
      %v1739 = vsel %vm1679, %v1734, %v1738
      %v1740 = vrot.slane %v480, 2
      %v1741 = vsel %vm1679, %v1736, %v1740
      %v1742 = vrot.slane %v481, 2
      %v1743 = vsel %vm1679, %v1738, %v1742
      %v1744 = vrot.slane %v482, 2
      %v1745 = vsel %vm1679, %v1740, %v1744
      %v1746 = vrot.slane %v1576, 2
      %v1747 = vsel %vm1679, %v1742, %v1746
      %v1748 = vrot.slane %v1577, 2
      %v1749 = vsel %vm1679, %v1744, %v1748
      %v1768 = vsel %vm807, %v1685, 0
      %v1770 = vsel %vm807, %v1689, 0
      %v1772 = vsel %vm807, %v1693, 0
      %v1774 = vsel %vm807, %v1697, 0
      %v1776 = vsel %vm807, %v1701, 0
      %v1778 = vsel %vm807, %v1705, 0
      %v1780 = vsel %vm807, %v1709, 0
      %v1782 = vsel %vm807, %v1713, 0
      %v1784 = vsel %vm807, %v1717, 0
      %v1786 = vsel %vm807, %v1721, 0
      %v1788 = vsel %vm807, %v1725, 0
      %v1790 = vsel %vm807, %v1729, 0
      %v1792 = vsel %vm807, %v1733, 0
      %v1794 = vsel %vm807, %v1737, 0
      %v1796 = vsel %vm807, %v1741, 0
      %v1798 = vsel %vm807, %v1745, 0
      %v1800 = vsel %vm807, %v1749, 0
      %v1802 = vsel %vm807, %v1748, 0
      %1804 = vmatprep.subr.mxu0 %v1580
      %1805 = vmatpush1.msra.mxu0 %v1579
      %1806 = vmatprep.subr.mxu0 %v1584
      %1807 = vmatpush1.msra.mxu0 %v1583
      %1808 = vmatprep.subr.mxu0 %v1588
      %1809 = vmatpush1.msra.mxu0 %v1587
      %1810 = vmatprep.subr.mxu0 %v1592
      %1811 = vmatpush1.msra.mxu0 %v1591
      %1812 = vmatprep.subr.mxu0 %v1596
      %1813 = vmatpush1.msra.mxu0 %v1595
      %1814 = vmatprep.subr.mxu0 %v1600
      %1815 = vmatpush1.msra.mxu0 %v1599
      %1816 = vmatprep.subr.mxu0 %v1604
      %1817 = vmatpush1.msra.mxu0 %v1603
      %1818 = vmatprep.subr.mxu0 %v1608
      %1819 = vmatpush1.msra.mxu0 %v1607
      %1820 = vmatprep.subr.mxu0 %v1612
      %1821 = vmatpush1.msra.mxu0 %v1611
      %1822 = vmatprep.subr.mxu0 %v1616
      %1823 = vmatpush1.msra.mxu0 %v1615
      %1824 = vmatprep.subr.mxu0 %v1620
      %1825 = vmatpush1.msra.mxu0 %v1619
      %1826 = vmatprep.subr.mxu0 %v1624
      %1827 = vmatpush1.msra.mxu0 %v1623
      %1828 = vmatprep.subr.mxu0 %v1628
      %1829 = vmatpush1.msra.mxu0 %v1627
      %1830 = vmatprep.subr.mxu0 %v1632
      %1831 = vmatpush1.msra.mxu0 %v1631
      %1832 = vmatprep.subr.mxu0 %v1636
      %1833 = vmatpush1.msra.mxu0 %v1635
      %1834 = vmatprep.subr.mxu0 %v1640
      %1835 = vmatpush1.msra.mxu0 %v1639
      %1836 = vmatprep.subr.mxu0 %v1644
      %1837 = vmatpush1.msra.mxu0 %v1643
      %1838 = vmatprep.subr.mxu0 %v1648
      %1839 = vmatpush1.msra.mxu0 %v1647
      %1840 = vmatprep.subr.mxu0 %v1652
      %1841 = vmatpush1.msra.mxu0 %v1651
      %1842 = vmatprep.subr.mxu0 %v1656
      %1843 = vmatpush1.msra.mxu0 %v1655
      %1844 = vmatprep.subr.mxu0 %v1660
      %1845 = vmatpush1.msra.mxu0 %v1659
      %1846 = vmatprep.subr.mxu0 %v1664
      %1847 = vmatpush1.msra.mxu0 %v1663
      %1848 = vmatprep.subr.mxu0 %v1668
      %1849 = vmatpush1.msra.mxu0 %v1667
      %1850 = vmatprep.subr.mxu0 %v1672
      %1851 = vmatpush1.msra.mxu0 %v1671
      %1852 = vmatprep.subr.mxu0 0.0
      %1853 = vmatpush1.msra.mxu0 0.0
      %1854 = vmatprep.subr.mxu0 0.0
      %1855 = vmatpush1.msra.mxu0 0.0
      %1856 = vmatprep.subr.mxu0 0.0
      %1857 = vmatpush1.msra.mxu0 0.0
      %1858 = vmatprep.subr.mxu0 0.0
      %1859 = vmatpush1.msra.mxu0 0.0
      %1860 = vmatprep.subr.mxu0 0.0
      %1861 = vmatpush1.msra.mxu0 0.0
      %1862 = vmatprep.subr.mxu0 0.0
      %1863 = vmatpush1.msra.mxu0 0.0
      %1864 = vmatprep.subr.mxu0 0.0
      %1865 = vmatpush1.msra.mxu0 0.0
      %1866 = vmatprep.subr.mxu0 0.0
      %1867 = vmatpush1.msra.mxu0 0.0
      %1868 = vmatprep.mubr.f32.mxu0 %v1768
      %1869 = vmatmul.mubr.f32.gmra.mrb[0].mxu0 %v1682
      %v1870 = vpop.f32.mrb[0].mxu0
      %v1871 = vadd.f32 0.0, %v1870
      %v1872 = vpop.f32.mrb[0].mxu0
      %v1873 = vadd.f32 0.0, %v1872
      %1874 = vmatprep.mubr.f32.mxu0 %v1770
      %1875 = vmatmul.mubr.f32.gmra.mrb[0].mxu0 %v1687
      %v1876 = vpop.f32.mrb[0].mxu0
      %v1877 = vadd.f32 0.0, %v1876
      %v1878 = vpop.f32.mrb[0].mxu0
      %v1879 = vadd.f32 0.0, %v1878
      %1880 = vmatprep.mubr.f32.mxu0 %v1772
      %1881 = vmatmul.mubr.f32.gmra.mrb[0].mxu0 %v1691
      %v1882 = vpop.f32.mrb[0].mxu0
      %v1883 = vadd.f32 0.0, %v1882
      %v1884 = vpop.f32.mrb[0].mxu0
      %v1885 = vadd.f32 0.0, %v1884
      %1886 = vmatprep.mubr.f32.mxu0 %v1774
      %1887 = vmatmul.mubr.f32.gmra.mrb[0].mxu0 %v1695
      %v1888 = vpop.f32.mrb[0].mxu0
      %v1889 = vadd.f32 0.0, %v1888
      %v1890 = vpop.f32.mrb[0].mxu0
      %v1891 = vadd.f32 0.0, %v1890
      %1892 = vmatprep.mubr.f32.mxu0 %v1776
      %1893 = vmatmul.mubr.f32.gmra.mrb[0].mxu0 %v1699
      %v1894 = vpop.f32.mrb[0].mxu0
      %v1895 = vadd.f32 0.0, %v1894
      %v1896 = vpop.f32.mrb[0].mxu0
      %v1897 = vadd.f32 0.0, %v1896
      %1898 = vmatprep.mubr.f32.mxu0 %v1778
      %1899 = vmatmul.mubr.f32.gmra.mrb[0].mxu0 %v1703
      %v1900 = vpop.f32.mrb[0].mxu0
      %v1901 = vadd.f32 0.0, %v1900
      %v1902 = vpop.f32.mrb[0].mxu0
      %v1903 = vadd.f32 0.0, %v1902
      %1904 = vmatprep.mubr.f32.mxu0 %v1780
      %1905 = vmatmul.mubr.f32.gmra.mrb[0].mxu0 %v1707
      %v1906 = vpop.f32.mrb[0].mxu0
      %v1907 = vadd.f32 0.0, %v1906
      %v1908 = vpop.f32.mrb[0].mxu0
      %v1909 = vadd.f32 0.0, %v1908
      %1910 = vmatprep.mubr.f32.mxu0 %v1782
      %1911 = vmatmul.mubr.f32.gmra.mrb[0].mxu0 %v1711
      %v1912 = vpop.f32.mrb[0].mxu0
      %v1913 = vadd.f32 0.0, %v1912
      %v1914 = vpop.f32.mrb[0].mxu0
      %v1915 = vadd.f32 0.0, %v1914
      %1916 = vmatprep.mubr.f32.mxu0 %v1784
      %1917 = vmatmul.mubr.f32.gmra.mrb[0].mxu0 %v1715
      %v1918 = vpop.f32.mrb[0].mxu0
      %v1919 = vadd.f32 0.0, %v1918
      %v1920 = vpop.f32.mrb[0].mxu0
      %v1921 = vadd.f32 0.0, %v1920
      %1922 = vmatprep.mubr.f32.mxu0 %v1786
      %1923 = vmatmul.mubr.f32.gmra.mrb[0].mxu0 %v1719
      %v1924 = vpop.f32.mrb[0].mxu0
      %v1925 = vadd.f32 0.0, %v1924
      %v1926 = vpop.f32.mrb[0].mxu0
      %v1927 = vadd.f32 0.0, %v1926
      %1928 = vmatprep.mubr.f32.mxu0 %v1788
      %1929 = vmatmul.mubr.f32.gmra.mrb[0].mxu0 %v1723
      %v1930 = vpop.f32.mrb[0].mxu0
      %v1931 = vadd.f32 0.0, %v1930
      %v1932 = vpop.f32.mrb[0].mxu0
      %v1933 = vadd.f32 0.0, %v1932
      %1934 = vmatprep.mubr.f32.mxu0 %v1790
      %1935 = vmatmul.mubr.f32.gmra.mrb[0].mxu0 %v1727
      %v1936 = vpop.f32.mrb[0].mxu0
      %v1937 = vadd.f32 0.0, %v1936
      %v1938 = vpop.f32.mrb[0].mxu0
      %v1939 = vadd.f32 0.0, %v1938
      %1940 = vmatprep.mubr.f32.mxu0 %v1792
      %1941 = vmatmul.mubr.f32.gmra.mrb[0].mxu0 %v1731
      %v1942 = vpop.f32.mrb[0].mxu0
      %v1943 = vadd.f32 0.0, %v1942
      %v1944 = vpop.f32.mrb[0].mxu0
      %v1945 = vadd.f32 0.0, %v1944
      %1946 = vmatprep.mubr.f32.mxu0 %v1794
      %1947 = vmatmul.mubr.f32.gmra.mrb[0].mxu0 %v1735
      %v1948 = vpop.f32.mrb[0].mxu0
      %v1949 = vadd.f32 0.0, %v1948
      %v1950 = vpop.f32.mrb[0].mxu0
      %v1951 = vadd.f32 0.0, %v1950
      %1952 = vmatprep.mubr.f32.mxu0 %v1796
      %1953 = vmatmul.mubr.f32.gmra.mrb[0].mxu0 %v1739
      %v1954 = vpop.f32.mrb[0].mxu0
      %v1955 = vadd.f32 0.0, %v1954
      %v1956 = vpop.f32.mrb[0].mxu0
      %v1957 = vadd.f32 0.0, %v1956
      %1958 = vmatprep.mubr.f32.mxu0 %v1798
      %1959 = vmatmul.mubr.f32.gmra.mrb[0].mxu0 %v1743
      %v1960 = vpop.f32.mrb[0].mxu0
      %v1961 = vadd.f32 0.0, %v1960
      %v1962 = vpop.f32.mrb[0].mxu0
      %v1963 = vadd.f32 0.0, %v1962
      %1964 = vmatprep.mubr.f32.mxu0 %v1800
      %1965 = vmatmul.mubr.f32.gmra.mrb[0].mxu0 %v1747
      %v1966 = vpop.f32.mrb[0].mxu0
      %v1967 = vadd.f32 0.0, %v1966
      %v1968 = vpop.f32.mrb[0].mxu0
      %v1969 = vadd.f32 0.0, %v1968
      %1970 = vmatprep.mubr.f32.mxu0 %v1802
      %1971 = vmatmul.mubr.f32.gmra.mrb[0].mxu0 %v1746
      %v1972 = vpop.f32.mrb[0].mxu0
      %v1973 = vadd.f32 0.0, %v1972
      %v1974 = vpop.f32.mrb[0].mxu0
      %v1975 = vadd.f32 0.0, %v1974
      %1976 = vdwg.mxu0
      %1977 = vmatprep.subr.mxu0 %v1582
      %1978 = vmatpush1.msra.mxu0 %v1581
      %1979 = vmatprep.subr.mxu0 %v1586
      %1980 = vmatpush1.msra.mxu0 %v1585
      %1981 = vmatprep.subr.mxu0 %v1590
      %1982 = vmatpush1.msra.mxu0 %v1589
      %1983 = vmatprep.subr.mxu0 %v1594
      %1984 = vmatpush1.msra.mxu0 %v1593
      %1985 = vmatprep.subr.mxu0 %v1598
      %1986 = vmatpush1.msra.mxu0 %v1597
      %1987 = vmatprep.subr.mxu0 %v1602
      %1988 = vmatpush1.msra.mxu0 %v1601
      %1989 = vmatprep.subr.mxu0 %v1606
      %1990 = vmatpush1.msra.mxu0 %v1605
      %1991 = vmatprep.subr.mxu0 %v1610
      %1992 = vmatpush1.msra.mxu0 %v1609
      %1993 = vmatprep.subr.mxu0 %v1614
      %1994 = vmatpush1.msra.mxu0 %v1613
      %1995 = vmatprep.subr.mxu0 %v1618
      %1996 = vmatpush1.msra.mxu0 %v1617
      %1997 = vmatprep.subr.mxu0 %v1622
      %1998 = vmatpush1.msra.mxu0 %v1621
      %1999 = vmatprep.subr.mxu0 %v1626
      %2000 = vmatpush1.msra.mxu0 %v1625
      %2001 = vmatprep.subr.mxu0 %v1630
      %2002 = vmatpush1.msra.mxu0 %v1629
      %2003 = vmatprep.subr.mxu0 %v1634
      %2004 = vmatpush1.msra.mxu0 %v1633
      %2005 = vmatprep.subr.mxu0 %v1638
      %2006 = vmatpush1.msra.mxu0 %v1637
      %2007 = vmatprep.subr.mxu0 %v1642
      %2008 = vmatpush1.msra.mxu0 %v1641
      %2009 = vmatprep.subr.mxu0 %v1646
      %2010 = vmatpush1.msra.mxu0 %v1645
      %2011 = vmatprep.subr.mxu0 %v1650
      %2012 = vmatpush1.msra.mxu0 %v1649
      %2013 = vmatprep.subr.mxu0 %v1654
      %2014 = vmatpush1.msra.mxu0 %v1653
      %2015 = vmatprep.subr.mxu0 %v1658
      %2016 = vmatpush1.msra.mxu0 %v1657
      %2017 = vmatprep.subr.mxu0 %v1662
      %2018 = vmatpush1.msra.mxu0 %v1661
      %2019 = vmatprep.subr.mxu0 %v1666
      %2020 = vmatpush1.msra.mxu0 %v1665
      %2021 = vmatprep.subr.mxu0 %v1670
      %2022 = vmatpush1.msra.mxu0 %v1669
      %2023 = vmatprep.subr.mxu0 %v1674
      %2024 = vmatpush1.msra.mxu0 %v1673
      %2025 = vmatprep.subr.mxu0 0.0
      %2026 = vmatpush1.msra.mxu0 0.0
      %2027 = vmatprep.subr.mxu0 0.0
      %2028 = vmatpush1.msra.mxu0 0.0
      %2029 = vmatprep.subr.mxu0 0.0
      %2030 = vmatpush1.msra.mxu0 0.0
      %2031 = vmatprep.subr.mxu0 0.0
      %2032 = vmatpush1.msra.mxu0 0.0
      %2033 = vmatprep.subr.mxu0 0.0
      %2034 = vmatpush1.msra.mxu0 0.0
      %2035 = vmatprep.subr.mxu0 0.0
      %2036 = vmatpush1.msra.mxu0 0.0
      %2037 = vmatprep.subr.mxu0 0.0
      %2038 = vmatpush1.msra.mxu0 0.0
      %2039 = vmatprep.subr.mxu0 0.0
      %2040 = vmatpush1.msra.mxu0 0.0
      %2041 = vmatprep.mubr.f32.mxu0 %v1768
      %2042 = vmatmul.mubr.f32.gmra.mrb[0].mxu0 %v1682
      %v2043 = vpop.f32.mrb[0].mxu0
      %v2044 = vadd.f32 0.0, %v2043
      %v2045 = vpop.f32.mrb[0].mxu0
      %v2046 = vadd.f32 0.0, %v2045
      %2047 = vmatprep.mubr.f32.mxu0 %v1770
      %2048 = vmatmul.mubr.f32.gmra.mrb[0].mxu0 %v1687
      %v2049 = vpop.f32.mrb[0].mxu0
      %v2050 = vadd.f32 0.0, %v2049
      %v2051 = vpop.f32.mrb[0].mxu0
      %v2052 = vadd.f32 0.0, %v2051
      %2053 = vmatprep.mubr.f32.mxu0 %v1772
      %2054 = vmatmul.mubr.f32.gmra.mrb[0].mxu0 %v1691
      %v2055 = vpop.f32.mrb[0].mxu0
      %v2056 = vadd.f32 0.0, %v2055
      %v2057 = vpop.f32.mrb[0].mxu0
      %v2058 = vadd.f32 0.0, %v2057
      %2059 = vmatprep.mubr.f32.mxu0 %v1774
      %2060 = vmatmul.mubr.f32.gmra.mrb[0].mxu0 %v1695
      %v2061 = vpop.f32.mrb[0].mxu0
      %v2062 = vadd.f32 0.0, %v2061
      %v2063 = vpop.f32.mrb[0].mxu0
      %v2064 = vadd.f32 0.0, %v2063
      %2065 = vmatprep.mubr.f32.mxu0 %v1776
      %2066 = vmatmul.mubr.f32.gmra.mrb[0].mxu0 %v1699
      %v2067 = vpop.f32.mrb[0].mxu0
      %v2068 = vadd.f32 0.0, %v2067
      %v2069 = vpop.f32.mrb[0].mxu0
      %v2070 = vadd.f32 0.0, %v2069
      %2071 = vmatprep.mubr.f32.mxu0 %v1778
      %2072 = vmatmul.mubr.f32.gmra.mrb[0].mxu0 %v1703
      %v2073 = vpop.f32.mrb[0].mxu0
      %v2074 = vadd.f32 0.0, %v2073
      %v2075 = vpop.f32.mrb[0].mxu0
      %v2076 = vadd.f32 0.0, %v2075
      %2077 = vmatprep.mubr.f32.mxu0 %v1780
      %2078 = vmatmul.mubr.f32.gmra.mrb[0].mxu0 %v1707
      %v2079 = vpop.f32.mrb[0].mxu0
      %v2080 = vadd.f32 0.0, %v2079
      %v2081 = vpop.f32.mrb[0].mxu0
      %v2082 = vadd.f32 0.0, %v2081
      %2083 = vmatprep.mubr.f32.mxu0 %v1782
      %2084 = vmatmul.mubr.f32.gmra.mrb[0].mxu0 %v1711
      %v2085 = vpop.f32.mrb[0].mxu0
      %v2086 = vadd.f32 0.0, %v2085
      %v2087 = vpop.f32.mrb[0].mxu0
      %v2088 = vadd.f32 0.0, %v2087
      %2089 = vmatprep.mubr.f32.mxu0 %v1784
      %2090 = vmatmul.mubr.f32.gmra.mrb[0].mxu0 %v1715
      %v2091 = vpop.f32.mrb[0].mxu0
      %v2092 = vadd.f32 0.0, %v2091
      %v2093 = vpop.f32.mrb[0].mxu0
      %v2094 = vadd.f32 0.0, %v2093
      %2095 = vmatprep.mubr.f32.mxu0 %v1786
      %2096 = vmatmul.mubr.f32.gmra.mrb[0].mxu0 %v1719
      %v2097 = vpop.f32.mrb[0].mxu0
      %v2098 = vadd.f32 0.0, %v2097
      %v2099 = vpop.f32.mrb[0].mxu0
      %v2100 = vadd.f32 0.0, %v2099
      %2101 = vmatprep.mubr.f32.mxu0 %v1788
      %2102 = vmatmul.mubr.f32.gmra.mrb[0].mxu0 %v1723
      %v2103 = vpop.f32.mrb[0].mxu0
      %v2104 = vadd.f32 0.0, %v2103
      %v2105 = vpop.f32.mrb[0].mxu0
      %v2106 = vadd.f32 0.0, %v2105
      %2107 = vmatprep.mubr.f32.mxu0 %v1790
      %2108 = vmatmul.mubr.f32.gmra.mrb[0].mxu0 %v1727
      %v2109 = vpop.f32.mrb[0].mxu0
      %v2110 = vadd.f32 0.0, %v2109
      %v2111 = vpop.f32.mrb[0].mxu0
      %v2112 = vadd.f32 0.0, %v2111
      %2113 = vmatprep.mubr.f32.mxu0 %v1792
      %2114 = vmatmul.mubr.f32.gmra.mrb[0].mxu0 %v1731
      %v2115 = vpop.f32.mrb[0].mxu0
      %v2116 = vadd.f32 0.0, %v2115
      %v2117 = vpop.f32.mrb[0].mxu0
      %v2118 = vadd.f32 0.0, %v2117
      %2119 = vmatprep.mubr.f32.mxu0 %v1794
      %2120 = vmatmul.mubr.f32.gmra.mrb[0].mxu0 %v1735
      %v2121 = vpop.f32.mrb[0].mxu0
      %v2122 = vadd.f32 0.0, %v2121
      %v2123 = vpop.f32.mrb[0].mxu0
      %v2124 = vadd.f32 0.0, %v2123
      %2125 = vmatprep.mubr.f32.mxu0 %v1796
      %2126 = vmatmul.mubr.f32.gmra.mrb[0].mxu0 %v1739
      %v2127 = vpop.f32.mrb[0].mxu0
      %v2128 = vadd.f32 0.0, %v2127
      %v2129 = vpop.f32.mrb[0].mxu0
      %v2130 = vadd.f32 0.0, %v2129
      %2131 = vmatprep.mubr.f32.mxu0 %v1798
      %2132 = vmatmul.mubr.f32.gmra.mrb[0].mxu0 %v1743
      %v2133 = vpop.f32.mrb[0].mxu0
      %v2134 = vadd.f32 0.0, %v2133
      %v2135 = vpop.f32.mrb[0].mxu0
      %v2136 = vadd.f32 0.0, %v2135
      %2137 = vmatprep.mubr.f32.mxu0 %v1800
      %2138 = vmatmul.mubr.f32.gmra.mrb[0].mxu0 %v1747
      %v2139 = vpop.f32.mrb[0].mxu0
      %v2140 = vadd.f32 0.0, %v2139
      %v2141 = vpop.f32.mrb[0].mxu0
      %v2142 = vadd.f32 0.0, %v2141
      %2143 = vmatprep.mubr.f32.mxu0 %v1802
      %2144 = vmatmul.mubr.f32.gmra.mrb[0].mxu0 %v1746
      %v2145 = vpop.f32.mrb[0].mxu0
      %v2146 = vadd.f32 0.0, %v2145
      %v2147 = vpop.f32.mrb[0].mxu0
      %v2148 = vadd.f32 0.0, %v2147
      %2149 = vdwg.mxu0
      %v2150 = vadd.f32 %v1295, %v1871
      %v2151 = vadd.f32 %v1297, %v1873
      %v2152 = vadd.f32 %v1468, %v2044
      %v2153 = vadd.f32 %v1470, %v2046
      %v2154 = vadd.f32 %v1301, %v1877
      %v2155 = vadd.f32 %v1303, %v1879
      %v2156 = vadd.f32 %v1474, %v2050
      %v2157 = vadd.f32 %v1476, %v2052
      %v2158 = vadd.f32 %v1307, %v1883
      %v2159 = vadd.f32 %v1309, %v1885
      %v2160 = vadd.f32 %v1480, %v2056
      %v2161 = vadd.f32 %v1482, %v2058
      %v2162 = vadd.f32 %v1313, %v1889
      %v2163 = vadd.f32 %v1315, %v1891
      %v2164 = vadd.f32 %v1486, %v2062
      %v2165 = vadd.f32 %v1488, %v2064
      %v2166 = vadd.f32 %v1319, %v1895
      %v2167 = vadd.f32 %v1321, %v1897
      %v2168 = vadd.f32 %v1492, %v2068
      %v2169 = vadd.f32 %v1494, %v2070
      %v2170 = vadd.f32 %v1325, %v1901
      %v2171 = vadd.f32 %v1327, %v1903
      %v2172 = vadd.f32 %v1498, %v2074
      %v2173 = vadd.f32 %v1500, %v2076
      %v2174 = vadd.f32 %v1331, %v1907
      %v2175 = vadd.f32 %v1333, %v1909
      %v2176 = vadd.f32 %v1504, %v2080
      %v2177 = vadd.f32 %v1506, %v2082
      %v2178 = vadd.f32 %v1337, %v1913
      %v2179 = vadd.f32 %v1339, %v1915
      %v2180 = vadd.f32 %v1510, %v2086
      %v2181 = vadd.f32 %v1512, %v2088
      %v2182 = vadd.f32 %v1343, %v1919
      %v2183 = vadd.f32 %v1345, %v1921
      %v2184 = vadd.f32 %v1516, %v2092
      %v2185 = vadd.f32 %v1518, %v2094
      %v2186 = vadd.f32 %v1349, %v1925
      %v2187 = vadd.f32 %v1351, %v1927
      %v2188 = vadd.f32 %v1522, %v2098
      %v2189 = vadd.f32 %v1524, %v2100
      %v2190 = vadd.f32 %v1355, %v1931
      %v2191 = vadd.f32 %v1357, %v1933
      %v2192 = vadd.f32 %v1528, %v2104
      %v2193 = vadd.f32 %v1530, %v2106
      %v2194 = vadd.f32 %v1361, %v1937
      %v2195 = vadd.f32 %v1363, %v1939
      %v2196 = vadd.f32 %v1534, %v2110
      %v2197 = vadd.f32 %v1536, %v2112
      %v2198 = vadd.f32 %v1367, %v1943
      %v2199 = vadd.f32 %v1369, %v1945
      %v2200 = vadd.f32 %v1540, %v2116
      %v2201 = vadd.f32 %v1542, %v2118
      %v2202 = vadd.f32 %v1373, %v1949
      %v2203 = vadd.f32 %v1375, %v1951
      %v2204 = vadd.f32 %v1546, %v2122
      %v2205 = vadd.f32 %v1548, %v2124
      %v2206 = vadd.f32 %v1379, %v1955
      %v2207 = vadd.f32 %v1381, %v1957
      %v2208 = vadd.f32 %v1552, %v2128
      %v2209 = vadd.f32 %v1554, %v2130
      %v2210 = vadd.f32 %v1385, %v1961
      %v2211 = vadd.f32 %v1387, %v1963
      %v2212 = vadd.f32 %v1558, %v2134
      %v2213 = vadd.f32 %v1560, %v2136
      %v2214 = vadd.f32 %v1391, %v1967
      %v2215 = vadd.f32 %v1393, %v1969
      %v2216 = vadd.f32 %v1564, %v2140
      %v2217 = vadd.f32 %v1566, %v2142
      %v2218 = vadd.f32 %v1397, %v1973
      %v2219 = vadd.f32 %v1399, %v1975
      %v2220 = vadd.f32 %v1570, %v2146
      %v2221 = vadd.f32 %v1572, %v2148
      %v2294 = vrot.slane %v2150, 1
      %v2295 = vrot.slane %v2154, 1
      %v2296 = vsel %vm718, %v2294, %v2295
      %v2297 = vrot.slane %v2151, 1
      %v2298 = vrot.slane %v2155, 1
      %v2299 = vsel %vm718, %v2297, %v2298
      %v2300 = vrot.slane %v2152, 1
      %v2301 = vrot.slane %v2156, 1
      %v2302 = vsel %vm718, %v2300, %v2301
      %v2303 = vrot.slane %v2153, 1
      %v2304 = vrot.slane %v2157, 1
      %v2305 = vsel %vm718, %v2303, %v2304
      %v2306 = vrot.slane %v2158, 1
      %v2307 = vsel %vm718, %v2295, %v2306
      %v2308 = vrot.slane %v2159, 1
      %v2309 = vsel %vm718, %v2298, %v2308
      %v2310 = vrot.slane %v2160, 1
      %v2311 = vsel %vm718, %v2301, %v2310
      %v2312 = vrot.slane %v2161, 1
      %v2313 = vsel %vm718, %v2304, %v2312
      %v2314 = vrot.slane %v2162, 1
      %v2315 = vsel %vm718, %v2306, %v2314
      %v2316 = vrot.slane %v2163, 1
      %v2317 = vsel %vm718, %v2308, %v2316
      %v2318 = vrot.slane %v2164, 1
      %v2319 = vsel %vm718, %v2310, %v2318
      %v2320 = vrot.slane %v2165, 1
      %v2321 = vsel %vm718, %v2312, %v2320
      %v2322 = vrot.slane %v2166, 1
      %v2323 = vsel %vm718, %v2314, %v2322
      %v2324 = vrot.slane %v2167, 1
      %v2325 = vsel %vm718, %v2316, %v2324
      %v2326 = vrot.slane %v2168, 1
      %v2327 = vsel %vm718, %v2318, %v2326
      %v2328 = vrot.slane %v2169, 1
      %v2329 = vsel %vm718, %v2320, %v2328
      %v2330 = vrot.slane %v2170, 1
      %v2331 = vsel %vm718, %v2322, %v2330
      %v2332 = vrot.slane %v2171, 1
      %v2333 = vsel %vm718, %v2324, %v2332
      %v2334 = vrot.slane %v2172, 1
      %v2335 = vsel %vm718, %v2326, %v2334
      %v2336 = vrot.slane %v2173, 1
      %v2337 = vsel %vm718, %v2328, %v2336
      %v2338 = vrot.slane %v2174, 1
      %v2339 = vsel %vm718, %v2330, %v2338
      %v2340 = vrot.slane %v2175, 1
      %v2341 = vsel %vm718, %v2332, %v2340
      %v2342 = vrot.slane %v2176, 1
      %v2343 = vsel %vm718, %v2334, %v2342
      %v2344 = vrot.slane %v2177, 1
      %v2345 = vsel %vm718, %v2336, %v2344
      %v2346 = vrot.slane %v2178, 1
      %v2347 = vsel %vm718, %v2338, %v2346
      %v2348 = vrot.slane %v2179, 1
      %v2349 = vsel %vm718, %v2340, %v2348
      %v2350 = vrot.slane %v2180, 1
      %v2351 = vsel %vm718, %v2342, %v2350
      %v2352 = vrot.slane %v2181, 1
      %v2353 = vsel %vm718, %v2344, %v2352
      %v2354 = vrot.slane %v2182, 1
      %v2355 = vsel %vm718, %v2346, %v2354
      %v2356 = vrot.slane %v2183, 1
      %v2357 = vsel %vm718, %v2348, %v2356
      %v2358 = vrot.slane %v2184, 1
      %v2359 = vsel %vm718, %v2350, %v2358
      %v2360 = vrot.slane %v2185, 1
      %v2361 = vsel %vm718, %v2352, %v2360
      %v2362 = vrot.slane %v2186, 1
      %v2363 = vsel %vm718, %v2354, %v2362
      %v2364 = vrot.slane %v2187, 1
      %v2365 = vsel %vm718, %v2356, %v2364
      %v2366 = vrot.slane %v2188, 1
      %v2367 = vsel %vm718, %v2358, %v2366
      %v2368 = vrot.slane %v2189, 1
      %v2369 = vsel %vm718, %v2360, %v2368
      %v2370 = vrot.slane %v2190, 1
      %v2371 = vsel %vm718, %v2362, %v2370
      %v2372 = vrot.slane %v2191, 1
      %v2373 = vsel %vm718, %v2364, %v2372
      %v2374 = vrot.slane %v2192, 1
      %v2375 = vsel %vm718, %v2366, %v2374
      %v2376 = vrot.slane %v2193, 1
      %v2377 = vsel %vm718, %v2368, %v2376
      %v2378 = vrot.slane %v2194, 1
      %v2379 = vsel %vm718, %v2370, %v2378
      %v2380 = vrot.slane %v2195, 1
      %v2381 = vsel %vm718, %v2372, %v2380
      %v2382 = vrot.slane %v2196, 1
      %v2383 = vsel %vm718, %v2374, %v2382
      %v2384 = vrot.slane %v2197, 1
      %v2385 = vsel %vm718, %v2376, %v2384
      %v2386 = vrot.slane %v2198, 1
      %v2387 = vsel %vm718, %v2378, %v2386
      %v2388 = vrot.slane %v2199, 1
      %v2389 = vsel %vm718, %v2380, %v2388
      %v2390 = vrot.slane %v2200, 1
      %v2391 = vsel %vm718, %v2382, %v2390
      %v2392 = vrot.slane %v2201, 1
      %v2393 = vsel %vm718, %v2384, %v2392
      %v2394 = vrot.slane %v2202, 1
      %v2395 = vsel %vm718, %v2386, %v2394
      %v2396 = vrot.slane %v2203, 1
      %v2397 = vsel %vm718, %v2388, %v2396
      %v2398 = vrot.slane %v2204, 1
      %v2399 = vsel %vm718, %v2390, %v2398
      %v2400 = vrot.slane %v2205, 1
      %v2401 = vsel %vm718, %v2392, %v2400
      %v2402 = vrot.slane %v2206, 1
      %v2403 = vsel %vm718, %v2394, %v2402
      %v2404 = vrot.slane %v2207, 1
      %v2405 = vsel %vm718, %v2396, %v2404
      %v2406 = vrot.slane %v2208, 1
      %v2407 = vsel %vm718, %v2398, %v2406
      %v2408 = vrot.slane %v2209, 1
      %v2409 = vsel %vm718, %v2400, %v2408
      %v2410 = vrot.slane %v2210, 1
      %v2411 = vsel %vm718, %v2402, %v2410
      %v2412 = vrot.slane %v2211, 1
      %v2413 = vsel %vm718, %v2404, %v2412
      %v2414 = vrot.slane %v2212, 1
      %v2415 = vsel %vm718, %v2406, %v2414
      %v2416 = vrot.slane %v2213, 1
      %v2417 = vsel %vm718, %v2408, %v2416
      %v2418 = vrot.slane %v2214, 1
      %v2419 = vsel %vm718, %v2410, %v2418
      %v2420 = vrot.slane %v2215, 1
      %v2421 = vsel %vm718, %v2412, %v2420
      %v2422 = vrot.slane %v2216, 1
      %v2423 = vsel %vm718, %v2414, %v2422
      %v2424 = vrot.slane %v2217, 1
      %v2425 = vsel %vm718, %v2416, %v2424
      %v2426 = vrot.slane %v2218, 1
      %v2427 = vsel %vm718, %v2418, %v2426
      %v2428 = vrot.slane %v2219, 1
      %v2429 = vsel %vm718, %v2420, %v2428
      %v2430 = vrot.slane %v2220, 1
      %v2431 = vsel %vm718, %v2422, %v2430
      %v2432 = vrot.slane %v2221, 1
      %v2433 = vsel %vm718, %v2424, %v2432
      %v2506 = vmax.f32 %v2150, %v2296
      %v2507 = vmax.f32 %v2151, %v2299
      %v2508 = vmax.f32 %v2152, %v2302
      %v2509 = vmax.f32 %v2153, %v2305
      %v2510 = vmax.f32 %v2154, %v2307
      %v2511 = vmax.f32 %v2155, %v2309
      %v2512 = vmax.f32 %v2156, %v2311
      %v2513 = vmax.f32 %v2157, %v2313
      %v2514 = vmax.f32 %v2158, %v2315
      %v2515 = vmax.f32 %v2159, %v2317
      %v2516 = vmax.f32 %v2160, %v2319
      %v2517 = vmax.f32 %v2161, %v2321
      %v2518 = vmax.f32 %v2162, %v2323
      %v2519 = vmax.f32 %v2163, %v2325
      %v2520 = vmax.f32 %v2164, %v2327
      %v2521 = vmax.f32 %v2165, %v2329
      %v2522 = vmax.f32 %v2166, %v2331
      %v2523 = vmax.f32 %v2167, %v2333
      %v2524 = vmax.f32 %v2168, %v2335
      %v2525 = vmax.f32 %v2169, %v2337
      %v2526 = vmax.f32 %v2170, %v2339
      %v2527 = vmax.f32 %v2171, %v2341
      %v2528 = vmax.f32 %v2172, %v2343
      %v2529 = vmax.f32 %v2173, %v2345
      %v2530 = vmax.f32 %v2174, %v2347
      %v2531 = vmax.f32 %v2175, %v2349
      %v2532 = vmax.f32 %v2176, %v2351
      %v2533 = vmax.f32 %v2177, %v2353
      %v2534 = vmax.f32 %v2178, %v2355
      %v2535 = vmax.f32 %v2179, %v2357
      %v2536 = vmax.f32 %v2180, %v2359
      %v2537 = vmax.f32 %v2181, %v2361
      %v2538 = vmax.f32 %v2182, %v2363
      %v2539 = vmax.f32 %v2183, %v2365
      %v2540 = vmax.f32 %v2184, %v2367
      %v2541 = vmax.f32 %v2185, %v2369
      %v2542 = vmax.f32 %v2186, %v2371
      %v2543 = vmax.f32 %v2187, %v2373
      %v2544 = vmax.f32 %v2188, %v2375
      %v2545 = vmax.f32 %v2189, %v2377
      %v2546 = vmax.f32 %v2190, %v2379
      %v2547 = vmax.f32 %v2191, %v2381
      %v2548 = vmax.f32 %v2192, %v2383
      %v2549 = vmax.f32 %v2193, %v2385
      %v2550 = vmax.f32 %v2194, %v2387
      %v2551 = vmax.f32 %v2195, %v2389
      %v2552 = vmax.f32 %v2196, %v2391
      %v2553 = vmax.f32 %v2197, %v2393
      %v2554 = vmax.f32 %v2198, %v2395
      %v2555 = vmax.f32 %v2199, %v2397
      %v2556 = vmax.f32 %v2200, %v2399
      %v2557 = vmax.f32 %v2201, %v2401
      %v2558 = vmax.f32 %v2202, %v2403
      %v2559 = vmax.f32 %v2203, %v2405
      %v2560 = vmax.f32 %v2204, %v2407
      %v2561 = vmax.f32 %v2205, %v2409
      %v2562 = vmax.f32 %v2206, %v2411
      %v2563 = vmax.f32 %v2207, %v2413
      %v2564 = vmax.f32 %v2208, %v2415
      %v2565 = vmax.f32 %v2209, %v2417
      %v2566 = vmax.f32 %v2210, %v2419
      %v2567 = vmax.f32 %v2211, %v2421
      %v2568 = vmax.f32 %v2212, %v2423
      %v2569 = vmax.f32 %v2213, %v2425
      %v2570 = vmax.f32 %v2214, %v2427
      %v2571 = vmax.f32 %v2215, %v2429
      %v2572 = vmax.f32 %v2216, %v2431
      %v2573 = vmax.f32 %v2217, %v2433
      %v2574 = vmax.f32 %v2218, %v2426
      %v2575 = vmax.f32 %v2219, %v2428
      %v2576 = vmax.f32 %v2220, %v2430
      %v2577 = vmax.f32 %v2221, %v2432
      %2650 = vrot.lane.b32.xlu0 %v2506, 120
      %v2651 = vpop.permute.xlu0 %2650
      %2652 = vrot.lane.b32.xlu0 %v2507, 120
      %v2653 = vpop.permute.xlu0 %2652
      %2654 = vrot.lane.b32.xlu0 %v2508, 120
      %v2655 = vpop.permute.xlu0 %2654
      %2656 = vrot.lane.b32.xlu0 %v2509, 120
      %v2657 = vpop.permute.xlu0 %2656
      %2658 = vrot.lane.b32.xlu0 %v2510, 120
      %v2659 = vpop.permute.xlu0 %2658
      %2660 = vrot.lane.b32.xlu0 %v2511, 120
      %v2661 = vpop.permute.xlu0 %2660
      %2662 = vrot.lane.b32.xlu0 %v2512, 120
      %v2663 = vpop.permute.xlu0 %2662
      %2664 = vrot.lane.b32.xlu0 %v2513, 120
      %v2665 = vpop.permute.xlu0 %2664
      %2666 = vrot.lane.b32.xlu0 %v2514, 120
      %v2667 = vpop.permute.xlu0 %2666
      %2668 = vrot.lane.b32.xlu0 %v2515, 120
      %v2669 = vpop.permute.xlu0 %2668
      %2670 = vrot.lane.b32.xlu0 %v2516, 120
      %v2671 = vpop.permute.xlu0 %2670
      %2672 = vrot.lane.b32.xlu0 %v2517, 120
      %v2673 = vpop.permute.xlu0 %2672
      %2674 = vrot.lane.b32.xlu0 %v2518, 120
      %v2675 = vpop.permute.xlu0 %2674
      %2676 = vrot.lane.b32.xlu0 %v2519, 120
      %v2677 = vpop.permute.xlu0 %2676
      %2678 = vrot.lane.b32.xlu0 %v2520, 120
      %v2679 = vpop.permute.xlu0 %2678
      %2680 = vrot.lane.b32.xlu0 %v2521, 120
      %v2681 = vpop.permute.xlu0 %2680
      %2682 = vrot.lane.b32.xlu0 %v2522, 120
      %v2683 = vpop.permute.xlu0 %2682
      %2684 = vrot.lane.b32.xlu0 %v2523, 120
      %v2685 = vpop.permute.xlu0 %2684
      %2686 = vrot.lane.b32.xlu0 %v2524, 120
      %v2687 = vpop.permute.xlu0 %2686
      %2688 = vrot.lane.b32.xlu0 %v2525, 120
      %v2689 = vpop.permute.xlu0 %2688
      %2690 = vrot.lane.b32.xlu0 %v2526, 120
      %v2691 = vpop.permute.xlu0 %2690
      %2692 = vrot.lane.b32.xlu0 %v2527, 120
      %v2693 = vpop.permute.xlu0 %2692
      %2694 = vrot.lane.b32.xlu0 %v2528, 120
      %v2695 = vpop.permute.xlu0 %2694
      %2696 = vrot.lane.b32.xlu0 %v2529, 120
      %v2697 = vpop.permute.xlu0 %2696
      %2698 = vrot.lane.b32.xlu0 %v2530, 120
      %v2699 = vpop.permute.xlu0 %2698
      %2700 = vrot.lane.b32.xlu0 %v2531, 120
      %v2701 = vpop.permute.xlu0 %2700
      %2702 = vrot.lane.b32.xlu0 %v2532, 120
      %v2703 = vpop.permute.xlu0 %2702
      %2704 = vrot.lane.b32.xlu0 %v2533, 120
      %v2705 = vpop.permute.xlu0 %2704
      %2706 = vrot.lane.b32.xlu0 %v2534, 120
      %v2707 = vpop.permute.xlu0 %2706
      %2708 = vrot.lane.b32.xlu0 %v2535, 120
      %v2709 = vpop.permute.xlu0 %2708
      %2710 = vrot.lane.b32.xlu0 %v2536, 120
      %v2711 = vpop.permute.xlu0 %2710
      %2712 = vrot.lane.b32.xlu0 %v2537, 120
      %v2713 = vpop.permute.xlu0 %2712
      %2714 = vrot.lane.b32.xlu0 %v2538, 120
      %v2715 = vpop.permute.xlu0 %2714
      %2716 = vrot.lane.b32.xlu0 %v2539, 120
      %v2717 = vpop.permute.xlu0 %2716
      %2718 = vrot.lane.b32.xlu0 %v2540, 120
      %v2719 = vpop.permute.xlu0 %2718
      %2720 = vrot.lane.b32.xlu0 %v2541, 120
      %v2721 = vpop.permute.xlu0 %2720
      %2722 = vrot.lane.b32.xlu0 %v2542, 120
      %v2723 = vpop.permute.xlu0 %2722
      %2724 = vrot.lane.b32.xlu0 %v2543, 120
      %v2725 = vpop.permute.xlu0 %2724
      %2726 = vrot.lane.b32.xlu0 %v2544, 120
      %v2727 = vpop.permute.xlu0 %2726
      %2728 = vrot.lane.b32.xlu0 %v2545, 120
      %v2729 = vpop.permute.xlu0 %2728
      %2730 = vrot.lane.b32.xlu0 %v2546, 120
      %v2731 = vpop.permute.xlu0 %2730
      %2732 = vrot.lane.b32.xlu0 %v2547, 120
      %v2733 = vpop.permute.xlu0 %2732
      %2734 = vrot.lane.b32.xlu0 %v2548, 120
      %v2735 = vpop.permute.xlu0 %2734
      %2736 = vrot.lane.b32.xlu0 %v2549, 120
      %v2737 = vpop.permute.xlu0 %2736
      %2738 = vrot.lane.b32.xlu0 %v2550, 120
      %v2739 = vpop.permute.xlu0 %2738
      %2740 = vrot.lane.b32.xlu0 %v2551, 120
      %v2741 = vpop.permute.xlu0 %2740
      %2742 = vrot.lane.b32.xlu0 %v2552, 120
      %v2743 = vpop.permute.xlu0 %2742
      %2744 = vrot.lane.b32.xlu0 %v2553, 120
      %v2745 = vpop.permute.xlu0 %2744
      %2746 = vrot.lane.b32.xlu0 %v2554, 120
      %v2747 = vpop.permute.xlu0 %2746
      %2748 = vrot.lane.b32.xlu0 %v2555, 120
      %v2749 = vpop.permute.xlu0 %2748
      %2750 = vrot.lane.b32.xlu0 %v2556, 120
      %v2751 = vpop.permute.xlu0 %2750
      %2752 = vrot.lane.b32.xlu0 %v2557, 120
      %v2753 = vpop.permute.xlu0 %2752
      %2754 = vrot.lane.b32.xlu0 %v2558, 120
      %v2755 = vpop.permute.xlu0 %2754
      %2756 = vrot.lane.b32.xlu0 %v2559, 120
      %v2757 = vpop.permute.xlu0 %2756
      %2758 = vrot.lane.b32.xlu0 %v2560, 120
      %v2759 = vpop.permute.xlu0 %2758
      %2760 = vrot.lane.b32.xlu0 %v2561, 120
      %v2761 = vpop.permute.xlu0 %2760
      %2762 = vrot.lane.b32.xlu0 %v2562, 120
      %v2763 = vpop.permute.xlu0 %2762
      %2764 = vrot.lane.b32.xlu0 %v2563, 120
      %v2765 = vpop.permute.xlu0 %2764
      %2766 = vrot.lane.b32.xlu0 %v2564, 120
      %v2767 = vpop.permute.xlu0 %2766
      %2768 = vrot.lane.b32.xlu0 %v2565, 120
      %v2769 = vpop.permute.xlu0 %2768
      %2770 = vrot.lane.b32.xlu0 %v2566, 120
      %v2771 = vpop.permute.xlu0 %2770
      %2772 = vrot.lane.b32.xlu0 %v2567, 120
      %v2773 = vpop.permute.xlu0 %2772
      %2774 = vrot.lane.b32.xlu0 %v2568, 120
      %v2775 = vpop.permute.xlu0 %2774
      %2776 = vrot.lane.b32.xlu0 %v2569, 120
      %v2777 = vpop.permute.xlu0 %2776
      %2778 = vrot.lane.b32.xlu0 %v2570, 120
      %v2779 = vpop.permute.xlu0 %2778
      %2780 = vrot.lane.b32.xlu0 %v2571, 120
      %v2781 = vpop.permute.xlu0 %2780
      %2782 = vrot.lane.b32.xlu0 %v2572, 120
      %v2783 = vpop.permute.xlu0 %2782
      %2784 = vrot.lane.b32.xlu0 %v2573, 120
      %v2785 = vpop.permute.xlu0 %2784
      %2786 = vrot.lane.b32.xlu0 %v2574, 120
      %v2787 = vpop.permute.xlu0 %2786
      %2788 = vrot.lane.b32.xlu0 %v2575, 120
      %v2789 = vpop.permute.xlu0 %2788
      %2790 = vrot.lane.b32.xlu0 %v2576, 120
      %v2791 = vpop.permute.xlu0 %2790
      %2792 = vrot.lane.b32.xlu0 %v2577, 120
      %v2793 = vpop.permute.xlu0 %2792
      %vm2794 = vcmask 982016
      %v2795 = vsel %vm2794, %v2651, %v2653
      %v2796 = vsel %vm2794, %v2653, %v2655
      %v2797 = vsel %vm2794, %v2655, %v2657
      %v2798 = vsel %vm2794, %v2659, %v2661
      %v2799 = vsel %vm2794, %v2661, %v2663
      %v2800 = vsel %vm2794, %v2663, %v2665
      %v2801 = vsel %vm2794, %v2667, %v2669
      %v2802 = vsel %vm2794, %v2669, %v2671
      %v2803 = vsel %vm2794, %v2671, %v2673
      %v2804 = vsel %vm2794, %v2675, %v2677
      %v2805 = vsel %vm2794, %v2677, %v2679
      %v2806 = vsel %vm2794, %v2679, %v2681
      %v2807 = vsel %vm2794, %v2683, %v2685
      %v2808 = vsel %vm2794, %v2685, %v2687
      %v2809 = vsel %vm2794, %v2687, %v2689
      %v2810 = vsel %vm2794, %v2691, %v2693
      %v2811 = vsel %vm2794, %v2693, %v2695
      %v2812 = vsel %vm2794, %v2695, %v2697
      %v2813 = vsel %vm2794, %v2699, %v2701
      %v2814 = vsel %vm2794, %v2701, %v2703
      %v2815 = vsel %vm2794, %v2703, %v2705
      %v2816 = vsel %vm2794, %v2707, %v2709
      %v2817 = vsel %vm2794, %v2709, %v2711
      %v2818 = vsel %vm2794, %v2711, %v2713
      %v2819 = vsel %vm2794, %v2715, %v2717
      %v2820 = vsel %vm2794, %v2717, %v2719
      %v2821 = vsel %vm2794, %v2719, %v2721
      %v2822 = vsel %vm2794, %v2723, %v2725
      %v2823 = vsel %vm2794, %v2725, %v2727
      %v2824 = vsel %vm2794, %v2727, %v2729
      %v2825 = vsel %vm2794, %v2731, %v2733
      %v2826 = vsel %vm2794, %v2733, %v2735
      %v2827 = vsel %vm2794, %v2735, %v2737
      %v2828 = vsel %vm2794, %v2739, %v2741
      %v2829 = vsel %vm2794, %v2741, %v2743
      %v2830 = vsel %vm2794, %v2743, %v2745
      %v2831 = vsel %vm2794, %v2747, %v2749
      %v2832 = vsel %vm2794, %v2749, %v2751
      %v2833 = vsel %vm2794, %v2751, %v2753
      %v2834 = vsel %vm2794, %v2755, %v2757
      %v2835 = vsel %vm2794, %v2757, %v2759
      %v2836 = vsel %vm2794, %v2759, %v2761
      %v2837 = vsel %vm2794, %v2763, %v2765
      %v2838 = vsel %vm2794, %v2765, %v2767
      %v2839 = vsel %vm2794, %v2767, %v2769
      %v2840 = vsel %vm2794, %v2771, %v2773
      %v2841 = vsel %vm2794, %v2773, %v2775
      %v2842 = vsel %vm2794, %v2775, %v2777
      %v2843 = vsel %vm2794, %v2779, %v2781
      %v2844 = vsel %vm2794, %v2781, %v2783
      %v2845 = vsel %vm2794, %v2783, %v2785
      %v2846 = vsel %vm2794, %v2787, %v2789
      %v2847 = vsel %vm2794, %v2789, %v2791
      %v2848 = vsel %vm2794, %v2791, %v2793
      %v2921 = vmax.f32 %v2506, %v2795
      %v2922 = vmax.f32 %v2507, %v2796
      %v2923 = vmax.f32 %v2508, %v2797
      %v2924 = vmax.f32 %v2509, %v2657
      %v2925 = vmax.f32 %v2510, %v2798
      %v2926 = vmax.f32 %v2511, %v2799
      %v2927 = vmax.f32 %v2512, %v2800
      %v2928 = vmax.f32 %v2513, %v2665
      %v2929 = vmax.f32 %v2514, %v2801
      %v2930 = vmax.f32 %v2515, %v2802
      %v2931 = vmax.f32 %v2516, %v2803
      %v2932 = vmax.f32 %v2517, %v2673
      %v2933 = vmax.f32 %v2518, %v2804
      %v2934 = vmax.f32 %v2519, %v2805
      %v2935 = vmax.f32 %v2520, %v2806
      %v2936 = vmax.f32 %v2521, %v2681
      %v2937 = vmax.f32 %v2522, %v2807
      %v2938 = vmax.f32 %v2523, %v2808
      %v2939 = vmax.f32 %v2524, %v2809
      %v2940 = vmax.f32 %v2525, %v2689
      %v2941 = vmax.f32 %v2526, %v2810
      %v2942 = vmax.f32 %v2527, %v2811
      %v2943 = vmax.f32 %v2528, %v2812
      %v2944 = vmax.f32 %v2529, %v2697
      %v2945 = vmax.f32 %v2530, %v2813
      %v2946 = vmax.f32 %v2531, %v2814
      %v2947 = vmax.f32 %v2532, %v2815
      %v2948 = vmax.f32 %v2533, %v2705
      %v2949 = vmax.f32 %v2534, %v2816
      %v2950 = vmax.f32 %v2535, %v2817
      %v2951 = vmax.f32 %v2536, %v2818
      %v2952 = vmax.f32 %v2537, %v2713
      %v2953 = vmax.f32 %v2538, %v2819
      %v2954 = vmax.f32 %v2539, %v2820
      %v2955 = vmax.f32 %v2540, %v2821
      %v2956 = vmax.f32 %v2541, %v2721
      %v2957 = vmax.f32 %v2542, %v2822
      %v2958 = vmax.f32 %v2543, %v2823
      %v2959 = vmax.f32 %v2544, %v2824
      %v2960 = vmax.f32 %v2545, %v2729
      %v2961 = vmax.f32 %v2546, %v2825
      %v2962 = vmax.f32 %v2547, %v2826
      %v2963 = vmax.f32 %v2548, %v2827
      %v2964 = vmax.f32 %v2549, %v2737
      %v2965 = vmax.f32 %v2550, %v2828
      %v2966 = vmax.f32 %v2551, %v2829
      %v2967 = vmax.f32 %v2552, %v2830
      %v2968 = vmax.f32 %v2553, %v2745
      %v2969 = vmax.f32 %v2554, %v2831
      %v2970 = vmax.f32 %v2555, %v2832
      %v2971 = vmax.f32 %v2556, %v2833
      %v2972 = vmax.f32 %v2557, %v2753
      %v2973 = vmax.f32 %v2558, %v2834
      %v2974 = vmax.f32 %v2559, %v2835
      %v2975 = vmax.f32 %v2560, %v2836
      %v2976 = vmax.f32 %v2561, %v2761
      %v2977 = vmax.f32 %v2562, %v2837
      %v2978 = vmax.f32 %v2563, %v2838
      %v2979 = vmax.f32 %v2564, %v2839
      %v2980 = vmax.f32 %v2565, %v2769
      %v2981 = vmax.f32 %v2566, %v2840
      %v2982 = vmax.f32 %v2567, %v2841
      %v2983 = vmax.f32 %v2568, %v2842
      %v2984 = vmax.f32 %v2569, %v2777
      %v2985 = vmax.f32 %v2570, %v2843
      %v2986 = vmax.f32 %v2571, %v2844
      %v2987 = vmax.f32 %v2572, %v2845
      %v2988 = vmax.f32 %v2573, %v2785
      %v2989 = vmax.f32 %v2574, %v2846
      %v2990 = vmax.f32 %v2575, %v2847
      %v2991 = vmax.f32 %v2576, %v2848
      %v2992 = vmax.f32 %v2577, %v2793
      %v2993 = vld [vmem:[%s4] sm:$0xff]
      %v2994 = vld [vmem:[%s4 + $0x8] sm:$0xff]
      %v2995 = vld [vmem:[%s4 + $0x10] sm:$0xff]
      %v2996 = vld [vmem:[%s4 + $0x18] sm:$0xff]
      %v2997 = vld [vmem:[%s4 + $0x20] sm:$0xff]
      %v2998 = vld [vmem:[%s4 + $0x28] sm:$0xff]
      %v2999 = vld [vmem:[%s4 + $0x30] sm:$0xff]
      %v3000 = vld [vmem:[%s4 + $0x38] sm:$0xff]
      %v3001 = vld [vmem:[%s4 + $0x40] sm:$0xff]
      %v3002 = vld [vmem:[%s4 + $0x48] sm:$0xff]
      %v3003 = vld [vmem:[%s4 + $0x50] sm:$0xff]
      %v3004 = vld [vmem:[%s4 + $0x58] sm:$0xff]
      %v3005 = vld [vmem:[%s4 + $0x60] sm:$0xff]
      %v3006 = vld [vmem:[%s4 + $0x68] sm:$0xff]
      %v3007 = vld [vmem:[%s4 + $0x70] sm:$0xff]
      %v3008 = vld [vmem:[%s4 + $0x78] sm:$0xff]
      %v3009 = vld [vmem:[%s4 + $0x80] sm:$0xff]
      %v3010 = vld [vmem:[%s4 + $0x88] sm:$0xff]
      %v3011 = vld [vmem:[%s4 + $0x90] sm:$0xff]
      %v3012 = vld [vmem:[%s4 + $0x98] sm:$0xff]
      %v3013 = vld [vmem:[%s4 + $0xa0] sm:$0xff]
      %v3014 = vld [vmem:[%s4 + $0xa8] sm:$0xff]
      %v3015 = vld [vmem:[%s4 + $0xb0] sm:$0xff]
      %v3016 = vld [vmem:[%s4 + $0xb8] sm:$0xff]
      %v3017 = vld [vmem:[%s4 + $0xc0] sm:$0xff]
      %v3018 = vld [vmem:[%s4 + $0xc8] sm:$0xff]
      %v3019 = vld [vmem:[%s4 + $0xd0] sm:$0xff]
      %v3020 = vld [vmem:[%s4 + $0xd8] sm:$0xff]
      %v3021 = vld [vmem:[%s4 + $0xe0] sm:$0xff]
      %v3022 = vld [vmem:[%s4 + $0xe8] sm:$0xff]
      %v3023 = vld [vmem:[%s4 + $0xf0] sm:$0xff]
      %v3024 = vld [vmem:[%s4 + $0xf8] sm:$0xff]
      %v3025 = vld [vmem:[%s4 + $0x100] sm:$0xff]
      %v3026 = vld [vmem:[%s4 + $0x108] sm:$0xff]
      %v3027 = vld [vmem:[%s4 + $0x110] sm:$0xff]
      %v3028 = vld [vmem:[%s4 + $0x118] sm:$0xff]
      %v3029 = vld [vmem:[%s4 + $0x120] sm:$0xff]
      %v3030 = vld [vmem:[%s4 + $0x128] sm:$0xff]
      %v3031 = vld [vmem:[%s4 + $0x130] sm:$0xff]
      %v3032 = vld [vmem:[%s4 + $0x138] sm:$0xff]
      %v3033 = vld [vmem:[%s4 + $0x140] sm:$0xff]
      %v3034 = vld [vmem:[%s4 + $0x148] sm:$0xff]
      %v3035 = vld [vmem:[%s4 + $0x150] sm:$0xff]
      %v3036 = vld [vmem:[%s4 + $0x158] sm:$0xff]
      %v3037 = vld [vmem:[%s4 + $0x160] sm:$0xff]
      %v3038 = vld [vmem:[%s4 + $0x168] sm:$0xff]
      %v3039 = vld [vmem:[%s4 + $0x170] sm:$0xff]
      %v3040 = vld [vmem:[%s4 + $0x178] sm:$0xff]
      %v3041 = vld [vmem:[%s4 + $0x180] sm:$0xff]
      %v3042 = vld [vmem:[%s4 + $0x188] sm:$0xff]
      %v3043 = vld [vmem:[%s4 + $0x190] sm:$0xff]
      %v3044 = vld [vmem:[%s4 + $0x198] sm:$0xff]
      %v3045 = vld [vmem:[%s4 + $0x1a0] sm:$0xff]
      %v3046 = vld [vmem:[%s4 + $0x1a8] sm:$0xff]
      %v3047 = vld [vmem:[%s4 + $0x1b0] sm:$0xff]
      %v3048 = vld [vmem:[%s4 + $0x1b8] sm:$0xff]
      %v3049 = vld [vmem:[%s4 + $0x1c0] sm:$0xff]
      %v3050 = vld [vmem:[%s4 + $0x1c8] sm:$0xff]
      %v3051 = vld [vmem:[%s4 + $0x1d0] sm:$0xff]
      %v3052 = vld [vmem:[%s4 + $0x1d8] sm:$0xff]
      %v3053 = vld [vmem:[%s4 + $0x1e0] sm:$0xff]
      %v3054 = vld [vmem:[%s4 + $0x1e8] sm:$0xff]
      %v3055 = vld [vmem:[%s4 + $0x1f0] sm:$0xff]
      %v3056 = vld [vmem:[%s4 + $0x1f8] sm:$0xff]
      %v3057 = vld [vmem:[%s4 + $0x200] sm:$0xff]
      %v3058 = vld [vmem:[%s4 + $0x208] sm:$0xff]
      %v3059 = vld [vmem:[%s4 + $0x210] sm:$0xff]
      %v3060 = vld [vmem:[%s4 + $0x218] sm:$0xff]
      %v3061 = vld [vmem:[%s4 + $0x220] sm:$0xff]
      %v3062 = vld [vmem:[%s4 + $0x228] sm:$0xff]
      %v3063 = vld [vmem:[%s4 + $0x230] sm:$0xff]
      %v3064 = vld [vmem:[%s4 + $0x238] sm:$0xff]
      %v3065 = vld [vmem:[%s4 + $0x240] sm:$0xff]
      %v3066 = vld [vmem:[%s4 + $0x248] sm:$0xff]
      %v3067 = vld [vmem:[%s4 + $0x250] sm:$0xff]
      %v3068 = vld [vmem:[%s4 + $0x258] sm:$0xff]
      %v3069 = vld [vmem:[%s4 + $0x260] sm:$0xff]
      %v3070 = vld [vmem:[%s4 + $0x268] sm:$0xff]
      %v3071 = vld [vmem:[%s4 + $0x270] sm:$0xff]
      %v3072 = vld [vmem:[%s4 + $0x278] sm:$0xff]
      %v3073 = vld [vmem:[%s4 + $0x280] sm:$0xff]
      %v3074 = vld [vmem:[%s4 + $0x288] sm:$0xff]
      %v3075 = vld [vmem:[%s4 + $0x290] sm:$0xff]
      %v3076 = vld [vmem:[%s4 + $0x298] sm:$0xff]
      %v3077 = vld [vmem:[%s4 + $0x2a0] sm:$0xff]
      %v3078 = vld [vmem:[%s4 + $0x2a8] sm:$0xff]
      %v3079 = vld [vmem:[%s4 + $0x2b0] sm:$0xff]
      %v3080 = vld [vmem:[%s4 + $0x2b8] sm:$0xff]
      %v3081 = vld [vmem:[%s4 + $0x2c0] sm:$0xff]
      %v3082 = vld [vmem:[%s4 + $0x2c8] sm:$0xff]
      %v3083 = vld [vmem:[%s4 + $0x2d0] sm:$0xff]
      %v3084 = vld [vmem:[%s4 + $0x2d8] sm:$0xff]
      %v3085 = vld [vmem:[%s4 + $0x2e0] sm:$0xff]
      %v3086 = vld [vmem:[%s4 + $0x2e8] sm:$0xff]
      %v3087 = vld [vmem:[%s4 + $0x2f0] sm:$0xff]
      %v3088 = vld [vmem:[%s4 + $0x2f8] sm:$0xff]
      %v3089 = vld [vmem:[%s4 + $0x300] sm:$0xff]
      %v3090 = vld [vmem:[%s4 + $0x308] sm:$0xff]
      %v3091 = vld [vmem:[%s4 + $0x310] sm:$0xff]
      %v3092 = vld [vmem:[%s4 + $0x318] sm:$0xff]
      %v3093 = vld [vmem:[%s4 + $0x320] sm:$0xff]
      %v3094 = vld [vmem:[%s4 + $0x328] sm:$0xff]
      %v3095 = vld [vmem:[%s4 + $0x330] sm:$0xff]
      %v3096 = vld [vmem:[%s4 + $0x338] sm:$0xff]
      %v3097 = vld [vmem:[%s4 + $0x340] sm:$0xff]
      %v3098 = vld [vmem:[%s4 + $0x348] sm:$0xff]
      %v3099 = vld [vmem:[%s4 + $0x350] sm:$0xff]
      %v3100 = vld [vmem:[%s4 + $0x358] sm:$0xff]
      %v3101 = vld [vmem:[%s4 + $0x360] sm:$0xff]
      %v3102 = vld [vmem:[%s4 + $0x368] sm:$0xff]
      %v3103 = vld [vmem:[%s4 + $0x370] sm:$0xff]
      %v3104 = vld [vmem:[%s4 + $0x378] sm:$0xff]
      %v3105 = vld [vmem:[%s4 + $0x380] sm:$0xff]
      %v3106 = vld [vmem:[%s4 + $0x388] sm:$0xff]
      %v3107 = vld [vmem:[%s4 + $0x390] sm:$0xff]
      %v3108 = vld [vmem:[%s4 + $0x398] sm:$0xff]
      %v3109 = vld [vmem:[%s4 + $0x3a0] sm:$0xff]
      %v3110 = vld [vmem:[%s4 + $0x3a8] sm:$0xff]
      %v3111 = vld [vmem:[%s4 + $0x3b0] sm:$0xff]
      %v3112 = vld [vmem:[%s4 + $0x3b8] sm:$0xff]
      %v3113 = vld [vmem:[%s4 + $0x3c0] sm:$0xff]
      %v3114 = vld [vmem:[%s4 + $0x3c8] sm:$0xff]
      %v3115 = vld [vmem:[%s4 + $0x3d0] sm:$0xff]
      %v3116 = vld [vmem:[%s4 + $0x3d8] sm:$0xff]
      %v3117 = vld [vmem:[%s4 + $0x3e0] sm:$0xff]
      %v3118 = vld [vmem:[%s4 + $0x3e8] sm:$0xff]
      %v3120 = vsel %vm2794, %v2924, 0
      %v3123 = vsel %vm2794, %v2928, 0
      %v3126 = vsel %vm2794, %v2932, 0
      %v3129 = vsel %vm2794, %v2936, 0
      %v3132 = vsel %vm2794, %v2940, 0
      %v3135 = vsel %vm2794, %v2944, 0
      %v3138 = vsel %vm2794, %v2948, 0
      %v3141 = vsel %vm2794, %v2952, 0
      %v3144 = vsel %vm2794, %v2956, 0
      %v3147 = vsel %vm2794, %v2960, 0
      %v3150 = vsel %vm2794, %v2964, 0
      %v3153 = vsel %vm2794, %v2968, 0
      %v3156 = vsel %vm2794, %v2972, 0
      %v3159 = vsel %vm2794, %v2976, 0
      %v3162 = vsel %vm2794, %v2980, 0
      %v3165 = vsel %vm2794, %v2984, 0
      %v3168 = vsel %vm2794, %v2988, 0
      %v3171 = vsel %vm2794, %v2992, 0
      %3173 = vmatprep.subr.mxu0 %v2994
      %3174 = vmatpush1.msra.mxu0 %v2993
      %3175 = vmatprep.subr.mxu0 %v2996
      %3176 = vmatpush1.msra.mxu0 %v2995
      %3177 = vmatprep.subr.mxu0 %v2998
      %3178 = vmatpush1.msra.mxu0 %v2997
      %3179 = vmatprep.subr.mxu0 %v3000
      %3180 = vmatpush1.msra.mxu0 %v2999
      %3181 = vmatprep.subr.mxu0 %v3002
      %3182 = vmatpush1.msra.mxu0 %v3001
      %3183 = vmatprep.subr.mxu0 %v3004
      %3184 = vmatpush1.msra.mxu0 %v3003
      %3185 = vmatprep.subr.mxu0 %v3006
      %3186 = vmatpush1.msra.mxu0 %v3005
      %3187 = vmatprep.subr.mxu0 %v3008
      %3188 = vmatpush1.msra.mxu0 %v3007
      %3189 = vmatprep.subr.mxu0 %v3010
      %3190 = vmatpush1.msra.mxu0 %v3009
      %3191 = vmatprep.subr.mxu0 %v3012
      %3192 = vmatpush1.msra.mxu0 %v3011
      %3193 = vmatprep.subr.mxu0 %v3014
      %3194 = vmatpush1.msra.mxu0 %v3013
      %3195 = vmatprep.subr.mxu0 %v3016
      %3196 = vmatpush1.msra.mxu0 %v3015
      %3197 = vmatprep.subr.mxu0 %v3018
      %3198 = vmatpush1.msra.mxu0 %v3017
      %3199 = vmatprep.subr.mxu0 %v3020
      %3200 = vmatpush1.msra.mxu0 %v3019
      %3201 = vmatprep.subr.mxu0 %v3022
      %3202 = vmatpush1.msra.mxu0 %v3021
      %3203 = vmatprep.subr.mxu0 %v3024
      %3204 = vmatpush1.msra.mxu0 %v3023
      %3205 = vmatprep.subr.mxu0 %v3026
      %3206 = vmatpush1.msra.mxu0 %v3025
      %3207 = vmatprep.subr.mxu0 %v3028
      %3208 = vmatpush1.msra.mxu0 %v3027
      %3209 = vmatprep.subr.mxu0 %v3030
      %3210 = vmatpush1.msra.mxu0 %v3029
      %3211 = vmatprep.subr.mxu0 %v3032
      %3212 = vmatpush1.msra.mxu0 %v3031
      %3213 = vmatprep.subr.mxu0 %v3034
      %3214 = vmatpush1.msra.mxu0 %v3033
      %3215 = vmatprep.subr.mxu0 %v3036
      %3216 = vmatpush1.msra.mxu0 %v3035
      %3217 = vmatprep.subr.mxu0 %v3038
      %3218 = vmatpush1.msra.mxu0 %v3037
      %3219 = vmatprep.subr.mxu0 %v3040
      %3220 = vmatpush1.msra.mxu0 %v3039
      %3221 = vmatprep.subr.mxu0 %v3042
      %3222 = vmatpush1.msra.mxu0 %v3041
      %3223 = vmatprep.subr.mxu0 %v3044
      %3224 = vmatpush1.msra.mxu0 %v3043
      %3225 = vmatprep.subr.mxu0 %v3046
      %3226 = vmatpush1.msra.mxu0 %v3045
      %3227 = vmatprep.subr.mxu0 %v3048
      %3228 = vmatpush1.msra.mxu0 %v3047
      %3229 = vmatprep.subr.mxu0 %v3050
      %3230 = vmatpush1.msra.mxu0 %v3049
      %3231 = vmatprep.subr.mxu0 %v3052
      %3232 = vmatpush1.msra.mxu0 %v3051
      %3233 = vmatprep.subr.mxu0 %v3054
      %3234 = vmatpush1.msra.mxu0 %v3053
      %3235 = vmatprep.subr.mxu0 %v3056
      %3236 = vmatpush1.msra.mxu0 %v3055
      %3237 = vmatprep.mubr.f32.mxu0 %v2922
      %3238 = vmatmul.mubr.f32.gmra.mrb[0].mxu0 %v2921
      %v3239 = vpop.f32.mrb[0].mxu0
      %v3240 = vadd.f32 0.0, %v3239
      %v3241 = vpop.f32.mrb[0].mxu0
      %v3242 = vadd.f32 0.0, %v3241
      %3243 = vmatprep.mubr.f32.mxu0 %v2926
      %3244 = vmatmul.mubr.f32.gmra.mrb[0].mxu0 %v2925
      %v3245 = vpop.f32.mrb[0].mxu0
      %v3246 = vadd.f32 0.0, %v3245
      %v3247 = vpop.f32.mrb[0].mxu0
      %v3248 = vadd.f32 0.0, %v3247
      %3249 = vmatprep.mubr.f32.mxu0 %v2930
      %3250 = vmatmul.mubr.f32.gmra.mrb[0].mxu0 %v2929
      %v3251 = vpop.f32.mrb[0].mxu0
      %v3252 = vadd.f32 0.0, %v3251
      %v3253 = vpop.f32.mrb[0].mxu0
      %v3254 = vadd.f32 0.0, %v3253
      %3255 = vmatprep.mubr.f32.mxu0 %v2934
      %3256 = vmatmul.mubr.f32.gmra.mrb[0].mxu0 %v2933
      %v3257 = vpop.f32.mrb[0].mxu0
      %v3258 = vadd.f32 0.0, %v3257
      %v3259 = vpop.f32.mrb[0].mxu0
      %v3260 = vadd.f32 0.0, %v3259
      %3261 = vmatprep.mubr.f32.mxu0 %v2938
      %3262 = vmatmul.mubr.f32.gmra.mrb[0].mxu0 %v2937
      %v3263 = vpop.f32.mrb[0].mxu0
      %v3264 = vadd.f32 0.0, %v3263
      %v3265 = vpop.f32.mrb[0].mxu0
      %v3266 = vadd.f32 0.0, %v3265
      %3267 = vmatprep.mubr.f32.mxu0 %v2942
      %3268 = vmatmul.mubr.f32.gmra.mrb[0].mxu0 %v2941
      %v3269 = vpop.f32.mrb[0].mxu0
      %v3270 = vadd.f32 0.0, %v3269
      %v3271 = vpop.f32.mrb[0].mxu0
      %v3272 = vadd.f32 0.0, %v3271
      %3273 = vmatprep.mubr.f32.mxu0 %v2946
      %3274 = vmatmul.mubr.f32.gmra.mrb[0].mxu0 %v2945
      %v3275 = vpop.f32.mrb[0].mxu0
      %v3276 = vadd.f32 0.0, %v3275
      %v3277 = vpop.f32.mrb[0].mxu0
      %v3278 = vadd.f32 0.0, %v3277
      %3279 = vmatprep.mubr.f32.mxu0 %v2950
      %3280 = vmatmul.mubr.f32.gmra.mrb[0].mxu0 %v2949
      %v3281 = vpop.f32.mrb[0].mxu0
      %v3282 = vadd.f32 0.0, %v3281
      %v3283 = vpop.f32.mrb[0].mxu0
      %v3284 = vadd.f32 0.0, %v3283
      %3285 = vmatprep.mubr.f32.mxu0 %v2954
      %3286 = vmatmul.mubr.f32.gmra.mrb[0].mxu0 %v2953
      %v3287 = vpop.f32.mrb[0].mxu0
      %v3288 = vadd.f32 0.0, %v3287
      %v3289 = vpop.f32.mrb[0].mxu0
      %v3290 = vadd.f32 0.0, %v3289
      %3291 = vmatprep.mubr.f32.mxu0 %v2958
      %3292 = vmatmul.mubr.f32.gmra.mrb[0].mxu0 %v2957
      %v3293 = vpop.f32.mrb[0].mxu0
      %v3294 = vadd.f32 0.0, %v3293
      %v3295 = vpop.f32.mrb[0].mxu0
      %v3296 = vadd.f32 0.0, %v3295
      %3297 = vmatprep.mubr.f32.mxu0 %v2962
      %3298 = vmatmul.mubr.f32.gmra.mrb[0].mxu0 %v2961
      %v3299 = vpop.f32.mrb[0].mxu0
      %v3300 = vadd.f32 0.0, %v3299
      %v3301 = vpop.f32.mrb[0].mxu0
      %v3302 = vadd.f32 0.0, %v3301
      %3303 = vmatprep.mubr.f32.mxu0 %v2966
      %3304 = vmatmul.mubr.f32.gmra.mrb[0].mxu0 %v2965
      %v3305 = vpop.f32.mrb[0].mxu0
      %v3306 = vadd.f32 0.0, %v3305
      %v3307 = vpop.f32.mrb[0].mxu0
      %v3308 = vadd.f32 0.0, %v3307
      %3309 = vmatprep.mubr.f32.mxu0 %v2970
      %3310 = vmatmul.mubr.f32.gmra.mrb[0].mxu0 %v2969
      %v3311 = vpop.f32.mrb[0].mxu0
      %v3312 = vadd.f32 0.0, %v3311
      %v3313 = vpop.f32.mrb[0].mxu0
      %v3314 = vadd.f32 0.0, %v3313
      %3315 = vmatprep.mubr.f32.mxu0 %v2974
      %3316 = vmatmul.mubr.f32.gmra.mrb[0].mxu0 %v2973
      %v3317 = vpop.f32.mrb[0].mxu0
      %v3318 = vadd.f32 0.0, %v3317
      %v3319 = vpop.f32.mrb[0].mxu0
      %v3320 = vadd.f32 0.0, %v3319
      %3321 = vmatprep.mubr.f32.mxu0 %v2978
      %3322 = vmatmul.mubr.f32.gmra.mrb[0].mxu0 %v2977
      %v3323 = vpop.f32.mrb[0].mxu0
      %v3324 = vadd.f32 0.0, %v3323
      %v3325 = vpop.f32.mrb[0].mxu0
      %v3326 = vadd.f32 0.0, %v3325
      %3327 = vmatprep.mubr.f32.mxu0 %v2982
      %3328 = vmatmul.mubr.f32.gmra.mrb[0].mxu0 %v2981
      %v3329 = vpop.f32.mrb[0].mxu0
      %v3330 = vadd.f32 0.0, %v3329
      %v3331 = vpop.f32.mrb[0].mxu0
      %v3332 = vadd.f32 0.0, %v3331
      %3333 = vmatprep.mubr.f32.mxu0 %v2986
      %3334 = vmatmul.mubr.f32.gmra.mrb[0].mxu0 %v2985
      %v3335 = vpop.f32.mrb[0].mxu0
      %v3336 = vadd.f32 0.0, %v3335
      %v3337 = vpop.f32.mrb[0].mxu0
      %v3338 = vadd.f32 0.0, %v3337
      %3339 = vmatprep.mubr.f32.mxu0 %v2990
      %3340 = vmatmul.mubr.f32.gmra.mrb[0].mxu0 %v2989
      %v3341 = vpop.f32.mrb[0].mxu0
      %v3342 = vadd.f32 0.0, %v3341
      %v3343 = vpop.f32.mrb[0].mxu0
      %v3344 = vadd.f32 0.0, %v3343
      %3345 = vdwg.mxu0
      %3346 = vmatprep.subr.mxu0 %v3058
      %3347 = vmatpush1.msra.mxu0 %v3057
      %3348 = vmatprep.subr.mxu0 %v3060
      %3349 = vmatpush1.msra.mxu0 %v3059
      %3350 = vmatprep.subr.mxu0 %v3062
      %3351 = vmatpush1.msra.mxu0 %v3061
      %3352 = vmatprep.subr.mxu0 %v3064
      %3353 = vmatpush1.msra.mxu0 %v3063
      %3354 = vmatprep.subr.mxu0 %v3066
      %3355 = vmatpush1.msra.mxu0 %v3065
      %3356 = vmatprep.subr.mxu0 %v3068
      %3357 = vmatpush1.msra.mxu0 %v3067
      %3358 = vmatprep.subr.mxu0 %v3070
      %3359 = vmatpush1.msra.mxu0 %v3069
      %3360 = vmatprep.subr.mxu0 %v3072
      %3361 = vmatpush1.msra.mxu0 %v3071
      %3362 = vmatprep.subr.mxu0 %v3074
      %3363 = vmatpush1.msra.mxu0 %v3073
      %3364 = vmatprep.subr.mxu0 %v3076
      %3365 = vmatpush1.msra.mxu0 %v3075
      %3366 = vmatprep.subr.mxu0 %v3078
      %3367 = vmatpush1.msra.mxu0 %v3077
      %3368 = vmatprep.subr.mxu0 %v3080
      %3369 = vmatpush1.msra.mxu0 %v3079
      %3370 = vmatprep.subr.mxu0 %v3082
      %3371 = vmatpush1.msra.mxu0 %v3081
      %3372 = vmatprep.subr.mxu0 %v3084
      %3373 = vmatpush1.msra.mxu0 %v3083
      %3374 = vmatprep.subr.mxu0 %v3086
      %3375 = vmatpush1.msra.mxu0 %v3085
      %3376 = vmatprep.subr.mxu0 %v3088
      %3377 = vmatpush1.msra.mxu0 %v3087
      %3378 = vmatprep.subr.mxu0 %v3090
      %3379 = vmatpush1.msra.mxu0 %v3089
      %3380 = vmatprep.subr.mxu0 %v3092
      %3381 = vmatpush1.msra.mxu0 %v3091
      %3382 = vmatprep.subr.mxu0 %v3094
      %3383 = vmatpush1.msra.mxu0 %v3093
      %3384 = vmatprep.subr.mxu0 %v3096
      %3385 = vmatpush1.msra.mxu0 %v3095
      %3386 = vmatprep.subr.mxu0 %v3098
      %3387 = vmatpush1.msra.mxu0 %v3097
      %3388 = vmatprep.subr.mxu0 %v3100
      %3389 = vmatpush1.msra.mxu0 %v3099
      %3390 = vmatprep.subr.mxu0 %v3102
      %3391 = vmatpush1.msra.mxu0 %v3101
      %3392 = vmatprep.subr.mxu0 %v3104
      %3393 = vmatpush1.msra.mxu0 %v3103
      %3394 = vmatprep.subr.mxu0 %v3106
      %3395 = vmatpush1.msra.mxu0 %v3105
      %3396 = vmatprep.subr.mxu0 %v3108
      %3397 = vmatpush1.msra.mxu0 %v3107
      %3398 = vmatprep.subr.mxu0 %v3110
      %3399 = vmatpush1.msra.mxu0 %v3109
      %3400 = vmatprep.subr.mxu0 %v3112
      %3401 = vmatpush1.msra.mxu0 %v3111
      %3402 = vmatprep.subr.mxu0 %v3114
      %3403 = vmatpush1.msra.mxu0 %v3113
      %3404 = vmatprep.subr.mxu0 %v3116
      %3405 = vmatpush1.msra.mxu0 %v3115
      %3406 = vmatprep.subr.mxu0 %v3118
      %3407 = vmatpush1.msra.mxu0 %v3117
      %3408 = vmatprep.subr.mxu0 0.0
      %3409 = vmatpush1.msra.mxu0 0.0
      %3410 = vmatprep.mubr.f32.mxu0 %v3120
      %3411 = vmatmul.mubr.f32.gmra.mrb[0].mxu0 %v2923
      %v3412 = vpop.f32.mrb[0].mxu0
      %v3413 = vadd.f32 %v3240, %v3412
      %v3414 = vpop.f32.mrb[0].mxu0
      %v3415 = vadd.f32 %v3242, %v3414
      %3416 = vmatprep.mubr.f32.mxu0 %v3123
      %3417 = vmatmul.mubr.f32.gmra.mrb[0].mxu0 %v2927
      %v3418 = vpop.f32.mrb[0].mxu0
      %v3419 = vadd.f32 %v3246, %v3418
      %v3420 = vpop.f32.mrb[0].mxu0
      %v3421 = vadd.f32 %v3248, %v3420
      %3422 = vmatprep.mubr.f32.mxu0 %v3126
      %3423 = vmatmul.mubr.f32.gmra.mrb[0].mxu0 %v2931
      %v3424 = vpop.f32.mrb[0].mxu0
      %v3425 = vadd.f32 %v3252, %v3424
      %v3426 = vpop.f32.mrb[0].mxu0
      %v3427 = vadd.f32 %v3254, %v3426
      %3428 = vmatprep.mubr.f32.mxu0 %v3129
      %3429 = vmatmul.mubr.f32.gmra.mrb[0].mxu0 %v2935
      %v3430 = vpop.f32.mrb[0].mxu0
      %v3431 = vadd.f32 %v3258, %v3430
      %v3432 = vpop.f32.mrb[0].mxu0
      %v3433 = vadd.f32 %v3260, %v3432
      %3434 = vmatprep.mubr.f32.mxu0 %v3132
      %3435 = vmatmul.mubr.f32.gmra.mrb[0].mxu0 %v2939
      %v3436 = vpop.f32.mrb[0].mxu0
      %v3437 = vadd.f32 %v3264, %v3436
      %v3438 = vpop.f32.mrb[0].mxu0
      %v3439 = vadd.f32 %v3266, %v3438
      %3440 = vmatprep.mubr.f32.mxu0 %v3135
      %3441 = vmatmul.mubr.f32.gmra.mrb[0].mxu0 %v2943
      %v3442 = vpop.f32.mrb[0].mxu0
      %v3443 = vadd.f32 %v3270, %v3442
      %v3444 = vpop.f32.mrb[0].mxu0
      %v3445 = vadd.f32 %v3272, %v3444
      %3446 = vmatprep.mubr.f32.mxu0 %v3138
      %3447 = vmatmul.mubr.f32.gmra.mrb[0].mxu0 %v2947
      %v3448 = vpop.f32.mrb[0].mxu0
      %v3449 = vadd.f32 %v3276, %v3448
      %v3450 = vpop.f32.mrb[0].mxu0
      %v3451 = vadd.f32 %v3278, %v3450
      %3452 = vmatprep.mubr.f32.mxu0 %v3141
      %3453 = vmatmul.mubr.f32.gmra.mrb[0].mxu0 %v2951
      %v3454 = vpop.f32.mrb[0].mxu0
      %v3455 = vadd.f32 %v3282, %v3454
      %v3456 = vpop.f32.mrb[0].mxu0
      %v3457 = vadd.f32 %v3284, %v3456
      %3458 = vmatprep.mubr.f32.mxu0 %v3144
      %3459 = vmatmul.mubr.f32.gmra.mrb[0].mxu0 %v2955
      %v3460 = vpop.f32.mrb[0].mxu0
      %v3461 = vadd.f32 %v3288, %v3460
      %v3462 = vpop.f32.mrb[0].mxu0
      %v3463 = vadd.f32 %v3290, %v3462
      %3464 = vmatprep.mubr.f32.mxu0 %v3147
      %3465 = vmatmul.mubr.f32.gmra.mrb[0].mxu0 %v2959
      %v3466 = vpop.f32.mrb[0].mxu0
      %v3467 = vadd.f32 %v3294, %v3466
      %v3468 = vpop.f32.mrb[0].mxu0
      %v3469 = vadd.f32 %v3296, %v3468
      %3470 = vmatprep.mubr.f32.mxu0 %v3150
      %3471 = vmatmul.mubr.f32.gmra.mrb[0].mxu0 %v2963
      %v3472 = vpop.f32.mrb[0].mxu0
      %v3473 = vadd.f32 %v3300, %v3472
      %v3474 = vpop.f32.mrb[0].mxu0
      %v3475 = vadd.f32 %v3302, %v3474
      %3476 = vmatprep.mubr.f32.mxu0 %v3153
      %3477 = vmatmul.mubr.f32.gmra.mrb[0].mxu0 %v2967
      %v3478 = vpop.f32.mrb[0].mxu0
      %v3479 = vadd.f32 %v3306, %v3478
      %v3480 = vpop.f32.mrb[0].mxu0
      %v3481 = vadd.f32 %v3308, %v3480
      %3482 = vmatprep.mubr.f32.mxu0 %v3156
      %3483 = vmatmul.mubr.f32.gmra.mrb[0].mxu0 %v2971
      %v3484 = vpop.f32.mrb[0].mxu0
      %v3485 = vadd.f32 %v3312, %v3484
      %v3486 = vpop.f32.mrb[0].mxu0
      %v3487 = vadd.f32 %v3314, %v3486
      %3488 = vmatprep.mubr.f32.mxu0 %v3159
      %3489 = vmatmul.mubr.f32.gmra.mrb[0].mxu0 %v2975
      %v3490 = vpop.f32.mrb[0].mxu0
      %v3491 = vadd.f32 %v3318, %v3490
      %v3492 = vpop.f32.mrb[0].mxu0
      %v3493 = vadd.f32 %v3320, %v3492
      %3494 = vmatprep.mubr.f32.mxu0 %v3162
      %3495 = vmatmul.mubr.f32.gmra.mrb[0].mxu0 %v2979
      %v3496 = vpop.f32.mrb[0].mxu0
      %v3497 = vadd.f32 %v3324, %v3496
      %v3498 = vpop.f32.mrb[0].mxu0
      %v3499 = vadd.f32 %v3326, %v3498
      %3500 = vmatprep.mubr.f32.mxu0 %v3165
      %3501 = vmatmul.mubr.f32.gmra.mrb[0].mxu0 %v2983
      %v3502 = vpop.f32.mrb[0].mxu0
      %v3503 = vadd.f32 %v3330, %v3502
      %v3504 = vpop.f32.mrb[0].mxu0
      %v3505 = vadd.f32 %v3332, %v3504
      %3506 = vmatprep.mubr.f32.mxu0 %v3168
      %3507 = vmatmul.mubr.f32.gmra.mrb[0].mxu0 %v2987
      %v3508 = vpop.f32.mrb[0].mxu0
      %v3509 = vadd.f32 %v3336, %v3508
      %v3510 = vpop.f32.mrb[0].mxu0
      %v3511 = vadd.f32 %v3338, %v3510
      %3512 = vmatprep.mubr.f32.mxu0 %v3171
      %3513 = vmatmul.mubr.f32.gmra.mrb[0].mxu0 %v2991
      %v3514 = vpop.f32.mrb[0].mxu0
      %v3515 = vadd.f32 %v3342, %v3514
      %v3516 = vpop.f32.mrb[0].mxu0
      %v3517 = vadd.f32 %v3344, %v3516
      %3518 = vdwg.mxu0
      %v3519 = vld [vmem:[%s7] sm:$0xff]
      %v3520 = vld [vmem:[%s7 + $0x8] sm:$0xff]
      %v3521 = vld [vmem:[%s7 + $0x10] sm:$0xff]
      %v3522 = vld [vmem:[%s7 + $0x18] sm:$0xff]
      %v3523 = vld [vmem:[%s7 + $0x20] sm:$0xff]
      %v3524 = vld [vmem:[%s7 + $0x28] sm:$0xff]
      %v3525 = vld [vmem:[%s7 + $0x30] sm:$0xff]
      %v3526 = vld [vmem:[%s7 + $0x38] sm:$0xff]
      %v3527 = vld [vmem:[%s7 + $0x40] sm:$0xff]
      %v3528 = vld [vmem:[%s7 + $0x48] sm:$0xff]
      %v3529 = vld [vmem:[%s7 + $0x50] sm:$0xff]
      %v3530 = vld [vmem:[%s7 + $0x58] sm:$0xff]
      %v3531 = vld [vmem:[%s7 + $0x60] sm:$0xff]
      %v3532 = vld [vmem:[%s7 + $0x68] sm:$0xff]
      %v3533 = vld [vmem:[%s7 + $0x70] sm:$0xff]
      %v3534 = vld [vmem:[%s7 + $0x78] sm:$0xff]
      %v3535 = vld [vmem:[%s7 + $0x80] sm:$0xf]
      %v3536 = vld [vmem:[%s7 + $0x88] sm:$0xf]
      %v3537 = vld [vmem:[%s10] sm:$0xff]
      %v3538 = vld [vmem:[%s10 + $0x8] sm:$0xff]
      %v3539 = vld [vmem:[%s10 + $0x10] sm:$0xff]
      %v3540 = vld [vmem:[%s10 + $0x18] sm:$0xff]
      %v3541 = vld [vmem:[%s10 + $0x20] sm:$0xff]
      %v3542 = vld [vmem:[%s10 + $0x28] sm:$0xff]
      %v3543 = vld [vmem:[%s10 + $0x30] sm:$0xff]
      %v3544 = vld [vmem:[%s10 + $0x38] sm:$0xff]
      %v3545 = vld [vmem:[%s10 + $0x40] sm:$0xff]
      %v3546 = vld [vmem:[%s10 + $0x48] sm:$0xff]
      %v3547 = vld [vmem:[%s10 + $0x50] sm:$0xff]
      %v3548 = vld [vmem:[%s10 + $0x58] sm:$0xff]
      %v3549 = vld [vmem:[%s10 + $0x60] sm:$0xff]
      %v3550 = vld [vmem:[%s10 + $0x68] sm:$0xff]
      %v3551 = vld [vmem:[%s10 + $0x70] sm:$0xff]
      %v3552 = vld [vmem:[%s10 + $0x78] sm:$0xff]
      %v3553 = vld [vmem:[%s10 + $0x80] sm:$0xf]
      %v3554 = vld [vmem:[%s10 + $0x88] sm:$0xf]
      %vm3555 = vcmask 105472
      %v3557 = vsel %vm3555, %v3520, 0
      %v3560 = vsel %vm3555, %v3522, 0
      %v3563 = vsel %vm3555, %v3524, 0
      %v3566 = vsel %vm3555, %v3526, 0
      %v3569 = vsel %vm3555, %v3528, 0
      %v3572 = vsel %vm3555, %v3530, 0
      %v3575 = vsel %vm3555, %v3532, 0
      %v3578 = vsel %vm3555, %v3534, 0
      %v3581 = vsel %vm3555, %v3536, 0
      %vm3583 = vcmask 1044480
      %v3585 = vsel %vm3583, %v3515, 0
      %v3588 = vsel %vm3583, %v3517, 0
      %3590 = vmatprep.subr.mxu0 %v3415
      %3591 = vmatpush1.msra.mxu0 %v3413
      %3592 = vmatprep.subr.mxu0 %v3421
      %3593 = vmatpush1.msra.mxu0 %v3419
      %3594 = vmatprep.subr.mxu0 %v3427
      %3595 = vmatpush1.msra.mxu0 %v3425
      %3596 = vmatprep.subr.mxu0 %v3433
      %3597 = vmatpush1.msra.mxu0 %v3431
      %3598 = vmatprep.subr.mxu0 %v3439
      %3599 = vmatpush1.msra.mxu0 %v3437
      %3600 = vmatprep.subr.mxu0 %v3445
      %3601 = vmatpush1.msra.mxu0 %v3443
      %3602 = vmatprep.subr.mxu0 %v3451
      %3603 = vmatpush1.msra.mxu0 %v3449
      %3604 = vmatprep.subr.mxu0 %v3457
      %3605 = vmatpush1.msra.mxu0 %v3455
      %3606 = vmatprep.subr.mxu0 %v3463
      %3607 = vmatpush1.msra.mxu0 %v3461
      %3608 = vmatprep.subr.mxu0 %v3469
      %3609 = vmatpush1.msra.mxu0 %v3467
      %3610 = vmatprep.subr.mxu0 %v3475
      %3611 = vmatpush1.msra.mxu0 %v3473
      %3612 = vmatprep.subr.mxu0 %v3481
      %3613 = vmatpush1.msra.mxu0 %v3479
      %3614 = vmatprep.subr.mxu0 %v3487
      %3615 = vmatpush1.msra.mxu0 %v3485
      %3616 = vmatprep.subr.mxu0 %v3493
      %3617 = vmatpush1.msra.mxu0 %v3491
      %3618 = vmatprep.subr.mxu0 %v3499
      %3619 = vmatpush1.msra.mxu0 %v3497
      %3620 = vmatprep.subr.mxu0 %v3505
      %3621 = vmatpush1.msra.mxu0 %v3503
      %3622 = vmatprep.subr.mxu0 %v3511
      %3623 = vmatpush1.msra.mxu0 %v3509
      %3624 = vmatprep.subr.mxu0 %v3588
      %3625 = vmatpush1.msra.mxu0 %v3585
      %3626 = vmatprep.subr.mxu0 0.0
      %3627 = vmatpush1.msra.mxu0 0.0
      %3628 = vmatprep.subr.mxu0 0.0
      %3629 = vmatpush1.msra.mxu0 0.0
      %3630 = vmatprep.subr.mxu0 0.0
      %3631 = vmatpush1.msra.mxu0 0.0
      %3632 = vmatprep.subr.mxu0 0.0
      %3633 = vmatpush1.msra.mxu0 0.0
      %3634 = vmatprep.subr.mxu0 0.0
      %3635 = vmatpush1.msra.mxu0 0.0
      %3636 = vmatprep.subr.mxu0 0.0
      %3637 = vmatpush1.msra.mxu0 0.0
      %3638 = vmatprep.subr.mxu0 0.0
      %3639 = vmatpush1.msra.mxu0 0.0
      %3640 = vmatprep.subr.mxu0 0.0
      %3641 = vmatpush1.msra.mxu0 0.0
      %3642 = vmatprep.subr.mxu0 0.0
      %3643 = vmatpush1.msra.mxu0 0.0
      %3644 = vmatprep.subr.mxu0 0.0
      %3645 = vmatpush1.msra.mxu0 0.0
      %3646 = vmatprep.subr.mxu0 0.0
      %3647 = vmatpush1.msra.mxu0 0.0
      %3648 = vmatprep.subr.mxu0 0.0
      %3649 = vmatpush1.msra.mxu0 0.0
      %3650 = vmatprep.subr.mxu0 0.0
      %3651 = vmatpush1.msra.mxu0 0.0
      %3652 = vmatprep.subr.mxu0 0.0
      %3653 = vmatpush1.msra.mxu0 0.0
      %3654 = vmatprep.mubr.f32.mxu0 %v3557
      %3655 = vmatmul.mubr.f32.gmra.mrb[0].mxu0 %v3519
      %v3656 = vpop.f32.mrb[0].mxu0
      %v3657 = vadd.f32 %v3537, %v3656
      %v3658 = vpop.f32.mrb[0].mxu0
      %v3659 = vadd.f32 %v3538, %v3658
      %3660 = vmatprep.mubr.f32.mxu0 %v3560
      %3661 = vmatmul.mubr.f32.gmra.mrb[0].mxu0 %v3521
      %v3662 = vpop.f32.mrb[0].mxu0
      %v3663 = vadd.f32 %v3539, %v3662
      %v3664 = vpop.f32.mrb[0].mxu0
      %v3665 = vadd.f32 %v3540, %v3664
      %3666 = vmatprep.mubr.f32.mxu0 %v3563
      %3667 = vmatmul.mubr.f32.gmra.mrb[0].mxu0 %v3523
      %v3668 = vpop.f32.mrb[0].mxu0
      %v3669 = vadd.f32 %v3541, %v3668
      %v3670 = vpop.f32.mrb[0].mxu0
      %v3671 = vadd.f32 %v3542, %v3670
      %3672 = vmatprep.mubr.f32.mxu0 %v3566
      %3673 = vmatmul.mubr.f32.gmra.mrb[0].mxu0 %v3525
      %v3674 = vpop.f32.mrb[0].mxu0
      %v3675 = vadd.f32 %v3543, %v3674
      %v3676 = vpop.f32.mrb[0].mxu0
      %v3677 = vadd.f32 %v3544, %v3676
      %3678 = vmatprep.mubr.f32.mxu0 %v3569
      %3679 = vmatmul.mubr.f32.gmra.mrb[0].mxu0 %v3527
      %v3680 = vpop.f32.mrb[0].mxu0
      %v3681 = vadd.f32 %v3545, %v3680
      %v3682 = vpop.f32.mrb[0].mxu0
      %v3683 = vadd.f32 %v3546, %v3682
      %3684 = vmatprep.mubr.f32.mxu0 %v3572
      %3685 = vmatmul.mubr.f32.gmra.mrb[0].mxu0 %v3529
      %v3686 = vpop.f32.mrb[0].mxu0
      %v3687 = vadd.f32 %v3547, %v3686
      %v3688 = vpop.f32.mrb[0].mxu0
      %v3689 = vadd.f32 %v3548, %v3688
      %3690 = vmatprep.mubr.f32.mxu0 %v3575
      %3691 = vmatmul.mubr.f32.gmra.mrb[0].mxu0 %v3531
      %v3692 = vpop.f32.mrb[0].mxu0
      %v3693 = vadd.f32 %v3549, %v3692
      %v3694 = vpop.f32.mrb[0].mxu0
      %v3695 = vadd.f32 %v3550, %v3694
      %3696 = vmatprep.mubr.f32.mxu0 %v3578
      %3697 = vmatmul.mubr.f32.gmra.mrb[0].mxu0 %v3533
      %v3698 = vpop.f32.mrb[0].mxu0
      %v3699 = vadd.f32 %v3551, %v3698
      %v3700 = vpop.f32.mrb[0].mxu0
      %v3701 = vadd.f32 %v3552, %v3700
      %3702 = vmatprep.mubr.f32.mxu0 %v3581
      %3703 = vmatmul.mubr.f32.gmra.mrb[0].mxu0 %v3535
      %v3704 = vpop.f32.mrb[0].mxu0
      %v3705 = vadd.f32 %v3553, %v3704
      %v3706 = vpop.f32.mrb[0].mxu0
      %v3707 = vadd.f32 %v3554, %v3706
      %3708 = vdwg.mxu0
      %3709 = vst [vmem:[#allocation2] sm:$0xff] %v3657
      %3710 = vst [vmem:[#allocation2 + $0x8] sm:$0xff] %v3659
      %3711 = vst [vmem:[#allocation2 + $0x10] sm:$0xff] %v3663
      %3712 = vst [vmem:[#allocation2 + $0x18] sm:$0xff] %v3665
      %3713 = vst [vmem:[#allocation2 + $0x20] sm:$0xff] %v3669
      %3714 = vst [vmem:[#allocation2 + $0x28] sm:$0xff] %v3671
      %3715 = vst [vmem:[#allocation2 + $0x30] sm:$0xff] %v3675
      %3716 = vst [vmem:[#allocation2 + $0x38] sm:$0xff] %v3677
      %3717 = vst [vmem:[#allocation2 + $0x40] sm:$0xff] %v3681
      %3718 = vst [vmem:[#allocation2 + $0x48] sm:$0xff] %v3683
      %3719 = vst [vmem:[#allocation2 + $0x50] sm:$0xff] %v3687
      %3720 = vst [vmem:[#allocation2 + $0x58] sm:$0xff] %v3689
      %3721 = vst [vmem:[#allocation2 + $0x60] sm:$0xff] %v3693
      %3722 = vst [vmem:[#allocation2 + $0x68] sm:$0xff] %v3695
      %3723 = vst [vmem:[#allocation2 + $0x70] sm:$0xff] %v3699
      %3724 = vst [vmem:[#allocation2 + $0x78] sm:$0xff] %v3701
      %3725 = vst [vmem:[#allocation2 + $0x80] sm:$0xf] %v3705
      %3726 = vst [vmem:[#allocation2 + $0x88] sm:$0xf] %v3707
      %v3727 = vld [vmem:[#allocation2] sm:$0xff]
      %v3728 = vld [vmem:[#allocation2 + $0x8] sm:$0xff]
      %v3729 = vld [vmem:[#allocation2 + $0x10] sm:$0xff]
      %v3730 = vld [vmem:[#allocation2 + $0x18] sm:$0xff]
      %v3731 = vld [vmem:[#allocation2 + $0x20] sm:$0xff]
      %v3732 = vld [vmem:[#allocation2 + $0x28] sm:$0xff]
      %v3733 = vld [vmem:[#allocation2 + $0x30] sm:$0xff]
      %v3734 = vld [vmem:[#allocation2 + $0x38] sm:$0xff]
      %v3735 = vld [vmem:[#allocation2 + $0x40] sm:$0xff]
      %v3736 = vld [vmem:[#allocation2 + $0x48] sm:$0xff]
      %v3737 = vld [vmem:[#allocation2 + $0x50] sm:$0xff]
      %v3738 = vld [vmem:[#allocation2 + $0x58] sm:$0xff]
      %v3739 = vld [vmem:[#allocation2 + $0x60] sm:$0xff]
      %v3740 = vld [vmem:[#allocation2 + $0x68] sm:$0xff]
      %v3741 = vld [vmem:[#allocation2 + $0x70] sm:$0xff]
      %v3742 = vld [vmem:[#allocation2 + $0x78] sm:$0xff]
      %v3743 = vld [vmem:[#allocation2 + $0x80] sm:$0x3]
      %v3744 = vld [vmem:[#allocation2 + $0x88] sm:$0x3]
      %v3745 = vld [vmem:[%s2] sm:$0xff]
      %v3746 = vld [vmem:[%s2 + $0x8] sm:$0xff]
      %v3747 = vld [vmem:[%s2 + $0x10] sm:$0xff]
      %v3748 = vld [vmem:[%s2 + $0x18] sm:$0xff]
      %v3749 = vld [vmem:[%s2 + $0x20] sm:$0xff]
      %v3750 = vld [vmem:[%s2 + $0x28] sm:$0xff]
      %v3751 = vld [vmem:[%s2 + $0x30] sm:$0xff]
      %v3752 = vld [vmem:[%s2 + $0x38] sm:$0xff]
      %v3753 = vld [vmem:[%s2 + $0x40] sm:$0xff]
      %v3754 = vld [vmem:[%s2 + $0x48] sm:$0xff]
      %v3755 = vld [vmem:[%s2 + $0x50] sm:$0xff]
      %v3756 = vld [vmem:[%s2 + $0x58] sm:$0xff]
      %v3757 = vld [vmem:[%s2 + $0x60] sm:$0xff]
      %v3758 = vld [vmem:[%s2 + $0x68] sm:$0xff]
      %v3759 = vld [vmem:[%s2 + $0x70] sm:$0xff]
      %v3760 = vld [vmem:[%s2 + $0x78] sm:$0xff]
      %v3761 = vld [vmem:[%s2 + $0x80] sm:$0xff]
      %v3762 = vld [vmem:[%s2 + $0x88] sm:$0xff]
      %v3763 = vld [vmem:[%s2 + $0x90] sm:$0xff]
      %v3764 = vld [vmem:[%s2 + $0x98] sm:$0xff]
      %v3765 = vld [vmem:[%s2 + $0xa0] sm:$0xff]
      %v3766 = vld [vmem:[%s2 + $0xa8] sm:$0xff]
      %v3767 = vld [vmem:[%s2 + $0xb0] sm:$0xff]
      %v3768 = vld [vmem:[%s2 + $0xb8] sm:$0xff]
      %v3769 = vld [vmem:[%s2 + $0xc0] sm:$0xff]
      %v3770 = vld [vmem:[%s2 + $0xc8] sm:$0xff]
      %v3771 = vld [vmem:[%s2 + $0xd0] sm:$0xff]
      %v3772 = vld [vmem:[%s2 + $0xd8] sm:$0xff]
      %v3773 = vld [vmem:[%s2 + $0xe0] sm:$0xff]
      %v3774 = vld [vmem:[%s2 + $0xe8] sm:$0xff]
      %v3775 = vld [vmem:[%s2 + $0xf0] sm:$0xff]
      %v3776 = vld [vmem:[%s2 + $0xf8] sm:$0xff]
      %v3777 = vld [vmem:[%s2 + $0x100] sm:$0xff]
      %v3778 = vld [vmem:[%s2 + $0x108] sm:$0xff]
      %v3779 = vld [vmem:[%s2 + $0x110] sm:$0xff]
      %v3780 = vld [vmem:[%s2 + $0x118] sm:$0xff]
      %v3781 = vld [vmem:[%s2 + $0x120] sm:$0xff]
      %v3782 = vld [vmem:[%s2 + $0x128] sm:$0xff]
      %v3783 = vld [vmem:[%s2 + $0x130] sm:$0xff]
      %v3784 = vld [vmem:[%s2 + $0x138] sm:$0xff]
      %v3785 = vld [vmem:[%s2 + $0x140] sm:$0xff]
      %v3786 = vld [vmem:[%s2 + $0x148] sm:$0xff]
      %v3787 = vld [vmem:[%s2 + $0x150] sm:$0xff]
      %v3788 = vld [vmem:[%s2 + $0x158] sm:$0xff]
      %v3789 = vld [vmem:[%s2 + $0x160] sm:$0xff]
      %v3790 = vld [vmem:[%s2 + $0x168] sm:$0xff]
      %v3791 = vld [vmem:[%s2 + $0x170] sm:$0xff]
      %v3792 = vld [vmem:[%s2 + $0x178] sm:$0xff]
      %v3793 = vld [vmem:[%s2 + $0x180] sm:$0xff]
      %v3794 = vld [vmem:[%s2 + $0x188] sm:$0xff]
      %v3795 = vld [vmem:[%s2 + $0x190] sm:$0xff]
      %v3796 = vld [vmem:[%s2 + $0x198] sm:$0xff]
      %v3797 = vld [vmem:[%s2 + $0x1a0] sm:$0xff]
      %v3798 = vld [vmem:[%s2 + $0x1a8] sm:$0xff]
      %v3799 = vld [vmem:[%s2 + $0x1b0] sm:$0xff]
      %v3800 = vld [vmem:[%s2 + $0x1b8] sm:$0xff]
      %v3801 = vld [vmem:[%s2 + $0x1c0] sm:$0xff]
      %v3802 = vld [vmem:[%s2 + $0x1c8] sm:$0xff]
      %v3803 = vld [vmem:[%s2 + $0x1d0] sm:$0xff]
      %v3804 = vld [vmem:[%s2 + $0x1d8] sm:$0xff]
      %v3805 = vld [vmem:[%s2 + $0x1e0] sm:$0xff]
      %v3806 = vld [vmem:[%s2 + $0x1e8] sm:$0xff]
      %v3807 = vld [vmem:[%s2 + $0x1f0] sm:$0xff]
      %v3808 = vld [vmem:[%s2 + $0x1f8] sm:$0xff]
      %v3809 = vld [vmem:[%s2 + $0x200] sm:$0xff]
      %v3810 = vld [vmem:[%s2 + $0x208] sm:$0xff]
      %v3811 = vld [vmem:[%s2 + $0x210] sm:$0xff]
      %v3812 = vld [vmem:[%s2 + $0x218] sm:$0xff]
      %v3813 = vld [vmem:[%s2 + $0x220] sm:$0xff]
      %v3814 = vld [vmem:[%s2 + $0x228] sm:$0xff]
      %v3815 = vld [vmem:[%s2 + $0x230] sm:$0xff]
      %v3816 = vld [vmem:[%s2 + $0x238] sm:$0xff]
      %v3817 = vld [vmem:[%s2 + $0x240] sm:$0xff]
      %v3818 = vld [vmem:[%s2 + $0x248] sm:$0xff]
      %v3819 = vld [vmem:[%s2 + $0x250] sm:$0xff]
      %v3820 = vld [vmem:[%s2 + $0x258] sm:$0xff]
      %v3821 = vld [vmem:[%s2 + $0x260] sm:$0xff]
      %v3822 = vld [vmem:[%s2 + $0x268] sm:$0xff]
      %v3823 = vld [vmem:[%s2 + $0x270] sm:$0xff]
      %v3824 = vld [vmem:[%s2 + $0x278] sm:$0xff]
      %v3825 = vld [vmem:[%s2 + $0x280] sm:$0xff]
      %v3826 = vld [vmem:[%s2 + $0x288] sm:$0xff]
      %v3827 = vld [vmem:[%s2 + $0x290] sm:$0xff]
      %v3828 = vld [vmem:[%s2 + $0x298] sm:$0xff]
      %v3829 = vld [vmem:[%s2 + $0x2a0] sm:$0xff]
      %v3830 = vld [vmem:[%s2 + $0x2a8] sm:$0xff]
      %v3831 = vld [vmem:[%s2 + $0x2b0] sm:$0xff]
      %v3832 = vld [vmem:[%s2 + $0x2b8] sm:$0xff]
      %v3833 = vld [vmem:[%s2 + $0x2c0] sm:$0xff]
      %v3834 = vld [vmem:[%s2 + $0x2c8] sm:$0xff]
      %v3835 = vld [vmem:[%s2 + $0x2d0] sm:$0xff]
      %v3836 = vld [vmem:[%s2 + $0x2d8] sm:$0xff]
      %v3837 = vld [vmem:[%s2 + $0x2e0] sm:$0xff]
      %v3838 = vld [vmem:[%s2 + $0x2e8] sm:$0xff]
      %v3839 = vld [vmem:[%s2 + $0x2f0] sm:$0xff]
      %v3840 = vld [vmem:[%s2 + $0x2f8] sm:$0xff]
      %v3841 = vld [vmem:[%s2 + $0x300] sm:$0xff]
      %v3842 = vld [vmem:[%s2 + $0x308] sm:$0xff]
      %v3843 = vld [vmem:[%s2 + $0x310] sm:$0xff]
      %v3844 = vld [vmem:[%s2 + $0x318] sm:$0xff]
      %v3845 = vld [vmem:[%s2 + $0x320] sm:$0xff]
      %v3846 = vld [vmem:[%s2 + $0x328] sm:$0xff]
      %v3847 = vld [vmem:[%s2 + $0x330] sm:$0xff]
      %v3848 = vld [vmem:[%s2 + $0x338] sm:$0xff]
      %v3849 = vld [vmem:[%s2 + $0x340] sm:$0xff]
      %v3850 = vld [vmem:[%s2 + $0x348] sm:$0xff]
      %v3851 = vld [vmem:[%s2 + $0x350] sm:$0xff]
      %v3852 = vld [vmem:[%s2 + $0x358] sm:$0xff]
      %v3853 = vld [vmem:[%s2 + $0x360] sm:$0xff]
      %v3854 = vld [vmem:[%s2 + $0x368] sm:$0xff]
      %v3855 = vld [vmem:[%s2 + $0x370] sm:$0xff]
      %v3856 = vld [vmem:[%s2 + $0x378] sm:$0xff]
      %v3857 = vld [vmem:[%s2 + $0x380] sm:$0xff]
      %v3858 = vld [vmem:[%s2 + $0x388] sm:$0xff]
      %v3859 = vld [vmem:[%s2 + $0x390] sm:$0xff]
      %v3860 = vld [vmem:[%s2 + $0x398] sm:$0xff]
      %v3861 = vld [vmem:[%s2 + $0x3a0] sm:$0xff]
      %v3862 = vld [vmem:[%s2 + $0x3a8] sm:$0xff]
      %v3863 = vld [vmem:[%s2 + $0x3b0] sm:$0xff]
      %v3864 = vld [vmem:[%s2 + $0x3b8] sm:$0xff]
      %v3865 = vld [vmem:[%s2 + $0x3c0] sm:$0xff]
      %v3866 = vld [vmem:[%s2 + $0x3c8] sm:$0xff]
      %v3867 = vld [vmem:[%s2 + $0x3d0] sm:$0xff]
      %v3868 = vld [vmem:[%s2 + $0x3d8] sm:$0xff]
      %v3869 = vld [vmem:[%s2 + $0x3e0] sm:$0xff]
      %v3870 = vld [vmem:[%s2 + $0x3e8] sm:$0xff]
      %v3871 = vld [vmem:[%s2 + $0x3f0] sm:$0xff]
      %v3872 = vld [vmem:[%s2 + $0x3f8] sm:$0xff]
      %v3873 = vld [vmem:[#allocation2] sm:$0xfe]
      %v3874 = vld [vmem:[#allocation2 + $0x8] sm:$0xfe]
      %v3875 = vld [vmem:[#allocation2 + $0x80] sm:$0x7]
      %v3876 = vld [vmem:[#allocation2 + $0x88] sm:$0x7]
      %s3877 = scalar_lea.vmem %s2, 1024
      %v3878 = vld [vmem:[%s3877] sm:$0xff]
      %v3879 = vld [vmem:[%s3877 + $0x8] sm:$0xff]
      %v3880 = vld [vmem:[%s3877 + $0x10] sm:$0xff]
      %v3881 = vld [vmem:[%s3877 + $0x18] sm:$0xff]
      %v3882 = vld [vmem:[%s3877 + $0x20] sm:$0xff]
      %v3883 = vld [vmem:[%s3877 + $0x28] sm:$0xff]
      %v3884 = vld [vmem:[%s3877 + $0x30] sm:$0xff]
      %v3885 = vld [vmem:[%s3877 + $0x38] sm:$0xff]
      %v3886 = vld [vmem:[%s3877 + $0x40] sm:$0xff]
      %v3887 = vld [vmem:[%s3877 + $0x48] sm:$0xff]
      %v3888 = vld [vmem:[%s3877 + $0x50] sm:$0xff]
      %v3889 = vld [vmem:[%s3877 + $0x58] sm:$0xff]
      %v3890 = vld [vmem:[%s3877 + $0x60] sm:$0xff]
      %v3891 = vld [vmem:[%s3877 + $0x68] sm:$0xff]
      %v3892 = vld [vmem:[%s3877 + $0x70] sm:$0xff]
      %v3893 = vld [vmem:[%s3877 + $0x78] sm:$0xff]
      %v3894 = vld [vmem:[%s3877 + $0x80] sm:$0xff]
      %v3895 = vld [vmem:[%s3877 + $0x88] sm:$0xff]
      %v3896 = vld [vmem:[%s3877 + $0x90] sm:$0xff]
      %v3897 = vld [vmem:[%s3877 + $0x98] sm:$0xff]
      %v3898 = vld [vmem:[%s3877 + $0xa0] sm:$0xff]
      %v3899 = vld [vmem:[%s3877 + $0xa8] sm:$0xff]
      %v3900 = vld [vmem:[%s3877 + $0xb0] sm:$0xff]
      %v3901 = vld [vmem:[%s3877 + $0xb8] sm:$0xff]
      %v3902 = vld [vmem:[%s3877 + $0xc0] sm:$0xff]
      %v3903 = vld [vmem:[%s3877 + $0xc8] sm:$0xff]
      %v3904 = vld [vmem:[%s3877 + $0xd0] sm:$0xff]
      %v3905 = vld [vmem:[%s3877 + $0xd8] sm:$0xff]
      %v3906 = vld [vmem:[%s3877 + $0xe0] sm:$0xff]
      %v3907 = vld [vmem:[%s3877 + $0xe8] sm:$0xff]
      %v3908 = vld [vmem:[%s3877 + $0xf0] sm:$0xff]
      %v3909 = vld [vmem:[%s3877 + $0xf8] sm:$0xff]
      %v3910 = vld [vmem:[%s3877 + $0x100] sm:$0xff]
      %v3911 = vld [vmem:[%s3877 + $0x108] sm:$0xff]
      %v3912 = vld [vmem:[%s3877 + $0x110] sm:$0xff]
      %v3913 = vld [vmem:[%s3877 + $0x118] sm:$0xff]
      %v3914 = vld [vmem:[%s3877 + $0x120] sm:$0xff]
      %v3915 = vld [vmem:[%s3877 + $0x128] sm:$0xff]
      %v3916 = vld [vmem:[%s3877 + $0x130] sm:$0xff]
      %v3917 = vld [vmem:[%s3877 + $0x138] sm:$0xff]
      %v3918 = vld [vmem:[%s3877 + $0x140] sm:$0xff]
      %v3919 = vld [vmem:[%s3877 + $0x148] sm:$0xff]
      %v3920 = vld [vmem:[%s3877 + $0x150] sm:$0xff]
      %v3921 = vld [vmem:[%s3877 + $0x158] sm:$0xff]
      %v3922 = vld [vmem:[%s3877 + $0x160] sm:$0xff]
      %v3923 = vld [vmem:[%s3877 + $0x168] sm:$0xff]
      %v3924 = vld [vmem:[%s3877 + $0x170] sm:$0xff]
      %v3925 = vld [vmem:[%s3877 + $0x178] sm:$0xff]
      %v3926 = vld [vmem:[%s3877 + $0x180] sm:$0xff]
      %v3927 = vld [vmem:[%s3877 + $0x188] sm:$0xff]
      %v3928 = vld [vmem:[%s3877 + $0x190] sm:$0xff]
      %v3929 = vld [vmem:[%s3877 + $0x198] sm:$0xff]
      %v3930 = vld [vmem:[%s3877 + $0x1a0] sm:$0xff]
      %v3931 = vld [vmem:[%s3877 + $0x1a8] sm:$0xff]
      %v3932 = vld [vmem:[%s3877 + $0x1b0] sm:$0xff]
      %v3933 = vld [vmem:[%s3877 + $0x1b8] sm:$0xff]
      %v3934 = vld [vmem:[%s3877 + $0x1c0] sm:$0xff]
      %v3935 = vld [vmem:[%s3877 + $0x1c8] sm:$0xff]
      %v3936 = vld [vmem:[%s3877 + $0x1d0] sm:$0xff]
      %v3937 = vld [vmem:[%s3877 + $0x1d8] sm:$0xff]
      %v3938 = vld [vmem:[%s3877 + $0x1e0] sm:$0xff]
      %v3939 = vld [vmem:[%s3877 + $0x1e8] sm:$0xff]
      %v3940 = vld [vmem:[%s3877 + $0x1f0] sm:$0xff]
      %v3941 = vld [vmem:[%s3877 + $0x1f8] sm:$0xff]
      %v3942 = vld [vmem:[%s3877 + $0x200] sm:$0xff]
      %v3943 = vld [vmem:[%s3877 + $0x208] sm:$0xff]
      %v3944 = vld [vmem:[%s3877 + $0x210] sm:$0xff]
      %v3945 = vld [vmem:[%s3877 + $0x218] sm:$0xff]
      %v3946 = vld [vmem:[%s3877 + $0x220] sm:$0xff]
      %v3947 = vld [vmem:[%s3877 + $0x228] sm:$0xff]
      %v3948 = vld [vmem:[%s3877 + $0x230] sm:$0xff]
      %v3949 = vld [vmem:[%s3877 + $0x238] sm:$0xff]
      %v3950 = vld [vmem:[%s3877 + $0x240] sm:$0xff]
      %v3951 = vld [vmem:[%s3877 + $0x248] sm:$0xff]
      %v3952 = vld [vmem:[%s3877 + $0x250] sm:$0xff]
      %v3953 = vld [vmem:[%s3877 + $0x258] sm:$0xff]
      %v3954 = vld [vmem:[%s3877 + $0x260] sm:$0xff]
      %v3955 = vld [vmem:[%s3877 + $0x268] sm:$0xff]
      %v3956 = vld [vmem:[%s3877 + $0x270] sm:$0xff]
      %v3957 = vld [vmem:[%s3877 + $0x278] sm:$0xff]
      %v3958 = vld [vmem:[%s3877 + $0x280] sm:$0xff]
      %v3959 = vld [vmem:[%s3877 + $0x288] sm:$0xff]
      %v3960 = vld [vmem:[%s3877 + $0x290] sm:$0xff]
      %v3961 = vld [vmem:[%s3877 + $0x298] sm:$0xff]
      %v3962 = vld [vmem:[%s3877 + $0x2a0] sm:$0xff]
      %v3963 = vld [vmem:[%s3877 + $0x2a8] sm:$0xff]
      %v3964 = vld [vmem:[%s3877 + $0x2b0] sm:$0xff]
      %v3965 = vld [vmem:[%s3877 + $0x2b8] sm:$0xff]
      %v3966 = vld [vmem:[%s3877 + $0x2c0] sm:$0xff]
      %v3967 = vld [vmem:[%s3877 + $0x2c8] sm:$0xff]
      %v3968 = vld [vmem:[%s3877 + $0x2d0] sm:$0xff]
      %v3969 = vld [vmem:[%s3877 + $0x2d8] sm:$0xff]
      %v3970 = vld [vmem:[%s3877 + $0x2e0] sm:$0xff]
      %v3971 = vld [vmem:[%s3877 + $0x2e8] sm:$0xff]
      %v3972 = vld [vmem:[%s3877 + $0x2f0] sm:$0xff]
      %v3973 = vld [vmem:[%s3877 + $0x2f8] sm:$0xff]
      %v3974 = vld [vmem:[%s3877 + $0x300] sm:$0xff]
      %v3975 = vld [vmem:[%s3877 + $0x308] sm:$0xff]
      %v3976 = vld [vmem:[%s3877 + $0x310] sm:$0xff]
      %v3977 = vld [vmem:[%s3877 + $0x318] sm:$0xff]
      %v3978 = vld [vmem:[%s3877 + $0x320] sm:$0xff]
      %v3979 = vld [vmem:[%s3877 + $0x328] sm:$0xff]
      %v3980 = vld [vmem:[%s3877 + $0x330] sm:$0xff]
      %v3981 = vld [vmem:[%s3877 + $0x338] sm:$0xff]
      %v3982 = vld [vmem:[%s3877 + $0x340] sm:$0xff]
      %v3983 = vld [vmem:[%s3877 + $0x348] sm:$0xff]
      %v3984 = vld [vmem:[%s3877 + $0x350] sm:$0xff]
      %v3985 = vld [vmem:[%s3877 + $0x358] sm:$0xff]
      %v3986 = vld [vmem:[%s3877 + $0x360] sm:$0xff]
      %v3987 = vld [vmem:[%s3877 + $0x368] sm:$0xff]
      %v3988 = vld [vmem:[%s3877 + $0x370] sm:$0xff]
      %v3989 = vld [vmem:[%s3877 + $0x378] sm:$0xff]
      %v3990 = vld [vmem:[%s3877 + $0x380] sm:$0xff]
      %v3991 = vld [vmem:[%s3877 + $0x388] sm:$0xff]
      %v3992 = vld [vmem:[%s3877 + $0x390] sm:$0xff]
      %v3993 = vld [vmem:[%s3877 + $0x398] sm:$0xff]
      %v3994 = vld [vmem:[%s3877 + $0x3a0] sm:$0xff]
      %v3995 = vld [vmem:[%s3877 + $0x3a8] sm:$0xff]
      %v3996 = vld [vmem:[%s3877 + $0x3b0] sm:$0xff]
      %v3997 = vld [vmem:[%s3877 + $0x3b8] sm:$0xff]
      %v3998 = vld [vmem:[%s3877 + $0x3c0] sm:$0xff]
      %v3999 = vld [vmem:[%s3877 + $0x3c8] sm:$0xff]
      %v4000 = vld [vmem:[%s3877 + $0x3d0] sm:$0xff]
      %v4001 = vld [vmem:[%s3877 + $0x3d8] sm:$0xff]
      %v4002 = vld [vmem:[%s3877 + $0x3e0] sm:$0xff]
      %v4003 = vld [vmem:[%s3877 + $0x3e8] sm:$0xff]
      %v4004 = vld [vmem:[%s3877 + $0x3f0] sm:$0xff]
      %v4005 = vld [vmem:[%s3877 + $0x3f8] sm:$0xff]
      %v4024 = vrot.slane %v3873, 1
      %v4025 = vrot.slane %v3729, 1
      %v4026 = vsel %vm718, %v4024, %v4025
      %v4027 = vrot.slane %v3874, 1
      %v4028 = vrot.slane %v3730, 1
      %v4029 = vsel %vm718, %v4027, %v4028
      %v4030 = vrot.slane %v3731, 1
      %v4031 = vsel %vm718, %v4025, %v4030
      %v4032 = vrot.slane %v3732, 1
      %v4033 = vsel %vm718, %v4028, %v4032
      %v4034 = vrot.slane %v3733, 1
      %v4035 = vsel %vm718, %v4030, %v4034
      %v4036 = vrot.slane %v3734, 1
      %v4037 = vsel %vm718, %v4032, %v4036
      %v4038 = vrot.slane %v3735, 1
      %v4039 = vsel %vm718, %v4034, %v4038
      %v4040 = vrot.slane %v3736, 1
      %v4041 = vsel %vm718, %v4036, %v4040
      %v4042 = vrot.slane %v3737, 1
      %v4043 = vsel %vm718, %v4038, %v4042
      %v4044 = vrot.slane %v3738, 1
      %v4045 = vsel %vm718, %v4040, %v4044
      %v4046 = vrot.slane %v3739, 1
      %v4047 = vsel %vm718, %v4042, %v4046
      %v4048 = vrot.slane %v3740, 1
      %v4049 = vsel %vm718, %v4044, %v4048
      %v4050 = vrot.slane %v3741, 1
      %v4051 = vsel %vm718, %v4046, %v4050
      %v4052 = vrot.slane %v3742, 1
      %v4053 = vsel %vm718, %v4048, %v4052
      %v4054 = vrot.slane %v3875, 1
      %v4055 = vsel %vm718, %v4050, %v4054
      %v4056 = vrot.slane %v3876, 1
      %v4057 = vsel %vm718, %v4052, %v4056
      %4076 = vmatprep.subr.mxu0 %v3879
      %4077 = vmatpush1.msra.mxu0 %v3878
      %4078 = vmatprep.subr.mxu0 %v3883
      %4079 = vmatpush1.msra.mxu0 %v3882
      %4080 = vmatprep.subr.mxu0 %v3887
      %4081 = vmatpush1.msra.mxu0 %v3886
      %4082 = vmatprep.subr.mxu0 %v3891
      %4083 = vmatpush1.msra.mxu0 %v3890
      %4084 = vmatprep.subr.mxu0 %v3895
      %4085 = vmatpush1.msra.mxu0 %v3894
      %4086 = vmatprep.subr.mxu0 %v3899
      %4087 = vmatpush1.msra.mxu0 %v3898
      %4088 = vmatprep.subr.mxu0 %v3903
      %4089 = vmatpush1.msra.mxu0 %v3902
      %4090 = vmatprep.subr.mxu0 %v3907
      %4091 = vmatpush1.msra.mxu0 %v3906
      %4092 = vmatprep.subr.mxu0 %v3911
      %4093 = vmatpush1.msra.mxu0 %v3910
      %4094 = vmatprep.subr.mxu0 %v3915
      %4095 = vmatpush1.msra.mxu0 %v3914
      %4096 = vmatprep.subr.mxu0 %v3919
      %4097 = vmatpush1.msra.mxu0 %v3918
      %4098 = vmatprep.subr.mxu0 %v3923
      %4099 = vmatpush1.msra.mxu0 %v3922
      %4100 = vmatprep.subr.mxu0 %v3927
      %4101 = vmatpush1.msra.mxu0 %v3926
      %4102 = vmatprep.subr.mxu0 %v3931
      %4103 = vmatpush1.msra.mxu0 %v3930
      %4104 = vmatprep.subr.mxu0 %v3935
      %4105 = vmatpush1.msra.mxu0 %v3934
      %4106 = vmatprep.subr.mxu0 %v3939
      %4107 = vmatpush1.msra.mxu0 %v3938
      %4108 = vmatprep.subr.mxu0 %v3943
      %4109 = vmatpush1.msra.mxu0 %v3942
      %4110 = vmatprep.subr.mxu0 %v3947
      %4111 = vmatpush1.msra.mxu0 %v3946
      %4112 = vmatprep.subr.mxu0 %v3951
      %4113 = vmatpush1.msra.mxu0 %v3950
      %4114 = vmatprep.subr.mxu0 %v3955
      %4115 = vmatpush1.msra.mxu0 %v3954
      %4116 = vmatprep.subr.mxu0 %v3959
      %4117 = vmatpush1.msra.mxu0 %v3958
      %4118 = vmatprep.subr.mxu0 %v3963
      %4119 = vmatpush1.msra.mxu0 %v3962
      %4120 = vmatprep.subr.mxu0 %v3967
      %4121 = vmatpush1.msra.mxu0 %v3966
      %4122 = vmatprep.subr.mxu0 %v3971
      %4123 = vmatpush1.msra.mxu0 %v3970
      %4124 = vmatprep.subr.mxu0 %v3975
      %4125 = vmatpush1.msra.mxu0 %v3974
      %4126 = vmatprep.subr.mxu0 %v3979
      %4127 = vmatpush1.msra.mxu0 %v3978
      %4128 = vmatprep.subr.mxu0 %v3983
      %4129 = vmatpush1.msra.mxu0 %v3982
      %4130 = vmatprep.subr.mxu0 %v3987
      %4131 = vmatpush1.msra.mxu0 %v3986
      %4132 = vmatprep.subr.mxu0 %v3991
      %4133 = vmatpush1.msra.mxu0 %v3990
      %4134 = vmatprep.subr.mxu0 %v3995
      %4135 = vmatpush1.msra.mxu0 %v3994
      %4136 = vmatprep.subr.mxu0 %v3999
      %4137 = vmatpush1.msra.mxu0 %v3998
      %4138 = vmatprep.subr.mxu0 %v4003
      %4139 = vmatpush1.msra.mxu0 %v4002
      %4140 = vmatprep.mubr.f32.mxu0 %v4029
      %4141 = vmatmul.mubr.f32.gmra.mrb[0].mxu0 %v4026
      %v4142 = vpop.f32.mrb[0].mxu0
      %v4143 = vadd.f32 0.0, %v4142
      %v4144 = vpop.f32.mrb[0].mxu0
      %v4145 = vadd.f32 0.0, %v4144
      %4146 = vmatprep.mubr.f32.mxu0 %v4033
      %4147 = vmatmul.mubr.f32.gmra.mrb[0].mxu0 %v4031
      %v4148 = vpop.f32.mrb[0].mxu0
      %v4149 = vadd.f32 0.0, %v4148
      %v4150 = vpop.f32.mrb[0].mxu0
      %v4151 = vadd.f32 0.0, %v4150
      %4152 = vmatprep.mubr.f32.mxu0 %v4037
      %4153 = vmatmul.mubr.f32.gmra.mrb[0].mxu0 %v4035
      %v4154 = vpop.f32.mrb[0].mxu0
      %v4155 = vadd.f32 0.0, %v4154
      %v4156 = vpop.f32.mrb[0].mxu0
      %v4157 = vadd.f32 0.0, %v4156
      %4158 = vmatprep.mubr.f32.mxu0 %v4041
      %4159 = vmatmul.mubr.f32.gmra.mrb[0].mxu0 %v4039
      %v4160 = vpop.f32.mrb[0].mxu0
      %v4161 = vadd.f32 0.0, %v4160
      %v4162 = vpop.f32.mrb[0].mxu0
      %v4163 = vadd.f32 0.0, %v4162
      %4164 = vmatprep.mubr.f32.mxu0 %v4045
      %4165 = vmatmul.mubr.f32.gmra.mrb[0].mxu0 %v4043
      %v4166 = vpop.f32.mrb[0].mxu0
      %v4167 = vadd.f32 0.0, %v4166
      %v4168 = vpop.f32.mrb[0].mxu0
      %v4169 = vadd.f32 0.0, %v4168
      %4170 = vmatprep.mubr.f32.mxu0 %v4049
      %4171 = vmatmul.mubr.f32.gmra.mrb[0].mxu0 %v4047
      %v4172 = vpop.f32.mrb[0].mxu0
      %v4173 = vadd.f32 0.0, %v4172
      %v4174 = vpop.f32.mrb[0].mxu0
      %v4175 = vadd.f32 0.0, %v4174
      %4176 = vmatprep.mubr.f32.mxu0 %v4053
      %4177 = vmatmul.mubr.f32.gmra.mrb[0].mxu0 %v4051
      %v4178 = vpop.f32.mrb[0].mxu0
      %v4179 = vadd.f32 0.0, %v4178
      %v4180 = vpop.f32.mrb[0].mxu0
      %v4181 = vadd.f32 0.0, %v4180
      %4182 = vmatprep.mubr.f32.mxu0 %v4057
      %4183 = vmatmul.mubr.f32.gmra.mrb[0].mxu0 %v4055
      %v4184 = vpop.f32.mrb[0].mxu0
      %v4185 = vadd.f32 0.0, %v4184
      %v4186 = vpop.f32.mrb[0].mxu0
      %v4187 = vadd.f32 0.0, %v4186
      %4188 = vmatprep.mubr.f32.mxu0 %v4056
      %4189 = vmatmul.mubr.f32.gmra.mrb[0].mxu0 %v4054
      %v4190 = vpop.f32.mrb[0].mxu0
      %v4191 = vadd.f32 0.0, %v4190
      %v4192 = vpop.f32.mrb[0].mxu0
      %v4193 = vadd.f32 0.0, %v4192
      %4194 = vdwg.mxu0
      %4195 = vmatprep.subr.mxu0 %v3881
      %4196 = vmatpush1.msra.mxu0 %v3880
      %4197 = vmatprep.subr.mxu0 %v3885
      %4198 = vmatpush1.msra.mxu0 %v3884
      %4199 = vmatprep.subr.mxu0 %v3889
      %4200 = vmatpush1.msra.mxu0 %v3888
      %4201 = vmatprep.subr.mxu0 %v3893
      %4202 = vmatpush1.msra.mxu0 %v3892
      %4203 = vmatprep.subr.mxu0 %v3897
      %4204 = vmatpush1.msra.mxu0 %v3896
      %4205 = vmatprep.subr.mxu0 %v3901
      %4206 = vmatpush1.msra.mxu0 %v3900
      %4207 = vmatprep.subr.mxu0 %v3905
      %4208 = vmatpush1.msra.mxu0 %v3904
      %4209 = vmatprep.subr.mxu0 %v3909
      %4210 = vmatpush1.msra.mxu0 %v3908
      %4211 = vmatprep.subr.mxu0 %v3913
      %4212 = vmatpush1.msra.mxu0 %v3912
      %4213 = vmatprep.subr.mxu0 %v3917
      %4214 = vmatpush1.msra.mxu0 %v3916
      %4215 = vmatprep.subr.mxu0 %v3921
      %4216 = vmatpush1.msra.mxu0 %v3920
      %4217 = vmatprep.subr.mxu0 %v3925
      %4218 = vmatpush1.msra.mxu0 %v3924
      %4219 = vmatprep.subr.mxu0 %v3929
      %4220 = vmatpush1.msra.mxu0 %v3928
      %4221 = vmatprep.subr.mxu0 %v3933
      %4222 = vmatpush1.msra.mxu0 %v3932
      %4223 = vmatprep.subr.mxu0 %v3937
      %4224 = vmatpush1.msra.mxu0 %v3936
      %4225 = vmatprep.subr.mxu0 %v3941
      %4226 = vmatpush1.msra.mxu0 %v3940
      %4227 = vmatprep.subr.mxu0 %v3945
      %4228 = vmatpush1.msra.mxu0 %v3944
      %4229 = vmatprep.subr.mxu0 %v3949
      %4230 = vmatpush1.msra.mxu0 %v3948
      %4231 = vmatprep.subr.mxu0 %v3953
      %4232 = vmatpush1.msra.mxu0 %v3952
      %4233 = vmatprep.subr.mxu0 %v3957
      %4234 = vmatpush1.msra.mxu0 %v3956
      %4235 = vmatprep.subr.mxu0 %v3961
      %4236 = vmatpush1.msra.mxu0 %v3960
      %4237 = vmatprep.subr.mxu0 %v3965
      %4238 = vmatpush1.msra.mxu0 %v3964
      %4239 = vmatprep.subr.mxu0 %v3969
      %4240 = vmatpush1.msra.mxu0 %v3968
      %4241 = vmatprep.subr.mxu0 %v3973
      %4242 = vmatpush1.msra.mxu0 %v3972
      %4243 = vmatprep.subr.mxu0 %v3977
      %4244 = vmatpush1.msra.mxu0 %v3976
      %4245 = vmatprep.subr.mxu0 %v3981
      %4246 = vmatpush1.msra.mxu0 %v3980
      %4247 = vmatprep.subr.mxu0 %v3985
      %4248 = vmatpush1.msra.mxu0 %v3984
      %4249 = vmatprep.subr.mxu0 %v3989
      %4250 = vmatpush1.msra.mxu0 %v3988
      %4251 = vmatprep.subr.mxu0 %v3993
      %4252 = vmatpush1.msra.mxu0 %v3992
      %4253 = vmatprep.subr.mxu0 %v3997
      %4254 = vmatpush1.msra.mxu0 %v3996
      %4255 = vmatprep.subr.mxu0 %v4001
      %4256 = vmatpush1.msra.mxu0 %v4000
      %4257 = vmatprep.subr.mxu0 %v4005
      %4258 = vmatpush1.msra.mxu0 %v4004
      %4259 = vmatprep.mubr.f32.mxu0 %v4029
      %4260 = vmatmul.mubr.f32.gmra.mrb[0].mxu0 %v4026
      %v4261 = vpop.f32.mrb[0].mxu0
      %v4262 = vadd.f32 0.0, %v4261
      %v4263 = vpop.f32.mrb[0].mxu0
      %v4264 = vadd.f32 0.0, %v4263
      %4265 = vmatprep.mubr.f32.mxu0 %v4033
      %4266 = vmatmul.mubr.f32.gmra.mrb[0].mxu0 %v4031
      %v4267 = vpop.f32.mrb[0].mxu0
      %v4268 = vadd.f32 0.0, %v4267
      %v4269 = vpop.f32.mrb[0].mxu0
      %v4270 = vadd.f32 0.0, %v4269
      %4271 = vmatprep.mubr.f32.mxu0 %v4037
      %4272 = vmatmul.mubr.f32.gmra.mrb[0].mxu0 %v4035
      %v4273 = vpop.f32.mrb[0].mxu0
      %v4274 = vadd.f32 0.0, %v4273
      %v4275 = vpop.f32.mrb[0].mxu0
      %v4276 = vadd.f32 0.0, %v4275
      %4277 = vmatprep.mubr.f32.mxu0 %v4041
      %4278 = vmatmul.mubr.f32.gmra.mrb[0].mxu0 %v4039
      %v4279 = vpop.f32.mrb[0].mxu0
      %v4280 = vadd.f32 0.0, %v4279
      %v4281 = vpop.f32.mrb[0].mxu0
      %v4282 = vadd.f32 0.0, %v4281
      %4283 = vmatprep.mubr.f32.mxu0 %v4045
      %4284 = vmatmul.mubr.f32.gmra.mrb[0].mxu0 %v4043
      %v4285 = vpop.f32.mrb[0].mxu0
      %v4286 = vadd.f32 0.0, %v4285
      %v4287 = vpop.f32.mrb[0].mxu0
      %v4288 = vadd.f32 0.0, %v4287
      %4289 = vmatprep.mubr.f32.mxu0 %v4049
      %4290 = vmatmul.mubr.f32.gmra.mrb[0].mxu0 %v4047
      %v4291 = vpop.f32.mrb[0].mxu0
      %v4292 = vadd.f32 0.0, %v4291
      %v4293 = vpop.f32.mrb[0].mxu0
      %v4294 = vadd.f32 0.0, %v4293
      %4295 = vmatprep.mubr.f32.mxu0 %v4053
      %4296 = vmatmul.mubr.f32.gmra.mrb[0].mxu0 %v4051
      %v4297 = vpop.f32.mrb[0].mxu0
      %v4298 = vadd.f32 0.0, %v4297
      %v4299 = vpop.f32.mrb[0].mxu0
      %v4300 = vadd.f32 0.0, %v4299
      %4301 = vmatprep.mubr.f32.mxu0 %v4057
      %4302 = vmatmul.mubr.f32.gmra.mrb[0].mxu0 %v4055
      %v4303 = vpop.f32.mrb[0].mxu0
      %v4304 = vadd.f32 0.0, %v4303
      %v4305 = vpop.f32.mrb[0].mxu0
      %v4306 = vadd.f32 0.0, %v4305
      %4307 = vmatprep.mubr.f32.mxu0 %v4056
      %4308 = vmatmul.mubr.f32.gmra.mrb[0].mxu0 %v4054
      %v4309 = vpop.f32.mrb[0].mxu0
      %v4310 = vadd.f32 0.0, %v4309
      %v4311 = vpop.f32.mrb[0].mxu0
      %v4312 = vadd.f32 0.0, %v4311
      %4313 = vdwg.mxu0
      %4314 = vmatprep.subr.mxu0 %v3746
      %4315 = vmatpush1.msra.mxu0 %v3745
      %4316 = vmatprep.subr.mxu0 %v3750
      %4317 = vmatpush1.msra.mxu0 %v3749
      %4318 = vmatprep.subr.mxu0 %v3754
      %4319 = vmatpush1.msra.mxu0 %v3753
      %4320 = vmatprep.subr.mxu0 %v3758
      %4321 = vmatpush1.msra.mxu0 %v3757
      %4322 = vmatprep.subr.mxu0 %v3762
      %4323 = vmatpush1.msra.mxu0 %v3761
      %4324 = vmatprep.subr.mxu0 %v3766
      %4325 = vmatpush1.msra.mxu0 %v3765
      %4326 = vmatprep.subr.mxu0 %v3770
      %4327 = vmatpush1.msra.mxu0 %v3769
      %4328 = vmatprep.subr.mxu0 %v3774
      %4329 = vmatpush1.msra.mxu0 %v3773
      %4330 = vmatprep.subr.mxu0 %v3778
      %4331 = vmatpush1.msra.mxu0 %v3777
      %4332 = vmatprep.subr.mxu0 %v3782
      %4333 = vmatpush1.msra.mxu0 %v3781
      %4334 = vmatprep.subr.mxu0 %v3786
      %4335 = vmatpush1.msra.mxu0 %v3785
      %4336 = vmatprep.subr.mxu0 %v3790
      %4337 = vmatpush1.msra.mxu0 %v3789
      %4338 = vmatprep.subr.mxu0 %v3794
      %4339 = vmatpush1.msra.mxu0 %v3793
      %4340 = vmatprep.subr.mxu0 %v3798
      %4341 = vmatpush1.msra.mxu0 %v3797
      %4342 = vmatprep.subr.mxu0 %v3802
      %4343 = vmatpush1.msra.mxu0 %v3801
      %4344 = vmatprep.subr.mxu0 %v3806
      %4345 = vmatpush1.msra.mxu0 %v3805
      %4346 = vmatprep.subr.mxu0 %v3810
      %4347 = vmatpush1.msra.mxu0 %v3809
      %4348 = vmatprep.subr.mxu0 %v3814
      %4349 = vmatpush1.msra.mxu0 %v3813
      %4350 = vmatprep.subr.mxu0 %v3818
      %4351 = vmatpush1.msra.mxu0 %v3817
      %4352 = vmatprep.subr.mxu0 %v3822
      %4353 = vmatpush1.msra.mxu0 %v3821
      %4354 = vmatprep.subr.mxu0 %v3826
      %4355 = vmatpush1.msra.mxu0 %v3825
      %4356 = vmatprep.subr.mxu0 %v3830
      %4357 = vmatpush1.msra.mxu0 %v3829
      %4358 = vmatprep.subr.mxu0 %v3834
      %4359 = vmatpush1.msra.mxu0 %v3833
      %4360 = vmatprep.subr.mxu0 %v3838
      %4361 = vmatpush1.msra.mxu0 %v3837
      %4362 = vmatprep.subr.mxu0 %v3842
      %4363 = vmatpush1.msra.mxu0 %v3841
      %4364 = vmatprep.subr.mxu0 %v3846
      %4365 = vmatpush1.msra.mxu0 %v3845
      %4366 = vmatprep.subr.mxu0 %v3850
      %4367 = vmatpush1.msra.mxu0 %v3849
      %4368 = vmatprep.subr.mxu0 %v3854
      %4369 = vmatpush1.msra.mxu0 %v3853
      %4370 = vmatprep.subr.mxu0 %v3858
      %4371 = vmatpush1.msra.mxu0 %v3857
      %4372 = vmatprep.subr.mxu0 %v3862
      %4373 = vmatpush1.msra.mxu0 %v3861
      %4374 = vmatprep.subr.mxu0 %v3866
      %4375 = vmatpush1.msra.mxu0 %v3865
      %4376 = vmatprep.subr.mxu0 %v3870
      %4377 = vmatpush1.msra.mxu0 %v3869
      %4378 = vmatprep.mubr.f32.mxu0 %v3728
      %4379 = vmatmul.mubr.f32.gmra.mrb[0].mxu0 %v3727
      %v4380 = vpop.f32.mrb[0].mxu0
      %v4381 = vadd.f32 %v4143, %v4380
      %v4382 = vpop.f32.mrb[0].mxu0
      %v4383 = vadd.f32 %v4145, %v4382
      %4384 = vmatprep.mubr.f32.mxu0 %v3730
      %4385 = vmatmul.mubr.f32.gmra.mrb[0].mxu0 %v3729
      %v4386 = vpop.f32.mrb[0].mxu0
      %v4387 = vadd.f32 %v4149, %v4386
      %v4388 = vpop.f32.mrb[0].mxu0
      %v4389 = vadd.f32 %v4151, %v4388
      %4390 = vmatprep.mubr.f32.mxu0 %v3732
      %4391 = vmatmul.mubr.f32.gmra.mrb[0].mxu0 %v3731
      %v4392 = vpop.f32.mrb[0].mxu0
      %v4393 = vadd.f32 %v4155, %v4392
      %v4394 = vpop.f32.mrb[0].mxu0
      %v4395 = vadd.f32 %v4157, %v4394
      %4396 = vmatprep.mubr.f32.mxu0 %v3734
      %4397 = vmatmul.mubr.f32.gmra.mrb[0].mxu0 %v3733
      %v4398 = vpop.f32.mrb[0].mxu0
      %v4399 = vadd.f32 %v4161, %v4398
      %v4400 = vpop.f32.mrb[0].mxu0
      %v4401 = vadd.f32 %v4163, %v4400
      %4402 = vmatprep.mubr.f32.mxu0 %v3736
      %4403 = vmatmul.mubr.f32.gmra.mrb[0].mxu0 %v3735
      %v4404 = vpop.f32.mrb[0].mxu0
      %v4405 = vadd.f32 %v4167, %v4404
      %v4406 = vpop.f32.mrb[0].mxu0
      %v4407 = vadd.f32 %v4169, %v4406
      %4408 = vmatprep.mubr.f32.mxu0 %v3738
      %4409 = vmatmul.mubr.f32.gmra.mrb[0].mxu0 %v3737
      %v4410 = vpop.f32.mrb[0].mxu0
      %v4411 = vadd.f32 %v4173, %v4410
      %v4412 = vpop.f32.mrb[0].mxu0
      %v4413 = vadd.f32 %v4175, %v4412
      %4414 = vmatprep.mubr.f32.mxu0 %v3740
      %4415 = vmatmul.mubr.f32.gmra.mrb[0].mxu0 %v3739
      %v4416 = vpop.f32.mrb[0].mxu0
      %v4417 = vadd.f32 %v4179, %v4416
      %v4418 = vpop.f32.mrb[0].mxu0
      %v4419 = vadd.f32 %v4181, %v4418
      %4420 = vmatprep.mubr.f32.mxu0 %v3742
      %4421 = vmatmul.mubr.f32.gmra.mrb[0].mxu0 %v3741
      %v4422 = vpop.f32.mrb[0].mxu0
      %v4423 = vadd.f32 %v4185, %v4422
      %v4424 = vpop.f32.mrb[0].mxu0
      %v4425 = vadd.f32 %v4187, %v4424
      %4426 = vmatprep.mubr.f32.mxu0 %v3744
      %4427 = vmatmul.mubr.f32.gmra.mrb[0].mxu0 %v3743
      %v4428 = vpop.f32.mrb[0].mxu0
      %v4429 = vadd.f32 %v4191, %v4428
      %v4430 = vpop.f32.mrb[0].mxu0
      %v4431 = vadd.f32 %v4193, %v4430
      %4432 = vdwg.mxu0
      %4433 = vmatprep.subr.mxu0 %v3748
      %4434 = vmatpush1.msra.mxu0 %v3747
      %4435 = vmatprep.subr.mxu0 %v3752
      %4436 = vmatpush1.msra.mxu0 %v3751
      %4437 = vmatprep.subr.mxu0 %v3756
      %4438 = vmatpush1.msra.mxu0 %v3755
      %4439 = vmatprep.subr.mxu0 %v3760
      %4440 = vmatpush1.msra.mxu0 %v3759
      %4441 = vmatprep.subr.mxu0 %v3764
      %4442 = vmatpush1.msra.mxu0 %v3763
      %4443 = vmatprep.subr.mxu0 %v3768
      %4444 = vmatpush1.msra.mxu0 %v3767
      %4445 = vmatprep.subr.mxu0 %v3772
      %4446 = vmatpush1.msra.mxu0 %v3771
      %4447 = vmatprep.subr.mxu0 %v3776
      %4448 = vmatpush1.msra.mxu0 %v3775
      %4449 = vmatprep.subr.mxu0 %v3780
      %4450 = vmatpush1.msra.mxu0 %v3779
      %4451 = vmatprep.subr.mxu0 %v3784
      %4452 = vmatpush1.msra.mxu0 %v3783
      %4453 = vmatprep.subr.mxu0 %v3788
      %4454 = vmatpush1.msra.mxu0 %v3787
      %4455 = vmatprep.subr.mxu0 %v3792
      %4456 = vmatpush1.msra.mxu0 %v3791
      %4457 = vmatprep.subr.mxu0 %v3796
      %4458 = vmatpush1.msra.mxu0 %v3795
      %4459 = vmatprep.subr.mxu0 %v3800
      %4460 = vmatpush1.msra.mxu0 %v3799
      %4461 = vmatprep.subr.mxu0 %v3804
      %4462 = vmatpush1.msra.mxu0 %v3803
      %4463 = vmatprep.subr.mxu0 %v3808
      %4464 = vmatpush1.msra.mxu0 %v3807
      %4465 = vmatprep.subr.mxu0 %v3812
      %4466 = vmatpush1.msra.mxu0 %v3811
      %4467 = vmatprep.subr.mxu0 %v3816
      %4468 = vmatpush1.msra.mxu0 %v3815
      %4469 = vmatprep.subr.mxu0 %v3820
      %4470 = vmatpush1.msra.mxu0 %v3819
      %4471 = vmatprep.subr.mxu0 %v3824
      %4472 = vmatpush1.msra.mxu0 %v3823
      %4473 = vmatprep.subr.mxu0 %v3828
      %4474 = vmatpush1.msra.mxu0 %v3827
      %4475 = vmatprep.subr.mxu0 %v3832
      %4476 = vmatpush1.msra.mxu0 %v3831
      %4477 = vmatprep.subr.mxu0 %v3836
      %4478 = vmatpush1.msra.mxu0 %v3835
      %4479 = vmatprep.subr.mxu0 %v3840
      %4480 = vmatpush1.msra.mxu0 %v3839
      %4481 = vmatprep.subr.mxu0 %v3844
      %4482 = vmatpush1.msra.mxu0 %v3843
      %4483 = vmatprep.subr.mxu0 %v3848
      %4484 = vmatpush1.msra.mxu0 %v3847
      %4485 = vmatprep.subr.mxu0 %v3852
      %4486 = vmatpush1.msra.mxu0 %v3851
      %4487 = vmatprep.subr.mxu0 %v3856
      %4488 = vmatpush1.msra.mxu0 %v3855
      %4489 = vmatprep.subr.mxu0 %v3860
      %4490 = vmatpush1.msra.mxu0 %v3859
      %4491 = vmatprep.subr.mxu0 %v3864
      %4492 = vmatpush1.msra.mxu0 %v3863
      %4493 = vmatprep.subr.mxu0 %v3868
      %4494 = vmatpush1.msra.mxu0 %v3867
      %4495 = vmatprep.subr.mxu0 %v3872
      %4496 = vmatpush1.msra.mxu0 %v3871
      %4497 = vmatprep.mubr.f32.mxu0 %v3728
      %4498 = vmatmul.mubr.f32.gmra.mrb[0].mxu0 %v3727
      %v4499 = vpop.f32.mrb[0].mxu0
      %v4500 = vadd.f32 %v4262, %v4499
      %v4501 = vpop.f32.mrb[0].mxu0
      %v4502 = vadd.f32 %v4264, %v4501
      %4503 = vmatprep.mubr.f32.mxu0 %v3730
      %4504 = vmatmul.mubr.f32.gmra.mrb[0].mxu0 %v3729
      %v4505 = vpop.f32.mrb[0].mxu0
      %v4506 = vadd.f32 %v4268, %v4505
      %v4507 = vpop.f32.mrb[0].mxu0
      %v4508 = vadd.f32 %v4270, %v4507
      %4509 = vmatprep.mubr.f32.mxu0 %v3732
      %4510 = vmatmul.mubr.f32.gmra.mrb[0].mxu0 %v3731
      %v4511 = vpop.f32.mrb[0].mxu0
      %v4512 = vadd.f32 %v4274, %v4511
      %v4513 = vpop.f32.mrb[0].mxu0
      %v4514 = vadd.f32 %v4276, %v4513
      %4515 = vmatprep.mubr.f32.mxu0 %v3734
      %4516 = vmatmul.mubr.f32.gmra.mrb[0].mxu0 %v3733
      %v4517 = vpop.f32.mrb[0].mxu0
      %v4518 = vadd.f32 %v4280, %v4517
      %v4519 = vpop.f32.mrb[0].mxu0
      %v4520 = vadd.f32 %v4282, %v4519
      %4521 = vmatprep.mubr.f32.mxu0 %v3736
      %4522 = vmatmul.mubr.f32.gmra.mrb[0].mxu0 %v3735
      %v4523 = vpop.f32.mrb[0].mxu0
      %v4524 = vadd.f32 %v4286, %v4523
      %v4525 = vpop.f32.mrb[0].mxu0
      %v4526 = vadd.f32 %v4288, %v4525
      %4527 = vmatprep.mubr.f32.mxu0 %v3738
      %4528 = vmatmul.mubr.f32.gmra.mrb[0].mxu0 %v3737
      %v4529 = vpop.f32.mrb[0].mxu0
      %v4530 = vadd.f32 %v4292, %v4529
      %v4531 = vpop.f32.mrb[0].mxu0
      %v4532 = vadd.f32 %v4294, %v4531
      %4533 = vmatprep.mubr.f32.mxu0 %v3740
      %4534 = vmatmul.mubr.f32.gmra.mrb[0].mxu0 %v3739
      %v4535 = vpop.f32.mrb[0].mxu0
      %v4536 = vadd.f32 %v4298, %v4535
      %v4537 = vpop.f32.mrb[0].mxu0
      %v4538 = vadd.f32 %v4300, %v4537
      %4539 = vmatprep.mubr.f32.mxu0 %v3742
      %4540 = vmatmul.mubr.f32.gmra.mrb[0].mxu0 %v3741
      %v4541 = vpop.f32.mrb[0].mxu0
      %v4542 = vadd.f32 %v4304, %v4541
      %v4543 = vpop.f32.mrb[0].mxu0
      %v4544 = vadd.f32 %v4306, %v4543
      %4545 = vmatprep.mubr.f32.mxu0 %v3744
      %4546 = vmatmul.mubr.f32.gmra.mrb[0].mxu0 %v3743
      %v4547 = vpop.f32.mrb[0].mxu0
      %v4548 = vadd.f32 %v4310, %v4547
      %v4549 = vpop.f32.mrb[0].mxu0
      %v4550 = vadd.f32 %v4312, %v4549
      %4551 = vdwg.mxu0
      %v4552 = vld [vmem:[#allocation2] sm:$0xfc]
      %v4553 = vld [vmem:[#allocation2 + $0x8] sm:$0xfc]
      %v4554 = vld [vmem:[#allocation2 + $0x80] sm:$0xf]
      %v4555 = vld [vmem:[#allocation2 + $0x88] sm:$0xf]
      %s4556 = scalar_lea.vmem %s2, 2048
      %v4557 = vld [vmem:[%s4556] sm:$0xff]
      %v4558 = vld [vmem:[%s4556 + $0x8] sm:$0xff]
      %v4559 = vld [vmem:[%s4556 + $0x10] sm:$0xff]
      %v4560 = vld [vmem:[%s4556 + $0x18] sm:$0xff]
      %v4561 = vld [vmem:[%s4556 + $0x20] sm:$0xff]
      %v4562 = vld [vmem:[%s4556 + $0x28] sm:$0xff]
      %v4563 = vld [vmem:[%s4556 + $0x30] sm:$0xff]
      %v4564 = vld [vmem:[%s4556 + $0x38] sm:$0xff]
      %v4565 = vld [vmem:[%s4556 + $0x40] sm:$0xff]
      %v4566 = vld [vmem:[%s4556 + $0x48] sm:$0xff]
      %v4567 = vld [vmem:[%s4556 + $0x50] sm:$0xff]
      %v4568 = vld [vmem:[%s4556 + $0x58] sm:$0xff]
      %v4569 = vld [vmem:[%s4556 + $0x60] sm:$0xff]
      %v4570 = vld [vmem:[%s4556 + $0x68] sm:$0xff]
      %v4571 = vld [vmem:[%s4556 + $0x70] sm:$0xff]
      %v4572 = vld [vmem:[%s4556 + $0x78] sm:$0xff]
      %v4573 = vld [vmem:[%s4556 + $0x80] sm:$0xff]
      %v4574 = vld [vmem:[%s4556 + $0x88] sm:$0xff]
      %v4575 = vld [vmem:[%s4556 + $0x90] sm:$0xff]
      %v4576 = vld [vmem:[%s4556 + $0x98] sm:$0xff]
      %v4577 = vld [vmem:[%s4556 + $0xa0] sm:$0xff]
      %v4578 = vld [vmem:[%s4556 + $0xa8] sm:$0xff]
      %v4579 = vld [vmem:[%s4556 + $0xb0] sm:$0xff]
      %v4580 = vld [vmem:[%s4556 + $0xb8] sm:$0xff]
      %v4581 = vld [vmem:[%s4556 + $0xc0] sm:$0xff]
      %v4582 = vld [vmem:[%s4556 + $0xc8] sm:$0xff]
      %v4583 = vld [vmem:[%s4556 + $0xd0] sm:$0xff]
      %v4584 = vld [vmem:[%s4556 + $0xd8] sm:$0xff]
      %v4585 = vld [vmem:[%s4556 + $0xe0] sm:$0xff]
      %v4586 = vld [vmem:[%s4556 + $0xe8] sm:$0xff]
      %v4587 = vld [vmem:[%s4556 + $0xf0] sm:$0xff]
      %v4588 = vld [vmem:[%s4556 + $0xf8] sm:$0xff]
      %v4589 = vld [vmem:[%s4556 + $0x100] sm:$0xff]
      %v4590 = vld [vmem:[%s4556 + $0x108] sm:$0xff]
      %v4591 = vld [vmem:[%s4556 + $0x110] sm:$0xff]
      %v4592 = vld [vmem:[%s4556 + $0x118] sm:$0xff]
      %v4593 = vld [vmem:[%s4556 + $0x120] sm:$0xff]
      %v4594 = vld [vmem:[%s4556 + $0x128] sm:$0xff]
      %v4595 = vld [vmem:[%s4556 + $0x130] sm:$0xff]
      %v4596 = vld [vmem:[%s4556 + $0x138] sm:$0xff]
      %v4597 = vld [vmem:[%s4556 + $0x140] sm:$0xff]
      %v4598 = vld [vmem:[%s4556 + $0x148] sm:$0xff]
      %v4599 = vld [vmem:[%s4556 + $0x150] sm:$0xff]
      %v4600 = vld [vmem:[%s4556 + $0x158] sm:$0xff]
      %v4601 = vld [vmem:[%s4556 + $0x160] sm:$0xff]
      %v4602 = vld [vmem:[%s4556 + $0x168] sm:$0xff]
      %v4603 = vld [vmem:[%s4556 + $0x170] sm:$0xff]
      %v4604 = vld [vmem:[%s4556 + $0x178] sm:$0xff]
      %v4605 = vld [vmem:[%s4556 + $0x180] sm:$0xff]
      %v4606 = vld [vmem:[%s4556 + $0x188] sm:$0xff]
      %v4607 = vld [vmem:[%s4556 + $0x190] sm:$0xff]
      %v4608 = vld [vmem:[%s4556 + $0x198] sm:$0xff]
      %v4609 = vld [vmem:[%s4556 + $0x1a0] sm:$0xff]
      %v4610 = vld [vmem:[%s4556 + $0x1a8] sm:$0xff]
      %v4611 = vld [vmem:[%s4556 + $0x1b0] sm:$0xff]
      %v4612 = vld [vmem:[%s4556 + $0x1b8] sm:$0xff]
      %v4613 = vld [vmem:[%s4556 + $0x1c0] sm:$0xff]
      %v4614 = vld [vmem:[%s4556 + $0x1c8] sm:$0xff]
      %v4615 = vld [vmem:[%s4556 + $0x1d0] sm:$0xff]
      %v4616 = vld [vmem:[%s4556 + $0x1d8] sm:$0xff]
      %v4617 = vld [vmem:[%s4556 + $0x1e0] sm:$0xff]
      %v4618 = vld [vmem:[%s4556 + $0x1e8] sm:$0xff]
      %v4619 = vld [vmem:[%s4556 + $0x1f0] sm:$0xff]
      %v4620 = vld [vmem:[%s4556 + $0x1f8] sm:$0xff]
      %v4621 = vld [vmem:[%s4556 + $0x200] sm:$0xff]
      %v4622 = vld [vmem:[%s4556 + $0x208] sm:$0xff]
      %v4623 = vld [vmem:[%s4556 + $0x210] sm:$0xff]
      %v4624 = vld [vmem:[%s4556 + $0x218] sm:$0xff]
      %v4625 = vld [vmem:[%s4556 + $0x220] sm:$0xff]
      %v4626 = vld [vmem:[%s4556 + $0x228] sm:$0xff]
      %v4627 = vld [vmem:[%s4556 + $0x230] sm:$0xff]
      %v4628 = vld [vmem:[%s4556 + $0x238] sm:$0xff]
      %v4629 = vld [vmem:[%s4556 + $0x240] sm:$0xff]
      %v4630 = vld [vmem:[%s4556 + $0x248] sm:$0xff]
      %v4631 = vld [vmem:[%s4556 + $0x250] sm:$0xff]
      %v4632 = vld [vmem:[%s4556 + $0x258] sm:$0xff]
      %v4633 = vld [vmem:[%s4556 + $0x260] sm:$0xff]
      %v4634 = vld [vmem:[%s4556 + $0x268] sm:$0xff]
      %v4635 = vld [vmem:[%s4556 + $0x270] sm:$0xff]
      %v4636 = vld [vmem:[%s4556 + $0x278] sm:$0xff]
      %v4637 = vld [vmem:[%s4556 + $0x280] sm:$0xff]
      %v4638 = vld [vmem:[%s4556 + $0x288] sm:$0xff]
      %v4639 = vld [vmem:[%s4556 + $0x290] sm:$0xff]
      %v4640 = vld [vmem:[%s4556 + $0x298] sm:$0xff]
      %v4641 = vld [vmem:[%s4556 + $0x2a0] sm:$0xff]
      %v4642 = vld [vmem:[%s4556 + $0x2a8] sm:$0xff]
      %v4643 = vld [vmem:[%s4556 + $0x2b0] sm:$0xff]
      %v4644 = vld [vmem:[%s4556 + $0x2b8] sm:$0xff]
      %v4645 = vld [vmem:[%s4556 + $0x2c0] sm:$0xff]
      %v4646 = vld [vmem:[%s4556 + $0x2c8] sm:$0xff]
      %v4647 = vld [vmem:[%s4556 + $0x2d0] sm:$0xff]
      %v4648 = vld [vmem:[%s4556 + $0x2d8] sm:$0xff]
      %v4649 = vld [vmem:[%s4556 + $0x2e0] sm:$0xff]
      %v4650 = vld [vmem:[%s4556 + $0x2e8] sm:$0xff]
      %v4651 = vld [vmem:[%s4556 + $0x2f0] sm:$0xff]
      %v4652 = vld [vmem:[%s4556 + $0x2f8] sm:$0xff]
      %v4653 = vld [vmem:[%s4556 + $0x300] sm:$0xff]
      %v4654 = vld [vmem:[%s4556 + $0x308] sm:$0xff]
      %v4655 = vld [vmem:[%s4556 + $0x310] sm:$0xff]
      %v4656 = vld [vmem:[%s4556 + $0x318] sm:$0xff]
      %v4657 = vld [vmem:[%s4556 + $0x320] sm:$0xff]
      %v4658 = vld [vmem:[%s4556 + $0x328] sm:$0xff]
      %v4659 = vld [vmem:[%s4556 + $0x330] sm:$0xff]
      %v4660 = vld [vmem:[%s4556 + $0x338] sm:$0xff]
      %v4661 = vld [vmem:[%s4556 + $0x340] sm:$0xff]
      %v4662 = vld [vmem:[%s4556 + $0x348] sm:$0xff]
      %v4663 = vld [vmem:[%s4556 + $0x350] sm:$0xff]
      %v4664 = vld [vmem:[%s4556 + $0x358] sm:$0xff]
      %v4665 = vld [vmem:[%s4556 + $0x360] sm:$0xff]
      %v4666 = vld [vmem:[%s4556 + $0x368] sm:$0xff]
      %v4667 = vld [vmem:[%s4556 + $0x370] sm:$0xff]
      %v4668 = vld [vmem:[%s4556 + $0x378] sm:$0xff]
      %v4669 = vld [vmem:[%s4556 + $0x380] sm:$0xff]
      %v4670 = vld [vmem:[%s4556 + $0x388] sm:$0xff]
      %v4671 = vld [vmem:[%s4556 + $0x390] sm:$0xff]
      %v4672 = vld [vmem:[%s4556 + $0x398] sm:$0xff]
      %v4673 = vld [vmem:[%s4556 + $0x3a0] sm:$0xff]
      %v4674 = vld [vmem:[%s4556 + $0x3a8] sm:$0xff]
      %v4675 = vld [vmem:[%s4556 + $0x3b0] sm:$0xff]
      %v4676 = vld [vmem:[%s4556 + $0x3b8] sm:$0xff]
      %v4677 = vld [vmem:[%s4556 + $0x3c0] sm:$0xff]
      %v4678 = vld [vmem:[%s4556 + $0x3c8] sm:$0xff]
      %v4679 = vld [vmem:[%s4556 + $0x3d0] sm:$0xff]
      %v4680 = vld [vmem:[%s4556 + $0x3d8] sm:$0xff]
      %v4681 = vld [vmem:[%s4556 + $0x3e0] sm:$0xff]
      %v4682 = vld [vmem:[%s4556 + $0x3e8] sm:$0xff]
      %v4683 = vld [vmem:[%s4556 + $0x3f0] sm:$0xff]
      %v4684 = vld [vmem:[%s4556 + $0x3f8] sm:$0xff]
      %v4689 = vrot.slane %v4552, 2
      %v4690 = vrot.slane %v3729, 2
      %v4691 = vsel %vm1679, %v4689, %v4690
      %v4692 = vrot.slane %v4553, 2
      %v4693 = vrot.slane %v3730, 2
      %v4694 = vsel %vm1679, %v4692, %v4693
      %v4695 = vrot.slane %v3731, 2
      %v4696 = vsel %vm1679, %v4690, %v4695
      %v4697 = vrot.slane %v3732, 2
      %v4698 = vsel %vm1679, %v4693, %v4697
      %v4699 = vrot.slane %v3733, 2
      %v4700 = vsel %vm1679, %v4695, %v4699
      %v4701 = vrot.slane %v3734, 2
      %v4702 = vsel %vm1679, %v4697, %v4701
      %v4703 = vrot.slane %v3735, 2
      %v4704 = vsel %vm1679, %v4699, %v4703
      %v4705 = vrot.slane %v3736, 2
      %v4706 = vsel %vm1679, %v4701, %v4705
      %v4707 = vrot.slane %v3737, 2
      %v4708 = vsel %vm1679, %v4703, %v4707
      %v4709 = vrot.slane %v3738, 2
      %v4710 = vsel %vm1679, %v4705, %v4709
      %v4711 = vrot.slane %v3739, 2
      %v4712 = vsel %vm1679, %v4707, %v4711
      %v4713 = vrot.slane %v3740, 2
      %v4714 = vsel %vm1679, %v4709, %v4713
      %v4715 = vrot.slane %v3741, 2
      %v4716 = vsel %vm1679, %v4711, %v4715
      %v4717 = vrot.slane %v3742, 2
      %v4718 = vsel %vm1679, %v4713, %v4717
      %v4719 = vrot.slane %v4554, 2
      %v4720 = vsel %vm1679, %v4715, %v4719
      %v4721 = vrot.slane %v4555, 2
      %v4722 = vsel %vm1679, %v4717, %v4721
      %4741 = vmatprep.subr.mxu0 %v4558
      %4742 = vmatpush1.msra.mxu0 %v4557
      %4743 = vmatprep.subr.mxu0 %v4562
      %4744 = vmatpush1.msra.mxu0 %v4561
      %4745 = vmatprep.subr.mxu0 %v4566
      %4746 = vmatpush1.msra.mxu0 %v4565
      %4747 = vmatprep.subr.mxu0 %v4570
      %4748 = vmatpush1.msra.mxu0 %v4569
      %4749 = vmatprep.subr.mxu0 %v4574
      %4750 = vmatpush1.msra.mxu0 %v4573
      %4751 = vmatprep.subr.mxu0 %v4578
      %4752 = vmatpush1.msra.mxu0 %v4577
      %4753 = vmatprep.subr.mxu0 %v4582
      %4754 = vmatpush1.msra.mxu0 %v4581
      %4755 = vmatprep.subr.mxu0 %v4586
      %4756 = vmatpush1.msra.mxu0 %v4585
      %4757 = vmatprep.subr.mxu0 %v4590
      %4758 = vmatpush1.msra.mxu0 %v4589
      %4759 = vmatprep.subr.mxu0 %v4594
      %4760 = vmatpush1.msra.mxu0 %v4593
      %4761 = vmatprep.subr.mxu0 %v4598
      %4762 = vmatpush1.msra.mxu0 %v4597
      %4763 = vmatprep.subr.mxu0 %v4602
      %4764 = vmatpush1.msra.mxu0 %v4601
      %4765 = vmatprep.subr.mxu0 %v4606
      %4766 = vmatpush1.msra.mxu0 %v4605
      %4767 = vmatprep.subr.mxu0 %v4610
      %4768 = vmatpush1.msra.mxu0 %v4609
      %4769 = vmatprep.subr.mxu0 %v4614
      %4770 = vmatpush1.msra.mxu0 %v4613
      %4771 = vmatprep.subr.mxu0 %v4618
      %4772 = vmatpush1.msra.mxu0 %v4617
      %4773 = vmatprep.subr.mxu0 %v4622
      %4774 = vmatpush1.msra.mxu0 %v4621
      %4775 = vmatprep.subr.mxu0 %v4626
      %4776 = vmatpush1.msra.mxu0 %v4625
      %4777 = vmatprep.subr.mxu0 %v4630
      %4778 = vmatpush1.msra.mxu0 %v4629
      %4779 = vmatprep.subr.mxu0 %v4634
      %4780 = vmatpush1.msra.mxu0 %v4633
      %4781 = vmatprep.subr.mxu0 %v4638
      %4782 = vmatpush1.msra.mxu0 %v4637
      %4783 = vmatprep.subr.mxu0 %v4642
      %4784 = vmatpush1.msra.mxu0 %v4641
      %4785 = vmatprep.subr.mxu0 %v4646
      %4786 = vmatpush1.msra.mxu0 %v4645
      %4787 = vmatprep.subr.mxu0 %v4650
      %4788 = vmatpush1.msra.mxu0 %v4649
      %4789 = vmatprep.subr.mxu0 %v4654
      %4790 = vmatpush1.msra.mxu0 %v4653
      %4791 = vmatprep.subr.mxu0 %v4658
      %4792 = vmatpush1.msra.mxu0 %v4657
      %4793 = vmatprep.subr.mxu0 %v4662
      %4794 = vmatpush1.msra.mxu0 %v4661
      %4795 = vmatprep.subr.mxu0 %v4666
      %4796 = vmatpush1.msra.mxu0 %v4665
      %4797 = vmatprep.subr.mxu0 %v4670
      %4798 = vmatpush1.msra.mxu0 %v4669
      %4799 = vmatprep.subr.mxu0 %v4674
      %4800 = vmatpush1.msra.mxu0 %v4673
      %4801 = vmatprep.subr.mxu0 %v4678
      %4802 = vmatpush1.msra.mxu0 %v4677
      %4803 = vmatprep.subr.mxu0 %v4682
      %4804 = vmatpush1.msra.mxu0 %v4681
      %4805 = vmatprep.mubr.f32.mxu0 %v4694
      %4806 = vmatmul.mubr.f32.gmra.mrb[0].mxu0 %v4691
      %v4807 = vpop.f32.mrb[0].mxu0
      %v4808 = vadd.f32 0.0, %v4807
      %v4809 = vpop.f32.mrb[0].mxu0
      %v4810 = vadd.f32 0.0, %v4809
      %4811 = vmatprep.mubr.f32.mxu0 %v4698
      %4812 = vmatmul.mubr.f32.gmra.mrb[0].mxu0 %v4696
      %v4813 = vpop.f32.mrb[0].mxu0
      %v4814 = vadd.f32 0.0, %v4813
      %v4815 = vpop.f32.mrb[0].mxu0
      %v4816 = vadd.f32 0.0, %v4815
      %4817 = vmatprep.mubr.f32.mxu0 %v4702
      %4818 = vmatmul.mubr.f32.gmra.mrb[0].mxu0 %v4700
      %v4819 = vpop.f32.mrb[0].mxu0
      %v4820 = vadd.f32 0.0, %v4819
      %v4821 = vpop.f32.mrb[0].mxu0
      %v4822 = vadd.f32 0.0, %v4821
      %4823 = vmatprep.mubr.f32.mxu0 %v4706
      %4824 = vmatmul.mubr.f32.gmra.mrb[0].mxu0 %v4704
      %v4825 = vpop.f32.mrb[0].mxu0
      %v4826 = vadd.f32 0.0, %v4825
      %v4827 = vpop.f32.mrb[0].mxu0
      %v4828 = vadd.f32 0.0, %v4827
      %4829 = vmatprep.mubr.f32.mxu0 %v4710
      %4830 = vmatmul.mubr.f32.gmra.mrb[0].mxu0 %v4708
      %v4831 = vpop.f32.mrb[0].mxu0
      %v4832 = vadd.f32 0.0, %v4831
      %v4833 = vpop.f32.mrb[0].mxu0
      %v4834 = vadd.f32 0.0, %v4833
      %4835 = vmatprep.mubr.f32.mxu0 %v4714
      %4836 = vmatmul.mubr.f32.gmra.mrb[0].mxu0 %v4712
      %v4837 = vpop.f32.mrb[0].mxu0
      %v4838 = vadd.f32 0.0, %v4837
      %v4839 = vpop.f32.mrb[0].mxu0
      %v4840 = vadd.f32 0.0, %v4839
      %4841 = vmatprep.mubr.f32.mxu0 %v4718
      %4842 = vmatmul.mubr.f32.gmra.mrb[0].mxu0 %v4716
      %v4843 = vpop.f32.mrb[0].mxu0
      %v4844 = vadd.f32 0.0, %v4843
      %v4845 = vpop.f32.mrb[0].mxu0
      %v4846 = vadd.f32 0.0, %v4845
      %4847 = vmatprep.mubr.f32.mxu0 %v4722
      %4848 = vmatmul.mubr.f32.gmra.mrb[0].mxu0 %v4720
      %v4849 = vpop.f32.mrb[0].mxu0
      %v4850 = vadd.f32 0.0, %v4849
      %v4851 = vpop.f32.mrb[0].mxu0
      %v4852 = vadd.f32 0.0, %v4851
      %4853 = vmatprep.mubr.f32.mxu0 %v4721
      %4854 = vmatmul.mubr.f32.gmra.mrb[0].mxu0 %v4719
      %v4855 = vpop.f32.mrb[0].mxu0
      %v4856 = vadd.f32 0.0, %v4855
      %v4857 = vpop.f32.mrb[0].mxu0
      %v4858 = vadd.f32 0.0, %v4857
      %4859 = vdwg.mxu0
      %4860 = vmatprep.subr.mxu0 %v4560
      %4861 = vmatpush1.msra.mxu0 %v4559
      %4862 = vmatprep.subr.mxu0 %v4564
      %4863 = vmatpush1.msra.mxu0 %v4563
      %4864 = vmatprep.subr.mxu0 %v4568
      %4865 = vmatpush1.msra.mxu0 %v4567
      %4866 = vmatprep.subr.mxu0 %v4572
      %4867 = vmatpush1.msra.mxu0 %v4571
      %4868 = vmatprep.subr.mxu0 %v4576
      %4869 = vmatpush1.msra.mxu0 %v4575
      %4870 = vmatprep.subr.mxu0 %v4580
      %4871 = vmatpush1.msra.mxu0 %v4579
      %4872 = vmatprep.subr.mxu0 %v4584
      %4873 = vmatpush1.msra.mxu0 %v4583
      %4874 = vmatprep.subr.mxu0 %v4588
      %4875 = vmatpush1.msra.mxu0 %v4587
      %4876 = vmatprep.subr.mxu0 %v4592
      %4877 = vmatpush1.msra.mxu0 %v4591
      %4878 = vmatprep.subr.mxu0 %v4596
      %4879 = vmatpush1.msra.mxu0 %v4595
      %4880 = vmatprep.subr.mxu0 %v4600
      %4881 = vmatpush1.msra.mxu0 %v4599
      %4882 = vmatprep.subr.mxu0 %v4604
      %4883 = vmatpush1.msra.mxu0 %v4603
      %4884 = vmatprep.subr.mxu0 %v4608
      %4885 = vmatpush1.msra.mxu0 %v4607
      %4886 = vmatprep.subr.mxu0 %v4612
      %4887 = vmatpush1.msra.mxu0 %v4611
      %4888 = vmatprep.subr.mxu0 %v4616
      %4889 = vmatpush1.msra.mxu0 %v4615
      %4890 = vmatprep.subr.mxu0 %v4620
      %4891 = vmatpush1.msra.mxu0 %v4619
      %4892 = vmatprep.subr.mxu0 %v4624
      %4893 = vmatpush1.msra.mxu0 %v4623
      %4894 = vmatprep.subr.mxu0 %v4628
      %4895 = vmatpush1.msra.mxu0 %v4627
      %4896 = vmatprep.subr.mxu0 %v4632
      %4897 = vmatpush1.msra.mxu0 %v4631
      %4898 = vmatprep.subr.mxu0 %v4636
      %4899 = vmatpush1.msra.mxu0 %v4635
      %4900 = vmatprep.subr.mxu0 %v4640
      %4901 = vmatpush1.msra.mxu0 %v4639
      %4902 = vmatprep.subr.mxu0 %v4644
      %4903 = vmatpush1.msra.mxu0 %v4643
      %4904 = vmatprep.subr.mxu0 %v4648
      %4905 = vmatpush1.msra.mxu0 %v4647
      %4906 = vmatprep.subr.mxu0 %v4652
      %4907 = vmatpush1.msra.mxu0 %v4651
      %4908 = vmatprep.subr.mxu0 %v4656
      %4909 = vmatpush1.msra.mxu0 %v4655
      %4910 = vmatprep.subr.mxu0 %v4660
      %4911 = vmatpush1.msra.mxu0 %v4659
      %4912 = vmatprep.subr.mxu0 %v4664
      %4913 = vmatpush1.msra.mxu0 %v4663
      %4914 = vmatprep.subr.mxu0 %v4668
      %4915 = vmatpush1.msra.mxu0 %v4667
      %4916 = vmatprep.subr.mxu0 %v4672
      %4917 = vmatpush1.msra.mxu0 %v4671
      %4918 = vmatprep.subr.mxu0 %v4676
      %4919 = vmatpush1.msra.mxu0 %v4675
      %4920 = vmatprep.subr.mxu0 %v4680
      %4921 = vmatpush1.msra.mxu0 %v4679
      %4922 = vmatprep.subr.mxu0 %v4684
      %4923 = vmatpush1.msra.mxu0 %v4683
      %4924 = vmatprep.mubr.f32.mxu0 %v4694
      %4925 = vmatmul.mubr.f32.gmra.mrb[0].mxu0 %v4691
      %v4926 = vpop.f32.mrb[0].mxu0
      %v4927 = vadd.f32 0.0, %v4926
      %v4928 = vpop.f32.mrb[0].mxu0
      %v4929 = vadd.f32 0.0, %v4928
      %4930 = vmatprep.mubr.f32.mxu0 %v4698
      %4931 = vmatmul.mubr.f32.gmra.mrb[0].mxu0 %v4696
      %v4932 = vpop.f32.mrb[0].mxu0
      %v4933 = vadd.f32 0.0, %v4932
      %v4934 = vpop.f32.mrb[0].mxu0
      %v4935 = vadd.f32 0.0, %v4934
      %4936 = vmatprep.mubr.f32.mxu0 %v4702
      %4937 = vmatmul.mubr.f32.gmra.mrb[0].mxu0 %v4700
      %v4938 = vpop.f32.mrb[0].mxu0
      %v4939 = vadd.f32 0.0, %v4938
      %v4940 = vpop.f32.mrb[0].mxu0
      %v4941 = vadd.f32 0.0, %v4940
      %4942 = vmatprep.mubr.f32.mxu0 %v4706
      %4943 = vmatmul.mubr.f32.gmra.mrb[0].mxu0 %v4704
      %v4944 = vpop.f32.mrb[0].mxu0
      %v4945 = vadd.f32 0.0, %v4944
      %v4946 = vpop.f32.mrb[0].mxu0
      %v4947 = vadd.f32 0.0, %v4946
      %4948 = vmatprep.mubr.f32.mxu0 %v4710
      %4949 = vmatmul.mubr.f32.gmra.mrb[0].mxu0 %v4708
      %v4950 = vpop.f32.mrb[0].mxu0
      %v4951 = vadd.f32 0.0, %v4950
      %v4952 = vpop.f32.mrb[0].mxu0
      %v4953 = vadd.f32 0.0, %v4952
      %4954 = vmatprep.mubr.f32.mxu0 %v4714
      %4955 = vmatmul.mubr.f32.gmra.mrb[0].mxu0 %v4712
      %v4956 = vpop.f32.mrb[0].mxu0
      %v4957 = vadd.f32 0.0, %v4956
      %v4958 = vpop.f32.mrb[0].mxu0
      %v4959 = vadd.f32 0.0, %v4958
      %4960 = vmatprep.mubr.f32.mxu0 %v4718
      %4961 = vmatmul.mubr.f32.gmra.mrb[0].mxu0 %v4716
      %v4962 = vpop.f32.mrb[0].mxu0
      %v4963 = vadd.f32 0.0, %v4962
      %v4964 = vpop.f32.mrb[0].mxu0
      %v4965 = vadd.f32 0.0, %v4964
      %4966 = vmatprep.mubr.f32.mxu0 %v4722
      %4967 = vmatmul.mubr.f32.gmra.mrb[0].mxu0 %v4720
      %v4968 = vpop.f32.mrb[0].mxu0
      %v4969 = vadd.f32 0.0, %v4968
      %v4970 = vpop.f32.mrb[0].mxu0
      %v4971 = vadd.f32 0.0, %v4970
      %4972 = vmatprep.mubr.f32.mxu0 %v4721
      %4973 = vmatmul.mubr.f32.gmra.mrb[0].mxu0 %v4719
      %v4974 = vpop.f32.mrb[0].mxu0
      %v4975 = vadd.f32 0.0, %v4974
      %v4976 = vpop.f32.mrb[0].mxu0
      %v4977 = vadd.f32 0.0, %v4976
      %4978 = vdwg.mxu0
      %v4979 = vadd.f32 %v4381, %v4808
      %v4980 = vadd.f32 %v4383, %v4810
      %v4981 = vadd.f32 %v4500, %v4927
      %v4982 = vadd.f32 %v4502, %v4929
      %v4983 = vadd.f32 %v4387, %v4814
      %v4984 = vadd.f32 %v4389, %v4816
      %v4985 = vadd.f32 %v4506, %v4933
      %v4986 = vadd.f32 %v4508, %v4935
      %v4987 = vadd.f32 %v4393, %v4820
      %v4988 = vadd.f32 %v4395, %v4822
      %v4989 = vadd.f32 %v4512, %v4939
      %v4990 = vadd.f32 %v4514, %v4941
      %v4991 = vadd.f32 %v4399, %v4826
      %v4992 = vadd.f32 %v4401, %v4828
      %v4993 = vadd.f32 %v4518, %v4945
      %v4994 = vadd.f32 %v4520, %v4947
      %v4995 = vadd.f32 %v4405, %v4832
      %v4996 = vadd.f32 %v4407, %v4834
      %v4997 = vadd.f32 %v4524, %v4951
      %v4998 = vadd.f32 %v4526, %v4953
      %v4999 = vadd.f32 %v4411, %v4838
      %v5000 = vadd.f32 %v4413, %v4840
      %v5001 = vadd.f32 %v4530, %v4957
      %v5002 = vadd.f32 %v4532, %v4959
      %v5003 = vadd.f32 %v4417, %v4844
      %v5004 = vadd.f32 %v4419, %v4846
      %v5005 = vadd.f32 %v4536, %v4963
      %v5006 = vadd.f32 %v4538, %v4965
      %v5007 = vadd.f32 %v4423, %v4850
      %v5008 = vadd.f32 %v4425, %v4852
      %v5009 = vadd.f32 %v4542, %v4969
      %v5010 = vadd.f32 %v4544, %v4971
      %v5011 = vadd.f32 %v4429, %v4856
      %v5012 = vadd.f32 %v4431, %v4858
      %v5013 = vadd.f32 %v4548, %v4975
      %v5014 = vadd.f32 %v4550, %v4977
      %v5051 = vrot.slane %v4979, 1
      %v5052 = vrot.slane %v4983, 1
      %v5053 = vsel %vm718, %v5051, %v5052
      %v5054 = vrot.slane %v4980, 1
      %v5055 = vrot.slane %v4984, 1
      %v5056 = vsel %vm718, %v5054, %v5055
      %v5057 = vrot.slane %v4981, 1
      %v5058 = vrot.slane %v4985, 1
      %v5059 = vsel %vm718, %v5057, %v5058
      %v5060 = vrot.slane %v4982, 1
      %v5061 = vrot.slane %v4986, 1
      %v5062 = vsel %vm718, %v5060, %v5061
      %v5063 = vrot.slane %v4987, 1
      %v5064 = vsel %vm718, %v5052, %v5063
      %v5065 = vrot.slane %v4988, 1
      %v5066 = vsel %vm718, %v5055, %v5065
      %v5067 = vrot.slane %v4989, 1
      %v5068 = vsel %vm718, %v5058, %v5067
      %v5069 = vrot.slane %v4990, 1
      %v5070 = vsel %vm718, %v5061, %v5069
      %v5071 = vrot.slane %v4991, 1
      %v5072 = vsel %vm718, %v5063, %v5071
      %v5073 = vrot.slane %v4992, 1
      %v5074 = vsel %vm718, %v5065, %v5073
      %v5075 = vrot.slane %v4993, 1
      %v5076 = vsel %vm718, %v5067, %v5075
      %v5077 = vrot.slane %v4994, 1
      %v5078 = vsel %vm718, %v5069, %v5077
      %v5079 = vrot.slane %v4995, 1
      %v5080 = vsel %vm718, %v5071, %v5079
      %v5081 = vrot.slane %v4996, 1
      %v5082 = vsel %vm718, %v5073, %v5081
      %v5083 = vrot.slane %v4997, 1
      %v5084 = vsel %vm718, %v5075, %v5083
      %v5085 = vrot.slane %v4998, 1
      %v5086 = vsel %vm718, %v5077, %v5085
      %v5087 = vrot.slane %v4999, 1
      %v5088 = vsel %vm718, %v5079, %v5087
      %v5089 = vrot.slane %v5000, 1
      %v5090 = vsel %vm718, %v5081, %v5089
      %v5091 = vrot.slane %v5001, 1
      %v5092 = vsel %vm718, %v5083, %v5091
      %v5093 = vrot.slane %v5002, 1
      %v5094 = vsel %vm718, %v5085, %v5093
      %v5095 = vrot.slane %v5003, 1
      %v5096 = vsel %vm718, %v5087, %v5095
      %v5097 = vrot.slane %v5004, 1
      %v5098 = vsel %vm718, %v5089, %v5097
      %v5099 = vrot.slane %v5005, 1
      %v5100 = vsel %vm718, %v5091, %v5099
      %v5101 = vrot.slane %v5006, 1
      %v5102 = vsel %vm718, %v5093, %v5101
      %v5103 = vrot.slane %v5007, 1
      %v5104 = vsel %vm718, %v5095, %v5103
      %v5105 = vrot.slane %v5008, 1
      %v5106 = vsel %vm718, %v5097, %v5105
      %v5107 = vrot.slane %v5009, 1
      %v5108 = vsel %vm718, %v5099, %v5107
      %v5109 = vrot.slane %v5010, 1
      %v5110 = vsel %vm718, %v5101, %v5109
      %v5111 = vrot.slane %v5011, 1
      %v5112 = vsel %vm718, %v5103, %v5111
      %v5113 = vrot.slane %v5012, 1
      %v5114 = vsel %vm718, %v5105, %v5113
      %v5115 = vrot.slane %v5013, 1
      %v5116 = vsel %vm718, %v5107, %v5115
      %v5117 = vrot.slane %v5014, 1
      %v5118 = vsel %vm718, %v5109, %v5117
      %v5155 = vmax.f32 %v4979, %v5053
      %v5156 = vmax.f32 %v4980, %v5056
      %v5157 = vmax.f32 %v4981, %v5059
      %v5158 = vmax.f32 %v4982, %v5062
      %v5159 = vmax.f32 %v4983, %v5064
      %v5160 = vmax.f32 %v4984, %v5066
      %v5161 = vmax.f32 %v4985, %v5068
      %v5162 = vmax.f32 %v4986, %v5070
      %v5163 = vmax.f32 %v4987, %v5072
      %v5164 = vmax.f32 %v4988, %v5074
      %v5165 = vmax.f32 %v4989, %v5076
      %v5166 = vmax.f32 %v4990, %v5078
      %v5167 = vmax.f32 %v4991, %v5080
      %v5168 = vmax.f32 %v4992, %v5082
      %v5169 = vmax.f32 %v4993, %v5084
      %v5170 = vmax.f32 %v4994, %v5086
      %v5171 = vmax.f32 %v4995, %v5088
      %v5172 = vmax.f32 %v4996, %v5090
      %v5173 = vmax.f32 %v4997, %v5092
      %v5174 = vmax.f32 %v4998, %v5094
      %v5175 = vmax.f32 %v4999, %v5096
      %v5176 = vmax.f32 %v5000, %v5098
      %v5177 = vmax.f32 %v5001, %v5100
      %v5178 = vmax.f32 %v5002, %v5102
      %v5179 = vmax.f32 %v5003, %v5104
      %v5180 = vmax.f32 %v5004, %v5106
      %v5181 = vmax.f32 %v5005, %v5108
      %v5182 = vmax.f32 %v5006, %v5110
      %v5183 = vmax.f32 %v5007, %v5112
      %v5184 = vmax.f32 %v5008, %v5114
      %v5185 = vmax.f32 %v5009, %v5116
      %v5186 = vmax.f32 %v5010, %v5118
      %v5187 = vmax.f32 %v5011, %v5111
      %v5188 = vmax.f32 %v5012, %v5113
      %v5189 = vmax.f32 %v5013, %v5115
      %v5190 = vmax.f32 %v5014, %v5117
      %5227 = vrot.lane.b32.xlu0 %v5155, 112
      %v5228 = vpop.permute.xlu0 %5227
      %5229 = vrot.lane.b32.xlu0 %v5156, 112
      %v5230 = vpop.permute.xlu0 %5229
      %5231 = vrot.lane.b32.xlu0 %v5157, 112
      %v5232 = vpop.permute.xlu0 %5231
      %5233 = vrot.lane.b32.xlu0 %v5158, 112
      %v5234 = vpop.permute.xlu0 %5233
      %5235 = vrot.lane.b32.xlu0 %v5159, 112
      %v5236 = vpop.permute.xlu0 %5235
      %5237 = vrot.lane.b32.xlu0 %v5160, 112
      %v5238 = vpop.permute.xlu0 %5237
      %5239 = vrot.lane.b32.xlu0 %v5161, 112
      %v5240 = vpop.permute.xlu0 %5239
      %5241 = vrot.lane.b32.xlu0 %v5162, 112
      %v5242 = vpop.permute.xlu0 %5241
      %5243 = vrot.lane.b32.xlu0 %v5163, 112
      %v5244 = vpop.permute.xlu0 %5243
      %5245 = vrot.lane.b32.xlu0 %v5164, 112
      %v5246 = vpop.permute.xlu0 %5245
      %5247 = vrot.lane.b32.xlu0 %v5165, 112
      %v5248 = vpop.permute.xlu0 %5247
      %5249 = vrot.lane.b32.xlu0 %v5166, 112
      %v5250 = vpop.permute.xlu0 %5249
      %5251 = vrot.lane.b32.xlu0 %v5167, 112
      %v5252 = vpop.permute.xlu0 %5251
      %5253 = vrot.lane.b32.xlu0 %v5168, 112
      %v5254 = vpop.permute.xlu0 %5253
      %5255 = vrot.lane.b32.xlu0 %v5169, 112
      %v5256 = vpop.permute.xlu0 %5255
      %5257 = vrot.lane.b32.xlu0 %v5170, 112
      %v5258 = vpop.permute.xlu0 %5257
      %5259 = vrot.lane.b32.xlu0 %v5171, 112
      %v5260 = vpop.permute.xlu0 %5259
      %5261 = vrot.lane.b32.xlu0 %v5172, 112
      %v5262 = vpop.permute.xlu0 %5261
      %5263 = vrot.lane.b32.xlu0 %v5173, 112
      %v5264 = vpop.permute.xlu0 %5263
      %5265 = vrot.lane.b32.xlu0 %v5174, 112
      %v5266 = vpop.permute.xlu0 %5265
      %5267 = vrot.lane.b32.xlu0 %v5175, 112
      %v5268 = vpop.permute.xlu0 %5267
      %5269 = vrot.lane.b32.xlu0 %v5176, 112
      %v5270 = vpop.permute.xlu0 %5269
      %5271 = vrot.lane.b32.xlu0 %v5177, 112
      %v5272 = vpop.permute.xlu0 %5271
      %5273 = vrot.lane.b32.xlu0 %v5178, 112
      %v5274 = vpop.permute.xlu0 %5273
      %5275 = vrot.lane.b32.xlu0 %v5179, 112
      %v5276 = vpop.permute.xlu0 %5275
      %5277 = vrot.lane.b32.xlu0 %v5180, 112
      %v5278 = vpop.permute.xlu0 %5277
      %5279 = vrot.lane.b32.xlu0 %v5181, 112
      %v5280 = vpop.permute.xlu0 %5279
      %5281 = vrot.lane.b32.xlu0 %v5182, 112
      %v5282 = vpop.permute.xlu0 %5281
      %5283 = vrot.lane.b32.xlu0 %v5183, 112
      %v5284 = vpop.permute.xlu0 %5283
      %5285 = vrot.lane.b32.xlu0 %v5184, 112
      %v5286 = vpop.permute.xlu0 %5285
      %5287 = vrot.lane.b32.xlu0 %v5185, 112
      %v5288 = vpop.permute.xlu0 %5287
      %5289 = vrot.lane.b32.xlu0 %v5186, 112
      %v5290 = vpop.permute.xlu0 %5289
      %5291 = vrot.lane.b32.xlu0 %v5187, 112
      %v5292 = vpop.permute.xlu0 %5291
      %5293 = vrot.lane.b32.xlu0 %v5188, 112
      %v5294 = vpop.permute.xlu0 %5293
      %5295 = vrot.lane.b32.xlu0 %v5189, 112
      %v5296 = vpop.permute.xlu0 %5295
      %5297 = vrot.lane.b32.xlu0 %v5190, 112
      %v5298 = vpop.permute.xlu0 %5297
      %vm5299 = vcmask 916480
      %v5300 = vsel %vm5299, %v5228, %v5230
      %v5301 = vsel %vm5299, %v5230, %v5232
      %v5302 = vsel %vm5299, %v5232, %v5234
      %v5303 = vsel %vm5299, %v5236, %v5238
      %v5304 = vsel %vm5299, %v5238, %v5240
      %v5305 = vsel %vm5299, %v5240, %v5242
      %v5306 = vsel %vm5299, %v5244, %v5246
      %v5307 = vsel %vm5299, %v5246, %v5248
      %v5308 = vsel %vm5299, %v5248, %v5250
      %v5309 = vsel %vm5299, %v5252, %v5254
      %v5310 = vsel %vm5299, %v5254, %v5256
      %v5311 = vsel %vm5299, %v5256, %v5258
      %v5312 = vsel %vm5299, %v5260, %v5262
      %v5313 = vsel %vm5299, %v5262, %v5264
      %v5314 = vsel %vm5299, %v5264, %v5266
      %v5315 = vsel %vm5299, %v5268, %v5270
      %v5316 = vsel %vm5299, %v5270, %v5272
      %v5317 = vsel %vm5299, %v5272, %v5274
      %v5318 = vsel %vm5299, %v5276, %v5278
      %v5319 = vsel %vm5299, %v5278, %v5280
      %v5320 = vsel %vm5299, %v5280, %v5282
      %v5321 = vsel %vm5299, %v5284, %v5286
      %v5322 = vsel %vm5299, %v5286, %v5288
      %v5323 = vsel %vm5299, %v5288, %v5290
      %v5324 = vsel %vm5299, %v5292, %v5294
      %v5325 = vsel %vm5299, %v5294, %v5296
      %v5326 = vsel %vm5299, %v5296, %v5298
      %v5363 = vmax.f32 %v5155, %v5300
      %v5364 = vmax.f32 %v5156, %v5301
      %v5365 = vmax.f32 %v5157, %v5302
      %v5366 = vmax.f32 %v5158, %v5234
      %v5367 = vmax.f32 %v5159, %v5303
      %v5368 = vmax.f32 %v5160, %v5304
      %v5369 = vmax.f32 %v5161, %v5305
      %v5370 = vmax.f32 %v5162, %v5242
      %v5371 = vmax.f32 %v5163, %v5306
      %v5372 = vmax.f32 %v5164, %v5307
      %v5373 = vmax.f32 %v5165, %v5308
      %v5374 = vmax.f32 %v5166, %v5250
      %v5375 = vmax.f32 %v5167, %v5309
      %v5376 = vmax.f32 %v5168, %v5310
      %v5377 = vmax.f32 %v5169, %v5311
      %v5378 = vmax.f32 %v5170, %v5258
      %v5379 = vmax.f32 %v5171, %v5312
      %v5380 = vmax.f32 %v5172, %v5313
      %v5381 = vmax.f32 %v5173, %v5314
      %v5382 = vmax.f32 %v5174, %v5266
      %v5383 = vmax.f32 %v5175, %v5315
      %v5384 = vmax.f32 %v5176, %v5316
      %v5385 = vmax.f32 %v5177, %v5317
      %v5386 = vmax.f32 %v5178, %v5274
      %v5387 = vmax.f32 %v5179, %v5318
      %v5388 = vmax.f32 %v5180, %v5319
      %v5389 = vmax.f32 %v5181, %v5320
      %v5390 = vmax.f32 %v5182, %v5282
      %v5391 = vmax.f32 %v5183, %v5321
      %v5392 = vmax.f32 %v5184, %v5322
      %v5393 = vmax.f32 %v5185, %v5323
      %v5394 = vmax.f32 %v5186, %v5290
      %v5395 = vmax.f32 %v5187, %v5324
      %v5396 = vmax.f32 %v5188, %v5325
      %v5397 = vmax.f32 %v5189, %v5326
      %v5398 = vmax.f32 %v5190, %v5298
      %v5399 = vld [vmem:[%s5] sm:$0xff]
      %v5400 = vld [vmem:[%s5 + $0x8] sm:$0xff]
      %v5401 = vld [vmem:[%s5 + $0x10] sm:$0xff]
      %v5402 = vld [vmem:[%s5 + $0x18] sm:$0xff]
      %v5403 = vld [vmem:[%s5 + $0x20] sm:$0xff]
      %v5404 = vld [vmem:[%s5 + $0x28] sm:$0xff]
      %v5405 = vld [vmem:[%s5 + $0x30] sm:$0xff]
      %v5406 = vld [vmem:[%s5 + $0x38] sm:$0xff]
      %v5407 = vld [vmem:[%s5 + $0x40] sm:$0xff]
      %v5408 = vld [vmem:[%s5 + $0x48] sm:$0xff]
      %v5409 = vld [vmem:[%s5 + $0x50] sm:$0xff]
      %v5410 = vld [vmem:[%s5 + $0x58] sm:$0xff]
      %v5411 = vld [vmem:[%s5 + $0x60] sm:$0xff]
      %v5412 = vld [vmem:[%s5 + $0x68] sm:$0xff]
      %v5413 = vld [vmem:[%s5 + $0x70] sm:$0xff]
      %v5414 = vld [vmem:[%s5 + $0x78] sm:$0xff]
      %v5415 = vld [vmem:[%s5 + $0x80] sm:$0xff]
      %v5416 = vld [vmem:[%s5 + $0x88] sm:$0xff]
      %v5417 = vld [vmem:[%s5 + $0x90] sm:$0xff]
      %v5418 = vld [vmem:[%s5 + $0x98] sm:$0xff]
      %v5419 = vld [vmem:[%s5 + $0xa0] sm:$0xff]
      %v5420 = vld [vmem:[%s5 + $0xa8] sm:$0xff]
      %v5421 = vld [vmem:[%s5 + $0xb0] sm:$0xff]
      %v5422 = vld [vmem:[%s5 + $0xb8] sm:$0xff]
      %v5423 = vld [vmem:[%s5 + $0xc0] sm:$0xff]
      %v5424 = vld [vmem:[%s5 + $0xc8] sm:$0xff]
      %v5425 = vld [vmem:[%s5 + $0xd0] sm:$0xff]
      %v5426 = vld [vmem:[%s5 + $0xd8] sm:$0xff]
      %v5427 = vld [vmem:[%s5 + $0xe0] sm:$0xff]
      %v5428 = vld [vmem:[%s5 + $0xe8] sm:$0xff]
      %v5429 = vld [vmem:[%s5 + $0xf0] sm:$0xff]
      %v5430 = vld [vmem:[%s5 + $0xf8] sm:$0xff]
      %v5431 = vld [vmem:[%s5 + $0x100] sm:$0xff]
      %v5432 = vld [vmem:[%s5 + $0x108] sm:$0xff]
      %v5433 = vld [vmem:[%s5 + $0x110] sm:$0xff]
      %v5434 = vld [vmem:[%s5 + $0x118] sm:$0xff]
      %v5435 = vld [vmem:[%s5 + $0x120] sm:$0xff]
      %v5436 = vld [vmem:[%s5 + $0x128] sm:$0xff]
      %v5437 = vld [vmem:[%s5 + $0x130] sm:$0xff]
      %v5438 = vld [vmem:[%s5 + $0x138] sm:$0xff]
      %v5439 = vld [vmem:[%s5 + $0x140] sm:$0xff]
      %v5440 = vld [vmem:[%s5 + $0x148] sm:$0xff]
      %v5441 = vld [vmem:[%s5 + $0x150] sm:$0xff]
      %v5442 = vld [vmem:[%s5 + $0x158] sm:$0xff]
      %v5443 = vld [vmem:[%s5 + $0x160] sm:$0xff]
      %v5444 = vld [vmem:[%s5 + $0x168] sm:$0xff]
      %v5445 = vld [vmem:[%s5 + $0x170] sm:$0xff]
      %v5446 = vld [vmem:[%s5 + $0x178] sm:$0xff]
      %v5447 = vld [vmem:[%s5 + $0x180] sm:$0xff]
      %v5448 = vld [vmem:[%s5 + $0x188] sm:$0xff]
      %v5449 = vld [vmem:[%s5 + $0x190] sm:$0xff]
      %v5450 = vld [vmem:[%s5 + $0x198] sm:$0xff]
      %v5451 = vld [vmem:[%s5 + $0x1a0] sm:$0xff]
      %v5452 = vld [vmem:[%s5 + $0x1a8] sm:$0xff]
      %v5453 = vld [vmem:[%s5 + $0x1b0] sm:$0xff]
      %v5454 = vld [vmem:[%s5 + $0x1b8] sm:$0xff]
      %v5455 = vld [vmem:[%s5 + $0x1c0] sm:$0xff]
      %v5456 = vld [vmem:[%s5 + $0x1c8] sm:$0xff]
      %v5457 = vld [vmem:[%s5 + $0x1d0] sm:$0xff]
      %v5458 = vld [vmem:[%s5 + $0x1d8] sm:$0xff]
      %v5459 = vld [vmem:[%s5 + $0x1e0] sm:$0xff]
      %v5460 = vld [vmem:[%s5 + $0x1e8] sm:$0xff]
      %v5461 = vld [vmem:[%s5 + $0x1f0] sm:$0xff]
      %v5462 = vld [vmem:[%s5 + $0x1f8] sm:$0xff]
      %v5463 = vld [vmem:[%s5 + $0x200] sm:$0xff]
      %v5464 = vld [vmem:[%s5 + $0x208] sm:$0xff]
      %v5465 = vld [vmem:[%s5 + $0x210] sm:$0xff]
      %v5466 = vld [vmem:[%s5 + $0x218] sm:$0xff]
      %v5467 = vld [vmem:[%s5 + $0x220] sm:$0xff]
      %v5468 = vld [vmem:[%s5 + $0x228] sm:$0xff]
      %v5469 = vld [vmem:[%s5 + $0x230] sm:$0xff]
      %v5470 = vld [vmem:[%s5 + $0x238] sm:$0xff]
      %v5471 = vld [vmem:[%s5 + $0x240] sm:$0xff]
      %v5472 = vld [vmem:[%s5 + $0x248] sm:$0xff]
      %v5473 = vld [vmem:[%s5 + $0x250] sm:$0xff]
      %v5474 = vld [vmem:[%s5 + $0x258] sm:$0xff]
      %v5475 = vld [vmem:[%s5 + $0x260] sm:$0xff]
      %v5476 = vld [vmem:[%s5 + $0x268] sm:$0xff]
      %v5477 = vld [vmem:[%s5 + $0x270] sm:$0xff]
      %v5478 = vld [vmem:[%s5 + $0x278] sm:$0xff]
      %v5479 = vld [vmem:[%s5 + $0x280] sm:$0xff]
      %v5480 = vld [vmem:[%s5 + $0x288] sm:$0xff]
      %v5481 = vld [vmem:[%s5 + $0x290] sm:$0xff]
      %v5482 = vld [vmem:[%s5 + $0x298] sm:$0xff]
      %v5483 = vld [vmem:[%s5 + $0x2a0] sm:$0xff]
      %v5484 = vld [vmem:[%s5 + $0x2a8] sm:$0xff]
      %v5485 = vld [vmem:[%s5 + $0x2b0] sm:$0xff]
      %v5486 = vld [vmem:[%s5 + $0x2b8] sm:$0xff]
      %v5487 = vld [vmem:[%s5 + $0x2c0] sm:$0xff]
      %v5488 = vld [vmem:[%s5 + $0x2c8] sm:$0xff]
      %v5489 = vld [vmem:[%s5 + $0x2d0] sm:$0xff]
      %v5490 = vld [vmem:[%s5 + $0x2d8] sm:$0xff]
      %v5491 = vld [vmem:[%s5 + $0x2e0] sm:$0xff]
      %v5492 = vld [vmem:[%s5 + $0x2e8] sm:$0xff]
      %v5493 = vld [vmem:[%s5 + $0x2f0] sm:$0xff]
      %v5494 = vld [vmem:[%s5 + $0x2f8] sm:$0xff]
      %v5495 = vld [vmem:[%s5 + $0x300] sm:$0xff]
      %v5496 = vld [vmem:[%s5 + $0x308] sm:$0xff]
      %v5497 = vld [vmem:[%s5 + $0x310] sm:$0xff]
      %v5498 = vld [vmem:[%s5 + $0x318] sm:$0xff]
      %v5499 = vld [vmem:[%s5 + $0x320] sm:$0xff]
      %v5500 = vld [vmem:[%s5 + $0x328] sm:$0xff]
      %v5501 = vld [vmem:[%s5 + $0x330] sm:$0xff]
      %v5502 = vld [vmem:[%s5 + $0x338] sm:$0xff]
      %v5503 = vld [vmem:[%s5 + $0x340] sm:$0xff]
      %v5504 = vld [vmem:[%s5 + $0x348] sm:$0xff]
      %v5505 = vld [vmem:[%s5 + $0x350] sm:$0xff]
      %v5506 = vld [vmem:[%s5 + $0x358] sm:$0xff]
      %v5507 = vld [vmem:[%s5 + $0x360] sm:$0xff]
      %v5508 = vld [vmem:[%s5 + $0x368] sm:$0xff]
      %v5509 = vld [vmem:[%s5 + $0x370] sm:$0xff]
      %v5510 = vld [vmem:[%s5 + $0x378] sm:$0xff]
      %v5511 = vld [vmem:[%s5 + $0x380] sm:$0xff]
      %v5512 = vld [vmem:[%s5 + $0x388] sm:$0xff]
      %v5513 = vld [vmem:[%s5 + $0x390] sm:$0xff]
      %v5514 = vld [vmem:[%s5 + $0x398] sm:$0xff]
      %v5515 = vld [vmem:[%s5 + $0x3a0] sm:$0xff]
      %v5516 = vld [vmem:[%s5 + $0x3a8] sm:$0xff]
      %v5517 = vld [vmem:[%s5 + $0x3b0] sm:$0xff]
      %v5518 = vld [vmem:[%s5 + $0x3b8] sm:$0xff]
      %v5519 = vld [vmem:[%s5 + $0x3c0] sm:$0xff]
      %v5520 = vld [vmem:[%s5 + $0x3c8] sm:$0xff]
      %v5521 = vld [vmem:[%s5 + $0x3d0] sm:$0xff]
      %v5522 = vld [vmem:[%s5 + $0x3d8] sm:$0xff]
      %v5524 = vsel %vm5299, %v5366, 0
      %v5527 = vsel %vm5299, %v5370, 0
      %v5530 = vsel %vm5299, %v5374, 0
      %v5533 = vsel %vm5299, %v5378, 0
      %v5536 = vsel %vm5299, %v5382, 0
      %v5539 = vsel %vm5299, %v5386, 0
      %v5542 = vsel %vm5299, %v5390, 0
      %v5545 = vsel %vm5299, %v5394, 0
      %v5548 = vsel %vm5299, %v5398, 0
      %5550 = vmatprep.subr.mxu0 %v5400
      %5551 = vmatpush1.msra.mxu0 %v5399
      %5552 = vmatprep.subr.mxu0 %v5402
      %5553 = vmatpush1.msra.mxu0 %v5401
      %5554 = vmatprep.subr.mxu0 %v5404
      %5555 = vmatpush1.msra.mxu0 %v5403
      %5556 = vmatprep.subr.mxu0 %v5406
      %5557 = vmatpush1.msra.mxu0 %v5405
      %5558 = vmatprep.subr.mxu0 %v5408
      %5559 = vmatpush1.msra.mxu0 %v5407
      %5560 = vmatprep.subr.mxu0 %v5410
      %5561 = vmatpush1.msra.mxu0 %v5409
      %5562 = vmatprep.subr.mxu0 %v5412
      %5563 = vmatpush1.msra.mxu0 %v5411
      %5564 = vmatprep.subr.mxu0 %v5414
      %5565 = vmatpush1.msra.mxu0 %v5413
      %5566 = vmatprep.subr.mxu0 %v5416
      %5567 = vmatpush1.msra.mxu0 %v5415
      %5568 = vmatprep.subr.mxu0 %v5418
      %5569 = vmatpush1.msra.mxu0 %v5417
      %5570 = vmatprep.subr.mxu0 %v5420
      %5571 = vmatpush1.msra.mxu0 %v5419
      %5572 = vmatprep.subr.mxu0 %v5422
      %5573 = vmatpush1.msra.mxu0 %v5421
      %5574 = vmatprep.subr.mxu0 %v5424
      %5575 = vmatpush1.msra.mxu0 %v5423
      %5576 = vmatprep.subr.mxu0 %v5426
      %5577 = vmatpush1.msra.mxu0 %v5425
      %5578 = vmatprep.subr.mxu0 %v5428
      %5579 = vmatpush1.msra.mxu0 %v5427
      %5580 = vmatprep.subr.mxu0 %v5430
      %5581 = vmatpush1.msra.mxu0 %v5429
      %5582 = vmatprep.subr.mxu0 %v5432
      %5583 = vmatpush1.msra.mxu0 %v5431
      %5584 = vmatprep.subr.mxu0 %v5434
      %5585 = vmatpush1.msra.mxu0 %v5433
      %5586 = vmatprep.subr.mxu0 %v5436
      %5587 = vmatpush1.msra.mxu0 %v5435
      %5588 = vmatprep.subr.mxu0 %v5438
      %5589 = vmatpush1.msra.mxu0 %v5437
      %5590 = vmatprep.subr.mxu0 %v5440
      %5591 = vmatpush1.msra.mxu0 %v5439
      %5592 = vmatprep.subr.mxu0 %v5442
      %5593 = vmatpush1.msra.mxu0 %v5441
      %5594 = vmatprep.subr.mxu0 %v5444
      %5595 = vmatpush1.msra.mxu0 %v5443
      %5596 = vmatprep.subr.mxu0 %v5446
      %5597 = vmatpush1.msra.mxu0 %v5445
      %5598 = vmatprep.subr.mxu0 %v5448
      %5599 = vmatpush1.msra.mxu0 %v5447
      %5600 = vmatprep.subr.mxu0 %v5450
      %5601 = vmatpush1.msra.mxu0 %v5449
      %5602 = vmatprep.subr.mxu0 %v5452
      %5603 = vmatpush1.msra.mxu0 %v5451
      %5604 = vmatprep.subr.mxu0 %v5454
      %5605 = vmatpush1.msra.mxu0 %v5453
      %5606 = vmatprep.subr.mxu0 %v5456
      %5607 = vmatpush1.msra.mxu0 %v5455
      %5608 = vmatprep.subr.mxu0 %v5458
      %5609 = vmatpush1.msra.mxu0 %v5457
      %5610 = vmatprep.subr.mxu0 %v5460
      %5611 = vmatpush1.msra.mxu0 %v5459
      %5612 = vmatprep.subr.mxu0 %v5462
      %5613 = vmatpush1.msra.mxu0 %v5461
      %5614 = vmatprep.mubr.f32.mxu0 %v5364
      %5615 = vmatmul.mubr.f32.gmra.mrb[0].mxu0 %v5363
      %v5616 = vpop.f32.mrb[0].mxu0
      %v5617 = vadd.f32 0.0, %v5616
      %v5618 = vpop.f32.mrb[0].mxu0
      %v5619 = vadd.f32 0.0, %v5618
      %5620 = vmatprep.mubr.f32.mxu0 %v5368
      %5621 = vmatmul.mubr.f32.gmra.mrb[0].mxu0 %v5367
      %v5622 = vpop.f32.mrb[0].mxu0
      %v5623 = vadd.f32 0.0, %v5622
      %v5624 = vpop.f32.mrb[0].mxu0
      %v5625 = vadd.f32 0.0, %v5624
      %5626 = vmatprep.mubr.f32.mxu0 %v5372
      %5627 = vmatmul.mubr.f32.gmra.mrb[0].mxu0 %v5371
      %v5628 = vpop.f32.mrb[0].mxu0
      %v5629 = vadd.f32 0.0, %v5628
      %v5630 = vpop.f32.mrb[0].mxu0
      %v5631 = vadd.f32 0.0, %v5630
      %5632 = vmatprep.mubr.f32.mxu0 %v5376
      %5633 = vmatmul.mubr.f32.gmra.mrb[0].mxu0 %v5375
      %v5634 = vpop.f32.mrb[0].mxu0
      %v5635 = vadd.f32 0.0, %v5634
      %v5636 = vpop.f32.mrb[0].mxu0
      %v5637 = vadd.f32 0.0, %v5636
      %5638 = vmatprep.mubr.f32.mxu0 %v5380
      %5639 = vmatmul.mubr.f32.gmra.mrb[0].mxu0 %v5379
      %v5640 = vpop.f32.mrb[0].mxu0
      %v5641 = vadd.f32 0.0, %v5640
      %v5642 = vpop.f32.mrb[0].mxu0
      %v5643 = vadd.f32 0.0, %v5642
      %5644 = vmatprep.mubr.f32.mxu0 %v5384
      %5645 = vmatmul.mubr.f32.gmra.mrb[0].mxu0 %v5383
      %v5646 = vpop.f32.mrb[0].mxu0
      %v5647 = vadd.f32 0.0, %v5646
      %v5648 = vpop.f32.mrb[0].mxu0
      %v5649 = vadd.f32 0.0, %v5648
      %5650 = vmatprep.mubr.f32.mxu0 %v5388
      %5651 = vmatmul.mubr.f32.gmra.mrb[0].mxu0 %v5387
      %v5652 = vpop.f32.mrb[0].mxu0
      %v5653 = vadd.f32 0.0, %v5652
      %v5654 = vpop.f32.mrb[0].mxu0
      %v5655 = vadd.f32 0.0, %v5654
      %5656 = vmatprep.mubr.f32.mxu0 %v5392
      %5657 = vmatmul.mubr.f32.gmra.mrb[0].mxu0 %v5391
      %v5658 = vpop.f32.mrb[0].mxu0
      %v5659 = vadd.f32 0.0, %v5658
      %v5660 = vpop.f32.mrb[0].mxu0
      %v5661 = vadd.f32 0.0, %v5660
      %5662 = vmatprep.mubr.f32.mxu0 %v5396
      %5663 = vmatmul.mubr.f32.gmra.mrb[0].mxu0 %v5395
      %v5664 = vpop.f32.mrb[0].mxu0
      %v5665 = vadd.f32 0.0, %v5664
      %v5666 = vpop.f32.mrb[0].mxu0
      %v5667 = vadd.f32 0.0, %v5666
      %5668 = vdwg.mxu0
      %5669 = vmatprep.subr.mxu0 %v5464
      %5670 = vmatpush1.msra.mxu0 %v5463
      %5671 = vmatprep.subr.mxu0 %v5466
      %5672 = vmatpush1.msra.mxu0 %v5465
      %5673 = vmatprep.subr.mxu0 %v5468
      %5674 = vmatpush1.msra.mxu0 %v5467
      %5675 = vmatprep.subr.mxu0 %v5470
      %5676 = vmatpush1.msra.mxu0 %v5469
      %5677 = vmatprep.subr.mxu0 %v5472
      %5678 = vmatpush1.msra.mxu0 %v5471
      %5679 = vmatprep.subr.mxu0 %v5474
      %5680 = vmatpush1.msra.mxu0 %v5473
      %5681 = vmatprep.subr.mxu0 %v5476
      %5682 = vmatpush1.msra.mxu0 %v5475
      %5683 = vmatprep.subr.mxu0 %v5478
      %5684 = vmatpush1.msra.mxu0 %v5477
      %5685 = vmatprep.subr.mxu0 %v5480
      %5686 = vmatpush1.msra.mxu0 %v5479
      %5687 = vmatprep.subr.mxu0 %v5482
      %5688 = vmatpush1.msra.mxu0 %v5481
      %5689 = vmatprep.subr.mxu0 %v5484
      %5690 = vmatpush1.msra.mxu0 %v5483
      %5691 = vmatprep.subr.mxu0 %v5486
      %5692 = vmatpush1.msra.mxu0 %v5485
      %5693 = vmatprep.subr.mxu0 %v5488
      %5694 = vmatpush1.msra.mxu0 %v5487
      %5695 = vmatprep.subr.mxu0 %v5490
      %5696 = vmatpush1.msra.mxu0 %v5489
      %5697 = vmatprep.subr.mxu0 %v5492
      %5698 = vmatpush1.msra.mxu0 %v5491
      %5699 = vmatprep.subr.mxu0 %v5494
      %5700 = vmatpush1.msra.mxu0 %v5493
      %5701 = vmatprep.subr.mxu0 %v5496
      %5702 = vmatpush1.msra.mxu0 %v5495
      %5703 = vmatprep.subr.mxu0 %v5498
      %5704 = vmatpush1.msra.mxu0 %v5497
      %5705 = vmatprep.subr.mxu0 %v5500
      %5706 = vmatpush1.msra.mxu0 %v5499
      %5707 = vmatprep.subr.mxu0 %v5502
      %5708 = vmatpush1.msra.mxu0 %v5501
      %5709 = vmatprep.subr.mxu0 %v5504
      %5710 = vmatpush1.msra.mxu0 %v5503
      %5711 = vmatprep.subr.mxu0 %v5506
      %5712 = vmatpush1.msra.mxu0 %v5505
      %5713 = vmatprep.subr.mxu0 %v5508
      %5714 = vmatpush1.msra.mxu0 %v5507
      %5715 = vmatprep.subr.mxu0 %v5510
      %5716 = vmatpush1.msra.mxu0 %v5509
      %5717 = vmatprep.subr.mxu0 %v5512
      %5718 = vmatpush1.msra.mxu0 %v5511
      %5719 = vmatprep.subr.mxu0 %v5514
      %5720 = vmatpush1.msra.mxu0 %v5513
      %5721 = vmatprep.subr.mxu0 %v5516
      %5722 = vmatpush1.msra.mxu0 %v5515
      %5723 = vmatprep.subr.mxu0 %v5518
      %5724 = vmatpush1.msra.mxu0 %v5517
      %5725 = vmatprep.subr.mxu0 %v5520
      %5726 = vmatpush1.msra.mxu0 %v5519
      %5727 = vmatprep.subr.mxu0 %v5522
      %5728 = vmatpush1.msra.mxu0 %v5521
      %5729 = vmatprep.subr.mxu0 0.0
      %5730 = vmatpush1.msra.mxu0 0.0
      %5731 = vmatprep.subr.mxu0 0.0
      %5732 = vmatpush1.msra.mxu0 0.0
      %5733 = vmatprep.mubr.f32.mxu0 %v5524
      %5734 = vmatmul.mubr.f32.gmra.mrb[0].mxu0 %v5365
      %v5735 = vpop.f32.mrb[0].mxu0
      %v5736 = vadd.f32 %v5617, %v5735
      %v5737 = vpop.f32.mrb[0].mxu0
      %v5738 = vadd.f32 %v5619, %v5737
      %5739 = vmatprep.mubr.f32.mxu0 %v5527
      %5740 = vmatmul.mubr.f32.gmra.mrb[0].mxu0 %v5369
      %v5741 = vpop.f32.mrb[0].mxu0
      %v5742 = vadd.f32 %v5623, %v5741
      %v5743 = vpop.f32.mrb[0].mxu0
      %v5744 = vadd.f32 %v5625, %v5743
      %5745 = vmatprep.mubr.f32.mxu0 %v5530
      %5746 = vmatmul.mubr.f32.gmra.mrb[0].mxu0 %v5373
      %v5747 = vpop.f32.mrb[0].mxu0
      %v5748 = vadd.f32 %v5629, %v5747
      %v5749 = vpop.f32.mrb[0].mxu0
      %v5750 = vadd.f32 %v5631, %v5749
      %5751 = vmatprep.mubr.f32.mxu0 %v5533
      %5752 = vmatmul.mubr.f32.gmra.mrb[0].mxu0 %v5377
      %v5753 = vpop.f32.mrb[0].mxu0
      %v5754 = vadd.f32 %v5635, %v5753
      %v5755 = vpop.f32.mrb[0].mxu0
      %v5756 = vadd.f32 %v5637, %v5755
      %5757 = vmatprep.mubr.f32.mxu0 %v5536
      %5758 = vmatmul.mubr.f32.gmra.mrb[0].mxu0 %v5381
      %v5759 = vpop.f32.mrb[0].mxu0
      %v5760 = vadd.f32 %v5641, %v5759
      %v5761 = vpop.f32.mrb[0].mxu0
      %v5762 = vadd.f32 %v5643, %v5761
      %5763 = vmatprep.mubr.f32.mxu0 %v5539
      %5764 = vmatmul.mubr.f32.gmra.mrb[0].mxu0 %v5385
      %v5765 = vpop.f32.mrb[0].mxu0
      %v5766 = vadd.f32 %v5647, %v5765
      %v5767 = vpop.f32.mrb[0].mxu0
      %v5768 = vadd.f32 %v5649, %v5767
      %5769 = vmatprep.mubr.f32.mxu0 %v5542
      %5770 = vmatmul.mubr.f32.gmra.mrb[0].mxu0 %v5389
      %v5771 = vpop.f32.mrb[0].mxu0
      %v5772 = vadd.f32 %v5653, %v5771
      %v5773 = vpop.f32.mrb[0].mxu0
      %v5774 = vadd.f32 %v5655, %v5773
      %5775 = vmatprep.mubr.f32.mxu0 %v5545
      %5776 = vmatmul.mubr.f32.gmra.mrb[0].mxu0 %v5393
      %v5777 = vpop.f32.mrb[0].mxu0
      %v5778 = vadd.f32 %v5659, %v5777
      %v5779 = vpop.f32.mrb[0].mxu0
      %v5780 = vadd.f32 %v5661, %v5779
      %5781 = vmatprep.mubr.f32.mxu0 %v5548
      %5782 = vmatmul.mubr.f32.gmra.mrb[0].mxu0 %v5397
      %v5783 = vpop.f32.mrb[0].mxu0
      %v5784 = vadd.f32 %v5665, %v5783
      %v5785 = vpop.f32.mrb[0].mxu0
      %v5786 = vadd.f32 %v5667, %v5785
      %5787 = vdwg.mxu0
      %v5788 = vld [vmem:[%s8] sm:$0xff]
      %v5789 = vld [vmem:[%s8 + $0x8] sm:$0xff]
      %v5790 = vld [vmem:[%s8 + $0x10] sm:$0xff]
      %v5791 = vld [vmem:[%s8 + $0x18] sm:$0xff]
      %v5792 = vld [vmem:[%s8 + $0x20] sm:$0xf]
      %v5793 = vld [vmem:[%s11] sm:$0xff]
      %v5794 = vld [vmem:[%s11 + $0x8] sm:$0xff]
      %v5795 = vld [vmem:[%s11 + $0x10] sm:$0xff]
      %v5796 = vld [vmem:[%s11 + $0x18] sm:$0xff]
      %v5797 = vld [vmem:[%s11 + $0x20] sm:$0xff]
      %v5798 = vld [vmem:[%s11 + $0x28] sm:$0xff]
      %v5799 = vld [vmem:[%s11 + $0x30] sm:$0xff]
      %v5800 = vld [vmem:[%s11 + $0x38] sm:$0xff]
      %v5801 = vld [vmem:[%s11 + $0x40] sm:$0xf]
      %v5802 = vld [vmem:[%s11 + $0x48] sm:$0xf]
      %vm5803 = vcmask 531456
      %v5805 = vsel %vm5803, %v5788, 0
      %v5808 = vsel %vm5803, %v5789, 0
      %v5811 = vsel %vm5803, %v5790, 0
      %v5814 = vsel %vm5803, %v5791, 0
      %v5817 = vsel %vm5803, %v5792, 0
      %vm5819 = vcmask 1040384
      %v5821 = vsel %vm5819, %v5784, 0
      %v5824 = vsel %vm5819, %v5786, 0
      %5826 = vmatprep.subr.mxu0 %v5738
      %5827 = vmatpush1.msra.mxu0 %v5736
      %5828 = vmatprep.subr.mxu0 %v5744
      %5829 = vmatpush1.msra.mxu0 %v5742
      %5830 = vmatprep.subr.mxu0 %v5750
      %5831 = vmatpush1.msra.mxu0 %v5748
      %5832 = vmatprep.subr.mxu0 %v5756
      %5833 = vmatpush1.msra.mxu0 %v5754
      %5834 = vmatprep.subr.mxu0 %v5762
      %5835 = vmatpush1.msra.mxu0 %v5760
      %5836 = vmatprep.subr.mxu0 %v5768
      %5837 = vmatpush1.msra.mxu0 %v5766
      %5838 = vmatprep.subr.mxu0 %v5774
      %5839 = vmatpush1.msra.mxu0 %v5772
      %5840 = vmatprep.subr.mxu0 %v5780
      %5841 = vmatpush1.msra.mxu0 %v5778
      %5842 = vmatprep.subr.mxu0 %v5824
      %5843 = vmatpush1.msra.mxu0 %v5821
      %5844 = vmatprep.subr.mxu0 0.0
      %5845 = vmatpush1.msra.mxu0 0.0
      %5846 = vmatprep.subr.mxu0 0.0
      %5847 = vmatpush1.msra.mxu0 0.0
      %5848 = vmatprep.subr.mxu0 0.0
      %5849 = vmatpush1.msra.mxu0 0.0
      %5850 = vmatprep.subr.mxu0 0.0
      %5851 = vmatpush1.msra.mxu0 0.0
      %5852 = vmatprep.subr.mxu0 0.0
      %5853 = vmatpush1.msra.mxu0 0.0
      %5854 = vmatprep.subr.mxu0 0.0
      %5855 = vmatpush1.msra.mxu0 0.0
      %5856 = vmatprep.subr.mxu0 0.0
      %5857 = vmatpush1.msra.mxu0 0.0
      %5858 = vmatprep.subr.mxu0 0.0
      %5859 = vmatpush1.msra.mxu0 0.0
      %5860 = vmatprep.subr.mxu0 0.0
      %5861 = vmatpush1.msra.mxu0 0.0
      %5862 = vmatprep.subr.mxu0 0.0
      %5863 = vmatpush1.msra.mxu0 0.0
      %5864 = vmatprep.subr.mxu0 0.0
      %5865 = vmatpush1.msra.mxu0 0.0
      %5866 = vmatprep.subr.mxu0 0.0
      %5867 = vmatpush1.msra.mxu0 0.0
      %5868 = vmatprep.subr.mxu0 0.0
      %5869 = vmatpush1.msra.mxu0 0.0
      %5870 = vmatprep.subr.mxu0 0.0
      %5871 = vmatpush1.msra.mxu0 0.0
      %5872 = vmatprep.subr.mxu0 0.0
      %5873 = vmatpush1.msra.mxu0 0.0
      %5874 = vmatprep.subr.mxu0 0.0
      %5875 = vmatpush1.msra.mxu0 0.0
      %5876 = vmatprep.subr.mxu0 0.0
      %5877 = vmatpush1.msra.mxu0 0.0
      %5878 = vmatprep.subr.mxu0 0.0
      %5879 = vmatpush1.msra.mxu0 0.0
      %5880 = vmatprep.subr.mxu0 0.0
      %5881 = vmatpush1.msra.mxu0 0.0
      %5882 = vmatprep.subr.mxu0 0.0
      %5883 = vmatpush1.msra.mxu0 0.0
      %5884 = vmatprep.subr.mxu0 0.0
      %5885 = vmatpush1.msra.mxu0 0.0
      %5886 = vmatprep.subr.mxu0 0.0
      %5887 = vmatpush1.msra.mxu0 0.0
      %5888 = vmatprep.subr.mxu0 0.0
      %5889 = vmatpush1.msra.mxu0 0.0
      %5890 = vmatprep.mubr.f32.mxu0 0.0
      %5891 = vmatmul.mubr.f32.gmra.mrb[0].mxu0 %v5805
      %v5892 = vpop.f32.mrb[0].mxu0
      %v5893 = vadd.f32 %v5793, %v5892
      %v5894 = vpop.f32.mrb[0].mxu0
      %v5895 = vadd.f32 %v5794, %v5894
      %5896 = vmatprep.mubr.f32.mxu0 0.0
      %5897 = vmatmul.mubr.f32.gmra.mrb[0].mxu0 %v5808
      %v5898 = vpop.f32.mrb[0].mxu0
      %v5899 = vadd.f32 %v5795, %v5898
      %v5900 = vpop.f32.mrb[0].mxu0
      %v5901 = vadd.f32 %v5796, %v5900
      %5902 = vmatprep.mubr.f32.mxu0 0.0
      %5903 = vmatmul.mubr.f32.gmra.mrb[0].mxu0 %v5811
      %v5904 = vpop.f32.mrb[0].mxu0
      %v5905 = vadd.f32 %v5797, %v5904
      %v5906 = vpop.f32.mrb[0].mxu0
      %v5907 = vadd.f32 %v5798, %v5906
      %5908 = vmatprep.mubr.f32.mxu0 0.0
      %5909 = vmatmul.mubr.f32.gmra.mrb[0].mxu0 %v5814
      %v5910 = vpop.f32.mrb[0].mxu0
      %v5911 = vadd.f32 %v5799, %v5910
      %v5912 = vpop.f32.mrb[0].mxu0
      %v5913 = vadd.f32 %v5800, %v5912
      %5914 = vmatprep.mubr.f32.mxu0 0.0
      %5915 = vmatmul.mubr.f32.gmra.mrb[0].mxu0 %v5817
      %v5916 = vpop.f32.mrb[0].mxu0
      %v5917 = vadd.f32 %v5801, %v5916
      %v5918 = vpop.f32.mrb[0].mxu0
      %v5919 = vadd.f32 %v5802, %v5918
      %5920 = vdwg.mxu0
      %5921 = vst [vmem:[#allocation3] sm:$0xff] %v5893
      %5922 = vst [vmem:[#allocation3 + $0x8] sm:$0xff] %v5895
      %5923 = vst [vmem:[#allocation3 + $0x10] sm:$0xff] %v5899
      %5924 = vst [vmem:[#allocation3 + $0x18] sm:$0xff] %v5901
      %5925 = vst [vmem:[#allocation3 + $0x20] sm:$0xff] %v5905
      %5926 = vst [vmem:[#allocation3 + $0x28] sm:$0xff] %v5907
      %5927 = vst [vmem:[#allocation3 + $0x30] sm:$0xff] %v5911
      %5928 = vst [vmem:[#allocation3 + $0x38] sm:$0xff] %v5913
      %5929 = vst [vmem:[#allocation3 + $0x40] sm:$0xf] %v5917
      %5930 = vst [vmem:[#allocation3 + $0x48] sm:$0xf] %v5919
      %v5931 = vld [vmem:[#allocation3] sm:$0xff]
      %v5932 = vld [vmem:[#allocation3 + $0x8] sm:$0xff]
      %v5933 = vld [vmem:[#allocation3 + $0x10] sm:$0xff]
      %v5934 = vld [vmem:[#allocation3 + $0x18] sm:$0xff]
      %v5935 = vld [vmem:[#allocation3 + $0x20] sm:$0xff]
      %v5936 = vld [vmem:[#allocation3 + $0x28] sm:$0xff]
      %v5937 = vld [vmem:[#allocation3 + $0x30] sm:$0xff]
      %v5938 = vld [vmem:[#allocation3 + $0x38] sm:$0xff]
      %v5939 = vld [vmem:[#allocation3 + $0x40] sm:$0x3]
      %v5940 = vld [vmem:[#allocation3 + $0x48] sm:$0x3]
      %v5941 = vld [vmem:[%s3] sm:$0xff]
      %v5942 = vld [vmem:[%s3 + $0x8] sm:$0xff]
      %v5943 = vld [vmem:[%s3 + $0x10] sm:$0xff]
      %v5944 = vld [vmem:[%s3 + $0x18] sm:$0xff]
      %v5945 = vld [vmem:[%s3 + $0x20] sm:$0xff]
      %v5946 = vld [vmem:[%s3 + $0x28] sm:$0xff]
      %v5947 = vld [vmem:[%s3 + $0x30] sm:$0xff]
      %v5948 = vld [vmem:[%s3 + $0x38] sm:$0xff]
      %v5949 = vld [vmem:[%s3 + $0x40] sm:$0xff]
      %v5950 = vld [vmem:[%s3 + $0x48] sm:$0xff]
      %v5951 = vld [vmem:[%s3 + $0x50] sm:$0xff]
      %v5952 = vld [vmem:[%s3 + $0x58] sm:$0xff]
      %v5953 = vld [vmem:[%s3 + $0x60] sm:$0xff]
      %v5954 = vld [vmem:[%s3 + $0x68] sm:$0xff]
      %v5955 = vld [vmem:[%s3 + $0x70] sm:$0xff]
      %v5956 = vld [vmem:[%s3 + $0x78] sm:$0xff]
      %v5957 = vld [vmem:[%s3 + $0x80] sm:$0xff]
      %v5958 = vld [vmem:[%s3 + $0x88] sm:$0xff]
      %v5959 = vld [vmem:[%s3 + $0x90] sm:$0xff]
      %v5960 = vld [vmem:[%s3 + $0x98] sm:$0xff]
      %v5961 = vld [vmem:[%s3 + $0xa0] sm:$0xff]
      %v5962 = vld [vmem:[%s3 + $0xa8] sm:$0xff]
      %v5963 = vld [vmem:[%s3 + $0xb0] sm:$0xff]
      %v5964 = vld [vmem:[%s3 + $0xb8] sm:$0xff]
      %v5965 = vld [vmem:[%s3 + $0xc0] sm:$0xff]
      %v5966 = vld [vmem:[%s3 + $0xc8] sm:$0xff]
      %v5967 = vld [vmem:[%s3 + $0xd0] sm:$0xff]
      %v5968 = vld [vmem:[%s3 + $0xd8] sm:$0xff]
      %v5969 = vld [vmem:[%s3 + $0xe0] sm:$0xff]
      %v5970 = vld [vmem:[%s3 + $0xe8] sm:$0xff]
      %v5971 = vld [vmem:[%s3 + $0xf0] sm:$0xff]
      %v5972 = vld [vmem:[%s3 + $0xf8] sm:$0xff]
      %v5973 = vld [vmem:[%s3 + $0x100] sm:$0xff]
      %v5974 = vld [vmem:[%s3 + $0x108] sm:$0xff]
      %v5975 = vld [vmem:[%s3 + $0x110] sm:$0xff]
      %v5976 = vld [vmem:[%s3 + $0x118] sm:$0xff]
      %v5977 = vld [vmem:[%s3 + $0x120] sm:$0xff]
      %v5978 = vld [vmem:[%s3 + $0x128] sm:$0xff]
      %v5979 = vld [vmem:[%s3 + $0x130] sm:$0xff]
      %v5980 = vld [vmem:[%s3 + $0x138] sm:$0xff]
      %v5981 = vld [vmem:[%s3 + $0x140] sm:$0xff]
      %v5982 = vld [vmem:[%s3 + $0x148] sm:$0xff]
      %v5983 = vld [vmem:[%s3 + $0x150] sm:$0xff]
      %v5984 = vld [vmem:[%s3 + $0x158] sm:$0xff]
      %v5985 = vld [vmem:[%s3 + $0x160] sm:$0xff]
      %v5986 = vld [vmem:[%s3 + $0x168] sm:$0xff]
      %v5987 = vld [vmem:[%s3 + $0x170] sm:$0xff]
      %v5988 = vld [vmem:[%s3 + $0x178] sm:$0xff]
      %v5989 = vld [vmem:[%s3 + $0x180] sm:$0xff]
      %v5990 = vld [vmem:[%s3 + $0x188] sm:$0xff]
      %v5991 = vld [vmem:[%s3 + $0x190] sm:$0xff]
      %v5992 = vld [vmem:[%s3 + $0x198] sm:$0xff]
      %v5993 = vld [vmem:[%s3 + $0x1a0] sm:$0xff]
      %v5994 = vld [vmem:[%s3 + $0x1a8] sm:$0xff]
      %v5995 = vld [vmem:[%s3 + $0x1b0] sm:$0xff]
      %v5996 = vld [vmem:[%s3 + $0x1b8] sm:$0xff]
      %v5997 = vld [vmem:[%s3 + $0x1c0] sm:$0xff]
      %v5998 = vld [vmem:[%s3 + $0x1c8] sm:$0xff]
      %v5999 = vld [vmem:[%s3 + $0x1d0] sm:$0xff]
      %v6000 = vld [vmem:[%s3 + $0x1d8] sm:$0xff]
      %v6001 = vld [vmem:[%s3 + $0x1e0] sm:$0xff]
      %v6002 = vld [vmem:[%s3 + $0x1e8] sm:$0xff]
      %v6003 = vld [vmem:[%s3 + $0x1f0] sm:$0xff]
      %v6004 = vld [vmem:[%s3 + $0x1f8] sm:$0xff]
      %v6005 = vld [vmem:[%s3 + $0x200] sm:$0xff]
      %v6006 = vld [vmem:[%s3 + $0x208] sm:$0xff]
      %v6007 = vld [vmem:[%s3 + $0x210] sm:$0xff]
      %v6008 = vld [vmem:[%s3 + $0x218] sm:$0xff]
      %v6009 = vld [vmem:[%s3 + $0x220] sm:$0xff]
      %v6010 = vld [vmem:[%s3 + $0x228] sm:$0xff]
      %v6011 = vld [vmem:[%s3 + $0x230] sm:$0xff]
      %v6012 = vld [vmem:[%s3 + $0x238] sm:$0xff]
      %v6013 = vld [vmem:[%s3 + $0x240] sm:$0xff]
      %v6014 = vld [vmem:[%s3 + $0x248] sm:$0xff]
      %v6015 = vld [vmem:[%s3 + $0x250] sm:$0xff]
      %v6016 = vld [vmem:[%s3 + $0x258] sm:$0xff]
      %v6017 = vld [vmem:[%s3 + $0x260] sm:$0xff]
      %v6018 = vld [vmem:[%s3 + $0x268] sm:$0xff]
      %v6019 = vld [vmem:[%s3 + $0x270] sm:$0xff]
      %v6020 = vld [vmem:[%s3 + $0x278] sm:$0xff]
      %v6021 = vld [vmem:[%s3 + $0x280] sm:$0xff]
      %v6022 = vld [vmem:[%s3 + $0x288] sm:$0xff]
      %v6023 = vld [vmem:[%s3 + $0x290] sm:$0xff]
      %v6024 = vld [vmem:[%s3 + $0x298] sm:$0xff]
      %v6025 = vld [vmem:[%s3 + $0x2a0] sm:$0xff]
      %v6026 = vld [vmem:[%s3 + $0x2a8] sm:$0xff]
      %v6027 = vld [vmem:[%s3 + $0x2b0] sm:$0xff]
      %v6028 = vld [vmem:[%s3 + $0x2b8] sm:$0xff]
      %v6029 = vld [vmem:[%s3 + $0x2c0] sm:$0xff]
      %v6030 = vld [vmem:[%s3 + $0x2c8] sm:$0xff]
      %v6031 = vld [vmem:[%s3 + $0x2d0] sm:$0xff]
      %v6032 = vld [vmem:[%s3 + $0x2d8] sm:$0xff]
      %v6033 = vld [vmem:[%s3 + $0x2e0] sm:$0xff]
      %v6034 = vld [vmem:[%s3 + $0x2e8] sm:$0xff]
      %v6035 = vld [vmem:[%s3 + $0x2f0] sm:$0xff]
      %v6036 = vld [vmem:[%s3 + $0x2f8] sm:$0xff]
      %v6037 = vld [vmem:[%s3 + $0x300] sm:$0xff]
      %v6038 = vld [vmem:[%s3 + $0x308] sm:$0xff]
      %v6039 = vld [vmem:[%s3 + $0x310] sm:$0xff]
      %v6040 = vld [vmem:[%s3 + $0x318] sm:$0xff]
      %v6041 = vld [vmem:[%s3 + $0x320] sm:$0xff]
      %v6042 = vld [vmem:[%s3 + $0x328] sm:$0xff]
      %v6043 = vld [vmem:[%s3 + $0x330] sm:$0xff]
      %v6044 = vld [vmem:[%s3 + $0x338] sm:$0xff]
      %v6045 = vld [vmem:[%s3 + $0x340] sm:$0xff]
      %v6046 = vld [vmem:[%s3 + $0x348] sm:$0xff]
      %v6047 = vld [vmem:[%s3 + $0x350] sm:$0xff]
      %v6048 = vld [vmem:[%s3 + $0x358] sm:$0xff]
      %v6049 = vld [vmem:[%s3 + $0x360] sm:$0xff]
      %v6050 = vld [vmem:[%s3 + $0x368] sm:$0xff]
      %v6051 = vld [vmem:[%s3 + $0x370] sm:$0xff]
      %v6052 = vld [vmem:[%s3 + $0x378] sm:$0xff]
      %v6053 = vld [vmem:[%s3 + $0x380] sm:$0xff]
      %v6054 = vld [vmem:[%s3 + $0x388] sm:$0xff]
      %v6055 = vld [vmem:[%s3 + $0x390] sm:$0xff]
      %v6056 = vld [vmem:[%s3 + $0x398] sm:$0xff]
      %v6057 = vld [vmem:[%s3 + $0x3a0] sm:$0xff]
      %v6058 = vld [vmem:[%s3 + $0x3a8] sm:$0xff]
      %v6059 = vld [vmem:[%s3 + $0x3b0] sm:$0xff]
      %v6060 = vld [vmem:[%s3 + $0x3b8] sm:$0xff]
      %v6061 = vld [vmem:[%s3 + $0x3c0] sm:$0xff]
      %v6062 = vld [vmem:[%s3 + $0x3c8] sm:$0xff]
      %v6063 = vld [vmem:[%s3 + $0x3d0] sm:$0xff]
      %v6064 = vld [vmem:[%s3 + $0x3d8] sm:$0xff]
      %v6065 = vld [vmem:[%s3 + $0x3e0] sm:$0xff]
      %v6066 = vld [vmem:[%s3 + $0x3e8] sm:$0xff]
      %v6067 = vld [vmem:[%s3 + $0x3f0] sm:$0xff]
      %v6068 = vld [vmem:[%s3 + $0x3f8] sm:$0xff]
      %v6069 = vld [vmem:[#allocation3] sm:$0xfe]
      %v6070 = vld [vmem:[#allocation3 + $0x8] sm:$0xfe]
      %v6071 = vld [vmem:[#allocation3 + $0x40] sm:$0x7]
      %v6072 = vld [vmem:[#allocation3 + $0x48] sm:$0x7]
      %s6073 = scalar_lea.vmem %s3, 1024
      %v6074 = vld [vmem:[%s6073] sm:$0xff]
      %v6075 = vld [vmem:[%s6073 + $0x8] sm:$0xff]
      %v6076 = vld [vmem:[%s6073 + $0x10] sm:$0xff]
      %v6077 = vld [vmem:[%s6073 + $0x18] sm:$0xff]
      %v6078 = vld [vmem:[%s6073 + $0x20] sm:$0xff]
      %v6079 = vld [vmem:[%s6073 + $0x28] sm:$0xff]
      %v6080 = vld [vmem:[%s6073 + $0x30] sm:$0xff]
      %v6081 = vld [vmem:[%s6073 + $0x38] sm:$0xff]
      %v6082 = vld [vmem:[%s6073 + $0x40] sm:$0xff]
      %v6083 = vld [vmem:[%s6073 + $0x48] sm:$0xff]
      %v6084 = vld [vmem:[%s6073 + $0x50] sm:$0xff]
      %v6085 = vld [vmem:[%s6073 + $0x58] sm:$0xff]
      %v6086 = vld [vmem:[%s6073 + $0x60] sm:$0xff]
      %v6087 = vld [vmem:[%s6073 + $0x68] sm:$0xff]
      %v6088 = vld [vmem:[%s6073 + $0x70] sm:$0xff]
      %v6089 = vld [vmem:[%s6073 + $0x78] sm:$0xff]
      %v6090 = vld [vmem:[%s6073 + $0x80] sm:$0xff]
      %v6091 = vld [vmem:[%s6073 + $0x88] sm:$0xff]
      %v6092 = vld [vmem:[%s6073 + $0x90] sm:$0xff]
      %v6093 = vld [vmem:[%s6073 + $0x98] sm:$0xff]
      %v6094 = vld [vmem:[%s6073 + $0xa0] sm:$0xff]
      %v6095 = vld [vmem:[%s6073 + $0xa8] sm:$0xff]
      %v6096 = vld [vmem:[%s6073 + $0xb0] sm:$0xff]
      %v6097 = vld [vmem:[%s6073 + $0xb8] sm:$0xff]
      %v6098 = vld [vmem:[%s6073 + $0xc0] sm:$0xff]
      %v6099 = vld [vmem:[%s6073 + $0xc8] sm:$0xff]
      %v6100 = vld [vmem:[%s6073 + $0xd0] sm:$0xff]
      %v6101 = vld [vmem:[%s6073 + $0xd8] sm:$0xff]
      %v6102 = vld [vmem:[%s6073 + $0xe0] sm:$0xff]
      %v6103 = vld [vmem:[%s6073 + $0xe8] sm:$0xff]
      %v6104 = vld [vmem:[%s6073 + $0xf0] sm:$0xff]
      %v6105 = vld [vmem:[%s6073 + $0xf8] sm:$0xff]
      %v6106 = vld [vmem:[%s6073 + $0x100] sm:$0xff]
      %v6107 = vld [vmem:[%s6073 + $0x108] sm:$0xff]
      %v6108 = vld [vmem:[%s6073 + $0x110] sm:$0xff]
      %v6109 = vld [vmem:[%s6073 + $0x118] sm:$0xff]
      %v6110 = vld [vmem:[%s6073 + $0x120] sm:$0xff]
      %v6111 = vld [vmem:[%s6073 + $0x128] sm:$0xff]
      %v6112 = vld [vmem:[%s6073 + $0x130] sm:$0xff]
      %v6113 = vld [vmem:[%s6073 + $0x138] sm:$0xff]
      %v6114 = vld [vmem:[%s6073 + $0x140] sm:$0xff]
      %v6115 = vld [vmem:[%s6073 + $0x148] sm:$0xff]
      %v6116 = vld [vmem:[%s6073 + $0x150] sm:$0xff]
      %v6117 = vld [vmem:[%s6073 + $0x158] sm:$0xff]
      %v6118 = vld [vmem:[%s6073 + $0x160] sm:$0xff]
      %v6119 = vld [vmem:[%s6073 + $0x168] sm:$0xff]
      %v6120 = vld [vmem:[%s6073 + $0x170] sm:$0xff]
      %v6121 = vld [vmem:[%s6073 + $0x178] sm:$0xff]
      %v6122 = vld [vmem:[%s6073 + $0x180] sm:$0xff]
      %v6123 = vld [vmem:[%s6073 + $0x188] sm:$0xff]
      %v6124 = vld [vmem:[%s6073 + $0x190] sm:$0xff]
      %v6125 = vld [vmem:[%s6073 + $0x198] sm:$0xff]
      %v6126 = vld [vmem:[%s6073 + $0x1a0] sm:$0xff]
      %v6127 = vld [vmem:[%s6073 + $0x1a8] sm:$0xff]
      %v6128 = vld [vmem:[%s6073 + $0x1b0] sm:$0xff]
      %v6129 = vld [vmem:[%s6073 + $0x1b8] sm:$0xff]
      %v6130 = vld [vmem:[%s6073 + $0x1c0] sm:$0xff]
      %v6131 = vld [vmem:[%s6073 + $0x1c8] sm:$0xff]
      %v6132 = vld [vmem:[%s6073 + $0x1d0] sm:$0xff]
      %v6133 = vld [vmem:[%s6073 + $0x1d8] sm:$0xff]
      %v6134 = vld [vmem:[%s6073 + $0x1e0] sm:$0xff]
      %v6135 = vld [vmem:[%s6073 + $0x1e8] sm:$0xff]
      %v6136 = vld [vmem:[%s6073 + $0x1f0] sm:$0xff]
      %v6137 = vld [vmem:[%s6073 + $0x1f8] sm:$0xff]
      %v6138 = vld [vmem:[%s6073 + $0x200] sm:$0xff]
      %v6139 = vld [vmem:[%s6073 + $0x208] sm:$0xff]
      %v6140 = vld [vmem:[%s6073 + $0x210] sm:$0xff]
      %v6141 = vld [vmem:[%s6073 + $0x218] sm:$0xff]
      %v6142 = vld [vmem:[%s6073 + $0x220] sm:$0xff]
      %v6143 = vld [vmem:[%s6073 + $0x228] sm:$0xff]
      %v6144 = vld [vmem:[%s6073 + $0x230] sm:$0xff]
      %v6145 = vld [vmem:[%s6073 + $0x238] sm:$0xff]
      %v6146 = vld [vmem:[%s6073 + $0x240] sm:$0xff]
      %v6147 = vld [vmem:[%s6073 + $0x248] sm:$0xff]
      %v6148 = vld [vmem:[%s6073 + $0x250] sm:$0xff]
      %v6149 = vld [vmem:[%s6073 + $0x258] sm:$0xff]
      %v6150 = vld [vmem:[%s6073 + $0x260] sm:$0xff]
      %v6151 = vld [vmem:[%s6073 + $0x268] sm:$0xff]
      %v6152 = vld [vmem:[%s6073 + $0x270] sm:$0xff]
      %v6153 = vld [vmem:[%s6073 + $0x278] sm:$0xff]
      %v6154 = vld [vmem:[%s6073 + $0x280] sm:$0xff]
      %v6155 = vld [vmem:[%s6073 + $0x288] sm:$0xff]
      %v6156 = vld [vmem:[%s6073 + $0x290] sm:$0xff]
      %v6157 = vld [vmem:[%s6073 + $0x298] sm:$0xff]
      %v6158 = vld [vmem:[%s6073 + $0x2a0] sm:$0xff]
      %v6159 = vld [vmem:[%s6073 + $0x2a8] sm:$0xff]
      %v6160 = vld [vmem:[%s6073 + $0x2b0] sm:$0xff]
      %v6161 = vld [vmem:[%s6073 + $0x2b8] sm:$0xff]
      %v6162 = vld [vmem:[%s6073 + $0x2c0] sm:$0xff]
      %v6163 = vld [vmem:[%s6073 + $0x2c8] sm:$0xff]
      %v6164 = vld [vmem:[%s6073 + $0x2d0] sm:$0xff]
      %v6165 = vld [vmem:[%s6073 + $0x2d8] sm:$0xff]
      %v6166 = vld [vmem:[%s6073 + $0x2e0] sm:$0xff]
      %v6167 = vld [vmem:[%s6073 + $0x2e8] sm:$0xff]
      %v6168 = vld [vmem:[%s6073 + $0x2f0] sm:$0xff]
      %v6169 = vld [vmem:[%s6073 + $0x2f8] sm:$0xff]
      %v6170 = vld [vmem:[%s6073 + $0x300] sm:$0xff]
      %v6171 = vld [vmem:[%s6073 + $0x308] sm:$0xff]
      %v6172 = vld [vmem:[%s6073 + $0x310] sm:$0xff]
      %v6173 = vld [vmem:[%s6073 + $0x318] sm:$0xff]
      %v6174 = vld [vmem:[%s6073 + $0x320] sm:$0xff]
      %v6175 = vld [vmem:[%s6073 + $0x328] sm:$0xff]
      %v6176 = vld [vmem:[%s6073 + $0x330] sm:$0xff]
      %v6177 = vld [vmem:[%s6073 + $0x338] sm:$0xff]
      %v6178 = vld [vmem:[%s6073 + $0x340] sm:$0xff]
      %v6179 = vld [vmem:[%s6073 + $0x348] sm:$0xff]
      %v6180 = vld [vmem:[%s6073 + $0x350] sm:$0xff]
      %v6181 = vld [vmem:[%s6073 + $0x358] sm:$0xff]
      %v6182 = vld [vmem:[%s6073 + $0x360] sm:$0xff]
      %v6183 = vld [vmem:[%s6073 + $0x368] sm:$0xff]
      %v6184 = vld [vmem:[%s6073 + $0x370] sm:$0xff]
      %v6185 = vld [vmem:[%s6073 + $0x378] sm:$0xff]
      %v6186 = vld [vmem:[%s6073 + $0x380] sm:$0xff]
      %v6187 = vld [vmem:[%s6073 + $0x388] sm:$0xff]
      %v6188 = vld [vmem:[%s6073 + $0x390] sm:$0xff]
      %v6189 = vld [vmem:[%s6073 + $0x398] sm:$0xff]
      %v6190 = vld [vmem:[%s6073 + $0x3a0] sm:$0xff]
      %v6191 = vld [vmem:[%s6073 + $0x3a8] sm:$0xff]
      %v6192 = vld [vmem:[%s6073 + $0x3b0] sm:$0xff]
      %v6193 = vld [vmem:[%s6073 + $0x3b8] sm:$0xff]
      %v6194 = vld [vmem:[%s6073 + $0x3c0] sm:$0xff]
      %v6195 = vld [vmem:[%s6073 + $0x3c8] sm:$0xff]
      %v6196 = vld [vmem:[%s6073 + $0x3d0] sm:$0xff]
      %v6197 = vld [vmem:[%s6073 + $0x3d8] sm:$0xff]
      %v6198 = vld [vmem:[%s6073 + $0x3e0] sm:$0xff]
      %v6199 = vld [vmem:[%s6073 + $0x3e8] sm:$0xff]
      %v6200 = vld [vmem:[%s6073 + $0x3f0] sm:$0xff]
      %v6201 = vld [vmem:[%s6073 + $0x3f8] sm:$0xff]
      %v6212 = vrot.slane %v6069, 1
      %v6213 = vrot.slane %v5933, 1
      %v6214 = vsel %vm718, %v6212, %v6213
      %v6215 = vrot.slane %v6070, 1
      %v6216 = vrot.slane %v5934, 1
      %v6217 = vsel %vm718, %v6215, %v6216
      %v6218 = vrot.slane %v5935, 1
      %v6219 = vsel %vm718, %v6213, %v6218
      %v6220 = vrot.slane %v5936, 1
      %v6221 = vsel %vm718, %v6216, %v6220
      %v6222 = vrot.slane %v5937, 1
      %v6223 = vsel %vm718, %v6218, %v6222
      %v6224 = vrot.slane %v5938, 1
      %v6225 = vsel %vm718, %v6220, %v6224
      %v6226 = vrot.slane %v6071, 1
      %v6227 = vsel %vm718, %v6222, %v6226
      %v6228 = vrot.slane %v6072, 1
      %v6229 = vsel %vm718, %v6224, %v6228
      %6240 = vmatprep.subr.mxu0 %v6075
      %6241 = vmatpush1.msra.mxu0 %v6074
      %6242 = vmatprep.subr.mxu0 %v6079
      %6243 = vmatpush1.msra.mxu0 %v6078
      %6244 = vmatprep.subr.mxu0 %v6083
      %6245 = vmatpush1.msra.mxu0 %v6082
      %6246 = vmatprep.subr.mxu0 %v6087
      %6247 = vmatpush1.msra.mxu0 %v6086
      %6248 = vmatprep.subr.mxu0 %v6091
      %6249 = vmatpush1.msra.mxu0 %v6090
      %6250 = vmatprep.subr.mxu0 %v6095
      %6251 = vmatpush1.msra.mxu0 %v6094
      %6252 = vmatprep.subr.mxu0 %v6099
      %6253 = vmatpush1.msra.mxu0 %v6098
      %6254 = vmatprep.subr.mxu0 %v6103
      %6255 = vmatpush1.msra.mxu0 %v6102
      %6256 = vmatprep.subr.mxu0 %v6107
      %6257 = vmatpush1.msra.mxu0 %v6106
      %6258 = vmatprep.subr.mxu0 %v6111
      %6259 = vmatpush1.msra.mxu0 %v6110
      %6260 = vmatprep.subr.mxu0 %v6115
      %6261 = vmatpush1.msra.mxu0 %v6114
      %6262 = vmatprep.subr.mxu0 %v6119
      %6263 = vmatpush1.msra.mxu0 %v6118
      %6264 = vmatprep.subr.mxu0 %v6123
      %6265 = vmatpush1.msra.mxu0 %v6122
      %6266 = vmatprep.subr.mxu0 %v6127
      %6267 = vmatpush1.msra.mxu0 %v6126
      %6268 = vmatprep.subr.mxu0 %v6131
      %6269 = vmatpush1.msra.mxu0 %v6130
      %6270 = vmatprep.subr.mxu0 %v6135
      %6271 = vmatpush1.msra.mxu0 %v6134
      %6272 = vmatprep.subr.mxu0 %v6139
      %6273 = vmatpush1.msra.mxu0 %v6138
      %6274 = vmatprep.subr.mxu0 %v6143
      %6275 = vmatpush1.msra.mxu0 %v6142
      %6276 = vmatprep.subr.mxu0 %v6147
      %6277 = vmatpush1.msra.mxu0 %v6146
      %6278 = vmatprep.subr.mxu0 %v6151
      %6279 = vmatpush1.msra.mxu0 %v6150
      %6280 = vmatprep.subr.mxu0 %v6155
      %6281 = vmatpush1.msra.mxu0 %v6154
      %6282 = vmatprep.subr.mxu0 %v6159
      %6283 = vmatpush1.msra.mxu0 %v6158
      %6284 = vmatprep.subr.mxu0 %v6163
      %6285 = vmatpush1.msra.mxu0 %v6162
      %6286 = vmatprep.subr.mxu0 %v6167
      %6287 = vmatpush1.msra.mxu0 %v6166
      %6288 = vmatprep.subr.mxu0 %v6171
      %6289 = vmatpush1.msra.mxu0 %v6170
      %6290 = vmatprep.subr.mxu0 %v6175
      %6291 = vmatpush1.msra.mxu0 %v6174
      %6292 = vmatprep.subr.mxu0 %v6179
      %6293 = vmatpush1.msra.mxu0 %v6178
      %6294 = vmatprep.subr.mxu0 %v6183
      %6295 = vmatpush1.msra.mxu0 %v6182
      %6296 = vmatprep.subr.mxu0 %v6187
      %6297 = vmatpush1.msra.mxu0 %v6186
      %6298 = vmatprep.subr.mxu0 %v6191
      %6299 = vmatpush1.msra.mxu0 %v6190
      %6300 = vmatprep.subr.mxu0 %v6195
      %6301 = vmatpush1.msra.mxu0 %v6194
      %6302 = vmatprep.subr.mxu0 %v6199
      %6303 = vmatpush1.msra.mxu0 %v6198
      %6304 = vmatprep.mubr.f32.mxu0 %v6217
      %6305 = vmatmul.mubr.f32.gmra.mrb[0].mxu0 %v6214
      %v6306 = vpop.f32.mrb[0].mxu0
      %v6307 = vadd.f32 0.0, %v6306
      %v6308 = vpop.f32.mrb[0].mxu0
      %v6309 = vadd.f32 0.0, %v6308
      %6310 = vmatprep.mubr.f32.mxu0 %v6221
      %6311 = vmatmul.mubr.f32.gmra.mrb[0].mxu0 %v6219
      %v6312 = vpop.f32.mrb[0].mxu0
      %v6313 = vadd.f32 0.0, %v6312
      %v6314 = vpop.f32.mrb[0].mxu0
      %v6315 = vadd.f32 0.0, %v6314
      %6316 = vmatprep.mubr.f32.mxu0 %v6225
      %6317 = vmatmul.mubr.f32.gmra.mrb[0].mxu0 %v6223
      %v6318 = vpop.f32.mrb[0].mxu0
      %v6319 = vadd.f32 0.0, %v6318
      %v6320 = vpop.f32.mrb[0].mxu0
      %v6321 = vadd.f32 0.0, %v6320
      %6322 = vmatprep.mubr.f32.mxu0 %v6229
      %6323 = vmatmul.mubr.f32.gmra.mrb[0].mxu0 %v6227
      %v6324 = vpop.f32.mrb[0].mxu0
      %v6325 = vadd.f32 0.0, %v6324
      %v6326 = vpop.f32.mrb[0].mxu0
      %v6327 = vadd.f32 0.0, %v6326
      %6328 = vmatprep.mubr.f32.mxu0 %v6228
      %6329 = vmatmul.mubr.f32.gmra.mrb[0].mxu0 %v6226
      %v6330 = vpop.f32.mrb[0].mxu0
      %v6331 = vadd.f32 0.0, %v6330
      %v6332 = vpop.f32.mrb[0].mxu0
      %v6333 = vadd.f32 0.0, %v6332
      %6334 = vdwg.mxu0
      %6335 = vmatprep.subr.mxu0 %v6077
      %6336 = vmatpush1.msra.mxu0 %v6076
      %6337 = vmatprep.subr.mxu0 %v6081
      %6338 = vmatpush1.msra.mxu0 %v6080
      %6339 = vmatprep.subr.mxu0 %v6085
      %6340 = vmatpush1.msra.mxu0 %v6084
      %6341 = vmatprep.subr.mxu0 %v6089
      %6342 = vmatpush1.msra.mxu0 %v6088
      %6343 = vmatprep.subr.mxu0 %v6093
      %6344 = vmatpush1.msra.mxu0 %v6092
      %6345 = vmatprep.subr.mxu0 %v6097
      %6346 = vmatpush1.msra.mxu0 %v6096
      %6347 = vmatprep.subr.mxu0 %v6101
      %6348 = vmatpush1.msra.mxu0 %v6100
      %6349 = vmatprep.subr.mxu0 %v6105
      %6350 = vmatpush1.msra.mxu0 %v6104
      %6351 = vmatprep.subr.mxu0 %v6109
      %6352 = vmatpush1.msra.mxu0 %v6108
      %6353 = vmatprep.subr.mxu0 %v6113
      %6354 = vmatpush1.msra.mxu0 %v6112
      %6355 = vmatprep.subr.mxu0 %v6117
      %6356 = vmatpush1.msra.mxu0 %v6116
      %6357 = vmatprep.subr.mxu0 %v6121
      %6358 = vmatpush1.msra.mxu0 %v6120
      %6359 = vmatprep.subr.mxu0 %v6125
      %6360 = vmatpush1.msra.mxu0 %v6124
      %6361 = vmatprep.subr.mxu0 %v6129
      %6362 = vmatpush1.msra.mxu0 %v6128
      %6363 = vmatprep.subr.mxu0 %v6133
      %6364 = vmatpush1.msra.mxu0 %v6132
      %6365 = vmatprep.subr.mxu0 %v6137
      %6366 = vmatpush1.msra.mxu0 %v6136
      %6367 = vmatprep.subr.mxu0 %v6141
      %6368 = vmatpush1.msra.mxu0 %v6140
      %6369 = vmatprep.subr.mxu0 %v6145
      %6370 = vmatpush1.msra.mxu0 %v6144
      %6371 = vmatprep.subr.mxu0 %v6149
      %6372 = vmatpush1.msra.mxu0 %v6148
      %6373 = vmatprep.subr.mxu0 %v6153
      %6374 = vmatpush1.msra.mxu0 %v6152
      %6375 = vmatprep.subr.mxu0 %v6157
      %6376 = vmatpush1.msra.mxu0 %v6156
      %6377 = vmatprep.subr.mxu0 %v6161
      %6378 = vmatpush1.msra.mxu0 %v6160
      %6379 = vmatprep.subr.mxu0 %v6165
      %6380 = vmatpush1.msra.mxu0 %v6164
      %6381 = vmatprep.subr.mxu0 %v6169
      %6382 = vmatpush1.msra.mxu0 %v6168
      %6383 = vmatprep.subr.mxu0 %v6173
      %6384 = vmatpush1.msra.mxu0 %v6172
      %6385 = vmatprep.subr.mxu0 %v6177
      %6386 = vmatpush1.msra.mxu0 %v6176
      %6387 = vmatprep.subr.mxu0 %v6181
      %6388 = vmatpush1.msra.mxu0 %v6180
      %6389 = vmatprep.subr.mxu0 %v6185
      %6390 = vmatpush1.msra.mxu0 %v6184
      %6391 = vmatprep.subr.mxu0 %v6189
      %6392 = vmatpush1.msra.mxu0 %v6188
      %6393 = vmatprep.subr.mxu0 %v6193
      %6394 = vmatpush1.msra.mxu0 %v6192
      %6395 = vmatprep.subr.mxu0 %v6197
      %6396 = vmatpush1.msra.mxu0 %v6196
      %6397 = vmatprep.subr.mxu0 %v6201
      %6398 = vmatpush1.msra.mxu0 %v6200
      %6399 = vmatprep.mubr.f32.mxu0 %v6217
      %6400 = vmatmul.mubr.f32.gmra.mrb[0].mxu0 %v6214
      %v6401 = vpop.f32.mrb[0].mxu0
      %v6402 = vadd.f32 0.0, %v6401
      %v6403 = vpop.f32.mrb[0].mxu0
      %v6404 = vadd.f32 0.0, %v6403
      %6405 = vmatprep.mubr.f32.mxu0 %v6221
      %6406 = vmatmul.mubr.f32.gmra.mrb[0].mxu0 %v6219
      %v6407 = vpop.f32.mrb[0].mxu0
      %v6408 = vadd.f32 0.0, %v6407
      %v6409 = vpop.f32.mrb[0].mxu0
      %v6410 = vadd.f32 0.0, %v6409
      %6411 = vmatprep.mubr.f32.mxu0 %v6225
      %6412 = vmatmul.mubr.f32.gmra.mrb[0].mxu0 %v6223
      %v6413 = vpop.f32.mrb[0].mxu0
      %v6414 = vadd.f32 0.0, %v6413
      %v6415 = vpop.f32.mrb[0].mxu0
      %v6416 = vadd.f32 0.0, %v6415
      %6417 = vmatprep.mubr.f32.mxu0 %v6229
      %6418 = vmatmul.mubr.f32.gmra.mrb[0].mxu0 %v6227
      %v6419 = vpop.f32.mrb[0].mxu0
      %v6420 = vadd.f32 0.0, %v6419
      %v6421 = vpop.f32.mrb[0].mxu0
      %v6422 = vadd.f32 0.0, %v6421
      %6423 = vmatprep.mubr.f32.mxu0 %v6228
      %6424 = vmatmul.mubr.f32.gmra.mrb[0].mxu0 %v6226
      %v6425 = vpop.f32.mrb[0].mxu0
      %v6426 = vadd.f32 0.0, %v6425
      %v6427 = vpop.f32.mrb[0].mxu0
      %v6428 = vadd.f32 0.0, %v6427
      %6429 = vdwg.mxu0
      %6430 = vmatprep.subr.mxu0 %v5942
      %6431 = vmatpush1.msra.mxu0 %v5941
      %6432 = vmatprep.subr.mxu0 %v5946
      %6433 = vmatpush1.msra.mxu0 %v5945
      %6434 = vmatprep.subr.mxu0 %v5950
      %6435 = vmatpush1.msra.mxu0 %v5949
      %6436 = vmatprep.subr.mxu0 %v5954
      %6437 = vmatpush1.msra.mxu0 %v5953
      %6438 = vmatprep.subr.mxu0 %v5958
      %6439 = vmatpush1.msra.mxu0 %v5957
      %6440 = vmatprep.subr.mxu0 %v5962
      %6441 = vmatpush1.msra.mxu0 %v5961
      %6442 = vmatprep.subr.mxu0 %v5966
      %6443 = vmatpush1.msra.mxu0 %v5965
      %6444 = vmatprep.subr.mxu0 %v5970
      %6445 = vmatpush1.msra.mxu0 %v5969
      %6446 = vmatprep.subr.mxu0 %v5974
      %6447 = vmatpush1.msra.mxu0 %v5973
      %6448 = vmatprep.subr.mxu0 %v5978
      %6449 = vmatpush1.msra.mxu0 %v5977
      %6450 = vmatprep.subr.mxu0 %v5982
      %6451 = vmatpush1.msra.mxu0 %v5981
      %6452 = vmatprep.subr.mxu0 %v5986
      %6453 = vmatpush1.msra.mxu0 %v5985
      %6454 = vmatprep.subr.mxu0 %v5990
      %6455 = vmatpush1.msra.mxu0 %v5989
      %6456 = vmatprep.subr.mxu0 %v5994
      %6457 = vmatpush1.msra.mxu0 %v5993
      %6458 = vmatprep.subr.mxu0 %v5998
      %6459 = vmatpush1.msra.mxu0 %v5997
      %6460 = vmatprep.subr.mxu0 %v6002
      %6461 = vmatpush1.msra.mxu0 %v6001
      %6462 = vmatprep.subr.mxu0 %v6006
      %6463 = vmatpush1.msra.mxu0 %v6005
      %6464 = vmatprep.subr.mxu0 %v6010
      %6465 = vmatpush1.msra.mxu0 %v6009
      %6466 = vmatprep.subr.mxu0 %v6014
      %6467 = vmatpush1.msra.mxu0 %v6013
      %6468 = vmatprep.subr.mxu0 %v6018
      %6469 = vmatpush1.msra.mxu0 %v6017
      %6470 = vmatprep.subr.mxu0 %v6022
      %6471 = vmatpush1.msra.mxu0 %v6021
      %6472 = vmatprep.subr.mxu0 %v6026
      %6473 = vmatpush1.msra.mxu0 %v6025
      %6474 = vmatprep.subr.mxu0 %v6030
      %6475 = vmatpush1.msra.mxu0 %v6029
      %6476 = vmatprep.subr.mxu0 %v6034
      %6477 = vmatpush1.msra.mxu0 %v6033
      %6478 = vmatprep.subr.mxu0 %v6038
      %6479 = vmatpush1.msra.mxu0 %v6037
      %6480 = vmatprep.subr.mxu0 %v6042
      %6481 = vmatpush1.msra.mxu0 %v6041
      %6482 = vmatprep.subr.mxu0 %v6046
      %6483 = vmatpush1.msra.mxu0 %v6045
      %6484 = vmatprep.subr.mxu0 %v6050
      %6485 = vmatpush1.msra.mxu0 %v6049
      %6486 = vmatprep.subr.mxu0 %v6054
      %6487 = vmatpush1.msra.mxu0 %v6053
      %6488 = vmatprep.subr.mxu0 %v6058
      %6489 = vmatpush1.msra.mxu0 %v6057
      %6490 = vmatprep.subr.mxu0 %v6062
      %6491 = vmatpush1.msra.mxu0 %v6061
      %6492 = vmatprep.subr.mxu0 %v6066
      %6493 = vmatpush1.msra.mxu0 %v6065
      %6494 = vmatprep.mubr.f32.mxu0 %v5932
      %6495 = vmatmul.mubr.f32.gmra.mrb[0].mxu0 %v5931
      %v6496 = vpop.f32.mrb[0].mxu0
      %v6497 = vadd.f32 %v6307, %v6496
      %v6498 = vpop.f32.mrb[0].mxu0
      %v6499 = vadd.f32 %v6309, %v6498
      %6500 = vmatprep.mubr.f32.mxu0 %v5934
      %6501 = vmatmul.mubr.f32.gmra.mrb[0].mxu0 %v5933
      %v6502 = vpop.f32.mrb[0].mxu0
      %v6503 = vadd.f32 %v6313, %v6502
      %v6504 = vpop.f32.mrb[0].mxu0
      %v6505 = vadd.f32 %v6315, %v6504
      %6506 = vmatprep.mubr.f32.mxu0 %v5936
      %6507 = vmatmul.mubr.f32.gmra.mrb[0].mxu0 %v5935
      %v6508 = vpop.f32.mrb[0].mxu0
      %v6509 = vadd.f32 %v6319, %v6508
      %v6510 = vpop.f32.mrb[0].mxu0
      %v6511 = vadd.f32 %v6321, %v6510
      %6512 = vmatprep.mubr.f32.mxu0 %v5938
      %6513 = vmatmul.mubr.f32.gmra.mrb[0].mxu0 %v5937
      %v6514 = vpop.f32.mrb[0].mxu0
      %v6515 = vadd.f32 %v6325, %v6514
      %v6516 = vpop.f32.mrb[0].mxu0
      %v6517 = vadd.f32 %v6327, %v6516
      %6518 = vmatprep.mubr.f32.mxu0 %v5940
      %6519 = vmatmul.mubr.f32.gmra.mrb[0].mxu0 %v5939
      %v6520 = vpop.f32.mrb[0].mxu0
      %v6521 = vadd.f32 %v6331, %v6520
      %v6522 = vpop.f32.mrb[0].mxu0
      %v6523 = vadd.f32 %v6333, %v6522
      %6524 = vdwg.mxu0
      %6525 = vmatprep.subr.mxu0 %v5944
      %6526 = vmatpush1.msra.mxu0 %v5943
      %6527 = vmatprep.subr.mxu0 %v5948
      %6528 = vmatpush1.msra.mxu0 %v5947
      %6529 = vmatprep.subr.mxu0 %v5952
      %6530 = vmatpush1.msra.mxu0 %v5951
      %6531 = vmatprep.subr.mxu0 %v5956
      %6532 = vmatpush1.msra.mxu0 %v5955
      %6533 = vmatprep.subr.mxu0 %v5960
      %6534 = vmatpush1.msra.mxu0 %v5959
      %6535 = vmatprep.subr.mxu0 %v5964
      %6536 = vmatpush1.msra.mxu0 %v5963
      %6537 = vmatprep.subr.mxu0 %v5968
      %6538 = vmatpush1.msra.mxu0 %v5967
      %6539 = vmatprep.subr.mxu0 %v5972
      %6540 = vmatpush1.msra.mxu0 %v5971
      %6541 = vmatprep.subr.mxu0 %v5976
      %6542 = vmatpush1.msra.mxu0 %v5975
      %6543 = vmatprep.subr.mxu0 %v5980
      %6544 = vmatpush1.msra.mxu0 %v5979
      %6545 = vmatprep.subr.mxu0 %v5984
      %6546 = vmatpush1.msra.mxu0 %v5983
      %6547 = vmatprep.subr.mxu0 %v5988
      %6548 = vmatpush1.msra.mxu0 %v5987
      %6549 = vmatprep.subr.mxu0 %v5992
      %6550 = vmatpush1.msra.mxu0 %v5991
      %6551 = vmatprep.subr.mxu0 %v5996
      %6552 = vmatpush1.msra.mxu0 %v5995
      %6553 = vmatprep.subr.mxu0 %v6000
      %6554 = vmatpush1.msra.mxu0 %v5999
      %6555 = vmatprep.subr.mxu0 %v6004
      %6556 = vmatpush1.msra.mxu0 %v6003
      %6557 = vmatprep.subr.mxu0 %v6008
      %6558 = vmatpush1.msra.mxu0 %v6007
      %6559 = vmatprep.subr.mxu0 %v6012
      %6560 = vmatpush1.msra.mxu0 %v6011
      %6561 = vmatprep.subr.mxu0 %v6016
      %6562 = vmatpush1.msra.mxu0 %v6015
      %6563 = vmatprep.subr.mxu0 %v6020
      %6564 = vmatpush1.msra.mxu0 %v6019
      %6565 = vmatprep.subr.mxu0 %v6024
      %6566 = vmatpush1.msra.mxu0 %v6023
      %6567 = vmatprep.subr.mxu0 %v6028
      %6568 = vmatpush1.msra.mxu0 %v6027
      %6569 = vmatprep.subr.mxu0 %v6032
      %6570 = vmatpush1.msra.mxu0 %v6031
      %6571 = vmatprep.subr.mxu0 %v6036
      %6572 = vmatpush1.msra.mxu0 %v6035
      %6573 = vmatprep.subr.mxu0 %v6040
      %6574 = vmatpush1.msra.mxu0 %v6039
      %6575 = vmatprep.subr.mxu0 %v6044
      %6576 = vmatpush1.msra.mxu0 %v6043
      %6577 = vmatprep.subr.mxu0 %v6048
      %6578 = vmatpush1.msra.mxu0 %v6047
      %6579 = vmatprep.subr.mxu0 %v6052
      %6580 = vmatpush1.msra.mxu0 %v6051
      %6581 = vmatprep.subr.mxu0 %v6056
      %6582 = vmatpush1.msra.mxu0 %v6055
      %6583 = vmatprep.subr.mxu0 %v6060
      %6584 = vmatpush1.msra.mxu0 %v6059
      %6585 = vmatprep.subr.mxu0 %v6064
      %6586 = vmatpush1.msra.mxu0 %v6063
      %6587 = vmatprep.subr.mxu0 %v6068
      %6588 = vmatpush1.msra.mxu0 %v6067
      %6589 = vmatprep.mubr.f32.mxu0 %v5932
      %6590 = vmatmul.mubr.f32.gmra.mrb[0].mxu0 %v5931
      %v6591 = vpop.f32.mrb[0].mxu0
      %v6592 = vadd.f32 %v6402, %v6591
      %v6593 = vpop.f32.mrb[0].mxu0
      %v6594 = vadd.f32 %v6404, %v6593
      %6595 = vmatprep.mubr.f32.mxu0 %v5934
      %6596 = vmatmul.mubr.f32.gmra.mrb[0].mxu0 %v5933
      %v6597 = vpop.f32.mrb[0].mxu0
      %v6598 = vadd.f32 %v6408, %v6597
      %v6599 = vpop.f32.mrb[0].mxu0
      %v6600 = vadd.f32 %v6410, %v6599
      %6601 = vmatprep.mubr.f32.mxu0 %v5936
      %6602 = vmatmul.mubr.f32.gmra.mrb[0].mxu0 %v5935
      %v6603 = vpop.f32.mrb[0].mxu0
      %v6604 = vadd.f32 %v6414, %v6603
      %v6605 = vpop.f32.mrb[0].mxu0
      %v6606 = vadd.f32 %v6416, %v6605
      %6607 = vmatprep.mubr.f32.mxu0 %v5938
      %6608 = vmatmul.mubr.f32.gmra.mrb[0].mxu0 %v5937
      %v6609 = vpop.f32.mrb[0].mxu0
      %v6610 = vadd.f32 %v6420, %v6609
      %v6611 = vpop.f32.mrb[0].mxu0
      %v6612 = vadd.f32 %v6422, %v6611
      %6613 = vmatprep.mubr.f32.mxu0 %v5940
      %6614 = vmatmul.mubr.f32.gmra.mrb[0].mxu0 %v5939
      %v6615 = vpop.f32.mrb[0].mxu0
      %v6616 = vadd.f32 %v6426, %v6615
      %v6617 = vpop.f32.mrb[0].mxu0
      %v6618 = vadd.f32 %v6428, %v6617
      %6619 = vdwg.mxu0
      %v6620 = vld [vmem:[#allocation3] sm:$0xfc]
      %v6621 = vld [vmem:[#allocation3 + $0x8] sm:$0xfc]
      %v6622 = vld [vmem:[#allocation3 + $0x40] sm:$0xf]
      %v6623 = vld [vmem:[#allocation3 + $0x48] sm:$0xf]
      %s6624 = scalar_lea.vmem %s3, 2048
      %v6625 = vld [vmem:[%s6624] sm:$0xff]
      %v6626 = vld [vmem:[%s6624 + $0x8] sm:$0xff]
      %v6627 = vld [vmem:[%s6624 + $0x10] sm:$0xff]
      %v6628 = vld [vmem:[%s6624 + $0x18] sm:$0xff]
      %v6629 = vld [vmem:[%s6624 + $0x20] sm:$0xff]
      %v6630 = vld [vmem:[%s6624 + $0x28] sm:$0xff]
      %v6631 = vld [vmem:[%s6624 + $0x30] sm:$0xff]
      %v6632 = vld [vmem:[%s6624 + $0x38] sm:$0xff]
      %v6633 = vld [vmem:[%s6624 + $0x40] sm:$0xff]
      %v6634 = vld [vmem:[%s6624 + $0x48] sm:$0xff]
      %v6635 = vld [vmem:[%s6624 + $0x50] sm:$0xff]
      %v6636 = vld [vmem:[%s6624 + $0x58] sm:$0xff]
      %v6637 = vld [vmem:[%s6624 + $0x60] sm:$0xff]
      %v6638 = vld [vmem:[%s6624 + $0x68] sm:$0xff]
      %v6639 = vld [vmem:[%s6624 + $0x70] sm:$0xff]
      %v6640 = vld [vmem:[%s6624 + $0x78] sm:$0xff]
      %v6641 = vld [vmem:[%s6624 + $0x80] sm:$0xff]
      %v6642 = vld [vmem:[%s6624 + $0x88] sm:$0xff]
      %v6643 = vld [vmem:[%s6624 + $0x90] sm:$0xff]
      %v6644 = vld [vmem:[%s6624 + $0x98] sm:$0xff]
      %v6645 = vld [vmem:[%s6624 + $0xa0] sm:$0xff]
      %v6646 = vld [vmem:[%s6624 + $0xa8] sm:$0xff]
      %v6647 = vld [vmem:[%s6624 + $0xb0] sm:$0xff]
      %v6648 = vld [vmem:[%s6624 + $0xb8] sm:$0xff]
      %v6649 = vld [vmem:[%s6624 + $0xc0] sm:$0xff]
      %v6650 = vld [vmem:[%s6624 + $0xc8] sm:$0xff]
      %v6651 = vld [vmem:[%s6624 + $0xd0] sm:$0xff]
      %v6652 = vld [vmem:[%s6624 + $0xd8] sm:$0xff]
      %v6653 = vld [vmem:[%s6624 + $0xe0] sm:$0xff]
      %v6654 = vld [vmem:[%s6624 + $0xe8] sm:$0xff]
      %v6655 = vld [vmem:[%s6624 + $0xf0] sm:$0xff]
      %v6656 = vld [vmem:[%s6624 + $0xf8] sm:$0xff]
      %v6657 = vld [vmem:[%s6624 + $0x100] sm:$0xff]
      %v6658 = vld [vmem:[%s6624 + $0x108] sm:$0xff]
      %v6659 = vld [vmem:[%s6624 + $0x110] sm:$0xff]
      %v6660 = vld [vmem:[%s6624 + $0x118] sm:$0xff]
      %v6661 = vld [vmem:[%s6624 + $0x120] sm:$0xff]
      %v6662 = vld [vmem:[%s6624 + $0x128] sm:$0xff]
      %v6663 = vld [vmem:[%s6624 + $0x130] sm:$0xff]
      %v6664 = vld [vmem:[%s6624 + $0x138] sm:$0xff]
      %v6665 = vld [vmem:[%s6624 + $0x140] sm:$0xff]
      %v6666 = vld [vmem:[%s6624 + $0x148] sm:$0xff]
      %v6667 = vld [vmem:[%s6624 + $0x150] sm:$0xff]
      %v6668 = vld [vmem:[%s6624 + $0x158] sm:$0xff]
      %v6669 = vld [vmem:[%s6624 + $0x160] sm:$0xff]
      %v6670 = vld [vmem:[%s6624 + $0x168] sm:$0xff]
      %v6671 = vld [vmem:[%s6624 + $0x170] sm:$0xff]
      %v6672 = vld [vmem:[%s6624 + $0x178] sm:$0xff]
      %v6673 = vld [vmem:[%s6624 + $0x180] sm:$0xff]
      %v6674 = vld [vmem:[%s6624 + $0x188] sm:$0xff]
      %v6675 = vld [vmem:[%s6624 + $0x190] sm:$0xff]
      %v6676 = vld [vmem:[%s6624 + $0x198] sm:$0xff]
      %v6677 = vld [vmem:[%s6624 + $0x1a0] sm:$0xff]
      %v6678 = vld [vmem:[%s6624 + $0x1a8] sm:$0xff]
      %v6679 = vld [vmem:[%s6624 + $0x1b0] sm:$0xff]
      %v6680 = vld [vmem:[%s6624 + $0x1b8] sm:$0xff]
      %v6681 = vld [vmem:[%s6624 + $0x1c0] sm:$0xff]
      %v6682 = vld [vmem:[%s6624 + $0x1c8] sm:$0xff]
      %v6683 = vld [vmem:[%s6624 + $0x1d0] sm:$0xff]
      %v6684 = vld [vmem:[%s6624 + $0x1d8] sm:$0xff]
      %v6685 = vld [vmem:[%s6624 + $0x1e0] sm:$0xff]
      %v6686 = vld [vmem:[%s6624 + $0x1e8] sm:$0xff]
      %v6687 = vld [vmem:[%s6624 + $0x1f0] sm:$0xff]
      %v6688 = vld [vmem:[%s6624 + $0x1f8] sm:$0xff]
      %v6689 = vld [vmem:[%s6624 + $0x200] sm:$0xff]
      %v6690 = vld [vmem:[%s6624 + $0x208] sm:$0xff]
      %v6691 = vld [vmem:[%s6624 + $0x210] sm:$0xff]
      %v6692 = vld [vmem:[%s6624 + $0x218] sm:$0xff]
      %v6693 = vld [vmem:[%s6624 + $0x220] sm:$0xff]
      %v6694 = vld [vmem:[%s6624 + $0x228] sm:$0xff]
      %v6695 = vld [vmem:[%s6624 + $0x230] sm:$0xff]
      %v6696 = vld [vmem:[%s6624 + $0x238] sm:$0xff]
      %v6697 = vld [vmem:[%s6624 + $0x240] sm:$0xff]
      %v6698 = vld [vmem:[%s6624 + $0x248] sm:$0xff]
      %v6699 = vld [vmem:[%s6624 + $0x250] sm:$0xff]
      %v6700 = vld [vmem:[%s6624 + $0x258] sm:$0xff]
      %v6701 = vld [vmem:[%s6624 + $0x260] sm:$0xff]
      %v6702 = vld [vmem:[%s6624 + $0x268] sm:$0xff]
      %v6703 = vld [vmem:[%s6624 + $0x270] sm:$0xff]
      %v6704 = vld [vmem:[%s6624 + $0x278] sm:$0xff]
      %v6705 = vld [vmem:[%s6624 + $0x280] sm:$0xff]
      %v6706 = vld [vmem:[%s6624 + $0x288] sm:$0xff]
      %v6707 = vld [vmem:[%s6624 + $0x290] sm:$0xff]
      %v6708 = vld [vmem:[%s6624 + $0x298] sm:$0xff]
      %v6709 = vld [vmem:[%s6624 + $0x2a0] sm:$0xff]
      %v6710 = vld [vmem:[%s6624 + $0x2a8] sm:$0xff]
      %v6711 = vld [vmem:[%s6624 + $0x2b0] sm:$0xff]
      %v6712 = vld [vmem:[%s6624 + $0x2b8] sm:$0xff]
      %v6713 = vld [vmem:[%s6624 + $0x2c0] sm:$0xff]
      %v6714 = vld [vmem:[%s6624 + $0x2c8] sm:$0xff]
      %v6715 = vld [vmem:[%s6624 + $0x2d0] sm:$0xff]
      %v6716 = vld [vmem:[%s6624 + $0x2d8] sm:$0xff]
      %v6717 = vld [vmem:[%s6624 + $0x2e0] sm:$0xff]
      %v6718 = vld [vmem:[%s6624 + $0x2e8] sm:$0xff]
      %v6719 = vld [vmem:[%s6624 + $0x2f0] sm:$0xff]
      %v6720 = vld [vmem:[%s6624 + $0x2f8] sm:$0xff]
      %v6721 = vld [vmem:[%s6624 + $0x300] sm:$0xff]
      %v6722 = vld [vmem:[%s6624 + $0x308] sm:$0xff]
      %v6723 = vld [vmem:[%s6624 + $0x310] sm:$0xff]
      %v6724 = vld [vmem:[%s6624 + $0x318] sm:$0xff]
      %v6725 = vld [vmem:[%s6624 + $0x320] sm:$0xff]
      %v6726 = vld [vmem:[%s6624 + $0x328] sm:$0xff]
      %v6727 = vld [vmem:[%s6624 + $0x330] sm:$0xff]
      %v6728 = vld [vmem:[%s6624 + $0x338] sm:$0xff]
      %v6729 = vld [vmem:[%s6624 + $0x340] sm:$0xff]
      %v6730 = vld [vmem:[%s6624 + $0x348] sm:$0xff]
      %v6731 = vld [vmem:[%s6624 + $0x350] sm:$0xff]
      %v6732 = vld [vmem:[%s6624 + $0x358] sm:$0xff]
      %v6733 = vld [vmem:[%s6624 + $0x360] sm:$0xff]
      %v6734 = vld [vmem:[%s6624 + $0x368] sm:$0xff]
      %v6735 = vld [vmem:[%s6624 + $0x370] sm:$0xff]
      %v6736 = vld [vmem:[%s6624 + $0x378] sm:$0xff]
      %v6737 = vld [vmem:[%s6624 + $0x380] sm:$0xff]
      %v6738 = vld [vmem:[%s6624 + $0x388] sm:$0xff]
      %v6739 = vld [vmem:[%s6624 + $0x390] sm:$0xff]
      %v6740 = vld [vmem:[%s6624 + $0x398] sm:$0xff]
      %v6741 = vld [vmem:[%s6624 + $0x3a0] sm:$0xff]
      %v6742 = vld [vmem:[%s6624 + $0x3a8] sm:$0xff]
      %v6743 = vld [vmem:[%s6624 + $0x3b0] sm:$0xff]
      %v6744 = vld [vmem:[%s6624 + $0x3b8] sm:$0xff]
      %v6745 = vld [vmem:[%s6624 + $0x3c0] sm:$0xff]
      %v6746 = vld [vmem:[%s6624 + $0x3c8] sm:$0xff]
      %v6747 = vld [vmem:[%s6624 + $0x3d0] sm:$0xff]
      %v6748 = vld [vmem:[%s6624 + $0x3d8] sm:$0xff]
      %v6749 = vld [vmem:[%s6624 + $0x3e0] sm:$0xff]
      %v6750 = vld [vmem:[%s6624 + $0x3e8] sm:$0xff]
      %v6751 = vld [vmem:[%s6624 + $0x3f0] sm:$0xff]
      %v6752 = vld [vmem:[%s6624 + $0x3f8] sm:$0xff]
      %v6757 = vrot.slane %v6620, 2
      %v6758 = vrot.slane %v5933, 2
      %v6759 = vsel %vm1679, %v6757, %v6758
      %v6760 = vrot.slane %v6621, 2
      %v6761 = vrot.slane %v5934, 2
      %v6762 = vsel %vm1679, %v6760, %v6761
      %v6763 = vrot.slane %v5935, 2
      %v6764 = vsel %vm1679, %v6758, %v6763
      %v6765 = vrot.slane %v5936, 2
      %v6766 = vsel %vm1679, %v6761, %v6765
      %v6767 = vrot.slane %v5937, 2
      %v6768 = vsel %vm1679, %v6763, %v6767
      %v6769 = vrot.slane %v5938, 2
      %v6770 = vsel %vm1679, %v6765, %v6769
      %v6771 = vrot.slane %v6622, 2
      %v6772 = vsel %vm1679, %v6767, %v6771
      %v6773 = vrot.slane %v6623, 2
      %v6774 = vsel %vm1679, %v6769, %v6773
      %6785 = vmatprep.subr.mxu0 %v6626
      %6786 = vmatpush1.msra.mxu0 %v6625
      %6787 = vmatprep.subr.mxu0 %v6630
      %6788 = vmatpush1.msra.mxu0 %v6629
      %6789 = vmatprep.subr.mxu0 %v6634
      %6790 = vmatpush1.msra.mxu0 %v6633
      %6791 = vmatprep.subr.mxu0 %v6638
      %6792 = vmatpush1.msra.mxu0 %v6637
      %6793 = vmatprep.subr.mxu0 %v6642
      %6794 = vmatpush1.msra.mxu0 %v6641
      %6795 = vmatprep.subr.mxu0 %v6646
      %6796 = vmatpush1.msra.mxu0 %v6645
      %6797 = vmatprep.subr.mxu0 %v6650
      %6798 = vmatpush1.msra.mxu0 %v6649
      %6799 = vmatprep.subr.mxu0 %v6654
      %6800 = vmatpush1.msra.mxu0 %v6653
      %6801 = vmatprep.subr.mxu0 %v6658
      %6802 = vmatpush1.msra.mxu0 %v6657
      %6803 = vmatprep.subr.mxu0 %v6662
      %6804 = vmatpush1.msra.mxu0 %v6661
      %6805 = vmatprep.subr.mxu0 %v6666
      %6806 = vmatpush1.msra.mxu0 %v6665
      %6807 = vmatprep.subr.mxu0 %v6670
      %6808 = vmatpush1.msra.mxu0 %v6669
      %6809 = vmatprep.subr.mxu0 %v6674
      %6810 = vmatpush1.msra.mxu0 %v6673
      %6811 = vmatprep.subr.mxu0 %v6678
      %6812 = vmatpush1.msra.mxu0 %v6677
      %6813 = vmatprep.subr.mxu0 %v6682
      %6814 = vmatpush1.msra.mxu0 %v6681
      %6815 = vmatprep.subr.mxu0 %v6686
      %6816 = vmatpush1.msra.mxu0 %v6685
      %6817 = vmatprep.subr.mxu0 %v6690
      %6818 = vmatpush1.msra.mxu0 %v6689
      %6819 = vmatprep.subr.mxu0 %v6694
      %6820 = vmatpush1.msra.mxu0 %v6693
      %6821 = vmatprep.subr.mxu0 %v6698
      %6822 = vmatpush1.msra.mxu0 %v6697
      %6823 = vmatprep.subr.mxu0 %v6702
      %6824 = vmatpush1.msra.mxu0 %v6701
      %6825 = vmatprep.subr.mxu0 %v6706
      %6826 = vmatpush1.msra.mxu0 %v6705
      %6827 = vmatprep.subr.mxu0 %v6710
      %6828 = vmatpush1.msra.mxu0 %v6709
      %6829 = vmatprep.subr.mxu0 %v6714
      %6830 = vmatpush1.msra.mxu0 %v6713
      %6831 = vmatprep.subr.mxu0 %v6718
      %6832 = vmatpush1.msra.mxu0 %v6717
      %6833 = vmatprep.subr.mxu0 %v6722
      %6834 = vmatpush1.msra.mxu0 %v6721
      %6835 = vmatprep.subr.mxu0 %v6726
      %6836 = vmatpush1.msra.mxu0 %v6725
      %6837 = vmatprep.subr.mxu0 %v6730
      %6838 = vmatpush1.msra.mxu0 %v6729
      %6839 = vmatprep.subr.mxu0 %v6734
      %6840 = vmatpush1.msra.mxu0 %v6733
      %6841 = vmatprep.subr.mxu0 %v6738
      %6842 = vmatpush1.msra.mxu0 %v6737
      %6843 = vmatprep.subr.mxu0 %v6742
      %6844 = vmatpush1.msra.mxu0 %v6741
      %6845 = vmatprep.subr.mxu0 %v6746
      %6846 = vmatpush1.msra.mxu0 %v6745
      %6847 = vmatprep.subr.mxu0 %v6750
      %6848 = vmatpush1.msra.mxu0 %v6749
      %6849 = vmatprep.mubr.f32.mxu0 %v6762
      %6850 = vmatmul.mubr.f32.gmra.mrb[0].mxu0 %v6759
      %v6851 = vpop.f32.mrb[0].mxu0
      %v6852 = vadd.f32 0.0, %v6851
      %v6853 = vpop.f32.mrb[0].mxu0
      %v6854 = vadd.f32 0.0, %v6853
      %6855 = vmatprep.mubr.f32.mxu0 %v6766
      %6856 = vmatmul.mubr.f32.gmra.mrb[0].mxu0 %v6764
      %v6857 = vpop.f32.mrb[0].mxu0
      %v6858 = vadd.f32 0.0, %v6857
      %v6859 = vpop.f32.mrb[0].mxu0
      %v6860 = vadd.f32 0.0, %v6859
      %6861 = vmatprep.mubr.f32.mxu0 %v6770
      %6862 = vmatmul.mubr.f32.gmra.mrb[0].mxu0 %v6768
      %v6863 = vpop.f32.mrb[0].mxu0
      %v6864 = vadd.f32 0.0, %v6863
      %v6865 = vpop.f32.mrb[0].mxu0
      %v6866 = vadd.f32 0.0, %v6865
      %6867 = vmatprep.mubr.f32.mxu0 %v6774
      %6868 = vmatmul.mubr.f32.gmra.mrb[0].mxu0 %v6772
      %v6869 = vpop.f32.mrb[0].mxu0
      %v6870 = vadd.f32 0.0, %v6869
      %v6871 = vpop.f32.mrb[0].mxu0
      %v6872 = vadd.f32 0.0, %v6871
      %6873 = vmatprep.mubr.f32.mxu0 %v6773
      %6874 = vmatmul.mubr.f32.gmra.mrb[0].mxu0 %v6771
      %v6875 = vpop.f32.mrb[0].mxu0
      %v6876 = vadd.f32 0.0, %v6875
      %v6877 = vpop.f32.mrb[0].mxu0
      %v6878 = vadd.f32 0.0, %v6877
      %6879 = vdwg.mxu0
      %6880 = vmatprep.subr.mxu0 %v6628
      %6881 = vmatpush1.msra.mxu0 %v6627
      %6882 = vmatprep.subr.mxu0 %v6632
      %6883 = vmatpush1.msra.mxu0 %v6631
      %6884 = vmatprep.subr.mxu0 %v6636
      %6885 = vmatpush1.msra.mxu0 %v6635
      %6886 = vmatprep.subr.mxu0 %v6640
      %6887 = vmatpush1.msra.mxu0 %v6639
      %6888 = vmatprep.subr.mxu0 %v6644
      %6889 = vmatpush1.msra.mxu0 %v6643
      %6890 = vmatprep.subr.mxu0 %v6648
      %6891 = vmatpush1.msra.mxu0 %v6647
      %6892 = vmatprep.subr.mxu0 %v6652
      %6893 = vmatpush1.msra.mxu0 %v6651
      %6894 = vmatprep.subr.mxu0 %v6656
      %6895 = vmatpush1.msra.mxu0 %v6655
      %6896 = vmatprep.subr.mxu0 %v6660
      %6897 = vmatpush1.msra.mxu0 %v6659
      %6898 = vmatprep.subr.mxu0 %v6664
      %6899 = vmatpush1.msra.mxu0 %v6663
      %6900 = vmatprep.subr.mxu0 %v6668
      %6901 = vmatpush1.msra.mxu0 %v6667
      %6902 = vmatprep.subr.mxu0 %v6672
      %6903 = vmatpush1.msra.mxu0 %v6671
      %6904 = vmatprep.subr.mxu0 %v6676
      %6905 = vmatpush1.msra.mxu0 %v6675
      %6906 = vmatprep.subr.mxu0 %v6680
      %6907 = vmatpush1.msra.mxu0 %v6679
      %6908 = vmatprep.subr.mxu0 %v6684
      %6909 = vmatpush1.msra.mxu0 %v6683
      %6910 = vmatprep.subr.mxu0 %v6688
      %6911 = vmatpush1.msra.mxu0 %v6687
      %6912 = vmatprep.subr.mxu0 %v6692
      %6913 = vmatpush1.msra.mxu0 %v6691
      %6914 = vmatprep.subr.mxu0 %v6696
      %6915 = vmatpush1.msra.mxu0 %v6695
      %6916 = vmatprep.subr.mxu0 %v6700
      %6917 = vmatpush1.msra.mxu0 %v6699
      %6918 = vmatprep.subr.mxu0 %v6704
      %6919 = vmatpush1.msra.mxu0 %v6703
      %6920 = vmatprep.subr.mxu0 %v6708
      %6921 = vmatpush1.msra.mxu0 %v6707
      %6922 = vmatprep.subr.mxu0 %v6712
      %6923 = vmatpush1.msra.mxu0 %v6711
      %6924 = vmatprep.subr.mxu0 %v6716
      %6925 = vmatpush1.msra.mxu0 %v6715
      %6926 = vmatprep.subr.mxu0 %v6720
      %6927 = vmatpush1.msra.mxu0 %v6719
      %6928 = vmatprep.subr.mxu0 %v6724
      %6929 = vmatpush1.msra.mxu0 %v6723
      %6930 = vmatprep.subr.mxu0 %v6728
      %6931 = vmatpush1.msra.mxu0 %v6727
      %6932 = vmatprep.subr.mxu0 %v6732
      %6933 = vmatpush1.msra.mxu0 %v6731
      %6934 = vmatprep.subr.mxu0 %v6736
      %6935 = vmatpush1.msra.mxu0 %v6735
      %6936 = vmatprep.subr.mxu0 %v6740
      %6937 = vmatpush1.msra.mxu0 %v6739
      %6938 = vmatprep.subr.mxu0 %v6744
      %6939 = vmatpush1.msra.mxu0 %v6743
      %6940 = vmatprep.subr.mxu0 %v6748
      %6941 = vmatpush1.msra.mxu0 %v6747
      %6942 = vmatprep.subr.mxu0 %v6752
      %6943 = vmatpush1.msra.mxu0 %v6751
      %6944 = vmatprep.mubr.f32.mxu0 %v6762
      %6945 = vmatmul.mubr.f32.gmra.mrb[0].mxu0 %v6759
      %v6946 = vpop.f32.mrb[0].mxu0
      %v6947 = vadd.f32 0.0, %v6946
      %v6948 = vpop.f32.mrb[0].mxu0
      %v6949 = vadd.f32 0.0, %v6948
      %6950 = vmatprep.mubr.f32.mxu0 %v6766
      %6951 = vmatmul.mubr.f32.gmra.mrb[0].mxu0 %v6764
      %v6952 = vpop.f32.mrb[0].mxu0
      %v6953 = vadd.f32 0.0, %v6952
      %v6954 = vpop.f32.mrb[0].mxu0
      %v6955 = vadd.f32 0.0, %v6954
      %6956 = vmatprep.mubr.f32.mxu0 %v6770
      %6957 = vmatmul.mubr.f32.gmra.mrb[0].mxu0 %v6768
      %v6958 = vpop.f32.mrb[0].mxu0
      %v6959 = vadd.f32 0.0, %v6958
      %v6960 = vpop.f32.mrb[0].mxu0
      %v6961 = vadd.f32 0.0, %v6960
      %6962 = vmatprep.mubr.f32.mxu0 %v6774
      %6963 = vmatmul.mubr.f32.gmra.mrb[0].mxu0 %v6772
      %v6964 = vpop.f32.mrb[0].mxu0
      %v6965 = vadd.f32 0.0, %v6964
      %v6966 = vpop.f32.mrb[0].mxu0
      %v6967 = vadd.f32 0.0, %v6966
      %6968 = vmatprep.mubr.f32.mxu0 %v6773
      %6969 = vmatmul.mubr.f32.gmra.mrb[0].mxu0 %v6771
      %v6970 = vpop.f32.mrb[0].mxu0
      %v6971 = vadd.f32 0.0, %v6970
      %v6972 = vpop.f32.mrb[0].mxu0
      %v6973 = vadd.f32 0.0, %v6972
      %6974 = vdwg.mxu0
      %v6975 = vadd.f32 %v6497, %v6852
      %v6976 = vadd.f32 %v6499, %v6854
      %v6977 = vadd.f32 %v6592, %v6947
      %v6978 = vadd.f32 %v6594, %v6949
      %v6979 = vadd.f32 %v6503, %v6858
      %v6980 = vadd.f32 %v6505, %v6860
      %v6981 = vadd.f32 %v6598, %v6953
      %v6982 = vadd.f32 %v6600, %v6955
      %v6983 = vadd.f32 %v6509, %v6864
      %v6984 = vadd.f32 %v6511, %v6866
      %v6985 = vadd.f32 %v6604, %v6959
      %v6986 = vadd.f32 %v6606, %v6961
      %v6987 = vadd.f32 %v6515, %v6870
      %v6988 = vadd.f32 %v6517, %v6872
      %v6989 = vadd.f32 %v6610, %v6965
      %v6990 = vadd.f32 %v6612, %v6967
      %v6991 = vadd.f32 %v6521, %v6876
      %v6992 = vadd.f32 %v6523, %v6878
      %v6993 = vadd.f32 %v6616, %v6971
      %v6994 = vadd.f32 %v6618, %v6973
      %v7015 = vrot.slane %v6975, 1
      %v7016 = vrot.slane %v6979, 1
      %v7017 = vsel %vm718, %v7015, %v7016
      %v7018 = vrot.slane %v6976, 1
      %v7019 = vrot.slane %v6980, 1
      %v7020 = vsel %vm718, %v7018, %v7019
      %v7021 = vrot.slane %v6977, 1
      %v7022 = vrot.slane %v6981, 1
      %v7023 = vsel %vm718, %v7021, %v7022
      %v7024 = vrot.slane %v6978, 1
      %v7025 = vrot.slane %v6982, 1
      %v7026 = vsel %vm718, %v7024, %v7025
      %v7027 = vrot.slane %v6983, 1
      %v7028 = vsel %vm718, %v7016, %v7027
      %v7029 = vrot.slane %v6984, 1
      %v7030 = vsel %vm718, %v7019, %v7029
      %v7031 = vrot.slane %v6985, 1
      %v7032 = vsel %vm718, %v7022, %v7031
      %v7033 = vrot.slane %v6986, 1
      %v7034 = vsel %vm718, %v7025, %v7033
      %v7035 = vrot.slane %v6987, 1
      %v7036 = vsel %vm718, %v7027, %v7035
      %v7037 = vrot.slane %v6988, 1
      %v7038 = vsel %vm718, %v7029, %v7037
      %v7039 = vrot.slane %v6989, 1
      %v7040 = vsel %vm718, %v7031, %v7039
      %v7041 = vrot.slane %v6990, 1
      %v7042 = vsel %vm718, %v7033, %v7041
      %v7043 = vrot.slane %v6991, 1
      %v7044 = vsel %vm718, %v7035, %v7043
      %v7045 = vrot.slane %v6992, 1
      %v7046 = vsel %vm718, %v7037, %v7045
      %v7047 = vrot.slane %v6993, 1
      %v7048 = vsel %vm718, %v7039, %v7047
      %v7049 = vrot.slane %v6994, 1
      %v7050 = vsel %vm718, %v7041, %v7049
      %v7071 = vmax.f32 %v6975, %v7017
      %v7072 = vmax.f32 %v6976, %v7020
      %v7073 = vmax.f32 %v6977, %v7023
      %v7074 = vmax.f32 %v6978, %v7026
      %v7075 = vmax.f32 %v6979, %v7028
      %v7076 = vmax.f32 %v6980, %v7030
      %v7077 = vmax.f32 %v6981, %v7032
      %v7078 = vmax.f32 %v6982, %v7034
      %v7079 = vmax.f32 %v6983, %v7036
      %v7080 = vmax.f32 %v6984, %v7038
      %v7081 = vmax.f32 %v6985, %v7040
      %v7082 = vmax.f32 %v6986, %v7042
      %v7083 = vmax.f32 %v6987, %v7044
      %v7084 = vmax.f32 %v6988, %v7046
      %v7085 = vmax.f32 %v6989, %v7048
      %v7086 = vmax.f32 %v6990, %v7050
      %v7087 = vmax.f32 %v6991, %v7043
      %v7088 = vmax.f32 %v6992, %v7045
      %v7089 = vmax.f32 %v6993, %v7047
      %v7090 = vmax.f32 %v6994, %v7049
      %7111 = vrot.lane.b32.xlu0 %v7071, 96
      %v7112 = vpop.permute.xlu0 %7111
      %7113 = vrot.lane.b32.xlu0 %v7072, 96
      %v7114 = vpop.permute.xlu0 %7113
      %7115 = vrot.lane.b32.xlu0 %v7073, 96
      %v7116 = vpop.permute.xlu0 %7115
      %7117 = vrot.lane.b32.xlu0 %v7074, 96
      %v7118 = vpop.permute.xlu0 %7117
      %7119 = vrot.lane.b32.xlu0 %v7075, 96
      %v7120 = vpop.permute.xlu0 %7119
      %7121 = vrot.lane.b32.xlu0 %v7076, 96
      %v7122 = vpop.permute.xlu0 %7121
      %7123 = vrot.lane.b32.xlu0 %v7077, 96
      %v7124 = vpop.permute.xlu0 %7123
      %7125 = vrot.lane.b32.xlu0 %v7078, 96
      %v7126 = vpop.permute.xlu0 %7125
      %7127 = vrot.lane.b32.xlu0 %v7079, 96
      %v7128 = vpop.permute.xlu0 %7127
      %7129 = vrot.lane.b32.xlu0 %v7080, 96
      %v7130 = vpop.permute.xlu0 %7129
      %7131 = vrot.lane.b32.xlu0 %v7081, 96
      %v7132 = vpop.permute.xlu0 %7131
      %7133 = vrot.lane.b32.xlu0 %v7082, 96
      %v7134 = vpop.permute.xlu0 %7133
      %7135 = vrot.lane.b32.xlu0 %v7083, 96
      %v7136 = vpop.permute.xlu0 %7135
      %7137 = vrot.lane.b32.xlu0 %v7084, 96
      %v7138 = vpop.permute.xlu0 %7137
      %7139 = vrot.lane.b32.xlu0 %v7085, 96
      %v7140 = vpop.permute.xlu0 %7139
      %7141 = vrot.lane.b32.xlu0 %v7086, 96
      %v7142 = vpop.permute.xlu0 %7141
      %7143 = vrot.lane.b32.xlu0 %v7087, 96
      %v7144 = vpop.permute.xlu0 %7143
      %7145 = vrot.lane.b32.xlu0 %v7088, 96
      %v7146 = vpop.permute.xlu0 %7145
      %7147 = vrot.lane.b32.xlu0 %v7089, 96
      %v7148 = vpop.permute.xlu0 %7147
      %7149 = vrot.lane.b32.xlu0 %v7090, 96
      %v7150 = vpop.permute.xlu0 %7149
      %vm7151 = vcmask 785408
      %v7152 = vsel %vm7151, %v7112, %v7114
      %v7153 = vsel %vm7151, %v7114, %v7116
      %v7154 = vsel %vm7151, %v7116, %v7118
      %v7155 = vsel %vm7151, %v7120, %v7122
      %v7156 = vsel %vm7151, %v7122, %v7124
      %v7157 = vsel %vm7151, %v7124, %v7126
      %v7158 = vsel %vm7151, %v7128, %v7130
      %v7159 = vsel %vm7151, %v7130, %v7132
      %v7160 = vsel %vm7151, %v7132, %v7134
      %v7161 = vsel %vm7151, %v7136, %v7138
      %v7162 = vsel %vm7151, %v7138, %v7140
      %v7163 = vsel %vm7151, %v7140, %v7142
      %v7164 = vsel %vm7151, %v7144, %v7146
      %v7165 = vsel %vm7151, %v7146, %v7148
      %v7166 = vsel %vm7151, %v7148, %v7150
      %v7187 = vmax.f32 %v7071, %v7152
      %v7188 = vmax.f32 %v7072, %v7153
      %v7189 = vmax.f32 %v7073, %v7154
      %v7190 = vmax.f32 %v7074, %v7118
      %v7191 = vmax.f32 %v7075, %v7155
      %v7192 = vmax.f32 %v7076, %v7156
      %v7193 = vmax.f32 %v7077, %v7157
      %v7194 = vmax.f32 %v7078, %v7126
      %v7195 = vmax.f32 %v7079, %v7158
      %v7196 = vmax.f32 %v7080, %v7159
      %v7197 = vmax.f32 %v7081, %v7160
      %v7198 = vmax.f32 %v7082, %v7134
      %v7199 = vmax.f32 %v7083, %v7161
      %v7200 = vmax.f32 %v7084, %v7162
      %v7201 = vmax.f32 %v7085, %v7163
      %v7202 = vmax.f32 %v7086, %v7142
      %v7203 = vmax.f32 %v7087, %v7164
      %v7204 = vmax.f32 %v7088, %v7165
      %v7205 = vmax.f32 %v7089, %v7166
      %v7206 = vmax.f32 %v7090, %v7150
      %v7207 = vld [vmem:[%s6] sm:$0xff]
      %v7208 = vld [vmem:[%s6 + $0x8] sm:$0xff]
      %v7209 = vld [vmem:[%s6 + $0x10] sm:$0xff]
      %v7210 = vld [vmem:[%s6 + $0x18] sm:$0xff]
      %v7211 = vld [vmem:[%s6 + $0x20] sm:$0xff]
      %v7212 = vld [vmem:[%s6 + $0x28] sm:$0xff]
      %v7213 = vld [vmem:[%s6 + $0x30] sm:$0xff]
      %v7214 = vld [vmem:[%s6 + $0x38] sm:$0xff]
      %v7215 = vld [vmem:[%s6 + $0x40] sm:$0xff]
      %v7216 = vld [vmem:[%s6 + $0x48] sm:$0xff]
      %v7217 = vld [vmem:[%s6 + $0x50] sm:$0xff]
      %v7218 = vld [vmem:[%s6 + $0x58] sm:$0xff]
      %v7219 = vld [vmem:[%s6 + $0x60] sm:$0xff]
      %v7220 = vld [vmem:[%s6 + $0x68] sm:$0xff]
      %v7221 = vld [vmem:[%s6 + $0x70] sm:$0xff]
      %v7222 = vld [vmem:[%s6 + $0x78] sm:$0xff]
      %v7223 = vld [vmem:[%s6 + $0x80] sm:$0xff]
      %v7224 = vld [vmem:[%s6 + $0x88] sm:$0xff]
      %v7225 = vld [vmem:[%s6 + $0x90] sm:$0xff]
      %v7226 = vld [vmem:[%s6 + $0x98] sm:$0xff]
      %v7227 = vld [vmem:[%s6 + $0xa0] sm:$0xff]
      %v7228 = vld [vmem:[%s6 + $0xa8] sm:$0xff]
      %v7229 = vld [vmem:[%s6 + $0xb0] sm:$0xff]
      %v7230 = vld [vmem:[%s6 + $0xb8] sm:$0xff]
      %v7231 = vld [vmem:[%s6 + $0xc0] sm:$0xff]
      %v7232 = vld [vmem:[%s6 + $0xc8] sm:$0xff]
      %v7233 = vld [vmem:[%s6 + $0xd0] sm:$0xff]
      %v7234 = vld [vmem:[%s6 + $0xd8] sm:$0xff]
      %v7235 = vld [vmem:[%s6 + $0xe0] sm:$0xff]
      %v7236 = vld [vmem:[%s6 + $0xe8] sm:$0xff]
      %v7237 = vld [vmem:[%s6 + $0xf0] sm:$0xff]
      %v7238 = vld [vmem:[%s6 + $0xf8] sm:$0xff]
      %v7239 = vld [vmem:[%s6 + $0x100] sm:$0xff]
      %v7240 = vld [vmem:[%s6 + $0x108] sm:$0xff]
      %v7241 = vld [vmem:[%s6 + $0x110] sm:$0xff]
      %v7242 = vld [vmem:[%s6 + $0x118] sm:$0xff]
      %v7243 = vld [vmem:[%s6 + $0x120] sm:$0xff]
      %v7244 = vld [vmem:[%s6 + $0x128] sm:$0xff]
      %v7245 = vld [vmem:[%s6 + $0x130] sm:$0xff]
      %v7246 = vld [vmem:[%s6 + $0x138] sm:$0xff]
      %v7247 = vld [vmem:[%s6 + $0x140] sm:$0xff]
      %v7248 = vld [vmem:[%s6 + $0x148] sm:$0xff]
      %v7249 = vld [vmem:[%s6 + $0x150] sm:$0xff]
      %v7250 = vld [vmem:[%s6 + $0x158] sm:$0xff]
      %v7251 = vld [vmem:[%s6 + $0x160] sm:$0xff]
      %v7252 = vld [vmem:[%s6 + $0x168] sm:$0xff]
      %v7253 = vld [vmem:[%s6 + $0x170] sm:$0xff]
      %v7254 = vld [vmem:[%s6 + $0x178] sm:$0xff]
      %v7255 = vld [vmem:[%s6 + $0x180] sm:$0xff]
      %v7256 = vld [vmem:[%s6 + $0x188] sm:$0xff]
      %v7257 = vld [vmem:[%s6 + $0x190] sm:$0xff]
      %v7258 = vld [vmem:[%s6 + $0x198] sm:$0xff]
      %v7259 = vld [vmem:[%s6 + $0x1a0] sm:$0xff]
      %v7260 = vld [vmem:[%s6 + $0x1a8] sm:$0xff]
      %v7261 = vld [vmem:[%s6 + $0x1b0] sm:$0xff]
      %v7262 = vld [vmem:[%s6 + $0x1b8] sm:$0xff]
      %v7263 = vld [vmem:[%s6 + $0x1c0] sm:$0xff]
      %v7264 = vld [vmem:[%s6 + $0x1c8] sm:$0xff]
      %v7265 = vld [vmem:[%s6 + $0x1d0] sm:$0xff]
      %v7266 = vld [vmem:[%s6 + $0x1d8] sm:$0xff]
      %v7267 = vld [vmem:[%s6 + $0x1e0] sm:$0xff]
      %v7268 = vld [vmem:[%s6 + $0x1e8] sm:$0xff]
      %v7269 = vld [vmem:[%s6 + $0x1f0] sm:$0xff]
      %v7270 = vld [vmem:[%s6 + $0x1f8] sm:$0xff]
      %v7271 = vld [vmem:[%s6 + $0x200] sm:$0xff]
      %v7272 = vld [vmem:[%s6 + $0x208] sm:$0xff]
      %v7273 = vld [vmem:[%s6 + $0x210] sm:$0xff]
      %v7274 = vld [vmem:[%s6 + $0x218] sm:$0xff]
      %v7275 = vld [vmem:[%s6 + $0x220] sm:$0xff]
      %v7276 = vld [vmem:[%s6 + $0x228] sm:$0xff]
      %v7277 = vld [vmem:[%s6 + $0x230] sm:$0xff]
      %v7278 = vld [vmem:[%s6 + $0x238] sm:$0xff]
      %v7279 = vld [vmem:[%s6 + $0x240] sm:$0xff]
      %v7280 = vld [vmem:[%s6 + $0x248] sm:$0xff]
      %v7281 = vld [vmem:[%s6 + $0x250] sm:$0xff]
      %v7282 = vld [vmem:[%s6 + $0x258] sm:$0xff]
      %v7283 = vld [vmem:[%s6 + $0x260] sm:$0xff]
      %v7284 = vld [vmem:[%s6 + $0x268] sm:$0xff]
      %v7285 = vld [vmem:[%s6 + $0x270] sm:$0xff]
      %v7286 = vld [vmem:[%s6 + $0x278] sm:$0xff]
      %v7287 = vld [vmem:[%s6 + $0x280] sm:$0xff]
      %v7288 = vld [vmem:[%s6 + $0x288] sm:$0xff]
      %v7289 = vld [vmem:[%s6 + $0x290] sm:$0xff]
      %v7290 = vld [vmem:[%s6 + $0x298] sm:$0xff]
      %v7291 = vld [vmem:[%s6 + $0x2a0] sm:$0xff]
      %v7292 = vld [vmem:[%s6 + $0x2a8] sm:$0xff]
      %v7293 = vld [vmem:[%s6 + $0x2b0] sm:$0xff]
      %v7294 = vld [vmem:[%s6 + $0x2b8] sm:$0xff]
      %v7295 = vld [vmem:[%s6 + $0x2c0] sm:$0xff]
      %v7296 = vld [vmem:[%s6 + $0x2c8] sm:$0xff]
      %v7297 = vld [vmem:[%s6 + $0x2d0] sm:$0xff]
      %v7298 = vld [vmem:[%s6 + $0x2d8] sm:$0xff]
      %v7299 = vld [vmem:[%s6 + $0x2e0] sm:$0xff]
      %v7300 = vld [vmem:[%s6 + $0x2e8] sm:$0xff]
      %v7301 = vld [vmem:[%s6 + $0x2f0] sm:$0xff]
      %v7302 = vld [vmem:[%s6 + $0x2f8] sm:$0xff]
      %v7303 = vld [vmem:[%s6 + $0x300] sm:$0xff]
      %v7304 = vld [vmem:[%s6 + $0x308] sm:$0xff]
      %v7305 = vld [vmem:[%s6 + $0x310] sm:$0xff]
      %v7306 = vld [vmem:[%s6 + $0x318] sm:$0xff]
      %v7307 = vld [vmem:[%s6 + $0x320] sm:$0xff]
      %v7308 = vld [vmem:[%s6 + $0x328] sm:$0xff]
      %v7309 = vld [vmem:[%s6 + $0x330] sm:$0xff]
      %v7310 = vld [vmem:[%s6 + $0x338] sm:$0xff]
      %v7311 = vld [vmem:[%s6 + $0x340] sm:$0xff]
      %v7312 = vld [vmem:[%s6 + $0x348] sm:$0xff]
      %v7313 = vld [vmem:[%s6 + $0x350] sm:$0xff]
      %v7314 = vld [vmem:[%s6 + $0x358] sm:$0xff]
      %v7315 = vld [vmem:[%s6 + $0x360] sm:$0xff]
      %v7316 = vld [vmem:[%s6 + $0x368] sm:$0xff]
      %v7317 = vld [vmem:[%s6 + $0x370] sm:$0xff]
      %v7318 = vld [vmem:[%s6 + $0x378] sm:$0xff]
      %v7319 = vld [vmem:[%s6 + $0x380] sm:$0xff]
      %v7320 = vld [vmem:[%s6 + $0x388] sm:$0xff]
      %v7321 = vld [vmem:[%s6 + $0x390] sm:$0xff]
      %v7322 = vld [vmem:[%s6 + $0x398] sm:$0xff]
      %v7323 = vld [vmem:[%s6 + $0x3a0] sm:$0xff]
      %v7324 = vld [vmem:[%s6 + $0x3a8] sm:$0xff]
      %v7325 = vld [vmem:[%s6 + $0x3b0] sm:$0xff]
      %v7326 = vld [vmem:[%s6 + $0x3b8] sm:$0xff]
      %v7328 = vsel %vm7151, %v7190, 0
      %v7331 = vsel %vm7151, %v7194, 0
      %v7334 = vsel %vm7151, %v7198, 0
      %v7337 = vsel %vm7151, %v7202, 0
      %v7340 = vsel %vm7151, %v7206, 0
      %7342 = vmatprep.subr.mxu0 %v7208
      %7343 = vmatpush1.msra.mxu0 %v7207
      %7344 = vmatprep.subr.mxu0 %v7210
      %7345 = vmatpush1.msra.mxu0 %v7209
      %7346 = vmatprep.subr.mxu0 %v7212
      %7347 = vmatpush1.msra.mxu0 %v7211
      %7348 = vmatprep.subr.mxu0 %v7214
      %7349 = vmatpush1.msra.mxu0 %v7213
      %7350 = vmatprep.subr.mxu0 %v7216
      %7351 = vmatpush1.msra.mxu0 %v7215
      %7352 = vmatprep.subr.mxu0 %v7218
      %7353 = vmatpush1.msra.mxu0 %v7217
      %7354 = vmatprep.subr.mxu0 %v7220
      %7355 = vmatpush1.msra.mxu0 %v7219
      %7356 = vmatprep.subr.mxu0 %v7222
      %7357 = vmatpush1.msra.mxu0 %v7221
      %7358 = vmatprep.subr.mxu0 %v7224
      %7359 = vmatpush1.msra.mxu0 %v7223
      %7360 = vmatprep.subr.mxu0 %v7226
      %7361 = vmatpush1.msra.mxu0 %v7225
      %7362 = vmatprep.subr.mxu0 %v7228
      %7363 = vmatpush1.msra.mxu0 %v7227
      %7364 = vmatprep.subr.mxu0 %v7230
      %7365 = vmatpush1.msra.mxu0 %v7229
      %7366 = vmatprep.subr.mxu0 %v7232
      %7367 = vmatpush1.msra.mxu0 %v7231
      %7368 = vmatprep.subr.mxu0 %v7234
      %7369 = vmatpush1.msra.mxu0 %v7233
      %7370 = vmatprep.subr.mxu0 %v7236
      %7371 = vmatpush1.msra.mxu0 %v7235
      %7372 = vmatprep.subr.mxu0 %v7238
      %7373 = vmatpush1.msra.mxu0 %v7237
      %7374 = vmatprep.subr.mxu0 %v7240
      %7375 = vmatpush1.msra.mxu0 %v7239
      %7376 = vmatprep.subr.mxu0 %v7242
      %7377 = vmatpush1.msra.mxu0 %v7241
      %7378 = vmatprep.subr.mxu0 %v7244
      %7379 = vmatpush1.msra.mxu0 %v7243
      %7380 = vmatprep.subr.mxu0 %v7246
      %7381 = vmatpush1.msra.mxu0 %v7245
      %7382 = vmatprep.subr.mxu0 %v7248
      %7383 = vmatpush1.msra.mxu0 %v7247
      %7384 = vmatprep.subr.mxu0 %v7250
      %7385 = vmatpush1.msra.mxu0 %v7249
      %7386 = vmatprep.subr.mxu0 %v7252
      %7387 = vmatpush1.msra.mxu0 %v7251
      %7388 = vmatprep.subr.mxu0 %v7254
      %7389 = vmatpush1.msra.mxu0 %v7253
      %7390 = vmatprep.subr.mxu0 %v7256
      %7391 = vmatpush1.msra.mxu0 %v7255
      %7392 = vmatprep.subr.mxu0 %v7258
      %7393 = vmatpush1.msra.mxu0 %v7257
      %7394 = vmatprep.subr.mxu0 %v7260
      %7395 = vmatpush1.msra.mxu0 %v7259
      %7396 = vmatprep.subr.mxu0 %v7262
      %7397 = vmatpush1.msra.mxu0 %v7261
      %7398 = vmatprep.subr.mxu0 %v7264
      %7399 = vmatpush1.msra.mxu0 %v7263
      %7400 = vmatprep.subr.mxu0 %v7266
      %7401 = vmatpush1.msra.mxu0 %v7265
      %7402 = vmatprep.subr.mxu0 %v7268
      %7403 = vmatpush1.msra.mxu0 %v7267
      %7404 = vmatprep.subr.mxu0 %v7270
      %7405 = vmatpush1.msra.mxu0 %v7269
      %7406 = vmatprep.mubr.f32.mxu0 %v7188
      %7407 = vmatmul.mubr.f32.gmra.mrb[0].mxu0 %v7187
      %v7408 = vpop.f32.mrb[0].mxu0
      %v7409 = vadd.f32 0.0, %v7408
      %v7410 = vpop.f32.mrb[0].mxu0
      %v7411 = vadd.f32 0.0, %v7410
      %7412 = vmatprep.mubr.f32.mxu0 %v7192
      %7413 = vmatmul.mubr.f32.gmra.mrb[0].mxu0 %v7191
      %v7414 = vpop.f32.mrb[0].mxu0
      %v7415 = vadd.f32 0.0, %v7414
      %v7416 = vpop.f32.mrb[0].mxu0
      %v7417 = vadd.f32 0.0, %v7416
      %7418 = vmatprep.mubr.f32.mxu0 %v7196
      %7419 = vmatmul.mubr.f32.gmra.mrb[0].mxu0 %v7195
      %v7420 = vpop.f32.mrb[0].mxu0
      %v7421 = vadd.f32 0.0, %v7420
      %v7422 = vpop.f32.mrb[0].mxu0
      %v7423 = vadd.f32 0.0, %v7422
      %7424 = vmatprep.mubr.f32.mxu0 %v7200
      %7425 = vmatmul.mubr.f32.gmra.mrb[0].mxu0 %v7199
      %v7426 = vpop.f32.mrb[0].mxu0
      %v7427 = vadd.f32 0.0, %v7426
      %v7428 = vpop.f32.mrb[0].mxu0
      %v7429 = vadd.f32 0.0, %v7428
      %7430 = vmatprep.mubr.f32.mxu0 %v7204
      %7431 = vmatmul.mubr.f32.gmra.mrb[0].mxu0 %v7203
      %v7432 = vpop.f32.mrb[0].mxu0
      %v7433 = vadd.f32 0.0, %v7432
      %v7434 = vpop.f32.mrb[0].mxu0
      %v7435 = vadd.f32 0.0, %v7434
      %7436 = vdwg.mxu0
      %7437 = vmatprep.subr.mxu0 %v7272
      %7438 = vmatpush1.msra.mxu0 %v7271
      %7439 = vmatprep.subr.mxu0 %v7274
      %7440 = vmatpush1.msra.mxu0 %v7273
      %7441 = vmatprep.subr.mxu0 %v7276
      %7442 = vmatpush1.msra.mxu0 %v7275
      %7443 = vmatprep.subr.mxu0 %v7278
      %7444 = vmatpush1.msra.mxu0 %v7277
      %7445 = vmatprep.subr.mxu0 %v7280
      %7446 = vmatpush1.msra.mxu0 %v7279
      %7447 = vmatprep.subr.mxu0 %v7282
      %7448 = vmatpush1.msra.mxu0 %v7281
      %7449 = vmatprep.subr.mxu0 %v7284
      %7450 = vmatpush1.msra.mxu0 %v7283
      %7451 = vmatprep.subr.mxu0 %v7286
      %7452 = vmatpush1.msra.mxu0 %v7285
      %7453 = vmatprep.subr.mxu0 %v7288
      %7454 = vmatpush1.msra.mxu0 %v7287
      %7455 = vmatprep.subr.mxu0 %v7290
      %7456 = vmatpush1.msra.mxu0 %v7289
      %7457 = vmatprep.subr.mxu0 %v7292
      %7458 = vmatpush1.msra.mxu0 %v7291
      %7459 = vmatprep.subr.mxu0 %v7294
      %7460 = vmatpush1.msra.mxu0 %v7293
      %7461 = vmatprep.subr.mxu0 %v7296
      %7462 = vmatpush1.msra.mxu0 %v7295
      %7463 = vmatprep.subr.mxu0 %v7298
      %7464 = vmatpush1.msra.mxu0 %v7297
      %7465 = vmatprep.subr.mxu0 %v7300
      %7466 = vmatpush1.msra.mxu0 %v7299
      %7467 = vmatprep.subr.mxu0 %v7302
      %7468 = vmatpush1.msra.mxu0 %v7301
      %7469 = vmatprep.subr.mxu0 %v7304
      %7470 = vmatpush1.msra.mxu0 %v7303
      %7471 = vmatprep.subr.mxu0 %v7306
      %7472 = vmatpush1.msra.mxu0 %v7305
      %7473 = vmatprep.subr.mxu0 %v7308
      %7474 = vmatpush1.msra.mxu0 %v7307
      %7475 = vmatprep.subr.mxu0 %v7310
      %7476 = vmatpush1.msra.mxu0 %v7309
      %7477 = vmatprep.subr.mxu0 %v7312
      %7478 = vmatpush1.msra.mxu0 %v7311
      %7479 = vmatprep.subr.mxu0 %v7314
      %7480 = vmatpush1.msra.mxu0 %v7313
      %7481 = vmatprep.subr.mxu0 %v7316
      %7482 = vmatpush1.msra.mxu0 %v7315
      %7483 = vmatprep.subr.mxu0 %v7318
      %7484 = vmatpush1.msra.mxu0 %v7317
      %7485 = vmatprep.subr.mxu0 %v7320
      %7486 = vmatpush1.msra.mxu0 %v7319
      %7487 = vmatprep.subr.mxu0 %v7322
      %7488 = vmatpush1.msra.mxu0 %v7321
      %7489 = vmatprep.subr.mxu0 %v7324
      %7490 = vmatpush1.msra.mxu0 %v7323
      %7491 = vmatprep.subr.mxu0 %v7326
      %7492 = vmatpush1.msra.mxu0 %v7325
      %7493 = vmatprep.subr.mxu0 0.0
      %7494 = vmatpush1.msra.mxu0 0.0
      %7495 = vmatprep.subr.mxu0 0.0
      %7496 = vmatpush1.msra.mxu0 0.0
      %7497 = vmatprep.subr.mxu0 0.0
      %7498 = vmatpush1.msra.mxu0 0.0
      %7499 = vmatprep.subr.mxu0 0.0
      %7500 = vmatpush1.msra.mxu0 0.0
      %7501 = vmatprep.mubr.f32.mxu0 %v7328
      %7502 = vmatmul.mubr.f32.gmra.mrb[0].mxu0 %v7189
      %v7503 = vpop.f32.mrb[0].mxu0
      %v7504 = vadd.f32 %v7409, %v7503
      %v7505 = vpop.f32.mrb[0].mxu0
      %v7506 = vadd.f32 %v7411, %v7505
      %7507 = vmatprep.mubr.f32.mxu0 %v7331
      %7508 = vmatmul.mubr.f32.gmra.mrb[0].mxu0 %v7193
      %v7509 = vpop.f32.mrb[0].mxu0
      %v7510 = vadd.f32 %v7415, %v7509
      %v7511 = vpop.f32.mrb[0].mxu0
      %v7512 = vadd.f32 %v7417, %v7511
      %7513 = vmatprep.mubr.f32.mxu0 %v7334
      %7514 = vmatmul.mubr.f32.gmra.mrb[0].mxu0 %v7197
      %v7515 = vpop.f32.mrb[0].mxu0
      %v7516 = vadd.f32 %v7421, %v7515
      %v7517 = vpop.f32.mrb[0].mxu0
      %v7518 = vadd.f32 %v7423, %v7517
      %7519 = vmatprep.mubr.f32.mxu0 %v7337
      %7520 = vmatmul.mubr.f32.gmra.mrb[0].mxu0 %v7201
      %v7521 = vpop.f32.mrb[0].mxu0
      %v7522 = vadd.f32 %v7427, %v7521
      %v7523 = vpop.f32.mrb[0].mxu0
      %v7524 = vadd.f32 %v7429, %v7523
      %7525 = vmatprep.mubr.f32.mxu0 %v7340
      %7526 = vmatmul.mubr.f32.gmra.mrb[0].mxu0 %v7205
      %v7527 = vpop.f32.mrb[0].mxu0
      %v7528 = vadd.f32 %v7433, %v7527
      %v7529 = vpop.f32.mrb[0].mxu0
      %v7530 = vadd.f32 %v7435, %v7529
      %7531 = vdwg.mxu0
      %v7532 = vld [vmem:[%s9] sm:$0xff]
      %v7533 = vld [vmem:[%s9 + $0x8] sm:$0xff]
      %v7534 = vld [vmem:[%s12] sm:$0x3]
      %v7536 = vlaneseq
      %v7537 = vshrl.u32 %v7536, 7
      %v7538 = vsub.s32 0, %v7537
      %v7539 = vrot.slane %v7534, %v7538
      %v7540 = vlaneseq
      %v7541 = vshrl.u32 %v7540, 7
      %v7542 = vsub.s32 1, %v7541
      %v7543 = vrot.slane %v7534, %v7542
      %vm7546 = vcmask 269312
      %v7548 = vsel %vm7546, %v7532, 0
      %v7551 = vsel %vm7546, %v7533, 0
      %v7554 = vsel %vm5819, %v7528, 0
      %v7557 = vsel %vm5819, %v7530, 0
      %7559 = vmatprep.subr.mxu0 %v7506
      %7560 = vmatpush1.msra.mxu0 %v7504
      %7561 = vmatprep.subr.mxu0 %v7512
      %7562 = vmatpush1.msra.mxu0 %v7510
      %7563 = vmatprep.subr.mxu0 %v7518
      %7564 = vmatpush1.msra.mxu0 %v7516
      %7565 = vmatprep.subr.mxu0 %v7524
      %7566 = vmatpush1.msra.mxu0 %v7522
      %7567 = vmatprep.subr.mxu0 %v7557
      %7568 = vmatpush1.msra.mxu0 %v7554
      %7569 = vmatprep.subr.mxu0 0.0
      %7570 = vmatpush1.msra.mxu0 0.0
      %7571 = vmatprep.subr.mxu0 0.0
      %7572 = vmatpush1.msra.mxu0 0.0
      %7573 = vmatprep.subr.mxu0 0.0
      %7574 = vmatpush1.msra.mxu0 0.0
      %7575 = vmatprep.subr.mxu0 0.0
      %7576 = vmatpush1.msra.mxu0 0.0
      %7577 = vmatprep.subr.mxu0 0.0
      %7578 = vmatpush1.msra.mxu0 0.0
      %7579 = vmatprep.subr.mxu0 0.0
      %7580 = vmatpush1.msra.mxu0 0.0
      %7581 = vmatprep.subr.mxu0 0.0
      %7582 = vmatpush1.msra.mxu0 0.0
      %7583 = vmatprep.subr.mxu0 0.0
      %7584 = vmatpush1.msra.mxu0 0.0
      %7585 = vmatprep.subr.mxu0 0.0
      %7586 = vmatpush1.msra.mxu0 0.0
      %7587 = vmatprep.subr.mxu0 0.0
      %7588 = vmatpush1.msra.mxu0 0.0
      %7589 = vmatprep.subr.mxu0 0.0
      %7590 = vmatpush1.msra.mxu0 0.0
      %7591 = vmatprep.subr.mxu0 0.0
      %7592 = vmatpush1.msra.mxu0 0.0
      %7593 = vmatprep.subr.mxu0 0.0
      %7594 = vmatpush1.msra.mxu0 0.0
      %7595 = vmatprep.subr.mxu0 0.0
      %7596 = vmatpush1.msra.mxu0 0.0
      %7597 = vmatprep.subr.mxu0 0.0
      %7598 = vmatpush1.msra.mxu0 0.0
      %7599 = vmatprep.subr.mxu0 0.0
      %7600 = vmatpush1.msra.mxu0 0.0
      %7601 = vmatprep.subr.mxu0 0.0
      %7602 = vmatpush1.msra.mxu0 0.0
      %7603 = vmatprep.subr.mxu0 0.0
      %7604 = vmatpush1.msra.mxu0 0.0
      %7605 = vmatprep.subr.mxu0 0.0
      %7606 = vmatpush1.msra.mxu0 0.0
      %7607 = vmatprep.subr.mxu0 0.0
      %7608 = vmatpush1.msra.mxu0 0.0
      %7609 = vmatprep.subr.mxu0 0.0
      %7610 = vmatpush1.msra.mxu0 0.0
      %7611 = vmatprep.subr.mxu0 0.0
      %7612 = vmatpush1.msra.mxu0 0.0
      %7613 = vmatprep.subr.mxu0 0.0
      %7614 = vmatpush1.msra.mxu0 0.0
      %7615 = vmatprep.subr.mxu0 0.0
      %7616 = vmatpush1.msra.mxu0 0.0
      %7617 = vmatprep.subr.mxu0 0.0
      %7618 = vmatpush1.msra.mxu0 0.0
      %7619 = vmatprep.subr.mxu0 0.0
      %7620 = vmatpush1.msra.mxu0 0.0
      %7621 = vmatprep.subr.mxu0 0.0
      %7622 = vmatpush1.msra.mxu0 0.0
      %7623 = vmatprep.mubr.f32.mxu0 0.0
      %7624 = vmatmul.mubr.f32.gmra.mrb[0].mxu0 %v7548
      %v7625 = vpop.f32.mrb[0].mxu0
      %v7626 = vadd.f32 %v7539, %v7625
      %v7627 = vpop.f32.mrb[0].mxu0
      %v7628 = vadd.f32 %v7543, %v7627
      %7629 = vmatprep.mubr.f32.mxu0 0.0
      %7630 = vmatmul.mubr.f32.gmra.mrb[0].mxu0 %v7551
      %v7631 = vpop.f32.mrb[0].mxu0
      %v7632 = vadd.f32 %v7539, %v7631
      %v7633 = vpop.f32.mrb[0].mxu0
      %v7634 = vadd.f32 %v7543, %v7633
      %7635 = vdwg.mxu0
      %7636 = vst [vmem:[%s447] sm:$0xff] %v7626
      %7637 = vst [vmem:[%s447 + $0x8] sm:$0xff] %v7628
      %7638 = vst [vmem:[%s447 + $0x10] sm:$0xff] %v7632
      %7639 = vst [vmem:[%s447 + $0x18] sm:$0xff] %v7634
      %s7640 = smul.u32 2, %s24
      %p7641 = scmp.lt.s32.totalorder %s7640, 3
      %s7642 = scalar_select %p7641, %s7640, 3
      %s7643 = smul.addr %s7642, 2
      %s7644 = smul.addr %s7643, 8
      %s7645 = scalar_lea.vmem %s13, %s7644
      // Predicated region
      $region73: #{net_forward.1} parent=71 // pred_check
        %p7646 = pneg %p320
      $region74: #{net_forward.1} parent=71 // pred_check_branch
        %7648 = sbr.rel (%p7646) target = $region76
      $region75: #{net_forward.1} parent=71 // pred_region
        %s7649 = smul.u32 2, %s24
      $region76: #{net_forward.1} parent=71 // pred_fallthru
        _
    $region72: #{net_forward.1} parent=5 // pred_fallthru
      _
    %p7650 = scmp.le.s32.totalorder 2, %s19
    // Predicated region
    $region77: #{net_forward.1} parent=5 // pred_check
      %p7651 = pneg %p7650
    $region78: #{net_forward.1} parent=5 // pred_check_branch
      %7653 = sbr.rel (%p7651) target = $region80
    $region79: #{net_forward.1} parent=5 // pred_region
      %s7654 = ssub.s32 %s19, 2
      // Predicated region
      $region81: #{net_forward.1} parent=79 // pred_check
        %p7655 = pneg %p326
      $region82: #{net_forward.1} parent=79 // pred_check_branch
        %7657 = sbr.rel (%p7655) target = $region84
      $region83: #{net_forward.1} parent=79 // pred_region
        %s7658 = smul.u32 2, %s25
        %p7659 = scmp.lt.s32.totalorder %s7658, 3
        %s7660 = scalar_select %p7659, %s7658, 3
        %s7661 = smul.addr %s7660, 2
        %s7662 = smul.addr %s7661, 8
        %s7663 = scalar_lea.vmem %s13, %s7662
      $region84: #{net_forward.1} parent=79 // pred_fallthru
        _
    $region80: #{net_forward.1} parent=5 // pred_fallthru
      _
  $region6: #{net_forward.1} parent=0 // loop_footer
    %s23 = sadd.s32 1, %s19
  $region7: #{net_forward.1} parent=0 // loop_footer_branch
    %18 = sbr.rel target = $region3
  $region8: #{net_forward.1} parent=0 // loop_exit
    _

</llo_original>
